<compile_context>
chip_gen: v6e
topology: v6e:2x2x1
jax: 0.10.0
libtpu: 0.0.40
codegen_flags: <defaults>
</compile_context>

<pallas_src>
import numpy as np
import jax
import jax.numpy as jnp
from jax.experimental import pallas as pl
from jax.experimental.pallas import tpu as pltpu

# ------------------------- configuration -------------------------
B = 2          # batch size
T = 8          # input sequence length
U = 6          # output sequence length
SX = 16        # |Sx|
SY = 12        # |Sy|
HE = 32        # num_encoder_hidden (per direction)
HD = 32        # num_decoder_hidden
KEY_DIM = 100  # fixed in the module
VALUE_DIM = 200
KPAD = 128     # lane-aligned zero-padding of KEY_DIM   (exact)
VPAD = 256     # lane-aligned zero-padding of VALUE_DIM (exact)
INV_SCALE = 1.0 / float(np.sqrt(KEY_DIM))

# ------------------- packed parameter buffer layout -------------------
# Every parameter lives as a (rows, cols) block in one (PBUF_ROWS, 256) f32
# buffer; row offsets are padded to multiples of 8 (sublane aligned).
PBUF_COLS = 256
PARAM_LAYOUT = [
    # name        rows        cols
    ('wih_bi',    SX,         6 * HE),   # [fwd r|z|n | bwd r|z|n] input weights
    ('bih_bi',    1,          6 * HE),
    ('whh_bi',    2 * HE,     6 * HE),   # block-diagonal bidirectional hidden weights
    ('bhh_bi',    1,          6 * HE),
    ('wk',        2 * HE,     KPAD),
    ('bk',        1,          KPAD),
    ('wq',        HD,         KPAD),
    ('bq',        1,          KPAD),
    ('wv',        2 * HE,     VPAD),
    ('bv',        1,          VPAD),
    ('wih_y',     SY,         3 * HD),
    ('bih_d',     1,          3 * HD),
    ('wih_c',     VPAD,       3 * HD),
    ('whh_d',     HD,         3 * HD),
    ('bhh_d',     1,          3 * HD),
    ('wout',      HD,         SY),
    ('bout',      1,          SY),
    ('init',      1,          HD),
]


def _build_offsets():
    offsets, off = {}, 0
    for name, r, c in PARAM_LAYOUT:
        offsets[name] = (off, r, c)
        off += -(-r // 8) * 8          # round rows up to a multiple of 8
    return offsets, off


OFFSETS, PBUF_ROWS = _build_offsets()


# ------------------------- fused kernel -------------------------
def fused_kernel(x_ref, y_ref, p_ref, out_ref):
    f32 = jnp.float32

    def P(name):
        off, r, c = OFFSETS[name]
        return p_ref[off:off + r, :][:, :c]      # static slices, zero-cost view

    x = x_ref[...]                               # (B, T, SX)
    y = y_ref[...]                               # (B, U, SY)

    def gru_gates(gi, gh, h):
        # gi, gh: (N, 3H) in PyTorch r|z|n order; h: (N, H)
        H = h.shape[1]
        r = jax.nn.sigmoid(gi[:, :H] + gh[:, :H])
        z = jax.nn.sigmoid(gi[:, H:2 * H] + gh[:, H:2 * H])
        n = jnp.tanh(gi[:, 2 * H:] + r * gh[:, 2 * H:])
        return (1.0 - z) * n + z * h

    # ------------- encoder: fused bidirectional GRU recurrence -------------
    # Input projection for BOTH directions and ALL gates: one matmul.
    x_flat = x.reshape(B * T, SX)
    gi_all = (jnp.dot(x_flat, P('wih_bi'), preferred_element_type=f32)
              + P('bih_bi')).reshape(B, T, 6 * HE)

    whh_bi = P('whh_bi')                         # (2HE, 6HE) block-diagonal
    bhh_bi = jnp.broadcast_to(P('bhh_bi'), (B, 6 * HE))

    h_cat = jnp.zeros((B, 2 * HE), f32)          # [h_fwd | h_bwd]
    outs_f = [None] * T
    outs_b = [None] * T
    for t in range(T):                           # both directions per iteration
        gh = jnp.dot(h_cat, whh_bi, preferred_element_type=f32) + bhh_bi  # (B, 192)
        h_f = gru_gates(gi_all[:, t, :3 * HE],        gh[:, :3 * HE], h_cat[:, :HE])
        h_b = gru_gates(gi_all[:, T - 1 - t, 3 * HE:], gh[:, 3 * HE:], h_cat[:, HE:])
        outs_f[t] = h_f
        outs_b[T - 1 - t] = h_b
        h_cat = jnp.concatenate([h_f, h_b], axis=1)

    # PyTorch bidirectional GRU output layout: [forward | backward] per step.
    enc = jnp.concatenate(
        [jnp.stack(outs_f, axis=1), jnp.stack(outs_b, axis=1)], axis=-1)
    enc_flat = enc.reshape(B * T, 2 * HE)

    # -------- attention keys / values: computed ONCE, keys pre-transposed --------
    keys = (jnp.dot(enc_flat, P('wk'), preferred_element_type=f32)
            + P('bk')).reshape(B, T, KPAD)
    keys_t = jnp.stack([keys[b].T for b in range(B)], axis=0)       # (B, KPAD, T)
    values = (jnp.dot(enc_flat, P('wv'), preferred_element_type=f32)
              + P('bv')).reshape(B, T, VPAD)

    # -------- hoisted teacher-forced input projection (y_prev is known) --------
    y_shift = jnp.concatenate([jnp.zeros((B, 1, SY), f32), y[:, :U - 1, :]], axis=1)
    gi_y_all = (jnp.dot(y_shift.reshape(B * U, SY), P('wih_y'),
                        preferred_element_type=f32)
                + P('bih_d')).reshape(B, U, 3 * HD)

    wq = P('wq')
    wih_c = P('wih_c')
    whh_d = P('whh_d')
    bq_b = jnp.broadcast_to(P('bq'), (B, KPAD))          # pre-broadcast once
    bhh_db = jnp.broadcast_to(P('bhh_d'), (B, 3 * HD))   # pre-broadcast once

    # ------- decoder: attention + GRUCell recurrence, unrolled over U -------
    h = jnp.broadcast_to(P('init'), (B, HD))
    hs = [None] * U
    for u in range(U):
        # attention: straight MXU matmuls, no per-step transpose
        q = (jnp.dot(h, wq, preferred_element_type=f32) + bq_b)[:, None, :]   # (B,1,KPAD)
        scores = jnp.einsum('bqk,bkt->bqt', q, keys_t,
                            preferred_element_type=f32)[:, 0, :] * INV_SCALE   # (B,T)
        m = jnp.max(scores, axis=1, keepdims=True)
        e = jnp.exp(scores - m)
        att = e / jnp.sum(e, axis=1, keepdims=True)                            # softmax over T
        context = jnp.einsum('bqt,btv->bqv', att[:, None, :], values,
                             preferred_element_type=f32)[:, 0, :]              # (B,VPAD)

        # GRUCell: only context / hidden terms are genuinely recurrent
        gi = gi_y_all[:, u, :] + jnp.dot(context, wih_c, preferred_element_type=f32)
        gh = jnp.dot(h, whh_d, preferred_element_type=f32) + bhh_db
        h = gru_gates(gi, gh, h)
        hs[u] = h

    # -------- hoisted output projection + log-softmax + score accumulation --------
    h_all = jnp.stack(hs, axis=1).reshape(B * U, HD)
    logits = (jnp.dot(h_all, P('wout'), preferred_element_type=f32)
              + P('bout')).reshape(B, U, SY)
    lmax = jnp.max(logits, axis=2, keepdims=True)
    lse = jnp.log(jnp.sum(jnp.exp(logits - lmax), axis=2, keepdims=True)) + lmax
    per_step = jnp.sum((logits - lse) * y, axis=2)                 # (B, U)
    out_ref[...] = jnp.sum(per_step, axis=1, keepdims=True)        # (B, 1)


def _full_spec(shape):
    nd = len(shape)
    return pl.BlockSpec(shape, lambda i, nd=nd: (0,) * nd)


def encoder_decoder_forward(x, y, pbuf):
    out = pl.pallas_call(
        fused_kernel,
        grid=(1,),
        in_specs=[_full_spec(x.shape), _full_spec(y.shape), _full_spec(pbuf.shape)],
        out_specs=_full_spec((B, 1)),
        out_shape=jax.ShapeDtypeStruct((B, 1), jnp.float32),
        compiler_params=pltpu.CompilerParams(dimension_semantics=("arbitrary",)),
    )(x, y, pbuf)
    return out[:, 0]


# ------------------------- parameters (deterministic) -------------------------
def init_params(key):
    keys = iter(jax.random.split(key, 24))

    def uni(shape, scale=0.1):
        return jax.random.uniform(next(keys), shape, jnp.float32, -scale, scale)

    p = {}
    # encoder: 1-layer bidirectional GRU (weights stored transposed, r|z|n order)
    p['enc_wih_f'] = uni((SX, 3 * HE)); p['enc_whh_f'] = uni((HE, 3 * HE))
    p['enc_bih_f'] = uni((1, 3 * HE));  p['enc_bhh_f'] = uni((1, 3 * HE))
    p['enc_wih_b'] = uni((SX, 3 * HE)); p['enc_whh_b'] = uni((HE, 3 * HE))
    p['enc_bih_b'] = uni((1, 3 * HE));  p['enc_bhh_b'] = uni((1, 3 * HE))
    # attention: Linear(2*HE -> 100), Linear(HD -> 100), Linear(2*HE -> 200)
    p['att_wk'] = uni((2 * HE, KEY_DIM));   p['att_bk'] = uni((1, KEY_DIM))
    p['att_wq'] = uni((HD, KEY_DIM));       p['att_bq'] = uni((1, KEY_DIM))
    p['att_wv'] = uni((2 * HE, VALUE_DIM)); p['att_bv'] = uni((1, VALUE_DIM))
    # decoder GRUCell, input size = SY + VALUE_DIM (split into y / context parts)
    p['dec_wih_y'] = uni((SY, 3 * HD)); p['dec_wih_c'] = uni((VALUE_DIM, 3 * HD))
    p['dec_whh'] = uni((HD, 3 * HD))
    p['dec_bih'] = uni((1, 3 * HD)); p['dec_bhh'] = uni((1, 3 * HD))
    # decoder output projection
    p['out_w'] = uni((HD, SY)); p['out_b'] = uni((1, SY))
    # decoder_init_state parameter (num_decoder_layers=1, HD)
    p['dec_init'] = jax.random.normal(next(keys), (1, HD), jnp.float32)
    return p


def prepare_kernel_params(p):
    """Pack all parameters into one contiguous (PBUF_ROWS, 256) f32 buffer.
    Zero-padding of KEY_DIM/VALUE_DIM and the block-diagonal bidirectional
    hidden weight are algebraically exact."""
    def npf(a):
        return np.asarray(a, dtype=np.float32)

    def pad_cols(w, n):
        w = npf(w)
        return np.pad(w, ((0, 0), (0, n - w.shape[1])))

    blocks = {}
    blocks['wih_bi'] = np.concatenate([npf(p['enc_wih_f']), npf(p['enc_wih_b'])], axis=1)
    blocks['bih_bi'] = np.concatenate([npf(p['enc_bih_f']), npf(p['enc_bih_b'])], axis=1)
    whh_bi = np.zeros((2 * HE, 6 * HE), np.float32)
    whh_bi[:HE, :3 * HE] = npf(p['enc_whh_f'])
    whh_bi[HE:, 3 * HE:] = npf(p['enc_whh_b'])
    blocks['whh_bi'] = whh_bi
    blocks['bhh_bi'] = np.concatenate([npf(p['enc_bhh_f']), npf(p['enc_bhh_b'])], axis=1)
    blocks['wk'] = pad_cols(p['att_wk'], KPAD); blocks['bk'] = pad_cols(p['att_bk'], KPAD)
    blocks['wq'] = pad_cols(p['att_wq'], KPAD); blocks['bq'] = pad_cols(p['att_bq'], KPAD)
    blocks['wv'] = pad_cols(p['att_wv'], VPAD); blocks['bv'] = pad_cols(p['att_bv'], VPAD)
    blocks['wih_y'] = npf(p['dec_wih_y'])
    blocks['bih_d'] = npf(p['dec_bih'])
    blocks['wih_c'] = np.pad(npf(p['dec_wih_c']), ((0, VPAD - VALUE_DIM), (0, 0)))
    blocks['whh_d'] = npf(p['dec_whh'])
    blocks['bhh_d'] = npf(p['dec_bhh'])
    blocks['wout'] = npf(p['out_w'])
    blocks['bout'] = npf(p['out_b'])
    blocks['init'] = npf(p['dec_init'])

    buf = np.zeros((PBUF_ROWS, PBUF_COLS), np.float32)
    for name, r, c in PARAM_LAYOUT:
        off = OFFSETS[name][0]
        buf[off:off + r, :c] = blocks[name]
    return jnp.asarray(buf)


# ------------------------- pure-JAX reference -------------------------
def reference_forward(x, y, p):
    def cell(xt, h, wih, whh, bih, bhh):
        H = h.shape[1]
        gi = xt @ wih + bih
        gh = h @ whh + bhh
        r = jax.nn.sigmoid(gi[:, :H] + gh[:, :H])
        z = jax.nn.sigmoid(gi[:, H:2 * H] + gh[:, H:2 * H])
        n = jnp.tanh(gi[:, 2 * H:] + r * gh[:, 2 * H:])
        return (1.0 - z) * n + z * h

    h = jnp.zeros((B, HE)); outs_f = []
    for t in range(T):
        h = cell(x[:, t], h, p['enc_wih_f'], p['enc_whh_f'], p['enc_bih_f'], p['enc_bhh_f'])
        outs_f.append(h)
    h = jnp.zeros((B, HE)); outs_b = [None] * T
    for t in range(T - 1, -1, -1):
        h = cell(x[:, t], h, p['enc_wih_b'], p['enc_whh_b'], p['enc_bih_b'], p['enc_bhh_b'])
        outs_b[t] = h
    enc_out = jnp.concatenate([jnp.stack(outs_f, 1), jnp.stack(outs_b, 1)], axis=-1)

    hdec = jnp.broadcast_to(p['dec_init'], (B, HD))
    yprev = jnp.zeros((B, SY))
    logp = jnp.zeros((B,))
    scale = float(np.sqrt(KEY_DIM))
    for u in range(U):
        keys = enc_out @ p['att_wk'] + p['att_bk']
        values = enc_out @ p['att_wv'] + p['att_bv']
        query = hdec @ p['att_wq'] + p['att_bq']
        scores = jnp.sum(keys * query[:, None, :], axis=2) / scale
        att = jax.nn.softmax(scores, axis=1)
        context = jnp.sum(att[:, :, None] * values, axis=1)
        gi = yprev @ p['dec_wih_y'] + context @ p['dec_wih_c'] + p['dec_bih']
        gh = hdec @ p['dec_whh'] + p['dec_bhh']
        r = jax.nn.sigmoid(gi[:, :HD] + gh[:, :HD])
        z = jax.nn.sigmoid(gi[:, HD:2 * HD] + gh[:, HD:2 * HD])
        n = jnp.tanh(gi[:, 2 * HD:] + r * gh[:, 2 * HD:])
        hdec = (1.0 - z) * n + z * hdec
        logits = hdec @ p['out_w'] + p['out_b']
        logp = logp + jnp.sum(jax.nn.log_softmax(logits, axis=1) * y[:, u], axis=1)
        yprev = y[:, u]
    return logp


# ------------------------- main -------------------------
if __name__ == "__main__":
    key = jax.random.PRNGKey(0)
    pkey, xkey, ykey = jax.random.split(key, 3)
    params = init_params(pkey)
    pbuf = prepare_kernel_params(params)

    x_ids = jax.random.randint(xkey, (B, T), 0, SX)
    x = jax.nn.one_hot(x_ids, SX, dtype=jnp.float32)      # (B, T, |Sx|)
    y_ids = jax.random.randint(ykey, (B, U), 0, SY)
    y = jax.nn.one_hot(y_ids, SY, dtype=jnp.float32)      # (B, U, |Sy|)
    # x_lengths = [T] * B  (all full-length; EncoderRNN's pack/sort is identity)

    log_p_y_x = encoder_decoder_forward(x, y, pbuf)       # (B,) log p(y|x)
    log_p_y_x = jax.block_until_ready(log_p_y_x)

    ref = reference_forward(x, y, params)
    np.testing.assert_allclose(np.asarray(log_p_y_x), np.asarray(ref),
                               rtol=1e-4, atol=1e-4)
    print("KERNEL_OK")
</pallas_src>

<mosaic_0001>
module attributes {stable_mosaic.version = 11 : i64} {
  func.func @fused_kernel(%arg0: i32, %arg1: memref<2x8x16xf32, #tpu.memory_space<vmem>>, %arg2: memref<2x6x12xf32, #tpu.memory_space<vmem>>, %arg3: memref<648x256xf32, #tpu.memory_space<vmem>>, %arg4: memref<2x1xf32, #tpu.memory_space<vmem>>) attributes {dimension_semantics = [#tpu.dimension_semantics<arbitrary>], iteration_bounds = array<i64: 1>, scalar_prefetch = 0 : i64, scratch_operands = 0 : i64, tpu.core_type = #tpu.core_type<tc>, window_params = [{pipeline_mode = #tpu.pipeline_mode<synchronous>, transform_indices = @transform_0, window_bounds = array<i64: 2, 8, 16>}, {pipeline_mode = #tpu.pipeline_mode<synchronous>, transform_indices = @transform_1, window_bounds = array<i64: 2, 6, 12>}, {pipeline_mode = #tpu.pipeline_mode<synchronous>, transform_indices = @transform_2, window_bounds = array<i64: 648, 256>}, {pipeline_mode = #tpu.pipeline_mode<synchronous>, transform_indices = @transform_3, window_bounds = array<i64: 2, 1>}]} {
    %c0 = arith.constant 0 : index
    %c0_0 = arith.constant 0 : index
    %c0_1 = arith.constant 0 : index
    %0 = vector.load %arg1[%c0, %c0_0, %c0_1] : memref<2x8x16xf32, #tpu.memory_space<vmem>>, vector<2x8x16xf32>
    %c0_2 = arith.constant 0 : index
    %c0_3 = arith.constant 0 : index
    %c0_4 = arith.constant 0 : index
    %1 = vector.load %arg2[%c0_2, %c0_3, %c0_4] : memref<2x6x12xf32, #tpu.memory_space<vmem>>, vector<2x6x12xf32>
    %2 = vector.shape_cast %0 : vector<2x8x16xf32> to vector<16x16xf32>
    %c0_5 = arith.constant 0 : index
    %c0_6 = arith.constant 0 : index
    %3 = vector.load %arg3[%c0_5, %c0_6] : memref<648x256xf32, #tpu.memory_space<vmem>>, vector<16x256xf32>
    %4 = vector.extract_strided_slice %3 {offsets = [0, 0], sizes = [16, 192], strides = [1, 1]} : vector<16x256xf32> to vector<16x192xf32>
    %cst = arith.constant dense<0.000000e+00> : vector<16x192xf32>
    %5 = tpu.matmul %2, %4, %cst {dimension_numbers = #tpu.dot_dimension_numbers<[1], [0], [0], [1], [0, 0, 1, 1], [], []>} : vector<16x16xf32>, vector<16x192xf32>, vector<16x192xf32> -> vector<16x192xf32>
    %c16 = arith.constant 16 : index
    %c0_7 = arith.constant 0 : index
    %6 = vector.load %arg3[%c16, %c0_7] : memref<648x256xf32, #tpu.memory_space<vmem>>, vector<1x256xf32>
    %7 = vector.extract_strided_slice %6 {offsets = [0, 0], sizes = [1, 192], strides = [1, 1]} : vector<1x256xf32> to vector<1x192xf32>
    %8 = vector.broadcast %7 : vector<1x192xf32> to vector<16x192xf32>
    %9 = arith.addf %5, %8 : vector<16x192xf32>
    %10 = vector.shape_cast %9 : vector<16x192xf32> to vector<2x8x192xf32>
    %c24 = arith.constant 24 : index
    %c0_8 = arith.constant 0 : index
    %11 = vector.load %arg3[%c24, %c0_8] : memref<648x256xf32, #tpu.memory_space<vmem>>, vector<64x256xf32>
    %12 = vector.extract_strided_slice %11 {offsets = [0, 0], sizes = [64, 192], strides = [1, 1]} : vector<64x256xf32> to vector<64x192xf32>
    %c88 = arith.constant 88 : index
    %c0_9 = arith.constant 0 : index
    %13 = vector.load %arg3[%c88, %c0_9] : memref<648x256xf32, #tpu.memory_space<vmem>>, vector<1x256xf32>
    %14 = vector.extract_strided_slice %13 {offsets = [0, 0], sizes = [1, 192], strides = [1, 1]} : vector<1x256xf32> to vector<1x192xf32>
    %15 = vector.shape_cast %14 : vector<1x192xf32> to vector<1x192xf32>
    %16 = vector.broadcast %15 : vector<1x192xf32> to vector<2x192xf32>
    %cst_10 = arith.constant 0.000000e+00 : f32
    %17 = vector.broadcast %cst_10 : f32 to vector<2x64xf32>
    %cst_11 = arith.constant dense<0.000000e+00> : vector<2x192xf32>
    %18 = tpu.matmul %17, %12, %cst_11 {dimension_numbers = #tpu.dot_dimension_numbers<[1], [0], [0], [1], [0, 0, 1, 1], [], []>} : vector<2x64xf32>, vector<64x192xf32>, vector<2x192xf32> -> vector<2x192xf32>
    %19 = arith.addf %18, %16 : vector<2x192xf32>
    %20 = vector.extract_strided_slice %10 {offsets = [0, 0, 0], sizes = [2, 1, 96], strides = [1, 1, 1]} : vector<2x8x192xf32> to vector<2x1x96xf32>
    %21 = vector.shape_cast %20 : vector<2x1x96xf32> to vector<2x96xf32>
    %22 = vector.extract_strided_slice %19 {offsets = [0, 0], sizes = [2, 96], strides = [1, 1]} : vector<2x192xf32> to vector<2x96xf32>
    %23 = vector.extract_strided_slice %17 {offsets = [0, 0], sizes = [2, 32], strides = [1, 1]} : vector<2x64xf32> to vector<2x32xf32>
    %24 = vector.extract_strided_slice %21 {offsets = [0, 0], sizes = [2, 32], strides = [1, 1]} : vector<2x96xf32> to vector<2x32xf32>
    %25 = vector.extract_strided_slice %22 {offsets = [0, 0], sizes = [2, 32], strides = [1, 1]} : vector<2x96xf32> to vector<2x32xf32>
    %26 = arith.addf %24, %25 : vector<2x32xf32>
    %27 = arith.negf %26 : vector<2x32xf32>
    %28 = math.exp %27 : vector<2x32xf32>
    %cst_12 = arith.constant 1.000000e+00 : f32
    %29 = vector.broadcast %cst_12 : f32 to vector<2x32xf32>
    %30 = arith.addf %29, %28 : vector<2x32xf32>
    %31 = arith.divf %29, %30 : vector<2x32xf32>
    %32 = vector.extract_strided_slice %21 {offsets = [0, 32], sizes = [2, 32], strides = [1, 1]} : vector<2x96xf32> to vector<2x32xf32>
    %33 = vector.extract_strided_slice %22 {offsets = [0, 32], sizes = [2, 32], strides = [1, 1]} : vector<2x96xf32> to vector<2x32xf32>
    %34 = arith.addf %32, %33 : vector<2x32xf32>
    %35 = arith.negf %34 : vector<2x32xf32>
    %36 = math.exp %35 : vector<2x32xf32>
    %cst_13 = arith.constant 1.000000e+00 : f32
    %37 = vector.broadcast %cst_13 : f32 to vector<2x32xf32>
    %38 = arith.addf %37, %36 : vector<2x32xf32>
    %39 = arith.divf %37, %38 : vector<2x32xf32>
    %40 = vector.extract_strided_slice %21 {offsets = [0, 64], sizes = [2, 32], strides = [1, 1]} : vector<2x96xf32> to vector<2x32xf32>
    %41 = vector.extract_strided_slice %22 {offsets = [0, 64], sizes = [2, 32], strides = [1, 1]} : vector<2x96xf32> to vector<2x32xf32>
    %42 = arith.mulf %31, %41 : vector<2x32xf32>
    %43 = arith.addf %40, %42 : vector<2x32xf32>
    %44 = math.tanh %43 : vector<2x32xf32>
    %cst_14 = arith.constant 1.000000e+00 : f32
    %45 = vector.broadcast %cst_14 : f32 to vector<2x32xf32>
    %46 = arith.subf %45, %39 : vector<2x32xf32>
    %47 = arith.mulf %46, %44 : vector<2x32xf32>
    %48 = arith.mulf %39, %23 : vector<2x32xf32>
    %49 = arith.addf %47, %48 : vector<2x32xf32>
    %50 = vector.extract_strided_slice %10 {offsets = [0, 7, 96], sizes = [2, 1, 96], strides = [1, 1, 1]} : vector<2x8x192xf32> to vector<2x1x96xf32>
    %51 = vector.shape_cast %50 : vector<2x1x96xf32> to vector<2x96xf32>
    %52 = vector.extract_strided_slice %19 {offsets = [0, 96], sizes = [2, 96], strides = [1, 1]} : vector<2x192xf32> to vector<2x96xf32>
    %53 = vector.extract_strided_slice %17 {offsets = [0, 32], sizes = [2, 32], strides = [1, 1]} : vector<2x64xf32> to vector<2x32xf32>
    %54 = vector.extract_strided_slice %51 {offsets = [0, 0], sizes = [2, 32], strides = [1, 1]} : vector<2x96xf32> to vector<2x32xf32>
    %55 = vector.extract_strided_slice %52 {offsets = [0, 0], sizes = [2, 32], strides = [1, 1]} : vector<2x96xf32> to vector<2x32xf32>
    %56 = arith.addf %54, %55 : vector<2x32xf32>
    %57 = arith.negf %56 : vector<2x32xf32>
    %58 = math.exp %57 : vector<2x32xf32>
    %cst_15 = arith.constant 1.000000e+00 : f32
    %59 = vector.broadcast %cst_15 : f32 to vector<2x32xf32>
    %60 = arith.addf %59, %58 : vector<2x32xf32>
    %61 = arith.divf %59, %60 : vector<2x32xf32>
    %62 = vector.extract_strided_slice %51 {offsets = [0, 32], sizes = [2, 32], strides = [1, 1]} : vector<2x96xf32> to vector<2x32xf32>
    %63 = vector.extract_strided_slice %52 {offsets = [0, 32], sizes = [2, 32], strides = [1, 1]} : vector<2x96xf32> to vector<2x32xf32>
    %64 = arith.addf %62, %63 : vector<2x32xf32>
    %65 = arith.negf %64 : vector<2x32xf32>
    %66 = math.exp %65 : vector<2x32xf32>
    %cst_16 = arith.constant 1.000000e+00 : f32
    %67 = vector.broadcast %cst_16 : f32 to vector<2x32xf32>
    %68 = arith.addf %67, %66 : vector<2x32xf32>
    %69 = arith.divf %67, %68 : vector<2x32xf32>
    %70 = vector.extract_strided_slice %51 {offsets = [0, 64], sizes = [2, 32], strides = [1, 1]} : vector<2x96xf32> to vector<2x32xf32>
    %71 = vector.extract_strided_slice %52 {offsets = [0, 64], sizes = [2, 32], strides = [1, 1]} : vector<2x96xf32> to vector<2x32xf32>
    %72 = arith.mulf %61, %71 : vector<2x32xf32>
    %73 = arith.addf %70, %72 : vector<2x32xf32>
    %74 = math.tanh %73 : vector<2x32xf32>
    %cst_17 = arith.constant 1.000000e+00 : f32
    %75 = vector.broadcast %cst_17 : f32 to vector<2x32xf32>
    %76 = arith.subf %75, %69 : vector<2x32xf32>
    %77 = arith.mulf %76, %74 : vector<2x32xf32>
    %78 = arith.mulf %69, %53 : vector<2x32xf32>
    %79 = arith.addf %77, %78 : vector<2x32xf32>
    %80 = tpu.concatenate %49, %79 in 1 : vector<2x32xf32>, vector<2x32xf32> -> vector<2x64xf32>
    %cst_18 = arith.constant dense<0.000000e+00> : vector<2x192xf32>
    %81 = tpu.matmul %80, %12, %cst_18 {dimension_numbers = #tpu.dot_dimension_numbers<[1], [0], [0], [1], [0, 0, 1, 1], [], []>} : vector<2x64xf32>, vector<64x192xf32>, vector<2x192xf32> -> vector<2x192xf32>
    %82 = arith.addf %81, %16 : vector<2x192xf32>
    %83 = vector.extract_strided_slice %10 {offsets = [0, 1, 0], sizes = [2, 1, 96], strides = [1, 1, 1]} : vector<2x8x192xf32> to vector<2x1x96xf32>
    %84 = vector.shape_cast %83 : vector<2x1x96xf32> to vector<2x96xf32>
    %85 = vector.extract_strided_slice %82 {offsets = [0, 0], sizes = [2, 96], strides = [1, 1]} : vector<2x192xf32> to vector<2x96xf32>
    %86 = vector.extract_strided_slice %80 {offsets = [0, 0], sizes = [2, 32], strides = [1, 1]} : vector<2x64xf32> to vector<2x32xf32>
    %87 = vector.extract_strided_slice %84 {offsets = [0, 0], sizes = [2, 32], strides = [1, 1]} : vector<2x96xf32> to vector<2x32xf32>
    %88 = vector.extract_strided_slice %85 {offsets = [0, 0], sizes = [2, 32], strides = [1, 1]} : vector<2x96xf32> to vector<2x32xf32>
    %89 = arith.addf %87, %88 : vector<2x32xf32>
    %90 = arith.negf %89 : vector<2x32xf32>
    %91 = math.exp %90 : vector<2x32xf32>
    %cst_19 = arith.constant 1.000000e+00 : f32
    %92 = vector.broadcast %cst_19 : f32 to vector<2x32xf32>
    %93 = arith.addf %92, %91 : vector<2x32xf32>
    %94 = arith.divf %92, %93 : vector<2x32xf32>
    %95 = vector.extract_strided_slice %84 {offsets = [0, 32], sizes = [2, 32], strides = [1, 1]} : vector<2x96xf32> to vector<2x32xf32>
    %96 = vector.extract_strided_slice %85 {offsets = [0, 32], sizes = [2, 32], strides = [1, 1]} : vector<2x96xf32> to vector<2x32xf32>
    %97 = arith.addf %95, %96 : vector<2x32xf32>
    %98 = arith.negf %97 : vector<2x32xf32>
    %99 = math.exp %98 : vector<2x32xf32>
    %cst_20 = arith.constant 1.000000e+00 : f32
    %100 = vector.broadcast %cst_20 : f32 to vector<2x32xf32>
    %101 = arith.addf %100, %99 : vector<2x32xf32>
    %102 = arith.divf %100, %101 : vector<2x32xf32>
    %103 = vector.extract_strided_slice %84 {offsets = [0, 64], sizes = [2, 32], strides = [1, 1]} : vector<2x96xf32> to vector<2x32xf32>
    %104 = vector.extract_strided_slice %85 {offsets = [0, 64], sizes = [2, 32], strides = [1, 1]} : vector<2x96xf32> to vector<2x32xf32>
    %105 = arith.mulf %94, %104 : vector<2x32xf32>
    %106 = arith.addf %103, %105 : vector<2x32xf32>
    %107 = math.tanh %106 : vector<2x32xf32>
    %cst_21 = arith.constant 1.000000e+00 : f32
    %108 = vector.broadcast %cst_21 : f32 to vector<2x32xf32>
    %109 = arith.subf %108, %102 : vector<2x32xf32>
    %110 = arith.mulf %109, %107 : vector<2x32xf32>
    %111 = arith.mulf %102, %86 : vector<2x32xf32>
    %112 = arith.addf %110, %111 : vector<2x32xf32>
    %113 = vector.extract_strided_slice %10 {offsets = [0, 6, 96], sizes = [2, 1, 96], strides = [1, 1, 1]} : vector<2x8x192xf32> to vector<2x1x96xf32>
    %114 = vector.shape_cast %113 : vector<2x1x96xf32> to vector<2x96xf32>
    %115 = vector.extract_strided_slice %82 {offsets = [0, 96], sizes = [2, 96], strides = [1, 1]} : vector<2x192xf32> to vector<2x96xf32>
    %116 = vector.extract_strided_slice %80 {offsets = [0, 32], sizes = [2, 32], strides = [1, 1]} : vector<2x64xf32> to vector<2x32xf32>
    %117 = vector.extract_strided_slice %114 {offsets = [0, 0], sizes = [2, 32], strides = [1, 1]} : vector<2x96xf32> to vector<2x32xf32>
    %118 = vector.extract_strided_slice %115 {offsets = [0, 0], sizes = [2, 32], strides = [1, 1]} : vector<2x96xf32> to vector<2x32xf32>
    %119 = arith.addf %117, %118 : vector<2x32xf32>
    %120 = arith.negf %119 : vector<2x32xf32>
    %121 = math.exp %120 : vector<2x32xf32>
    %cst_22 = arith.constant 1.000000e+00 : f32
    %122 = vector.broadcast %cst_22 : f32 to vector<2x32xf32>
    %123 = arith.addf %122, %121 : vector<2x32xf32>
    %124 = arith.divf %122, %123 : vector<2x32xf32>
    %125 = vector.extract_strided_slice %114 {offsets = [0, 32], sizes = [2, 32], strides = [1, 1]} : vector<2x96xf32> to vector<2x32xf32>
    %126 = vector.extract_strided_slice %115 {offsets = [0, 32], sizes = [2, 32], strides = [1, 1]} : vector<2x96xf32> to vector<2x32xf32>
    %127 = arith.addf %125, %126 : vector<2x32xf32>
    %128 = arith.negf %127 : vector<2x32xf32>
    %129 = math.exp %128 : vector<2x32xf32>
    %cst_23 = arith.constant 1.000000e+00 : f32
    %130 = vector.broadcast %cst_23 : f32 to vector<2x32xf32>
    %131 = arith.addf %130, %129 : vector<2x32xf32>
    %132 = arith.divf %130, %131 : vector<2x32xf32>
    %133 = vector.extract_strided_slice %114 {offsets = [0, 64], sizes = [2, 32], strides = [1, 1]} : vector<2x96xf32> to vector<2x32xf32>
    %134 = vector.extract_strided_slice %115 {offsets = [0, 64], sizes = [2, 32], strides = [1, 1]} : vector<2x96xf32> to vector<2x32xf32>
    %135 = arith.mulf %124, %134 : vector<2x32xf32>
    %136 = arith.addf %133, %135 : vector<2x32xf32>
    %137 = math.tanh %136 : vector<2x32xf32>
    %cst_24 = arith.constant 1.000000e+00 : f32
    %138 = vector.broadcast %cst_24 : f32 to vector<2x32xf32>
    %139 = arith.subf %138, %132 : vector<2x32xf32>
    %140 = arith.mulf %139, %137 : vector<2x32xf32>
    %141 = arith.mulf %132, %116 : vector<2x32xf32>
    %142 = arith.addf %140, %141 : vector<2x32xf32>
    %143 = tpu.concatenate %112, %142 in 1 : vector<2x32xf32>, vector<2x32xf32> -> vector<2x64xf32>
    %cst_25 = arith.constant dense<0.000000e+00> : vector<2x192xf32>
    %144 = tpu.matmul %143, %12, %cst_25 {dimension_numbers = #tpu.dot_dimension_numbers<[1], [0], [0], [1], [0, 0, 1, 1], [], []>} : vector<2x64xf32>, vector<64x192xf32>, vector<2x192xf32> -> vector<2x192xf32>
    %145 = arith.addf %144, %16 : vector<2x192xf32>
    %146 = vector.extract_strided_slice %10 {offsets = [0, 2, 0], sizes = [2, 1, 96], strides = [1, 1, 1]} : vector<2x8x192xf32> to vector<2x1x96xf32>
    %147 = vector.shape_cast %146 : vector<2x1x96xf32> to vector<2x96xf32>
    %148 = vector.extract_strided_slice %145 {offsets = [0, 0], sizes = [2, 96], strides = [1, 1]} : vector<2x192xf32> to vector<2x96xf32>
    %149 = vector.extract_strided_slice %143 {offsets = [0, 0], sizes = [2, 32], strides = [1, 1]} : vector<2x64xf32> to vector<2x32xf32>
    %150 = vector.extract_strided_slice %147 {offsets = [0, 0], sizes = [2, 32], strides = [1, 1]} : vector<2x96xf32> to vector<2x32xf32>
    %151 = vector.extract_strided_slice %148 {offsets = [0, 0], sizes = [2, 32], strides = [1, 1]} : vector<2x96xf32> to vector<2x32xf32>
    %152 = arith.addf %150, %151 : vector<2x32xf32>
    %153 = arith.negf %152 : vector<2x32xf32>
    %154 = math.exp %153 : vector<2x32xf32>
    %cst_26 = arith.constant 1.000000e+00 : f32
    %155 = vector.broadcast %cst_26 : f32 to vector<2x32xf32>
    %156 = arith.addf %155, %154 : vector<2x32xf32>
    %157 = arith.divf %155, %156 : vector<2x32xf32>
    %158 = vector.extract_strided_slice %147 {offsets = [0, 32], sizes = [2, 32], strides = [1, 1]} : vector<2x96xf32> to vector<2x32xf32>
    %159 = vector.extract_strided_slice %148 {offsets = [0, 32], sizes = [2, 32], strides = [1, 1]} : vector<2x96xf32> to vector<2x32xf32>
    %160 = arith.addf %158, %159 : vector<2x32xf32>
    %161 = arith.negf %160 : vector<2x32xf32>
    %162 = math.exp %161 : vector<2x32xf32>
    %cst_27 = arith.constant 1.000000e+00 : f32
    %163 = vector.broadcast %cst_27 : f32 to vector<2x32xf32>
    %164 = arith.addf %163, %162 : vector<2x32xf32>
    %165 = arith.divf %163, %164 : vector<2x32xf32>
    %166 = vector.extract_strided_slice %147 {offsets = [0, 64], sizes = [2, 32], strides = [1, 1]} : vector<2x96xf32> to vector<2x32xf32>
    %167 = vector.extract_strided_slice %148 {offsets = [0, 64], sizes = [2, 32], strides = [1, 1]} : vector<2x96xf32> to vector<2x32xf32>
    %168 = arith.mulf %157, %167 : vector<2x32xf32>
    %169 = arith.addf %166, %168 : vector<2x32xf32>
    %170 = math.tanh %169 : vector<2x32xf32>
    %cst_28 = arith.constant 1.000000e+00 : f32
    %171 = vector.broadcast %cst_28 : f32 to vector<2x32xf32>
    %172 = arith.subf %171, %165 : vector<2x32xf32>
    %173 = arith.mulf %172, %170 : vector<2x32xf32>
    %174 = arith.mulf %165, %149 : vector<2x32xf32>
    %175 = arith.addf %173, %174 : vector<2x32xf32>
    %176 = vector.extract_strided_slice %10 {offsets = [0, 5, 96], sizes = [2, 1, 96], strides = [1, 1, 1]} : vector<2x8x192xf32> to vector<2x1x96xf32>
    %177 = vector.shape_cast %176 : vector<2x1x96xf32> to vector<2x96xf32>
    %178 = vector.extract_strided_slice %145 {offsets = [0, 96], sizes = [2, 96], strides = [1, 1]} : vector<2x192xf32> to vector<2x96xf32>
    %179 = vector.extract_strided_slice %143 {offsets = [0, 32], sizes = [2, 32], strides = [1, 1]} : vector<2x64xf32> to vector<2x32xf32>
    %180 = vector.extract_strided_slice %177 {offsets = [0, 0], sizes = [2, 32], strides = [1, 1]} : vector<2x96xf32> to vector<2x32xf32>
    %181 = vector.extract_strided_slice %178 {offsets = [0, 0], sizes = [2, 32], strides = [1, 1]} : vector<2x96xf32> to vector<2x32xf32>
    %182 = arith.addf %180, %181 : vector<2x32xf32>
    %183 = arith.negf %182 : vector<2x32xf32>
    %184 = math.exp %183 : vector<2x32xf32>
    %cst_29 = arith.constant 1.000000e+00 : f32
    %185 = vector.broadcast %cst_29 : f32 to vector<2x32xf32>
    %186 = arith.addf %185, %184 : vector<2x32xf32>
    %187 = arith.divf %185, %186 : vector<2x32xf32>
    %188 = vector.extract_strided_slice %177 {offsets = [0, 32], sizes = [2, 32], strides = [1, 1]} : vector<2x96xf32> to vector<2x32xf32>
    %189 = vector.extract_strided_slice %178 {offsets = [0, 32], sizes = [2, 32], strides = [1, 1]} : vector<2x96xf32> to vector<2x32xf32>
    %190 = arith.addf %188, %189 : vector<2x32xf32>
    %191 = arith.negf %190 : vector<2x32xf32>
    %192 = math.exp %191 : vector<2x32xf32>
    %cst_30 = arith.constant 1.000000e+00 : f32
    %193 = vector.broadcast %cst_30 : f32 to vector<2x32xf32>
    %194 = arith.addf %193, %192 : vector<2x32xf32>
    %195 = arith.divf %193, %194 : vector<2x32xf32>
    %196 = vector.extract_strided_slice %177 {offsets = [0, 64], sizes = [2, 32], strides = [1, 1]} : vector<2x96xf32> to vector<2x32xf32>
    %197 = vector.extract_strided_slice %178 {offsets = [0, 64], sizes = [2, 32], strides = [1, 1]} : vector<2x96xf32> to vector<2x32xf32>
    %198 = arith.mulf %187, %197 : vector<2x32xf32>
    %199 = arith.addf %196, %198 : vector<2x32xf32>
    %200 = math.tanh %199 : vector<2x32xf32>
    %cst_31 = arith.constant 1.000000e+00 : f32
    %201 = vector.broadcast %cst_31 : f32 to vector<2x32xf32>
    %202 = arith.subf %201, %195 : vector<2x32xf32>
    %203 = arith.mulf %202, %200 : vector<2x32xf32>
    %204 = arith.mulf %195, %179 : vector<2x32xf32>
    %205 = arith.addf %203, %204 : vector<2x32xf32>
    %206 = tpu.concatenate %175, %205 in 1 : vector<2x32xf32>, vector<2x32xf32> -> vector<2x64xf32>
    %cst_32 = arith.constant dense<0.000000e+00> : vector<2x192xf32>
    %207 = tpu.matmul %206, %12, %cst_32 {dimension_numbers = #tpu.dot_dimension_numbers<[1], [0], [0], [1], [0, 0, 1, 1], [], []>} : vector<2x64xf32>, vector<64x192xf32>, vector<2x192xf32> -> vector<2x192xf32>
    %208 = arith.addf %207, %16 : vector<2x192xf32>
    %209 = vector.extract_strided_slice %10 {offsets = [0, 3, 0], sizes = [2, 1, 96], strides = [1, 1, 1]} : vector<2x8x192xf32> to vector<2x1x96xf32>
    %210 = vector.shape_cast %209 : vector<2x1x96xf32> to vector<2x96xf32>
    %211 = vector.extract_strided_slice %208 {offsets = [0, 0], sizes = [2, 96], strides = [1, 1]} : vector<2x192xf32> to vector<2x96xf32>
    %212 = vector.extract_strided_slice %206 {offsets = [0, 0], sizes = [2, 32], strides = [1, 1]} : vector<2x64xf32> to vector<2x32xf32>
    %213 = vector.extract_strided_slice %210 {offsets = [0, 0], sizes = [2, 32], strides = [1, 1]} : vector<2x96xf32> to vector<2x32xf32>
    %214 = vector.extract_strided_slice %211 {offsets = [0, 0], sizes = [2, 32], strides = [1, 1]} : vector<2x96xf32> to vector<2x32xf32>
    %215 = arith.addf %213, %214 : vector<2x32xf32>
    %216 = arith.negf %215 : vector<2x32xf32>
    %217 = math.exp %216 : vector<2x32xf32>
    %cst_33 = arith.constant 1.000000e+00 : f32
    %218 = vector.broadcast %cst_33 : f32 to vector<2x32xf32>
    %219 = arith.addf %218, %217 : vector<2x32xf32>
    %220 = arith.divf %218, %219 : vector<2x32xf32>
    %221 = vector.extract_strided_slice %210 {offsets = [0, 32], sizes = [2, 32], strides = [1, 1]} : vector<2x96xf32> to vector<2x32xf32>
    %222 = vector.extract_strided_slice %211 {offsets = [0, 32], sizes = [2, 32], strides = [1, 1]} : vector<2x96xf32> to vector<2x32xf32>
    %223 = arith.addf %221, %222 : vector<2x32xf32>
    %224 = arith.negf %223 : vector<2x32xf32>
    %225 = math.exp %224 : vector<2x32xf32>
    %cst_34 = arith.constant 1.000000e+00 : f32
    %226 = vector.broadcast %cst_34 : f32 to vector<2x32xf32>
    %227 = arith.addf %226, %225 : vector<2x32xf32>
    %228 = arith.divf %226, %227 : vector<2x32xf32>
    %229 = vector.extract_strided_slice %210 {offsets = [0, 64], sizes = [2, 32], strides = [1, 1]} : vector<2x96xf32> to vector<2x32xf32>
    %230 = vector.extract_strided_slice %211 {offsets = [0, 64], sizes = [2, 32], strides = [1, 1]} : vector<2x96xf32> to vector<2x32xf32>
    %231 = arith.mulf %220, %230 : vector<2x32xf32>
    %232 = arith.addf %229, %231 : vector<2x32xf32>
    %233 = math.tanh %232 : vector<2x32xf32>
    %cst_35 = arith.constant 1.000000e+00 : f32
    %234 = vector.broadcast %cst_35 : f32 to vector<2x32xf32>
    %235 = arith.subf %234, %228 : vector<2x32xf32>
    %236 = arith.mulf %235, %233 : vector<2x32xf32>
    %237 = arith.mulf %228, %212 : vector<2x32xf32>
    %238 = arith.addf %236, %237 : vector<2x32xf32>
    %239 = vector.extract_strided_slice %10 {offsets = [0, 4, 96], sizes = [2, 1, 96], strides = [1, 1, 1]} : vector<2x8x192xf32> to vector<2x1x96xf32>
    %240 = vector.shape_cast %239 : vector<2x1x96xf32> to vector<2x96xf32>
    %241 = vector.extract_strided_slice %208 {offsets = [0, 96], sizes = [2, 96], strides = [1, 1]} : vector<2x192xf32> to vector<2x96xf32>
    %242 = vector.extract_strided_slice %206 {offsets = [0, 32], sizes = [2, 32], strides = [1, 1]} : vector<2x64xf32> to vector<2x32xf32>
    %243 = vector.extract_strided_slice %240 {offsets = [0, 0], sizes = [2, 32], strides = [1, 1]} : vector<2x96xf32> to vector<2x32xf32>
    %244 = vector.extract_strided_slice %241 {offsets = [0, 0], sizes = [2, 32], strides = [1, 1]} : vector<2x96xf32> to vector<2x32xf32>
    %245 = arith.addf %243, %244 : vector<2x32xf32>
    %246 = arith.negf %245 : vector<2x32xf32>
    %247 = math.exp %246 : vector<2x32xf32>
    %cst_36 = arith.constant 1.000000e+00 : f32
    %248 = vector.broadcast %cst_36 : f32 to vector<2x32xf32>
    %249 = arith.addf %248, %247 : vector<2x32xf32>
    %250 = arith.divf %248, %249 : vector<2x32xf32>
    %251 = vector.extract_strided_slice %240 {offsets = [0, 32], sizes = [2, 32], strides = [1, 1]} : vector<2x96xf32> to vector<2x32xf32>
    %252 = vector.extract_strided_slice %241 {offsets = [0, 32], sizes = [2, 32], strides = [1, 1]} : vector<2x96xf32> to vector<2x32xf32>
    %253 = arith.addf %251, %252 : vector<2x32xf32>
    %254 = arith.negf %253 : vector<2x32xf32>
    %255 = math.exp %254 : vector<2x32xf32>
    %cst_37 = arith.constant 1.000000e+00 : f32
    %256 = vector.broadcast %cst_37 : f32 to vector<2x32xf32>
    %257 = arith.addf %256, %255 : vector<2x32xf32>
    %258 = arith.divf %256, %257 : vector<2x32xf32>
    %259 = vector.extract_strided_slice %240 {offsets = [0, 64], sizes = [2, 32], strides = [1, 1]} : vector<2x96xf32> to vector<2x32xf32>
    %260 = vector.extract_strided_slice %241 {offsets = [0, 64], sizes = [2, 32], strides = [1, 1]} : vector<2x96xf32> to vector<2x32xf32>
    %261 = arith.mulf %250, %260 : vector<2x32xf32>
    %262 = arith.addf %259, %261 : vector<2x32xf32>
    %263 = math.tanh %262 : vector<2x32xf32>
    %cst_38 = arith.constant 1.000000e+00 : f32
    %264 = vector.broadcast %cst_38 : f32 to vector<2x32xf32>
    %265 = arith.subf %264, %258 : vector<2x32xf32>
    %266 = arith.mulf %265, %263 : vector<2x32xf32>
    %267 = arith.mulf %258, %242 : vector<2x32xf32>
    %268 = arith.addf %266, %267 : vector<2x32xf32>
    %269 = tpu.concatenate %238, %268 in 1 : vector<2x32xf32>, vector<2x32xf32> -> vector<2x64xf32>
    %cst_39 = arith.constant dense<0.000000e+00> : vector<2x192xf32>
    %270 = tpu.matmul %269, %12, %cst_39 {dimension_numbers = #tpu.dot_dimension_numbers<[1], [0], [0], [1], [0, 0, 1, 1], [], []>} : vector<2x64xf32>, vector<64x192xf32>, vector<2x192xf32> -> vector<2x192xf32>
    %271 = arith.addf %270, %16 : vector<2x192xf32>
    %272 = vector.extract_strided_slice %10 {offsets = [0, 4, 0], sizes = [2, 1, 96], strides = [1, 1, 1]} : vector<2x8x192xf32> to vector<2x1x96xf32>
    %273 = vector.shape_cast %272 : vector<2x1x96xf32> to vector<2x96xf32>
    %274 = vector.extract_strided_slice %271 {offsets = [0, 0], sizes = [2, 96], strides = [1, 1]} : vector<2x192xf32> to vector<2x96xf32>
    %275 = vector.extract_strided_slice %269 {offsets = [0, 0], sizes = [2, 32], strides = [1, 1]} : vector<2x64xf32> to vector<2x32xf32>
    %276 = vector.extract_strided_slice %273 {offsets = [0, 0], sizes = [2, 32], strides = [1, 1]} : vector<2x96xf32> to vector<2x32xf32>
    %277 = vector.extract_strided_slice %274 {offsets = [0, 0], sizes = [2, 32], strides = [1, 1]} : vector<2x96xf32> to vector<2x32xf32>
    %278 = arith.addf %276, %277 : vector<2x32xf32>
    %279 = arith.negf %278 : vector<2x32xf32>
    %280 = math.exp %279 : vector<2x32xf32>
    %cst_40 = arith.constant 1.000000e+00 : f32
    %281 = vector.broadcast %cst_40 : f32 to vector<2x32xf32>
    %282 = arith.addf %281, %280 : vector<2x32xf32>
    %283 = arith.divf %281, %282 : vector<2x32xf32>
    %284 = vector.extract_strided_slice %273 {offsets = [0, 32], sizes = [2, 32], strides = [1, 1]} : vector<2x96xf32> to vector<2x32xf32>
    %285 = vector.extract_strided_slice %274 {offsets = [0, 32], sizes = [2, 32], strides = [1, 1]} : vector<2x96xf32> to vector<2x32xf32>
    %286 = arith.addf %284, %285 : vector<2x32xf32>
    %287 = arith.negf %286 : vector<2x32xf32>
    %288 = math.exp %287 : vector<2x32xf32>
    %cst_41 = arith.constant 1.000000e+00 : f32
    %289 = vector.broadcast %cst_41 : f32 to vector<2x32xf32>
    %290 = arith.addf %289, %288 : vector<2x32xf32>
    %291 = arith.divf %289, %290 : vector<2x32xf32>
    %292 = vector.extract_strided_slice %273 {offsets = [0, 64], sizes = [2, 32], strides = [1, 1]} : vector<2x96xf32> to vector<2x32xf32>
    %293 = vector.extract_strided_slice %274 {offsets = [0, 64], sizes = [2, 32], strides = [1, 1]} : vector<2x96xf32> to vector<2x32xf32>
    %294 = arith.mulf %283, %293 : vector<2x32xf32>
    %295 = arith.addf %292, %294 : vector<2x32xf32>
    %296 = math.tanh %295 : vector<2x32xf32>
    %cst_42 = arith.constant 1.000000e+00 : f32
    %297 = vector.broadcast %cst_42 : f32 to vector<2x32xf32>
    %298 = arith.subf %297, %291 : vector<2x32xf32>
    %299 = arith.mulf %298, %296 : vector<2x32xf32>
    %300 = arith.mulf %291, %275 : vector<2x32xf32>
    %301 = arith.addf %299, %300 : vector<2x32xf32>
    %302 = vector.extract_strided_slice %10 {offsets = [0, 3, 96], sizes = [2, 1, 96], strides = [1, 1, 1]} : vector<2x8x192xf32> to vector<2x1x96xf32>
    %303 = vector.shape_cast %302 : vector<2x1x96xf32> to vector<2x96xf32>
    %304 = vector.extract_strided_slice %271 {offsets = [0, 96], sizes = [2, 96], strides = [1, 1]} : vector<2x192xf32> to vector<2x96xf32>
    %305 = vector.extract_strided_slice %269 {offsets = [0, 32], sizes = [2, 32], strides = [1, 1]} : vector<2x64xf32> to vector<2x32xf32>
    %306 = vector.extract_strided_slice %303 {offsets = [0, 0], sizes = [2, 32], strides = [1, 1]} : vector<2x96xf32> to vector<2x32xf32>
    %307 = vector.extract_strided_slice %304 {offsets = [0, 0], sizes = [2, 32], strides = [1, 1]} : vector<2x96xf32> to vector<2x32xf32>
    %308 = arith.addf %306, %307 : vector<2x32xf32>
    %309 = arith.negf %308 : vector<2x32xf32>
    %310 = math.exp %309 : vector<2x32xf32>
    %cst_43 = arith.constant 1.000000e+00 : f32
    %311 = vector.broadcast %cst_43 : f32 to vector<2x32xf32>
    %312 = arith.addf %311, %310 : vector<2x32xf32>
    %313 = arith.divf %311, %312 : vector<2x32xf32>
    %314 = vector.extract_strided_slice %303 {offsets = [0, 32], sizes = [2, 32], strides = [1, 1]} : vector<2x96xf32> to vector<2x32xf32>
    %315 = vector.extract_strided_slice %304 {offsets = [0, 32], sizes = [2, 32], strides = [1, 1]} : vector<2x96xf32> to vector<2x32xf32>
    %316 = arith.addf %314, %315 : vector<2x32xf32>
    %317 = arith.negf %316 : vector<2x32xf32>
    %318 = math.exp %317 : vector<2x32xf32>
    %cst_44 = arith.constant 1.000000e+00 : f32
    %319 = vector.broadcast %cst_44 : f32 to vector<2x32xf32>
    %320 = arith.addf %319, %318 : vector<2x32xf32>
    %321 = arith.divf %319, %320 : vector<2x32xf32>
    %322 = vector.extract_strided_slice %303 {offsets = [0, 64], sizes = [2, 32], strides = [1, 1]} : vector<2x96xf32> to vector<2x32xf32>
    %323 = vector.extract_strided_slice %304 {offsets = [0, 64], sizes = [2, 32], strides = [1, 1]} : vector<2x96xf32> to vector<2x32xf32>
    %324 = arith.mulf %313, %323 : vector<2x32xf32>
    %325 = arith.addf %322, %324 : vector<2x32xf32>
    %326 = math.tanh %325 : vector<2x32xf32>
    %cst_45 = arith.constant 1.000000e+00 : f32
    %327 = vector.broadcast %cst_45 : f32 to vector<2x32xf32>
    %328 = arith.subf %327, %321 : vector<2x32xf32>
    %329 = arith.mulf %328, %326 : vector<2x32xf32>
    %330 = arith.mulf %321, %305 : vector<2x32xf32>
    %331 = arith.addf %329, %330 : vector<2x32xf32>
    %332 = tpu.concatenate %301, %331 in 1 : vector<2x32xf32>, vector<2x32xf32> -> vector<2x64xf32>
    %cst_46 = arith.constant dense<0.000000e+00> : vector<2x192xf32>
    %333 = tpu.matmul %332, %12, %cst_46 {dimension_numbers = #tpu.dot_dimension_numbers<[1], [0], [0], [1], [0, 0, 1, 1], [], []>} : vector<2x64xf32>, vector<64x192xf32>, vector<2x192xf32> -> vector<2x192xf32>
    %334 = arith.addf %333, %16 : vector<2x192xf32>
    %335 = vector.extract_strided_slice %10 {offsets = [0, 5, 0], sizes = [2, 1, 96], strides = [1, 1, 1]} : vector<2x8x192xf32> to vector<2x1x96xf32>
    %336 = vector.shape_cast %335 : vector<2x1x96xf32> to vector<2x96xf32>
    %337 = vector.extract_strided_slice %334 {offsets = [0, 0], sizes = [2, 96], strides = [1, 1]} : vector<2x192xf32> to vector<2x96xf32>
    %338 = vector.extract_strided_slice %332 {offsets = [0, 0], sizes = [2, 32], strides = [1, 1]} : vector<2x64xf32> to vector<2x32xf32>
    %339 = vector.extract_strided_slice %336 {offsets = [0, 0], sizes = [2, 32], strides = [1, 1]} : vector<2x96xf32> to vector<2x32xf32>
    %340 = vector.extract_strided_slice %337 {offsets = [0, 0], sizes = [2, 32], strides = [1, 1]} : vector<2x96xf32> to vector<2x32xf32>
    %341 = arith.addf %339, %340 : vector<2x32xf32>
    %342 = arith.negf %341 : vector<2x32xf32>
    %343 = math.exp %342 : vector<2x32xf32>
    %cst_47 = arith.constant 1.000000e+00 : f32
    %344 = vector.broadcast %cst_47 : f32 to vector<2x32xf32>
    %345 = arith.addf %344, %343 : vector<2x32xf32>
    %346 = arith.divf %344, %345 : vector<2x32xf32>
    %347 = vector.extract_strided_slice %336 {offsets = [0, 32], sizes = [2, 32], strides = [1, 1]} : vector<2x96xf32> to vector<2x32xf32>
    %348 = vector.extract_strided_slice %337 {offsets = [0, 32], sizes = [2, 32], strides = [1, 1]} : vector<2x96xf32> to vector<2x32xf32>
    %349 = arith.addf %347, %348 : vector<2x32xf32>
    %350 = arith.negf %349 : vector<2x32xf32>
    %351 = math.exp %350 : vector<2x32xf32>
    %cst_48 = arith.constant 1.000000e+00 : f32
    %352 = vector.broadcast %cst_48 : f32 to vector<2x32xf32>
    %353 = arith.addf %352, %351 : vector<2x32xf32>
    %354 = arith.divf %352, %353 : vector<2x32xf32>
    %355 = vector.extract_strided_slice %336 {offsets = [0, 64], sizes = [2, 32], strides = [1, 1]} : vector<2x96xf32> to vector<2x32xf32>
    %356 = vector.extract_strided_slice %337 {offsets = [0, 64], sizes = [2, 32], strides = [1, 1]} : vector<2x96xf32> to vector<2x32xf32>
    %357 = arith.mulf %346, %356 : vector<2x32xf32>
    %358 = arith.addf %355, %357 : vector<2x32xf32>
    %359 = math.tanh %358 : vector<2x32xf32>
    %cst_49 = arith.constant 1.000000e+00 : f32
    %360 = vector.broadcast %cst_49 : f32 to vector<2x32xf32>
    %361 = arith.subf %360, %354 : vector<2x32xf32>
    %362 = arith.mulf %361, %359 : vector<2x32xf32>
    %363 = arith.mulf %354, %338 : vector<2x32xf32>
    %364 = arith.addf %362, %363 : vector<2x32xf32>
    %365 = vector.extract_strided_slice %10 {offsets = [0, 2, 96], sizes = [2, 1, 96], strides = [1, 1, 1]} : vector<2x8x192xf32> to vector<2x1x96xf32>
    %366 = vector.shape_cast %365 : vector<2x1x96xf32> to vector<2x96xf32>
    %367 = vector.extract_strided_slice %334 {offsets = [0, 96], sizes = [2, 96], strides = [1, 1]} : vector<2x192xf32> to vector<2x96xf32>
    %368 = vector.extract_strided_slice %332 {offsets = [0, 32], sizes = [2, 32], strides = [1, 1]} : vector<2x64xf32> to vector<2x32xf32>
    %369 = vector.extract_strided_slice %366 {offsets = [0, 0], sizes = [2, 32], strides = [1, 1]} : vector<2x96xf32> to vector<2x32xf32>
    %370 = vector.extract_strided_slice %367 {offsets = [0, 0], sizes = [2, 32], strides = [1, 1]} : vector<2x96xf32> to vector<2x32xf32>
    %371 = arith.addf %369, %370 : vector<2x32xf32>
    %372 = arith.negf %371 : vector<2x32xf32>
    %373 = math.exp %372 : vector<2x32xf32>
    %cst_50 = arith.constant 1.000000e+00 : f32
    %374 = vector.broadcast %cst_50 : f32 to vector<2x32xf32>
    %375 = arith.addf %374, %373 : vector<2x32xf32>
    %376 = arith.divf %374, %375 : vector<2x32xf32>
    %377 = vector.extract_strided_slice %366 {offsets = [0, 32], sizes = [2, 32], strides = [1, 1]} : vector<2x96xf32> to vector<2x32xf32>
    %378 = vector.extract_strided_slice %367 {offsets = [0, 32], sizes = [2, 32], strides = [1, 1]} : vector<2x96xf32> to vector<2x32xf32>
    %379 = arith.addf %377, %378 : vector<2x32xf32>
    %380 = arith.negf %379 : vector<2x32xf32>
    %381 = math.exp %380 : vector<2x32xf32>
    %cst_51 = arith.constant 1.000000e+00 : f32
    %382 = vector.broadcast %cst_51 : f32 to vector<2x32xf32>
    %383 = arith.addf %382, %381 : vector<2x32xf32>
    %384 = arith.divf %382, %383 : vector<2x32xf32>
    %385 = vector.extract_strided_slice %366 {offsets = [0, 64], sizes = [2, 32], strides = [1, 1]} : vector<2x96xf32> to vector<2x32xf32>
    %386 = vector.extract_strided_slice %367 {offsets = [0, 64], sizes = [2, 32], strides = [1, 1]} : vector<2x96xf32> to vector<2x32xf32>
    %387 = arith.mulf %376, %386 : vector<2x32xf32>
    %388 = arith.addf %385, %387 : vector<2x32xf32>
    %389 = math.tanh %388 : vector<2x32xf32>
    %cst_52 = arith.constant 1.000000e+00 : f32
    %390 = vector.broadcast %cst_52 : f32 to vector<2x32xf32>
    %391 = arith.subf %390, %384 : vector<2x32xf32>
    %392 = arith.mulf %391, %389 : vector<2x32xf32>
    %393 = arith.mulf %384, %368 : vector<2x32xf32>
    %394 = arith.addf %392, %393 : vector<2x32xf32>
    %395 = tpu.concatenate %364, %394 in 1 : vector<2x32xf32>, vector<2x32xf32> -> vector<2x64xf32>
    %cst_53 = arith.constant dense<0.000000e+00> : vector<2x192xf32>
    %396 = tpu.matmul %395, %12, %cst_53 {dimension_numbers = #tpu.dot_dimension_numbers<[1], [0], [0], [1], [0, 0, 1, 1], [], []>} : vector<2x64xf32>, vector<64x192xf32>, vector<2x192xf32> -> vector<2x192xf32>
    %397 = arith.addf %396, %16 : vector<2x192xf32>
    %398 = vector.extract_strided_slice %10 {offsets = [0, 6, 0], sizes = [2, 1, 96], strides = [1, 1, 1]} : vector<2x8x192xf32> to vector<2x1x96xf32>
    %399 = vector.shape_cast %398 : vector<2x1x96xf32> to vector<2x96xf32>
    %400 = vector.extract_strided_slice %397 {offsets = [0, 0], sizes = [2, 96], strides = [1, 1]} : vector<2x192xf32> to vector<2x96xf32>
    %401 = vector.extract_strided_slice %395 {offsets = [0, 0], sizes = [2, 32], strides = [1, 1]} : vector<2x64xf32> to vector<2x32xf32>
    %402 = vector.extract_strided_slice %399 {offsets = [0, 0], sizes = [2, 32], strides = [1, 1]} : vector<2x96xf32> to vector<2x32xf32>
    %403 = vector.extract_strided_slice %400 {offsets = [0, 0], sizes = [2, 32], strides = [1, 1]} : vector<2x96xf32> to vector<2x32xf32>
    %404 = arith.addf %402, %403 : vector<2x32xf32>
    %405 = arith.negf %404 : vector<2x32xf32>
    %406 = math.exp %405 : vector<2x32xf32>
    %cst_54 = arith.constant 1.000000e+00 : f32
    %407 = vector.broadcast %cst_54 : f32 to vector<2x32xf32>
    %408 = arith.addf %407, %406 : vector<2x32xf32>
    %409 = arith.divf %407, %408 : vector<2x32xf32>
    %410 = vector.extract_strided_slice %399 {offsets = [0, 32], sizes = [2, 32], strides = [1, 1]} : vector<2x96xf32> to vector<2x32xf32>
    %411 = vector.extract_strided_slice %400 {offsets = [0, 32], sizes = [2, 32], strides = [1, 1]} : vector<2x96xf32> to vector<2x32xf32>
    %412 = arith.addf %410, %411 : vector<2x32xf32>
    %413 = arith.negf %412 : vector<2x32xf32>
    %414 = math.exp %413 : vector<2x32xf32>
    %cst_55 = arith.constant 1.000000e+00 : f32
    %415 = vector.broadcast %cst_55 : f32 to vector<2x32xf32>
    %416 = arith.addf %415, %414 : vector<2x32xf32>
    %417 = arith.divf %415, %416 : vector<2x32xf32>
    %418 = vector.extract_strided_slice %399 {offsets = [0, 64], sizes = [2, 32], strides = [1, 1]} : vector<2x96xf32> to vector<2x32xf32>
    %419 = vector.extract_strided_slice %400 {offsets = [0, 64], sizes = [2, 32], strides = [1, 1]} : vector<2x96xf32> to vector<2x32xf32>
    %420 = arith.mulf %409, %419 : vector<2x32xf32>
    %421 = arith.addf %418, %420 : vector<2x32xf32>
    %422 = math.tanh %421 : vector<2x32xf32>
    %cst_56 = arith.constant 1.000000e+00 : f32
    %423 = vector.broadcast %cst_56 : f32 to vector<2x32xf32>
    %424 = arith.subf %423, %417 : vector<2x32xf32>
    %425 = arith.mulf %424, %422 : vector<2x32xf32>
    %426 = arith.mulf %417, %401 : vector<2x32xf32>
    %427 = arith.addf %425, %426 : vector<2x32xf32>
    %428 = vector.extract_strided_slice %10 {offsets = [0, 1, 96], sizes = [2, 1, 96], strides = [1, 1, 1]} : vector<2x8x192xf32> to vector<2x1x96xf32>
    %429 = vector.shape_cast %428 : vector<2x1x96xf32> to vector<2x96xf32>
    %430 = vector.extract_strided_slice %397 {offsets = [0, 96], sizes = [2, 96], strides = [1, 1]} : vector<2x192xf32> to vector<2x96xf32>
    %431 = vector.extract_strided_slice %395 {offsets = [0, 32], sizes = [2, 32], strides = [1, 1]} : vector<2x64xf32> to vector<2x32xf32>
    %432 = vector.extract_strided_slice %429 {offsets = [0, 0], sizes = [2, 32], strides = [1, 1]} : vector<2x96xf32> to vector<2x32xf32>
    %433 = vector.extract_strided_slice %430 {offsets = [0, 0], sizes = [2, 32], strides = [1, 1]} : vector<2x96xf32> to vector<2x32xf32>
    %434 = arith.addf %432, %433 : vector<2x32xf32>
    %435 = arith.negf %434 : vector<2x32xf32>
    %436 = math.exp %435 : vector<2x32xf32>
    %cst_57 = arith.constant 1.000000e+00 : f32
    %437 = vector.broadcast %cst_57 : f32 to vector<2x32xf32>
    %438 = arith.addf %437, %436 : vector<2x32xf32>
    %439 = arith.divf %437, %438 : vector<2x32xf32>
    %440 = vector.extract_strided_slice %429 {offsets = [0, 32], sizes = [2, 32], strides = [1, 1]} : vector<2x96xf32> to vector<2x32xf32>
    %441 = vector.extract_strided_slice %430 {offsets = [0, 32], sizes = [2, 32], strides = [1, 1]} : vector<2x96xf32> to vector<2x32xf32>
    %442 = arith.addf %440, %441 : vector<2x32xf32>
    %443 = arith.negf %442 : vector<2x32xf32>
    %444 = math.exp %443 : vector<2x32xf32>
    %cst_58 = arith.constant 1.000000e+00 : f32
    %445 = vector.broadcast %cst_58 : f32 to vector<2x32xf32>
    %446 = arith.addf %445, %444 : vector<2x32xf32>
    %447 = arith.divf %445, %446 : vector<2x32xf32>
    %448 = vector.extract_strided_slice %429 {offsets = [0, 64], sizes = [2, 32], strides = [1, 1]} : vector<2x96xf32> to vector<2x32xf32>
    %449 = vector.extract_strided_slice %430 {offsets = [0, 64], sizes = [2, 32], strides = [1, 1]} : vector<2x96xf32> to vector<2x32xf32>
    %450 = arith.mulf %439, %449 : vector<2x32xf32>
    %451 = arith.addf %448, %450 : vector<2x32xf32>
    %452 = math.tanh %451 : vector<2x32xf32>
    %cst_59 = arith.constant 1.000000e+00 : f32
    %453 = vector.broadcast %cst_59 : f32 to vector<2x32xf32>
    %454 = arith.subf %453, %447 : vector<2x32xf32>
    %455 = arith.mulf %454, %452 : vector<2x32xf32>
    %456 = arith.mulf %447, %431 : vector<2x32xf32>
    %457 = arith.addf %455, %456 : vector<2x32xf32>
    %458 = tpu.concatenate %427, %457 in 1 : vector<2x32xf32>, vector<2x32xf32> -> vector<2x64xf32>
    %cst_60 = arith.constant dense<0.000000e+00> : vector<2x192xf32>
    %459 = tpu.matmul %458, %12, %cst_60 {dimension_numbers = #tpu.dot_dimension_numbers<[1], [0], [0], [1], [0, 0, 1, 1], [], []>} : vector<2x64xf32>, vector<64x192xf32>, vector<2x192xf32> -> vector<2x192xf32>
    %460 = arith.addf %459, %16 : vector<2x192xf32>
    %461 = vector.extract_strided_slice %10 {offsets = [0, 7, 0], sizes = [2, 1, 96], strides = [1, 1, 1]} : vector<2x8x192xf32> to vector<2x1x96xf32>
    %462 = vector.shape_cast %461 : vector<2x1x96xf32> to vector<2x96xf32>
    %463 = vector.extract_strided_slice %460 {offsets = [0, 0], sizes = [2, 96], strides = [1, 1]} : vector<2x192xf32> to vector<2x96xf32>
    %464 = vector.extract_strided_slice %458 {offsets = [0, 0], sizes = [2, 32], strides = [1, 1]} : vector<2x64xf32> to vector<2x32xf32>
    %465 = vector.extract_strided_slice %462 {offsets = [0, 0], sizes = [2, 32], strides = [1, 1]} : vector<2x96xf32> to vector<2x32xf32>
    %466 = vector.extract_strided_slice %463 {offsets = [0, 0], sizes = [2, 32], strides = [1, 1]} : vector<2x96xf32> to vector<2x32xf32>
    %467 = arith.addf %465, %466 : vector<2x32xf32>
    %468 = arith.negf %467 : vector<2x32xf32>
    %469 = math.exp %468 : vector<2x32xf32>
    %cst_61 = arith.constant 1.000000e+00 : f32
    %470 = vector.broadcast %cst_61 : f32 to vector<2x32xf32>
    %471 = arith.addf %470, %469 : vector<2x32xf32>
    %472 = arith.divf %470, %471 : vector<2x32xf32>
    %473 = vector.extract_strided_slice %462 {offsets = [0, 32], sizes = [2, 32], strides = [1, 1]} : vector<2x96xf32> to vector<2x32xf32>
    %474 = vector.extract_strided_slice %463 {offsets = [0, 32], sizes = [2, 32], strides = [1, 1]} : vector<2x96xf32> to vector<2x32xf32>
    %475 = arith.addf %473, %474 : vector<2x32xf32>
    %476 = arith.negf %475 : vector<2x32xf32>
    %477 = math.exp %476 : vector<2x32xf32>
    %cst_62 = arith.constant 1.000000e+00 : f32
    %478 = vector.broadcast %cst_62 : f32 to vector<2x32xf32>
    %479 = arith.addf %478, %477 : vector<2x32xf32>
    %480 = arith.divf %478, %479 : vector<2x32xf32>
    %481 = vector.extract_strided_slice %462 {offsets = [0, 64], sizes = [2, 32], strides = [1, 1]} : vector<2x96xf32> to vector<2x32xf32>
    %482 = vector.extract_strided_slice %463 {offsets = [0, 64], sizes = [2, 32], strides = [1, 1]} : vector<2x96xf32> to vector<2x32xf32>
    %483 = arith.mulf %472, %482 : vector<2x32xf32>
    %484 = arith.addf %481, %483 : vector<2x32xf32>
    %485 = math.tanh %484 : vector<2x32xf32>
    %cst_63 = arith.constant 1.000000e+00 : f32
    %486 = vector.broadcast %cst_63 : f32 to vector<2x32xf32>
    %487 = arith.subf %486, %480 : vector<2x32xf32>
    %488 = arith.mulf %487, %485 : vector<2x32xf32>
    %489 = arith.mulf %480, %464 : vector<2x32xf32>
    %490 = arith.addf %488, %489 : vector<2x32xf32>
    %491 = vector.extract_strided_slice %10 {offsets = [0, 0, 96], sizes = [2, 1, 96], strides = [1, 1, 1]} : vector<2x8x192xf32> to vector<2x1x96xf32>
    %492 = vector.shape_cast %491 : vector<2x1x96xf32> to vector<2x96xf32>
    %493 = vector.extract_strided_slice %460 {offsets = [0, 96], sizes = [2, 96], strides = [1, 1]} : vector<2x192xf32> to vector<2x96xf32>
    %494 = vector.extract_strided_slice %458 {offsets = [0, 32], sizes = [2, 32], strides = [1, 1]} : vector<2x64xf32> to vector<2x32xf32>
    %495 = vector.extract_strided_slice %492 {offsets = [0, 0], sizes = [2, 32], strides = [1, 1]} : vector<2x96xf32> to vector<2x32xf32>
    %496 = vector.extract_strided_slice %493 {offsets = [0, 0], sizes = [2, 32], strides = [1, 1]} : vector<2x96xf32> to vector<2x32xf32>
    %497 = arith.addf %495, %496 : vector<2x32xf32>
    %498 = arith.negf %497 : vector<2x32xf32>
    %499 = math.exp %498 : vector<2x32xf32>
    %cst_64 = arith.constant 1.000000e+00 : f32
    %500 = vector.broadcast %cst_64 : f32 to vector<2x32xf32>
    %501 = arith.addf %500, %499 : vector<2x32xf32>
    %502 = arith.divf %500, %501 : vector<2x32xf32>
    %503 = vector.extract_strided_slice %492 {offsets = [0, 32], sizes = [2, 32], strides = [1, 1]} : vector<2x96xf32> to vector<2x32xf32>
    %504 = vector.extract_strided_slice %493 {offsets = [0, 32], sizes = [2, 32], strides = [1, 1]} : vector<2x96xf32> to vector<2x32xf32>
    %505 = arith.addf %503, %504 : vector<2x32xf32>
    %506 = arith.negf %505 : vector<2x32xf32>
    %507 = math.exp %506 : vector<2x32xf32>
    %cst_65 = arith.constant 1.000000e+00 : f32
    %508 = vector.broadcast %cst_65 : f32 to vector<2x32xf32>
    %509 = arith.addf %508, %507 : vector<2x32xf32>
    %510 = arith.divf %508, %509 : vector<2x32xf32>
    %511 = vector.extract_strided_slice %492 {offsets = [0, 64], sizes = [2, 32], strides = [1, 1]} : vector<2x96xf32> to vector<2x32xf32>
    %512 = vector.extract_strided_slice %493 {offsets = [0, 64], sizes = [2, 32], strides = [1, 1]} : vector<2x96xf32> to vector<2x32xf32>
    %513 = arith.mulf %502, %512 : vector<2x32xf32>
    %514 = arith.addf %511, %513 : vector<2x32xf32>
    %515 = math.tanh %514 : vector<2x32xf32>
    %cst_66 = arith.constant 1.000000e+00 : f32
    %516 = vector.broadcast %cst_66 : f32 to vector<2x32xf32>
    %517 = arith.subf %516, %510 : vector<2x32xf32>
    %518 = arith.mulf %517, %515 : vector<2x32xf32>
    %519 = arith.mulf %510, %494 : vector<2x32xf32>
    %520 = arith.addf %518, %519 : vector<2x32xf32>
    %521 = vector.shape_cast %49 : vector<2x32xf32> to vector<2x1x32xf32>
    %522 = vector.shape_cast %112 : vector<2x32xf32> to vector<2x1x32xf32>
    %523 = vector.shape_cast %175 : vector<2x32xf32> to vector<2x1x32xf32>
    %524 = vector.shape_cast %238 : vector<2x32xf32> to vector<2x1x32xf32>
    %525 = vector.shape_cast %301 : vector<2x32xf32> to vector<2x1x32xf32>
    %526 = vector.shape_cast %364 : vector<2x32xf32> to vector<2x1x32xf32>
    %527 = vector.shape_cast %427 : vector<2x32xf32> to vector<2x1x32xf32>
    %528 = vector.shape_cast %490 : vector<2x32xf32> to vector<2x1x32xf32>
    %529 = tpu.concatenate %521, %522, %523, %524, %525, %526, %527, %528 in 1 : vector<2x1x32xf32>, vector<2x1x32xf32>, vector<2x1x32xf32>, vector<2x1x32xf32>, vector<2x1x32xf32>, vector<2x1x32xf32>, vector<2x1x32xf32>, vector<2x1x32xf32> -> vector<2x8x32xf32>
    %530 = vector.shape_cast %520 : vector<2x32xf32> to vector<2x1x32xf32>
    %531 = vector.shape_cast %457 : vector<2x32xf32> to vector<2x1x32xf32>
    %532 = vector.shape_cast %394 : vector<2x32xf32> to vector<2x1x32xf32>
    %533 = vector.shape_cast %331 : vector<2x32xf32> to vector<2x1x32xf32>
    %534 = vector.shape_cast %268 : vector<2x32xf32> to vector<2x1x32xf32>
    %535 = vector.shape_cast %205 : vector<2x32xf32> to vector<2x1x32xf32>
    %536 = vector.shape_cast %142 : vector<2x32xf32> to vector<2x1x32xf32>
    %537 = vector.shape_cast %79 : vector<2x32xf32> to vector<2x1x32xf32>
    %538 = tpu.concatenate %530, %531, %532, %533, %534, %535, %536, %537 in 1 : vector<2x1x32xf32>, vector<2x1x32xf32>, vector<2x1x32xf32>, vector<2x1x32xf32>, vector<2x1x32xf32>, vector<2x1x32xf32>, vector<2x1x32xf32>, vector<2x1x32xf32> -> vector<2x8x32xf32>
    %539 = tpu.concatenate %529, %538 in 2 : vector<2x8x32xf32>, vector<2x8x32xf32> -> vector<2x8x64xf32>
    %540 = vector.shape_cast %539 : vector<2x8x64xf32> to vector<16x64xf32>
    %c96 = arith.constant 96 : index
    %c0_67 = arith.constant 0 : index
    %541 = vector.load %arg3[%c96, %c0_67] : memref<648x256xf32, #tpu.memory_space<vmem>>, vector<64x256xf32>
    %542 = vector.extract_strided_slice %541 {offsets = [0, 0], sizes = [64, 128], strides = [1, 1]} : vector<64x256xf32> to vector<64x128xf32>
    %cst_68 = arith.constant dense<0.000000e+00> : vector<16x128xf32>
    %543 = tpu.matmul %540, %542, %cst_68 {dimension_numbers = #tpu.dot_dimension_numbers<[1], [0], [0], [1], [0, 0, 1, 1], [], []>} : vector<16x64xf32>, vector<64x128xf32>, vector<16x128xf32> -> vector<16x128xf32>
    %c160 = arith.constant 160 : index
    %c0_69 = arith.constant 0 : index
    %544 = vector.load %arg3[%c160, %c0_69] : memref<648x256xf32, #tpu.memory_space<vmem>>, vector<1x256xf32>
    %545 = vector.extract_strided_slice %544 {offsets = [0, 0], sizes = [1, 128], strides = [1, 1]} : vector<1x256xf32> to vector<1x128xf32>
    %546 = vector.broadcast %545 : vector<1x128xf32> to vector<16x128xf32>
    %547 = arith.addf %543, %546 : vector<16x128xf32>
    %548 = vector.shape_cast %547 : vector<16x128xf32> to vector<2x8x128xf32>
    %549 = vector.extract_strided_slice %548 {offsets = [0, 0, 0], sizes = [1, 8, 128], strides = [1, 1, 1]} : vector<2x8x128xf32> to vector<1x8x128xf32>
    %550 = vector.shape_cast %549 : vector<1x8x128xf32> to vector<8x128xf32>
    %551 = tpu.transpose %550, [1, 0] : vector<8x128xf32> -> vector<128x8xf32>
    %552 = vector.extract_strided_slice %548 {offsets = [1, 0, 0], sizes = [1, 8, 128], strides = [1, 1, 1]} : vector<2x8x128xf32> to vector<1x8x128xf32>
    %553 = vector.shape_cast %552 : vector<1x8x128xf32> to vector<8x128xf32>
    %554 = tpu.transpose %553, [1, 0] : vector<8x128xf32> -> vector<128x8xf32>
    %555 = vector.shape_cast %551 : vector<128x8xf32> to vector<1x128x8xf32>
    %556 = vector.shape_cast %554 : vector<128x8xf32> to vector<1x128x8xf32>
    %557 = tpu.concatenate %555, %556 in 0 : vector<1x128x8xf32>, vector<1x128x8xf32> -> vector<2x128x8xf32>
    %c208 = arith.constant 208 : index
    %c0_70 = arith.constant 0 : index
    %558 = vector.load %arg3[%c208, %c0_70] : memref<648x256xf32, #tpu.memory_space<vmem>>, vector<64x256xf32>
    %cst_71 = arith.constant dense<0.000000e+00> : vector<16x256xf32>
    %559 = tpu.matmul %540, %558, %cst_71 {dimension_numbers = #tpu.dot_dimension_numbers<[1], [0], [0], [1], [0, 0, 1, 1], [], []>} : vector<16x64xf32>, vector<64x256xf32>, vector<16x256xf32> -> vector<16x256xf32>
    %c272 = arith.constant 272 : index
    %c0_72 = arith.constant 0 : index
    %560 = vector.load %arg3[%c272, %c0_72] : memref<648x256xf32, #tpu.memory_space<vmem>>, vector<1x256xf32>
    %561 = vector.broadcast %560 : vector<1x256xf32> to vector<16x256xf32>
    %562 = arith.addf %559, %561 : vector<16x256xf32>
    %563 = vector.shape_cast %562 : vector<16x256xf32> to vector<2x8x256xf32>
    %cst_73 = arith.constant 0.000000e+00 : f32
    %564 = vector.broadcast %cst_73 : f32 to vector<2x1x12xf32>
    %565 = vector.extract_strided_slice %1 {offsets = [0, 0, 0], sizes = [2, 5, 12], strides = [1, 1, 1]} : vector<2x6x12xf32> to vector<2x5x12xf32>
    %566 = tpu.concatenate %564, %565 in 1 : vector<2x1x12xf32>, vector<2x5x12xf32> -> vector<2x6x12xf32>
    %567 = vector.shape_cast %566 : vector<2x6x12xf32> to vector<12x12xf32>
    %c280 = arith.constant 280 : index
    %c0_74 = arith.constant 0 : index
    %568 = vector.load %arg3[%c280, %c0_74] : memref<648x256xf32, #tpu.memory_space<vmem>>, vector<12x256xf32>
    %569 = vector.extract_strided_slice %568 {offsets = [0, 0], sizes = [12, 96], strides = [1, 1]} : vector<12x256xf32> to vector<12x96xf32>
    %cst_75 = arith.constant dense<0.000000e+00> : vector<12x96xf32>
    %570 = tpu.matmul %567, %569, %cst_75 {dimension_numbers = #tpu.dot_dimension_numbers<[1], [0], [0], [1], [0, 0, 1, 1], [], []>} : vector<12x12xf32>, vector<12x96xf32>, vector<12x96xf32> -> vector<12x96xf32>
    %c296 = arith.constant 296 : index
    %c0_76 = arith.constant 0 : index
    %571 = vector.load %arg3[%c296, %c0_76] : memref<648x256xf32, #tpu.memory_space<vmem>>, vector<1x256xf32>
    %572 = vector.extract_strided_slice %571 {offsets = [0, 0], sizes = [1, 96], strides = [1, 1]} : vector<1x256xf32> to vector<1x96xf32>
    %573 = vector.broadcast %572 : vector<1x96xf32> to vector<12x96xf32>
    %574 = arith.addf %570, %573 : vector<12x96xf32>
    %575 = vector.shape_cast %574 : vector<12x96xf32> to vector<2x6x96xf32>
    %c168 = arith.constant 168 : index
    %c0_77 = arith.constant 0 : index
    %576 = vector.load %arg3[%c168, %c0_77] : memref<648x256xf32, #tpu.memory_space<vmem>>, vector<32x256xf32>
    %577 = vector.extract_strided_slice %576 {offsets = [0, 0], sizes = [32, 128], strides = [1, 1]} : vector<32x256xf32> to vector<32x128xf32>
    %c304 = arith.constant 304 : index
    %c0_78 = arith.constant 0 : index
    %578 = vector.load %arg3[%c304, %c0_78] : memref<648x256xf32, #tpu.memory_space<vmem>>, vector<256x256xf32>
    %579 = vector.extract_strided_slice %578 {offsets = [0, 0], sizes = [256, 96], strides = [1, 1]} : vector<256x256xf32> to vector<256x96xf32>
    %c560 = arith.constant 560 : index
    %c0_79 = arith.constant 0 : index
    %580 = vector.load %arg3[%c560, %c0_79] : memref<648x256xf32, #tpu.memory_space<vmem>>, vector<32x256xf32>
    %581 = vector.extract_strided_slice %580 {offsets = [0, 0], sizes = [32, 96], strides = [1, 1]} : vector<32x256xf32> to vector<32x96xf32>
    %c200 = arith.constant 200 : index
    %c0_80 = arith.constant 0 : index
    %582 = vector.load %arg3[%c200, %c0_80] : memref<648x256xf32, #tpu.memory_space<vmem>>, vector<1x256xf32>
    %583 = vector.extract_strided_slice %582 {offsets = [0, 0], sizes = [1, 128], strides = [1, 1]} : vector<1x256xf32> to vector<1x128xf32>
    %584 = vector.shape_cast %583 : vector<1x128xf32> to vector<1x128xf32>
    %585 = vector.broadcast %584 : vector<1x128xf32> to vector<2x128xf32>
    %c592 = arith.constant 592 : index
    %c0_81 = arith.constant 0 : index
    %586 = vector.load %arg3[%c592, %c0_81] : memref<648x256xf32, #tpu.memory_space<vmem>>, vector<1x256xf32>
    %587 = vector.extract_strided_slice %586 {offsets = [0, 0], sizes = [1, 96], strides = [1, 1]} : vector<1x256xf32> to vector<1x96xf32>
    %588 = vector.shape_cast %587 : vector<1x96xf32> to vector<1x96xf32>
    %589 = vector.broadcast %588 : vector<1x96xf32> to vector<2x96xf32>
    %c640 = arith.constant 640 : index
    %c0_82 = arith.constant 0 : index
    %590 = vector.load %arg3[%c640, %c0_82] : memref<648x256xf32, #tpu.memory_space<vmem>>, vector<1x256xf32>
    %591 = vector.extract_strided_slice %590 {offsets = [0, 0], sizes = [1, 32], strides = [1, 1]} : vector<1x256xf32> to vector<1x32xf32>
    %592 = vector.shape_cast %591 : vector<1x32xf32> to vector<1x32xf32>
    %593 = vector.broadcast %592 : vector<1x32xf32> to vector<2x32xf32>
    %cst_83 = arith.constant dense<0.000000e+00> : vector<2x128xf32>
    %594 = tpu.matmul %593, %577, %cst_83 {dimension_numbers = #tpu.dot_dimension_numbers<[1], [0], [0], [1], [0, 0, 1, 1], [], []>} : vector<2x32xf32>, vector<32x128xf32>, vector<2x128xf32> -> vector<2x128xf32>
    %595 = arith.addf %594, %585 : vector<2x128xf32>
    %596 = vector.shape_cast %595 : vector<2x128xf32> to vector<2x1x128xf32>
    "tpu.trace_start"() <{level = 10 : i32, message = "bqk,bkt->bqt"}> : () -> ()
    %cst_84 = arith.constant dense<0.000000e+00> : vector<2x1x8xf32>
    %597 = tpu.matmul %596, %557, %cst_84 {dimension_numbers = #tpu.dot_dimension_numbers<[2], [1], [1], [2], [0, 0, 0, 1, 1, 2], [0], [0]>} : vector<2x1x128xf32>, vector<2x128x8xf32>, vector<2x1x8xf32> -> vector<2x1x8xf32>
    "tpu.trace_stop"() : () -> ()
    %598 = vector.shape_cast %597 : vector<2x1x8xf32> to vector<2x8xf32>
    %cst_85 = arith.constant 1.000000e-01 : f32
    %599 = vector.broadcast %cst_85 : f32 to vector<2x8xf32>
    %600 = arith.mulf %598, %599 : vector<2x8xf32>
    %cst_86 = arith.constant dense<0xFF800000> : vector<2xf32>
    %601 = vector.multi_reduction <maximumf>, %600, %cst_86 [1] : vector<2x8xf32> to vector<2xf32>
    %602 = vector.shape_cast %601 : vector<2xf32> to vector<2x1xf32>
    %603 = vector.broadcast %602 : vector<2x1xf32> to vector<2x8xf32>
    %604 = arith.subf %600, %603 : vector<2x8xf32>
    %605 = math.exp %604 : vector<2x8xf32>
    %cst_87 = arith.constant dense<0.000000e+00> : vector<2xf32>
    %606 = vector.multi_reduction <add>, %605, %cst_87 [1] : vector<2x8xf32> to vector<2xf32>
    %607 = vector.shape_cast %606 : vector<2xf32> to vector<2x1xf32>
    %608 = vector.broadcast %607 : vector<2x1xf32> to vector<2x8xf32>
    %609 = arith.divf %605, %608 : vector<2x8xf32>
    %610 = vector.shape_cast %609 : vector<2x8xf32> to vector<2x1x8xf32>
    "tpu.trace_start"() <{level = 10 : i32, message = "bqt,btv->bqv"}> : () -> ()
    %cst_88 = arith.constant dense<0.000000e+00> : vector<2x1x256xf32>
    %611 = tpu.matmul %610, %563, %cst_88 {dimension_numbers = #tpu.dot_dimension_numbers<[2], [1], [1], [2], [0, 0, 0, 1, 1, 2], [0], [0]>} : vector<2x1x8xf32>, vector<2x8x256xf32>, vector<2x1x256xf32> -> vector<2x1x256xf32>
    "tpu.trace_stop"() : () -> ()
    %612 = vector.shape_cast %611 : vector<2x1x256xf32> to vector<2x256xf32>
    %613 = vector.extract_strided_slice %575 {offsets = [0, 0, 0], sizes = [2, 1, 96], strides = [1, 1, 1]} : vector<2x6x96xf32> to vector<2x1x96xf32>
    %614 = vector.shape_cast %613 : vector<2x1x96xf32> to vector<2x96xf32>
    %cst_89 = arith.constant dense<0.000000e+00> : vector<2x96xf32>
    %615 = tpu.matmul %612, %579, %cst_89 {dimension_numbers = #tpu.dot_dimension_numbers<[1], [0], [0], [1], [0, 0, 1, 1], [], []>} : vector<2x256xf32>, vector<256x96xf32>, vector<2x96xf32> -> vector<2x96xf32>
    %616 = arith.addf %614, %615 : vector<2x96xf32>
    %cst_90 = arith.constant dense<0.000000e+00> : vector<2x96xf32>
    %617 = tpu.matmul %593, %581, %cst_90 {dimension_numbers = #tpu.dot_dimension_numbers<[1], [0], [0], [1], [0, 0, 1, 1], [], []>} : vector<2x32xf32>, vector<32x96xf32>, vector<2x96xf32> -> vector<2x96xf32>
    %618 = arith.addf %617, %589 : vector<2x96xf32>
    %619 = vector.extract_strided_slice %616 {offsets = [0, 0], sizes = [2, 32], strides = [1, 1]} : vector<2x96xf32> to vector<2x32xf32>
    %620 = vector.extract_strided_slice %618 {offsets = [0, 0], sizes = [2, 32], strides = [1, 1]} : vector<2x96xf32> to vector<2x32xf32>
    %621 = arith.addf %619, %620 : vector<2x32xf32>
    %622 = arith.negf %621 : vector<2x32xf32>
    %623 = math.exp %622 : vector<2x32xf32>
    %cst_91 = arith.constant 1.000000e+00 : f32
    %624 = vector.broadcast %cst_91 : f32 to vector<2x32xf32>
    %625 = arith.addf %624, %623 : vector<2x32xf32>
    %626 = arith.divf %624, %625 : vector<2x32xf32>
    %627 = vector.extract_strided_slice %616 {offsets = [0, 32], sizes = [2, 32], strides = [1, 1]} : vector<2x96xf32> to vector<2x32xf32>
    %628 = vector.extract_strided_slice %618 {offsets = [0, 32], sizes = [2, 32], strides = [1, 1]} : vector<2x96xf32> to vector<2x32xf32>
    %629 = arith.addf %627, %628 : vector<2x32xf32>
    %630 = arith.negf %629 : vector<2x32xf32>
    %631 = math.exp %630 : vector<2x32xf32>
    %cst_92 = arith.constant 1.000000e+00 : f32
    %632 = vector.broadcast %cst_92 : f32 to vector<2x32xf32>
    %633 = arith.addf %632, %631 : vector<2x32xf32>
    %634 = arith.divf %632, %633 : vector<2x32xf32>
    %635 = vector.extract_strided_slice %616 {offsets = [0, 64], sizes = [2, 32], strides = [1, 1]} : vector<2x96xf32> to vector<2x32xf32>
    %636 = vector.extract_strided_slice %618 {offsets = [0, 64], sizes = [2, 32], strides = [1, 1]} : vector<2x96xf32> to vector<2x32xf32>
    %637 = arith.mulf %626, %636 : vector<2x32xf32>
    %638 = arith.addf %635, %637 : vector<2x32xf32>
    %639 = math.tanh %638 : vector<2x32xf32>
    %cst_93 = arith.constant 1.000000e+00 : f32
    %640 = vector.broadcast %cst_93 : f32 to vector<2x32xf32>
    %641 = arith.subf %640, %634 : vector<2x32xf32>
    %642 = arith.mulf %641, %639 : vector<2x32xf32>
    %643 = arith.mulf %634, %593 : vector<2x32xf32>
    %644 = arith.addf %642, %643 : vector<2x32xf32>
    %cst_94 = arith.constant dense<0.000000e+00> : vector<2x128xf32>
    %645 = tpu.matmul %644, %577, %cst_94 {dimension_numbers = #tpu.dot_dimension_numbers<[1], [0], [0], [1], [0, 0, 1, 1], [], []>} : vector<2x32xf32>, vector<32x128xf32>, vector<2x128xf32> -> vector<2x128xf32>
    %646 = arith.addf %645, %585 : vector<2x128xf32>
    %647 = vector.shape_cast %646 : vector<2x128xf32> to vector<2x1x128xf32>
    "tpu.trace_start"() <{level = 10 : i32, message = "bqk,bkt->bqt"}> : () -> ()
    %cst_95 = arith.constant dense<0.000000e+00> : vector<2x1x8xf32>
    %648 = tpu.matmul %647, %557, %cst_95 {dimension_numbers = #tpu.dot_dimension_numbers<[2], [1], [1], [2], [0, 0, 0, 1, 1, 2], [0], [0]>} : vector<2x1x128xf32>, vector<2x128x8xf32>, vector<2x1x8xf32> -> vector<2x1x8xf32>
    "tpu.trace_stop"() : () -> ()
    %649 = vector.shape_cast %648 : vector<2x1x8xf32> to vector<2x8xf32>
    %cst_96 = arith.constant 1.000000e-01 : f32
    %650 = vector.broadcast %cst_96 : f32 to vector<2x8xf32>
    %651 = arith.mulf %649, %650 : vector<2x8xf32>
    %cst_97 = arith.constant dense<0xFF800000> : vector<2xf32>
    %652 = vector.multi_reduction <maximumf>, %651, %cst_97 [1] : vector<2x8xf32> to vector<2xf32>
    %653 = vector.shape_cast %652 : vector<2xf32> to vector<2x1xf32>
    %654 = vector.broadcast %653 : vector<2x1xf32> to vector<2x8xf32>
    %655 = arith.subf %651, %654 : vector<2x8xf32>
    %656 = math.exp %655 : vector<2x8xf32>
    %cst_98 = arith.constant dense<0.000000e+00> : vector<2xf32>
    %657 = vector.multi_reduction <add>, %656, %cst_98 [1] : vector<2x8xf32> to vector<2xf32>
    %658 = vector.shape_cast %657 : vector<2xf32> to vector<2x1xf32>
    %659 = vector.broadcast %658 : vector<2x1xf32> to vector<2x8xf32>
    %660 = arith.divf %656, %659 : vector<2x8xf32>
    %661 = vector.shape_cast %660 : vector<2x8xf32> to vector<2x1x8xf32>
    "tpu.trace_start"() <{level = 10 : i32, message = "bqt,btv->bqv"}> : () -> ()
    %cst_99 = arith.constant dense<0.000000e+00> : vector<2x1x256xf32>
    %662 = tpu.matmul %661, %563, %cst_99 {dimension_numbers = #tpu.dot_dimension_numbers<[2], [1], [1], [2], [0, 0, 0, 1, 1, 2], [0], [0]>} : vector<2x1x8xf32>, vector<2x8x256xf32>, vector<2x1x256xf32> -> vector<2x1x256xf32>
    "tpu.trace_stop"() : () -> ()
    %663 = vector.shape_cast %662 : vector<2x1x256xf32> to vector<2x256xf32>
    %664 = vector.extract_strided_slice %575 {offsets = [0, 1, 0], sizes = [2, 1, 96], strides = [1, 1, 1]} : vector<2x6x96xf32> to vector<2x1x96xf32>
    %665 = vector.shape_cast %664 : vector<2x1x96xf32> to vector<2x96xf32>
    %cst_100 = arith.constant dense<0.000000e+00> : vector<2x96xf32>
    %666 = tpu.matmul %663, %579, %cst_100 {dimension_numbers = #tpu.dot_dimension_numbers<[1], [0], [0], [1], [0, 0, 1, 1], [], []>} : vector<2x256xf32>, vector<256x96xf32>, vector<2x96xf32> -> vector<2x96xf32>
    %667 = arith.addf %665, %666 : vector<2x96xf32>
    %cst_101 = arith.constant dense<0.000000e+00> : vector<2x96xf32>
    %668 = tpu.matmul %644, %581, %cst_101 {dimension_numbers = #tpu.dot_dimension_numbers<[1], [0], [0], [1], [0, 0, 1, 1], [], []>} : vector<2x32xf32>, vector<32x96xf32>, vector<2x96xf32> -> vector<2x96xf32>
    %669 = arith.addf %668, %589 : vector<2x96xf32>
    %670 = vector.extract_strided_slice %667 {offsets = [0, 0], sizes = [2, 32], strides = [1, 1]} : vector<2x96xf32> to vector<2x32xf32>
    %671 = vector.extract_strided_slice %669 {offsets = [0, 0], sizes = [2, 32], strides = [1, 1]} : vector<2x96xf32> to vector<2x32xf32>
    %672 = arith.addf %670, %671 : vector<2x32xf32>
    %673 = arith.negf %672 : vector<2x32xf32>
    %674 = math.exp %673 : vector<2x32xf32>
    %cst_102 = arith.constant 1.000000e+00 : f32
    %675 = vector.broadcast %cst_102 : f32 to vector<2x32xf32>
    %676 = arith.addf %675, %674 : vector<2x32xf32>
    %677 = arith.divf %675, %676 : vector<2x32xf32>
    %678 = vector.extract_strided_slice %667 {offsets = [0, 32], sizes = [2, 32], strides = [1, 1]} : vector<2x96xf32> to vector<2x32xf32>
    %679 = vector.extract_strided_slice %669 {offsets = [0, 32], sizes = [2, 32], strides = [1, 1]} : vector<2x96xf32> to vector<2x32xf32>
    %680 = arith.addf %678, %679 : vector<2x32xf32>
    %681 = arith.negf %680 : vector<2x32xf32>
    %682 = math.exp %681 : vector<2x32xf32>
    %cst_103 = arith.constant 1.000000e+00 : f32
    %683 = vector.broadcast %cst_103 : f32 to vector<2x32xf32>
    %684 = arith.addf %683, %682 : vector<2x32xf32>
    %685 = arith.divf %683, %684 : vector<2x32xf32>
    %686 = vector.extract_strided_slice %667 {offsets = [0, 64], sizes = [2, 32], strides = [1, 1]} : vector<2x96xf32> to vector<2x32xf32>
    %687 = vector.extract_strided_slice %669 {offsets = [0, 64], sizes = [2, 32], strides = [1, 1]} : vector<2x96xf32> to vector<2x32xf32>
    %688 = arith.mulf %677, %687 : vector<2x32xf32>
    %689 = arith.addf %686, %688 : vector<2x32xf32>
    %690 = math.tanh %689 : vector<2x32xf32>
    %cst_104 = arith.constant 1.000000e+00 : f32
    %691 = vector.broadcast %cst_104 : f32 to vector<2x32xf32>
    %692 = arith.subf %691, %685 : vector<2x32xf32>
    %693 = arith.mulf %692, %690 : vector<2x32xf32>
    %694 = arith.mulf %685, %644 : vector<2x32xf32>
    %695 = arith.addf %693, %694 : vector<2x32xf32>
    %cst_105 = arith.constant dense<0.000000e+00> : vector<2x128xf32>
    %696 = tpu.matmul %695, %577, %cst_105 {dimension_numbers = #tpu.dot_dimension_numbers<[1], [0], [0], [1], [0, 0, 1, 1], [], []>} : vector<2x32xf32>, vector<32x128xf32>, vector<2x128xf32> -> vector<2x128xf32>
    %697 = arith.addf %696, %585 : vector<2x128xf32>
    %698 = vector.shape_cast %697 : vector<2x128xf32> to vector<2x1x128xf32>
    "tpu.trace_start"() <{level = 10 : i32, message = "bqk,bkt->bqt"}> : () -> ()
    %cst_106 = arith.constant dense<0.000000e+00> : vector<2x1x8xf32>
    %699 = tpu.matmul %698, %557, %cst_106 {dimension_numbers = #tpu.dot_dimension_numbers<[2], [1], [1], [2], [0, 0, 0, 1, 1, 2], [0], [0]>} : vector<2x1x128xf32>, vector<2x128x8xf32>, vector<2x1x8xf32> -> vector<2x1x8xf32>
    "tpu.trace_stop"() : () -> ()
    %700 = vector.shape_cast %699 : vector<2x1x8xf32> to vector<2x8xf32>
    %cst_107 = arith.constant 1.000000e-01 : f32
    %701 = vector.broadcast %cst_107 : f32 to vector<2x8xf32>
    %702 = arith.mulf %700, %701 : vector<2x8xf32>
    %cst_108 = arith.constant dense<0xFF800000> : vector<2xf32>
    %703 = vector.multi_reduction <maximumf>, %702, %cst_108 [1] : vector<2x8xf32> to vector<2xf32>
    %704 = vector.shape_cast %703 : vector<2xf32> to vector<2x1xf32>
    %705 = vector.broadcast %704 : vector<2x1xf32> to vector<2x8xf32>
    %706 = arith.subf %702, %705 : vector<2x8xf32>
    %707 = math.exp %706 : vector<2x8xf32>
    %cst_109 = arith.constant dense<0.000000e+00> : vector<2xf32>
    %708 = vector.multi_reduction <add>, %707, %cst_109 [1] : vector<2x8xf32> to vector<2xf32>
    %709 = vector.shape_cast %708 : vector<2xf32> to vector<2x1xf32>
    %710 = vector.broadcast %709 : vector<2x1xf32> to vector<2x8xf32>
    %711 = arith.divf %707, %710 : vector<2x8xf32>
    %712 = vector.shape_cast %711 : vector<2x8xf32> to vector<2x1x8xf32>
    "tpu.trace_start"() <{level = 10 : i32, message = "bqt,btv->bqv"}> : () -> ()
    %cst_110 = arith.constant dense<0.000000e+00> : vector<2x1x256xf32>
    %713 = tpu.matmul %712, %563, %cst_110 {dimension_numbers = #tpu.dot_dimension_numbers<[2], [1], [1], [2], [0, 0, 0, 1, 1, 2], [0], [0]>} : vector<2x1x8xf32>, vector<2x8x256xf32>, vector<2x1x256xf32> -> vector<2x1x256xf32>
    "tpu.trace_stop"() : () -> ()
    %714 = vector.shape_cast %713 : vector<2x1x256xf32> to vector<2x256xf32>
    %715 = vector.extract_strided_slice %575 {offsets = [0, 2, 0], sizes = [2, 1, 96], strides = [1, 1, 1]} : vector<2x6x96xf32> to vector<2x1x96xf32>
    %716 = vector.shape_cast %715 : vector<2x1x96xf32> to vector<2x96xf32>
    %cst_111 = arith.constant dense<0.000000e+00> : vector<2x96xf32>
    %717 = tpu.matmul %714, %579, %cst_111 {dimension_numbers = #tpu.dot_dimension_numbers<[1], [0], [0], [1], [0, 0, 1, 1], [], []>} : vector<2x256xf32>, vector<256x96xf32>, vector<2x96xf32> -> vector<2x96xf32>
    %718 = arith.addf %716, %717 : vector<2x96xf32>
    %cst_112 = arith.constant dense<0.000000e+00> : vector<2x96xf32>
    %719 = tpu.matmul %695, %581, %cst_112 {dimension_numbers = #tpu.dot_dimension_numbers<[1], [0], [0], [1], [0, 0, 1, 1], [], []>} : vector<2x32xf32>, vector<32x96xf32>, vector<2x96xf32> -> vector<2x96xf32>
    %720 = arith.addf %719, %589 : vector<2x96xf32>
    %721 = vector.extract_strided_slice %718 {offsets = [0, 0], sizes = [2, 32], strides = [1, 1]} : vector<2x96xf32> to vector<2x32xf32>
    %722 = vector.extract_strided_slice %720 {offsets = [0, 0], sizes = [2, 32], strides = [1, 1]} : vector<2x96xf32> to vector<2x32xf32>
    %723 = arith.addf %721, %722 : vector<2x32xf32>
    %724 = arith.negf %723 : vector<2x32xf32>
    %725 = math.exp %724 : vector<2x32xf32>
    %cst_113 = arith.constant 1.000000e+00 : f32
    %726 = vector.broadcast %cst_113 : f32 to vector<2x32xf32>
    %727 = arith.addf %726, %725 : vector<2x32xf32>
    %728 = arith.divf %726, %727 : vector<2x32xf32>
    %729 = vector.extract_strided_slice %718 {offsets = [0, 32], sizes = [2, 32], strides = [1, 1]} : vector<2x96xf32> to vector<2x32xf32>
    %730 = vector.extract_strided_slice %720 {offsets = [0, 32], sizes = [2, 32], strides = [1, 1]} : vector<2x96xf32> to vector<2x32xf32>
    %731 = arith.addf %729, %730 : vector<2x32xf32>
    %732 = arith.negf %731 : vector<2x32xf32>
    %733 = math.exp %732 : vector<2x32xf32>
    %cst_114 = arith.constant 1.000000e+00 : f32
    %734 = vector.broadcast %cst_114 : f32 to vector<2x32xf32>
    %735 = arith.addf %734, %733 : vector<2x32xf32>
    %736 = arith.divf %734, %735 : vector<2x32xf32>
    %737 = vector.extract_strided_slice %718 {offsets = [0, 64], sizes = [2, 32], strides = [1, 1]} : vector<2x96xf32> to vector<2x32xf32>
    %738 = vector.extract_strided_slice %720 {offsets = [0, 64], sizes = [2, 32], strides = [1, 1]} : vector<2x96xf32> to vector<2x32xf32>
    %739 = arith.mulf %728, %738 : vector<2x32xf32>
    %740 = arith.addf %737, %739 : vector<2x32xf32>
    %741 = math.tanh %740 : vector<2x32xf32>
    %cst_115 = arith.constant 1.000000e+00 : f32
    %742 = vector.broadcast %cst_115 : f32 to vector<2x32xf32>
    %743 = arith.subf %742, %736 : vector<2x32xf32>
    %744 = arith.mulf %743, %741 : vector<2x32xf32>
    %745 = arith.mulf %736, %695 : vector<2x32xf32>
    %746 = arith.addf %744, %745 : vector<2x32xf32>
    %cst_116 = arith.constant dense<0.000000e+00> : vector<2x128xf32>
    %747 = tpu.matmul %746, %577, %cst_116 {dimension_numbers = #tpu.dot_dimension_numbers<[1], [0], [0], [1], [0, 0, 1, 1], [], []>} : vector<2x32xf32>, vector<32x128xf32>, vector<2x128xf32> -> vector<2x128xf32>
    %748 = arith.addf %747, %585 : vector<2x128xf32>
    %749 = vector.shape_cast %748 : vector<2x128xf32> to vector<2x1x128xf32>
    "tpu.trace_start"() <{level = 10 : i32, message = "bqk,bkt->bqt"}> : () -> ()
    %cst_117 = arith.constant dense<0.000000e+00> : vector<2x1x8xf32>
    %750 = tpu.matmul %749, %557, %cst_117 {dimension_numbers = #tpu.dot_dimension_numbers<[2], [1], [1], [2], [0, 0, 0, 1, 1, 2], [0], [0]>} : vector<2x1x128xf32>, vector<2x128x8xf32>, vector<2x1x8xf32> -> vector<2x1x8xf32>
    "tpu.trace_stop"() : () -> ()
    %751 = vector.shape_cast %750 : vector<2x1x8xf32> to vector<2x8xf32>
    %cst_118 = arith.constant 1.000000e-01 : f32
    %752 = vector.broadcast %cst_118 : f32 to vector<2x8xf32>
    %753 = arith.mulf %751, %752 : vector<2x8xf32>
    %cst_119 = arith.constant dense<0xFF800000> : vector<2xf32>
    %754 = vector.multi_reduction <maximumf>, %753, %cst_119 [1] : vector<2x8xf32> to vector<2xf32>
    %755 = vector.shape_cast %754 : vector<2xf32> to vector<2x1xf32>
    %756 = vector.broadcast %755 : vector<2x1xf32> to vector<2x8xf32>
    %757 = arith.subf %753, %756 : vector<2x8xf32>
    %758 = math.exp %757 : vector<2x8xf32>
    %cst_120 = arith.constant dense<0.000000e+00> : vector<2xf32>
    %759 = vector.multi_reduction <add>, %758, %cst_120 [1] : vector<2x8xf32> to vector<2xf32>
    %760 = vector.shape_cast %759 : vector<2xf32> to vector<2x1xf32>
    %761 = vector.broadcast %760 : vector<2x1xf32> to vector<2x8xf32>
    %762 = arith.divf %758, %761 : vector<2x8xf32>
    %763 = vector.shape_cast %762 : vector<2x8xf32> to vector<2x1x8xf32>
    "tpu.trace_start"() <{level = 10 : i32, message = "bqt,btv->bqv"}> : () -> ()
    %cst_121 = arith.constant dense<0.000000e+00> : vector<2x1x256xf32>
    %764 = tpu.matmul %763, %563, %cst_121 {dimension_numbers = #tpu.dot_dimension_numbers<[2], [1], [1], [2], [0, 0, 0, 1, 1, 2], [0], [0]>} : vector<2x1x8xf32>, vector<2x8x256xf32>, vector<2x1x256xf32> -> vector<2x1x256xf32>
    "tpu.trace_stop"() : () -> ()
    %765 = vector.shape_cast %764 : vector<2x1x256xf32> to vector<2x256xf32>
    %766 = vector.extract_strided_slice %575 {offsets = [0, 3, 0], sizes = [2, 1, 96], strides = [1, 1, 1]} : vector<2x6x96xf32> to vector<2x1x96xf32>
    %767 = vector.shape_cast %766 : vector<2x1x96xf32> to vector<2x96xf32>
    %cst_122 = arith.constant dense<0.000000e+00> : vector<2x96xf32>
    %768 = tpu.matmul %765, %579, %cst_122 {dimension_numbers = #tpu.dot_dimension_numbers<[1], [0], [0], [1], [0, 0, 1, 1], [], []>} : vector<2x256xf32>, vector<256x96xf32>, vector<2x96xf32> -> vector<2x96xf32>
    %769 = arith.addf %767, %768 : vector<2x96xf32>
    %cst_123 = arith.constant dense<0.000000e+00> : vector<2x96xf32>
    %770 = tpu.matmul %746, %581, %cst_123 {dimension_numbers = #tpu.dot_dimension_numbers<[1], [0], [0], [1], [0, 0, 1, 1], [], []>} : vector<2x32xf32>, vector<32x96xf32>, vector<2x96xf32> -> vector<2x96xf32>
    %771 = arith.addf %770, %589 : vector<2x96xf32>
    %772 = vector.extract_strided_slice %769 {offsets = [0, 0], sizes = [2, 32], strides = [1, 1]} : vector<2x96xf32> to vector<2x32xf32>
    %773 = vector.extract_strided_slice %771 {offsets = [0, 0], sizes = [2, 32], strides = [1, 1]} : vector<2x96xf32> to vector<2x32xf32>
    %774 = arith.addf %772, %773 : vector<2x32xf32>
    %775 = arith.negf %774 : vector<2x32xf32>
    %776 = math.exp %775 : vector<2x32xf32>
    %cst_124 = arith.constant 1.000000e+00 : f32
    %777 = vector.broadcast %cst_124 : f32 to vector<2x32xf32>
    %778 = arith.addf %777, %776 : vector<2x32xf32>
    %779 = arith.divf %777, %778 : vector<2x32xf32>
    %780 = vector.extract_strided_slice %769 {offsets = [0, 32], sizes = [2, 32], strides = [1, 1]} : vector<2x96xf32> to vector<2x32xf32>
    %781 = vector.extract_strided_slice %771 {offsets = [0, 32], sizes = [2, 32], strides = [1, 1]} : vector<2x96xf32> to vector<2x32xf32>
    %782 = arith.addf %780, %781 : vector<2x32xf32>
    %783 = arith.negf %782 : vector<2x32xf32>
    %784 = math.exp %783 : vector<2x32xf32>
    %cst_125 = arith.constant 1.000000e+00 : f32
    %785 = vector.broadcast %cst_125 : f32 to vector<2x32xf32>
    %786 = arith.addf %785, %784 : vector<2x32xf32>
    %787 = arith.divf %785, %786 : vector<2x32xf32>
    %788 = vector.extract_strided_slice %769 {offsets = [0, 64], sizes = [2, 32], strides = [1, 1]} : vector<2x96xf32> to vector<2x32xf32>
    %789 = vector.extract_strided_slice %771 {offsets = [0, 64], sizes = [2, 32], strides = [1, 1]} : vector<2x96xf32> to vector<2x32xf32>
    %790 = arith.mulf %779, %789 : vector<2x32xf32>
    %791 = arith.addf %788, %790 : vector<2x32xf32>
    %792 = math.tanh %791 : vector<2x32xf32>
    %cst_126 = arith.constant 1.000000e+00 : f32
    %793 = vector.broadcast %cst_126 : f32 to vector<2x32xf32>
    %794 = arith.subf %793, %787 : vector<2x32xf32>
    %795 = arith.mulf %794, %792 : vector<2x32xf32>
    %796 = arith.mulf %787, %746 : vector<2x32xf32>
    %797 = arith.addf %795, %796 : vector<2x32xf32>
    %cst_127 = arith.constant dense<0.000000e+00> : vector<2x128xf32>
    %798 = tpu.matmul %797, %577, %cst_127 {dimension_numbers = #tpu.dot_dimension_numbers<[1], [0], [0], [1], [0, 0, 1, 1], [], []>} : vector<2x32xf32>, vector<32x128xf32>, vector<2x128xf32> -> vector<2x128xf32>
    %799 = arith.addf %798, %585 : vector<2x128xf32>
    %800 = vector.shape_cast %799 : vector<2x128xf32> to vector<2x1x128xf32>
    "tpu.trace_start"() <{level = 10 : i32, message = "bqk,bkt->bqt"}> : () -> ()
    %cst_128 = arith.constant dense<0.000000e+00> : vector<2x1x8xf32>
    %801 = tpu.matmul %800, %557, %cst_128 {dimension_numbers = #tpu.dot_dimension_numbers<[2], [1], [1], [2], [0, 0, 0, 1, 1, 2], [0], [0]>} : vector<2x1x128xf32>, vector<2x128x8xf32>, vector<2x1x8xf32> -> vector<2x1x8xf32>
    "tpu.trace_stop"() : () -> ()
    %802 = vector.shape_cast %801 : vector<2x1x8xf32> to vector<2x8xf32>
    %cst_129 = arith.constant 1.000000e-01 : f32
    %803 = vector.broadcast %cst_129 : f32 to vector<2x8xf32>
    %804 = arith.mulf %802, %803 : vector<2x8xf32>
    %cst_130 = arith.constant dense<0xFF800000> : vector<2xf32>
    %805 = vector.multi_reduction <maximumf>, %804, %cst_130 [1] : vector<2x8xf32> to vector<2xf32>
    %806 = vector.shape_cast %805 : vector<2xf32> to vector<2x1xf32>
    %807 = vector.broadcast %806 : vector<2x1xf32> to vector<2x8xf32>
    %808 = arith.subf %804, %807 : vector<2x8xf32>
    %809 = math.exp %808 : vector<2x8xf32>
    %cst_131 = arith.constant dense<0.000000e+00> : vector<2xf32>
    %810 = vector.multi_reduction <add>, %809, %cst_131 [1] : vector<2x8xf32> to vector<2xf32>
    %811 = vector.shape_cast %810 : vector<2xf32> to vector<2x1xf32>
    %812 = vector.broadcast %811 : vector<2x1xf32> to vector<2x8xf32>
    %813 = arith.divf %809, %812 : vector<2x8xf32>
    %814 = vector.shape_cast %813 : vector<2x8xf32> to vector<2x1x8xf32>
    "tpu.trace_start"() <{level = 10 : i32, message = "bqt,btv->bqv"}> : () -> ()
    %cst_132 = arith.constant dense<0.000000e+00> : vector<2x1x256xf32>
    %815 = tpu.matmul %814, %563, %cst_132 {dimension_numbers = #tpu.dot_dimension_numbers<[2], [1], [1], [2], [0, 0, 0, 1, 1, 2], [0], [0]>} : vector<2x1x8xf32>, vector<2x8x256xf32>, vector<2x1x256xf32> -> vector<2x1x256xf32>
    "tpu.trace_stop"() : () -> ()
    %816 = vector.shape_cast %815 : vector<2x1x256xf32> to vector<2x256xf32>
    %817 = vector.extract_strided_slice %575 {offsets = [0, 4, 0], sizes = [2, 1, 96], strides = [1, 1, 1]} : vector<2x6x96xf32> to vector<2x1x96xf32>
    %818 = vector.shape_cast %817 : vector<2x1x96xf32> to vector<2x96xf32>
    %cst_133 = arith.constant dense<0.000000e+00> : vector<2x96xf32>
    %819 = tpu.matmul %816, %579, %cst_133 {dimension_numbers = #tpu.dot_dimension_numbers<[1], [0], [0], [1], [0, 0, 1, 1], [], []>} : vector<2x256xf32>, vector<256x96xf32>, vector<2x96xf32> -> vector<2x96xf32>
    %820 = arith.addf %818, %819 : vector<2x96xf32>
    %cst_134 = arith.constant dense<0.000000e+00> : vector<2x96xf32>
    %821 = tpu.matmul %797, %581, %cst_134 {dimension_numbers = #tpu.dot_dimension_numbers<[1], [0], [0], [1], [0, 0, 1, 1], [], []>} : vector<2x32xf32>, vector<32x96xf32>, vector<2x96xf32> -> vector<2x96xf32>
    %822 = arith.addf %821, %589 : vector<2x96xf32>
    %823 = vector.extract_strided_slice %820 {offsets = [0, 0], sizes = [2, 32], strides = [1, 1]} : vector<2x96xf32> to vector<2x32xf32>
    %824 = vector.extract_strided_slice %822 {offsets = [0, 0], sizes = [2, 32], strides = [1, 1]} : vector<2x96xf32> to vector<2x32xf32>
    %825 = arith.addf %823, %824 : vector<2x32xf32>
    %826 = arith.negf %825 : vector<2x32xf32>
    %827 = math.exp %826 : vector<2x32xf32>
    %cst_135 = arith.constant 1.000000e+00 : f32
    %828 = vector.broadcast %cst_135 : f32 to vector<2x32xf32>
    %829 = arith.addf %828, %827 : vector<2x32xf32>
    %830 = arith.divf %828, %829 : vector<2x32xf32>
    %831 = vector.extract_strided_slice %820 {offsets = [0, 32], sizes = [2, 32], strides = [1, 1]} : vector<2x96xf32> to vector<2x32xf32>
    %832 = vector.extract_strided_slice %822 {offsets = [0, 32], sizes = [2, 32], strides = [1, 1]} : vector<2x96xf32> to vector<2x32xf32>
    %833 = arith.addf %831, %832 : vector<2x32xf32>
    %834 = arith.negf %833 : vector<2x32xf32>
    %835 = math.exp %834 : vector<2x32xf32>
    %cst_136 = arith.constant 1.000000e+00 : f32
    %836 = vector.broadcast %cst_136 : f32 to vector<2x32xf32>
    %837 = arith.addf %836, %835 : vector<2x32xf32>
    %838 = arith.divf %836, %837 : vector<2x32xf32>
    %839 = vector.extract_strided_slice %820 {offsets = [0, 64], sizes = [2, 32], strides = [1, 1]} : vector<2x96xf32> to vector<2x32xf32>
    %840 = vector.extract_strided_slice %822 {offsets = [0, 64], sizes = [2, 32], strides = [1, 1]} : vector<2x96xf32> to vector<2x32xf32>
    %841 = arith.mulf %830, %840 : vector<2x32xf32>
    %842 = arith.addf %839, %841 : vector<2x32xf32>
    %843 = math.tanh %842 : vector<2x32xf32>
    %cst_137 = arith.constant 1.000000e+00 : f32
    %844 = vector.broadcast %cst_137 : f32 to vector<2x32xf32>
    %845 = arith.subf %844, %838 : vector<2x32xf32>
    %846 = arith.mulf %845, %843 : vector<2x32xf32>
    %847 = arith.mulf %838, %797 : vector<2x32xf32>
    %848 = arith.addf %846, %847 : vector<2x32xf32>
    %cst_138 = arith.constant dense<0.000000e+00> : vector<2x128xf32>
    %849 = tpu.matmul %848, %577, %cst_138 {dimension_numbers = #tpu.dot_dimension_numbers<[1], [0], [0], [1], [0, 0, 1, 1], [], []>} : vector<2x32xf32>, vector<32x128xf32>, vector<2x128xf32> -> vector<2x128xf32>
    %850 = arith.addf %849, %585 : vector<2x128xf32>
    %851 = vector.shape_cast %850 : vector<2x128xf32> to vector<2x1x128xf32>
    "tpu.trace_start"() <{level = 10 : i32, message = "bqk,bkt->bqt"}> : () -> ()
    %cst_139 = arith.constant dense<0.000000e+00> : vector<2x1x8xf32>
    %852 = tpu.matmul %851, %557, %cst_139 {dimension_numbers = #tpu.dot_dimension_numbers<[2], [1], [1], [2], [0, 0, 0, 1, 1, 2], [0], [0]>} : vector<2x1x128xf32>, vector<2x128x8xf32>, vector<2x1x8xf32> -> vector<2x1x8xf32>
    "tpu.trace_stop"() : () -> ()
    %853 = vector.shape_cast %852 : vector<2x1x8xf32> to vector<2x8xf32>
    %cst_140 = arith.constant 1.000000e-01 : f32
    %854 = vector.broadcast %cst_140 : f32 to vector<2x8xf32>
    %855 = arith.mulf %853, %854 : vector<2x8xf32>
    %cst_141 = arith.constant dense<0xFF800000> : vector<2xf32>
    %856 = vector.multi_reduction <maximumf>, %855, %cst_141 [1] : vector<2x8xf32> to vector<2xf32>
    %857 = vector.shape_cast %856 : vector<2xf32> to vector<2x1xf32>
    %858 = vector.broadcast %857 : vector<2x1xf32> to vector<2x8xf32>
    %859 = arith.subf %855, %858 : vector<2x8xf32>
    %860 = math.exp %859 : vector<2x8xf32>
    %cst_142 = arith.constant dense<0.000000e+00> : vector<2xf32>
    %861 = vector.multi_reduction <add>, %860, %cst_142 [1] : vector<2x8xf32> to vector<2xf32>
    %862 = vector.shape_cast %861 : vector<2xf32> to vector<2x1xf32>
    %863 = vector.broadcast %862 : vector<2x1xf32> to vector<2x8xf32>
    %864 = arith.divf %860, %863 : vector<2x8xf32>
    %865 = vector.shape_cast %864 : vector<2x8xf32> to vector<2x1x8xf32>
    "tpu.trace_start"() <{level = 10 : i32, message = "bqt,btv->bqv"}> : () -> ()
    %cst_143 = arith.constant dense<0.000000e+00> : vector<2x1x256xf32>
    %866 = tpu.matmul %865, %563, %cst_143 {dimension_numbers = #tpu.dot_dimension_numbers<[2], [1], [1], [2], [0, 0, 0, 1, 1, 2], [0], [0]>} : vector<2x1x8xf32>, vector<2x8x256xf32>, vector<2x1x256xf32> -> vector<2x1x256xf32>
    "tpu.trace_stop"() : () -> ()
    %867 = vector.shape_cast %866 : vector<2x1x256xf32> to vector<2x256xf32>
    %868 = vector.extract_strided_slice %575 {offsets = [0, 5, 0], sizes = [2, 1, 96], strides = [1, 1, 1]} : vector<2x6x96xf32> to vector<2x1x96xf32>
    %869 = vector.shape_cast %868 : vector<2x1x96xf32> to vector<2x96xf32>
    %cst_144 = arith.constant dense<0.000000e+00> : vector<2x96xf32>
    %870 = tpu.matmul %867, %579, %cst_144 {dimension_numbers = #tpu.dot_dimension_numbers<[1], [0], [0], [1], [0, 0, 1, 1], [], []>} : vector<2x256xf32>, vector<256x96xf32>, vector<2x96xf32> -> vector<2x96xf32>
    %871 = arith.addf %869, %870 : vector<2x96xf32>
    %cst_145 = arith.constant dense<0.000000e+00> : vector<2x96xf32>
    %872 = tpu.matmul %848, %581, %cst_145 {dimension_numbers = #tpu.dot_dimension_numbers<[1], [0], [0], [1], [0, 0, 1, 1], [], []>} : vector<2x32xf32>, vector<32x96xf32>, vector<2x96xf32> -> vector<2x96xf32>
    %873 = arith.addf %872, %589 : vector<2x96xf32>
    %874 = vector.extract_strided_slice %871 {offsets = [0, 0], sizes = [2, 32], strides = [1, 1]} : vector<2x96xf32> to vector<2x32xf32>
    %875 = vector.extract_strided_slice %873 {offsets = [0, 0], sizes = [2, 32], strides = [1, 1]} : vector<2x96xf32> to vector<2x32xf32>
    %876 = arith.addf %874, %875 : vector<2x32xf32>
    %877 = arith.negf %876 : vector<2x32xf32>
    %878 = math.exp %877 : vector<2x32xf32>
    %cst_146 = arith.constant 1.000000e+00 : f32
    %879 = vector.broadcast %cst_146 : f32 to vector<2x32xf32>
    %880 = arith.addf %879, %878 : vector<2x32xf32>
    %881 = arith.divf %879, %880 : vector<2x32xf32>
    %882 = vector.extract_strided_slice %871 {offsets = [0, 32], sizes = [2, 32], strides = [1, 1]} : vector<2x96xf32> to vector<2x32xf32>
    %883 = vector.extract_strided_slice %873 {offsets = [0, 32], sizes = [2, 32], strides = [1, 1]} : vector<2x96xf32> to vector<2x32xf32>
    %884 = arith.addf %882, %883 : vector<2x32xf32>
    %885 = arith.negf %884 : vector<2x32xf32>
    %886 = math.exp %885 : vector<2x32xf32>
    %cst_147 = arith.constant 1.000000e+00 : f32
    %887 = vector.broadcast %cst_147 : f32 to vector<2x32xf32>
    %888 = arith.addf %887, %886 : vector<2x32xf32>
    %889 = arith.divf %887, %888 : vector<2x32xf32>
    %890 = vector.extract_strided_slice %871 {offsets = [0, 64], sizes = [2, 32], strides = [1, 1]} : vector<2x96xf32> to vector<2x32xf32>
    %891 = vector.extract_strided_slice %873 {offsets = [0, 64], sizes = [2, 32], strides = [1, 1]} : vector<2x96xf32> to vector<2x32xf32>
    %892 = arith.mulf %881, %891 : vector<2x32xf32>
    %893 = arith.addf %890, %892 : vector<2x32xf32>
    %894 = math.tanh %893 : vector<2x32xf32>
    %cst_148 = arith.constant 1.000000e+00 : f32
    %895 = vector.broadcast %cst_148 : f32 to vector<2x32xf32>
    %896 = arith.subf %895, %889 : vector<2x32xf32>
    %897 = arith.mulf %896, %894 : vector<2x32xf32>
    %898 = arith.mulf %889, %848 : vector<2x32xf32>
    %899 = arith.addf %897, %898 : vector<2x32xf32>
    %900 = vector.shape_cast %644 : vector<2x32xf32> to vector<2x1x32xf32>
    %901 = vector.shape_cast %695 : vector<2x32xf32> to vector<2x1x32xf32>
    %902 = vector.shape_cast %746 : vector<2x32xf32> to vector<2x1x32xf32>
    %903 = vector.shape_cast %797 : vector<2x32xf32> to vector<2x1x32xf32>
    %904 = vector.shape_cast %848 : vector<2x32xf32> to vector<2x1x32xf32>
    %905 = vector.shape_cast %899 : vector<2x32xf32> to vector<2x1x32xf32>
    %906 = tpu.concatenate %900, %901, %902, %903, %904, %905 in 1 : vector<2x1x32xf32>, vector<2x1x32xf32>, vector<2x1x32xf32>, vector<2x1x32xf32>, vector<2x1x32xf32>, vector<2x1x32xf32> -> vector<2x6x32xf32>
    %907 = vector.shape_cast %906 : vector<2x6x32xf32> to vector<12x32xf32>
    %c600 = arith.constant 600 : index
    %c0_149 = arith.constant 0 : index
    %908 = vector.load %arg3[%c600, %c0_149] : memref<648x256xf32, #tpu.memory_space<vmem>>, vector<32x256xf32>
    %909 = vector.extract_strided_slice %908 {offsets = [0, 0], sizes = [32, 12], strides = [1, 1]} : vector<32x256xf32> to vector<32x12xf32>
    %cst_150 = arith.constant dense<0.000000e+00> : vector<12x12xf32>
    %910 = tpu.matmul %907, %909, %cst_150 {dimension_numbers = #tpu.dot_dimension_numbers<[1], [0], [0], [1], [0, 0, 1, 1], [], []>} : vector<12x32xf32>, vector<32x12xf32>, vector<12x12xf32> -> vector<12x12xf32>
    %c632 = arith.constant 632 : index
    %c0_151 = arith.constant 0 : index
    %911 = vector.load %arg3[%c632, %c0_151] : memref<648x256xf32, #tpu.memory_space<vmem>>, vector<1x256xf32>
    %912 = vector.extract_strided_slice %911 {offsets = [0, 0], sizes = [1, 12], strides = [1, 1]} : vector<1x256xf32> to vector<1x12xf32>
    %913 = vector.broadcast %912 : vector<1x12xf32> to vector<12x12xf32>
    %914 = arith.addf %910, %913 : vector<12x12xf32>
    %915 = vector.shape_cast %914 : vector<12x12xf32> to vector<2x6x12xf32>
    %cst_152 = arith.constant dense<0xFF800000> : vector<2x6xf32>
    %916 = vector.multi_reduction <maximumf>, %915, %cst_152 [2] : vector<2x6x12xf32> to vector<2x6xf32>
    %917 = vector.shape_cast %916 : vector<2x6xf32> to vector<2x6x1xf32>
    %918 = vector.broadcast %917 : vector<2x6x1xf32> to vector<2x6x12xf32>
    %919 = arith.subf %915, %918 : vector<2x6x12xf32>
    %920 = math.exp %919 : vector<2x6x12xf32>
    %cst_153 = arith.constant dense<0.000000e+00> : vector<2x6xf32>
    %921 = vector.multi_reduction <add>, %920, %cst_153 [2] : vector<2x6x12xf32> to vector<2x6xf32>
    %922 = vector.shape_cast %921 : vector<2x6xf32> to vector<2x6x1xf32>
    %923 = math.log %922 : vector<2x6x1xf32>
    %924 = arith.addf %923, %917 : vector<2x6x1xf32>
    %925 = vector.broadcast %924 : vector<2x6x1xf32> to vector<2x6x12xf32>
    %926 = arith.subf %915, %925 : vector<2x6x12xf32>
    %927 = arith.mulf %926, %1 : vector<2x6x12xf32>
    %cst_154 = arith.constant dense<0.000000e+00> : vector<2x6xf32>
    %928 = vector.multi_reduction <add>, %927, %cst_154 [2] : vector<2x6x12xf32> to vector<2x6xf32>
    %cst_155 = arith.constant dense<0.000000e+00> : vector<2xf32>
    %929 = vector.multi_reduction <add>, %928, %cst_155 [1] : vector<2x6xf32> to vector<2xf32>
    %930 = vector.shape_cast %929 : vector<2xf32> to vector<2x1xf32>
    %c0_156 = arith.constant 0 : index
    %c0_157 = arith.constant 0 : index
    %931 = vector.load %arg4[%c0_156, %c0_157] : memref<2x1xf32, #tpu.memory_space<vmem>>, vector<2x1xf32>
    tpu.vector_store %arg4[%c0_156, %c0_157], %930 {strides = array<i32>} : memref<2x1xf32, #tpu.memory_space<vmem>>, vector<2x1xf32>,
    return
  }
  func.func @transform_0(%arg0: i32) -> (i32, i32, i32) {
    %c0_i32 = arith.constant 0 : i32
    %c0_i32_0 = arith.constant 0 : i32
    %c0_i32_1 = arith.constant 0 : i32
    %c0_i32_2 = arith.constant 0 : i32
    return %c0_i32, %c0_i32_0, %c0_i32_1 : i32, i32, i32
  }
  func.func @transform_1(%arg0: i32) -> (i32, i32, i32) {
    %c0_i32 = arith.constant 0 : i32
    %c0_i32_0 = arith.constant 0 : i32
    %c0_i32_1 = arith.constant 0 : i32
    %c0_i32_2 = arith.constant 0 : i32
    return %c0_i32, %c0_i32_0, %c0_i32_1 : i32, i32, i32
  }
  func.func @transform_2(%arg0: i32) -> (i32, i32) {
    %c0_i32 = arith.constant 0 : i32
    %c0_i32_0 = arith.constant 0 : i32
    %c0_i32_1 = arith.constant 0 : i32
    return %c0_i32, %c0_i32_0 : i32, i32
  }
  func.func @transform_3(%arg0: i32) -> (i32, i32) {
    %c0_i32 = arith.constant 0 : i32
    %c0_i32_0 = arith.constant 0 : i32
    %c0_i32_1 = arith.constant 0 : i32
    return %c0_i32, %c0_i32_0 : i32, i32
  }
}

</mosaic_0001>

<llo_original>
// kernel: tpu_custom_call.1
$region0: #{tpu_custom_call.1}
  #allocation0 [shape = 'u32[]', space=smem, size = 0x4, offset = 0x4, fixed_abs, tag = 'smem constant byte address 0x4 - core index']
  #allocation1 [shape = 'u32[144,128]{1,0:T(1,128)}', space=vmem, size = 0x12000, scoped, tag = 'internal scratch']
  %s0 = inlined_call_operand.vmem [shape: f32[2,8,16], index: 0, kind: input, shape index: {}]
  %s1 = inlined_call_operand.vmem [shape: f32[2,6,12], index: 1, kind: input, shape index: {}]
  %s2 = inlined_call_operand.hbm [shape: f32[648,256], index: 2, kind: input, shape index: {}]
  %s3 = inlined_call_operand.vmem [shape: f32[2,1], index: 3, kind: output, shape index: {}]
  %s4 = sld [smem:[#allocation0]]
  $region26: #{tpu_custom_call.1} parent=0
    _
  %s6 = ssub.s32 1, %s4
  %s7 = scalar_select 0, %s6, %s4
  $region1: #{tpu_custom_call.1} parent=0
    #allocation2 [shape = 'u8[663552]{0}', space=vmem, size = 0xa2000, scoped, tag = 'input window, operand 2, single buffered']
    #allocation3 [shape = 's32[1]{0}', space=sflag, size = 0x4, scoped, tag = 'scoped memory for tpu_custom_call.1']
    %8 = vsyncpa [#allocation3], 0
    // Predicated region
    $region2: #{tpu_custom_call.1} parent=1 // pred_check
      _
    $region3: #{tpu_custom_call.1} parent=1 // pred_check_branch
      %10 = sbr.rel (0) target = $region5
    $region4: #{tpu_custom_call.1} parent=1 // pred_region
      _
    $region5: #{tpu_custom_call.1} parent=1 // pred_fallthru
      _
    // Predicated region
    $region6: #{tpu_custom_call.1} parent=1 // pred_check
      _
    $region7: #{tpu_custom_call.1} parent=1 // pred_check_branch
      %12 = sbr.rel (0) target = $region9
    $region8: #{tpu_custom_call.1} parent=1 // pred_region
      _
    $region9: #{tpu_custom_call.1} parent=1 // pred_fallthru
      _
    // Predicated region
    $region10: #{tpu_custom_call.1} parent=1 // pred_check
      _
    $region11: #{tpu_custom_call.1} parent=1 // pred_check_branch
      %14 = sbr.rel (0) target = $region13
    $region12: #{tpu_custom_call.1} parent=1 // pred_region
      %s16 = ssub.s32 20736, 20736
      %17 = vsyncadd [#allocation3], %s16
      %s18 = sshll.u32 [#allocation2], 4
      %s19 = int_to_ptr.vmem [resolvable:$true] %s18
      %24 = dma.hbm_to_vmem [thread:$0]  %s2, 20736, %s19, [#allocation3], 256, 256, 16
    $region13: #{tpu_custom_call.1} parent=1 // pred_fallthru
      _
    // Predicated region
    $region14: #{tpu_custom_call.1} parent=1 // pred_check
      _
    $region15: #{tpu_custom_call.1} parent=1 // pred_check_branch
      %26 = sbr.rel (0) target = $region17
    $region16: #{tpu_custom_call.1} parent=1 // pred_region
      %27 = dma.done [#allocation3], 20736
    $region17: #{tpu_custom_call.1} parent=1 // pred_fallthru
      _
    %v28 = vld [vmem:[%s0] sm:$0xff]
    %v29 = vld [vmem:[%s0 + $0x8] sm:$0xff]
    %v30 = vld [vmem:[%s1] sm:$0x3f]
    %v31 = vld [vmem:[%s1 + $0x8] sm:$0x3f]
    %v32 = vld [vmem:[#allocation2] sm:$0xff]
    %v33 = vld [vmem:[#allocation2 + $0x8] sm:$0xff]
    %v34 = vld [vmem:[#allocation2 + $0x10] sm:$0xff]
    %v35 = vld [vmem:[#allocation2 + $0x18] sm:$0xff]
    %s36 = scalar_lea.vmem [#allocation2], 32
    %v37 = vld [vmem:[%s36] ss:$8 sm:$0x3]
    %v39 = vlaneseq
    %v40 = vshrl.u32 %v39, 7
    %v41 = vsub.s32 0, %v40
    %v42 = vrot.slane %v37, %v41
    %v43 = vlaneseq
    %v44 = vshrl.u32 %v43, 7
    %v45 = vsub.s32 1, %v44
    %v46 = vrot.slane %v37, %v45
    %vm49 = vcmask 130048
    %v51 = vsel %vm49, %v28, 0
    %v54 = vsel %vm49, %v29, 0
    %56 = vmatprep.subr.mxu0 0.0
    %57 = vmatpush1.msra.mxu0 0.0
    %58 = vmatprep.subr.mxu0 0.0
    %59 = vmatpush1.msra.mxu0 0.0
    %60 = vmatprep.subr.mxu0 0.0
    %61 = vmatpush1.msra.mxu0 0.0
    %62 = vmatprep.subr.mxu0 0.0
    %63 = vmatpush1.msra.mxu0 0.0
    %64 = vmatprep.subr.mxu0 0.0
    %65 = vmatpush1.msra.mxu0 0.0
    %66 = vmatprep.subr.mxu0 0.0
    %67 = vmatpush1.msra.mxu0 0.0
    %68 = vmatprep.subr.mxu0 0.0
    %69 = vmatpush1.msra.mxu0 0.0
    %70 = vmatprep.subr.mxu0 0.0
    %71 = vmatpush1.msra.mxu0 0.0
    %72 = vmatprep.subr.mxu0 0.0
    %73 = vmatpush1.msra.mxu0 0.0
    %74 = vmatprep.subr.mxu0 0.0
    %75 = vmatpush1.msra.mxu0 0.0
    %76 = vmatprep.subr.mxu0 0.0
    %77 = vmatpush1.msra.mxu0 0.0
    %78 = vmatprep.subr.mxu0 0.0
    %79 = vmatpush1.msra.mxu0 0.0
    %80 = vmatprep.subr.mxu0 0.0
    %81 = vmatpush1.msra.mxu0 0.0
    %82 = vmatprep.subr.mxu0 0.0
    %83 = vmatpush1.msra.mxu0 0.0
    %84 = vmatprep.subr.mxu0 %v35
    %85 = vmatpush1.msra.mxu0 %v34
    %86 = vmatprep.subr.mxu0 %v33
    %87 = vmatpush1.msra.mxu0 %v32
    %88 = vmatprep.subr.mxu0 0.0
    %89 = vmatpush2.msra.mxu0 0.0
    %90 = vmatprep.subr.mxu0 0.0
    %91 = vmatpush2.msra.mxu0 0.0
    %92 = vmatprep.subr.mxu0 0.0
    %93 = vmatpush2.msra.mxu0 0.0
    %94 = vmatprep.subr.mxu0 0.0
    %95 = vmatpush2.msra.mxu0 0.0
    %96 = vmatprep.subr.mxu0 0.0
    %97 = vmatpush2.msra.mxu0 0.0
    %98 = vmatprep.subr.mxu0 0.0
    %99 = vmatpush2.msra.mxu0 0.0
    %100 = vmatprep.subr.mxu0 0.0
    %101 = vmatpush2.msra.mxu0 0.0
    %102 = vmatprep.subr.mxu0 0.0
    %103 = vmatpush2.msra.mxu0 0.0
    %104 = vmatprep.subr.mxu0 0.0
    %105 = vmatpush2.msra.mxu0 0.0
    %106 = vmatprep.subr.mxu0 0.0
    %107 = vmatpush2.msra.mxu0 0.0
    %108 = vmatprep.subr.mxu0 0.0
    %109 = vmatpush2.msra.mxu0 0.0
    %110 = vmatprep.subr.mxu0 0.0
    %111 = vmatpush2.msra.mxu0 0.0
    %112 = vmatprep.subr.mxu0 0.0
    %113 = vmatpush2.msra.mxu0 0.0
    %114 = vmatprep.subr.mxu0 0.0
    %115 = vmatpush2.msra.mxu0 0.0
    %116 = vmatprep.subr.mxu0 0.0
    %117 = vmatpush2.msra.mxu0 0.0
    %118 = vmatprep.subr.mxu0 0.0
    %119 = vmatpush2.msra.mxu0 0.0
    %120 = vmatprep.mubr.f32.mxu0 0.0
    %121 = vmatmul.mubr.f32.gmra.mxu0 %v51
    %v122 = vpop.f32.mrf.mxu0
    %v123 = vadd.f32 %v42, %v122
    %v124 = vpop.f32.mrf.mxu0
    %v125 = vadd.f32 %v46, %v124
    %126 = vmatprep.mubr.f32.mxu0 0.0
    %127 = vmatmul.mubr.f32.gmra.mxu0 %v54
    %v128 = vpop.f32.mrf.mxu0
    %v129 = vadd.f32 %v42, %v128
    %v130 = vpop.f32.mrf.mxu0
    %v131 = vadd.f32 %v46, %v130
    %132 = vdwg.mxu0
    %v133 = vld [vmem:[#allocation2 + $0x30] sm:$0xff]
    %v134 = vld [vmem:[#allocation2 + $0x38] sm:$0xff]
    %v135 = vld [vmem:[#allocation2 + $0x40] sm:$0xff]
    %v136 = vld [vmem:[#allocation2 + $0x48] sm:$0xff]
    %v137 = vld [vmem:[#allocation2 + $0x50] sm:$0xff]
    %v138 = vld [vmem:[#allocation2 + $0x58] sm:$0xff]
    %v139 = vld [vmem:[#allocation2 + $0x60] sm:$0xff]
    %v140 = vld [vmem:[#allocation2 + $0x68] sm:$0xff]
    %v141 = vld [vmem:[#allocation2 + $0x70] sm:$0xff]
    %v142 = vld [vmem:[#allocation2 + $0x78] sm:$0xff]
    %v143 = vld [vmem:[#allocation2 + $0x80] sm:$0xff]
    %v144 = vld [vmem:[#allocation2 + $0x88] sm:$0xff]
    %v145 = vld [vmem:[#allocation2 + $0x90] sm:$0xff]
    %v146 = vld [vmem:[#allocation2 + $0x98] sm:$0xff]
    %v147 = vld [vmem:[#allocation2 + $0xa0] sm:$0xff]
    %v148 = vld [vmem:[#allocation2 + $0xa8] sm:$0xff]
    %s149 = scalar_lea.vmem [#allocation2], 176
    %v150 = vld [vmem:[%s149] ss:$8 sm:$0x3]
    %v152 = vlaneseq
    %v153 = vshrl.u32 %v152, 7
    %v154 = vsub.s32 0, %v153
    %v155 = vrot.slane %v150, %v154
    %v156 = vlaneseq
    %v157 = vshrl.u32 %v156, 7
    %v158 = vsub.s32 1, %v157
    %v159 = vrot.slane %v150, %v158
    %vm162 = vcmask 523264
    %v164 = vsel %vm162, 0.0, 0
    %166 = vmatprep.subr.mxu0 0.0
    %167 = vmatpush1.msra.mxu0 0.0
    %168 = vmatprep.subr.mxu0 0.0
    %169 = vmatpush1.msra.mxu0 0.0
    %170 = vmatprep.subr.mxu0 0.0
    %171 = vmatpush1.msra.mxu0 0.0
    %172 = vmatprep.subr.mxu0 0.0
    %173 = vmatpush1.msra.mxu0 0.0
    %174 = vmatprep.subr.mxu0 0.0
    %175 = vmatpush1.msra.mxu0 0.0
    %176 = vmatprep.subr.mxu0 0.0
    %177 = vmatpush1.msra.mxu0 0.0
    %178 = vmatprep.subr.mxu0 0.0
    %179 = vmatpush1.msra.mxu0 0.0
    %180 = vmatprep.subr.mxu0 0.0
    %181 = vmatpush1.msra.mxu0 0.0
    %182 = vmatprep.subr.mxu0 %v148
    %183 = vmatpush1.msra.mxu0 %v147
    %184 = vmatprep.subr.mxu0 %v146
    %185 = vmatpush1.msra.mxu0 %v145
    %186 = vmatprep.subr.mxu0 %v144
    %187 = vmatpush1.msra.mxu0 %v143
    %188 = vmatprep.subr.mxu0 %v142
    %189 = vmatpush1.msra.mxu0 %v141
    %190 = vmatprep.subr.mxu0 %v140
    %191 = vmatpush1.msra.mxu0 %v139
    %192 = vmatprep.subr.mxu0 %v138
    %193 = vmatpush1.msra.mxu0 %v137
    %194 = vmatprep.subr.mxu0 %v136
    %195 = vmatpush1.msra.mxu0 %v135
    %196 = vmatprep.subr.mxu0 %v134
    %197 = vmatpush1.msra.mxu0 %v133
    %198 = vmatprep.subr.mxu0 0.0
    %199 = vmatpush2.msra.mxu0 0.0
    %200 = vmatprep.subr.mxu0 0.0
    %201 = vmatpush2.msra.mxu0 0.0
    %202 = vmatprep.subr.mxu0 0.0
    %203 = vmatpush2.msra.mxu0 0.0
    %204 = vmatprep.subr.mxu0 0.0
    %205 = vmatpush2.msra.mxu0 0.0
    %206 = vmatprep.subr.mxu0 0.0
    %207 = vmatpush2.msra.mxu0 0.0
    %208 = vmatprep.subr.mxu0 0.0
    %209 = vmatpush2.msra.mxu0 0.0
    %210 = vmatprep.subr.mxu0 0.0
    %211 = vmatpush2.msra.mxu0 0.0
    %212 = vmatprep.subr.mxu0 0.0
    %213 = vmatpush2.msra.mxu0 0.0
    %214 = vmatprep.subr.mxu0 0.0
    %215 = vmatpush2.msra.mxu0 0.0
    %216 = vmatprep.subr.mxu0 0.0
    %217 = vmatpush2.msra.mxu0 0.0
    %218 = vmatprep.subr.mxu0 0.0
    %219 = vmatpush2.msra.mxu0 0.0
    %220 = vmatprep.subr.mxu0 0.0
    %221 = vmatpush2.msra.mxu0 0.0
    %222 = vmatprep.subr.mxu0 0.0
    %223 = vmatpush2.msra.mxu0 0.0
    %224 = vmatprep.subr.mxu0 0.0
    %225 = vmatpush2.msra.mxu0 0.0
    %226 = vmatprep.subr.mxu0 0.0
    %227 = vmatpush2.msra.mxu0 0.0
    %228 = vmatprep.subr.mxu0 0.0
    %229 = vmatpush2.msra.mxu0 0.0
    %230 = vmatprep.mubr.f32.mxu0 0.0
    %231 = vmatmul.mubr.f32.gmra.mxu0 %v164
    %v232 = vpop.f32.mrf.mxu0
    %v233 = vadd.f32 %v155, %v232
    %v234 = vpop.f32.mrf.mxu0
    %v235 = vadd.f32 %v159, %v234
    %236 = vdwg.mxu0
    %v238 = vrot.slane %v233, 1
    %v241 = vadd.f32 %v123, %v233
    %v242 = vadd.f32 %v129, %v238
    %v243 = vxor.u32 %v241, 2147483648
    %v244 = vxor.u32 %v242, 2147483648
    %v245 = vmul.f32 %v243, 1.442695
    %v246 = vpow.pop %v245
    %v247 = vmul.f32 %v244, 1.442695
    %v248 = vpow.pop %v247
    %v249 = vadd.f32 %v246, 1.0
    %v250 = vadd.f32 %v248, 1.0
    %v251 = vrcp.pop %v249
    %v252 = vmul.f32 1.0, %v251
    %v253 = vrcp.pop %v250
    %v254 = vmul.f32 1.0, %v253
    %255 = vrot.lane.b32.xlu0 %v233, 64
    %v256 = vpop.permute.xlu0 %255
    %257 = vrot.lane.b32.xlu0 %v238, 64
    %v258 = vpop.permute.xlu0 %257
    %v261 = vmul.f32 %v252, %v256
    %v262 = vmul.f32 %v254, %v258
    %265 = vrot.lane.b32.xlu0 %v261, 64
    %v266 = vpop.permute.xlu0 %265
    %267 = vrot.lane.b32.xlu0 %v262, 64
    %v268 = vpop.permute.xlu0 %267
    %v271 = vadd.f32 %v123, %v266
    %v272 = vadd.f32 %v129, %v268
    %v273 = vtanh.pop %v271
    %v274 = vtanh.pop %v272
    %v275 = vsub.f32 1.0, %v252
    %v276 = vsub.f32 1.0, %v254
    %279 = vrot.lane.b32.xlu0 %v273, 96
    %v280 = vpop.permute.xlu0 %279
    %281 = vrot.lane.b32.xlu0 %v274, 96
    %v282 = vpop.permute.xlu0 %281
    %v285 = vmul.f32 %v275, %v280
    %v286 = vmul.f32 %v276, %v282
    %v287 = vmul.f32 %v252, 0.0
    %v288 = vmul.f32 %v254, 0.0
    %v289 = vadd.f32 %v285, %v287
    %v290 = vadd.f32 %v286, %v288
    %v291 = vrot.slane %v233, 2
    %v293 = vadd.f32 %v123, %v238
    %v294 = vadd.f32 %v129, %v291
    %v295 = vxor.u32 %v293, 2147483648
    %v296 = vxor.u32 %v294, 2147483648
    %v297 = vmul.f32 %v295, 1.442695
    %v298 = vpow.pop %v297
    %v299 = vmul.f32 %v296, 1.442695
    %v300 = vpow.pop %v299
    %v301 = vadd.f32 %v298, 1.0
    %v302 = vadd.f32 %v300, 1.0
    %v303 = vrcp.pop %v301
    %v304 = vmul.f32 1.0, %v303
    %v305 = vrcp.pop %v302
    %v306 = vmul.f32 1.0, %v305
    %v308 = vrot.slane %v235, 1
    %v309 = vrot.slane %v235, 2
    %v312 = vadd.f32 %v125, %v308
    %v313 = vadd.f32 %v131, %v309
    %v314 = vxor.u32 %v312, 2147483648
    %v315 = vxor.u32 %v313, 2147483648
    %v316 = vmul.f32 %v314, 1.442695
    %v317 = vpow.pop %v316
    %v318 = vmul.f32 %v315, 1.442695
    %v319 = vpow.pop %v318
    %v320 = vadd.f32 %v317, 1.0
    %v321 = vadd.f32 %v319, 1.0
    %v322 = vrcp.pop %v320
    %v323 = vmul.f32 1.0, %v322
    %v324 = vrcp.pop %v321
    %v325 = vmul.f32 1.0, %v324
    %326 = vrot.lane.b32.xlu0 %v308, 64
    %v327 = vpop.permute.xlu0 %326
    %328 = vrot.lane.b32.xlu0 %v309, 64
    %v329 = vpop.permute.xlu0 %328
    %v332 = vmul.f32 %v304, %v327
    %v333 = vmul.f32 %v306, %v329
    %336 = vrot.lane.b32.xlu0 %v332, 64
    %v337 = vpop.permute.xlu0 %336
    %338 = vrot.lane.b32.xlu0 %v333, 64
    %v339 = vpop.permute.xlu0 %338
    %v342 = vadd.f32 %v125, %v337
    %v343 = vadd.f32 %v131, %v339
    %v344 = vtanh.pop %v342
    %v345 = vtanh.pop %v343
    %v346 = vsub.f32 1.0, %v323
    %v347 = vsub.f32 1.0, %v325
    %350 = vrot.lane.b32.xlu0 %v344, 96
    %v351 = vpop.permute.xlu0 %350
    %352 = vrot.lane.b32.xlu0 %v345, 96
    %v353 = vpop.permute.xlu0 %352
    %v356 = vmul.f32 %v346, %v351
    %v357 = vmul.f32 %v347, %v353
    %v358 = vmul.f32 %v323, 0.0
    %v359 = vmul.f32 %v325, 0.0
    %v360 = vadd.f32 %v356, %v358
    %v361 = vadd.f32 %v357, %v359
    %v364 = vrot.slane %v290, 7
    %vm365 = vcmask 1041409
    %v366 = vsel %vm365, %v364, %v289
    %367 = vrot.lane.b32.xlu0 %v366, 96
    %v368 = vpop.permute.xlu0 %367
    %v372 = vrot.slane %v360, 7
    %v373 = vrot.slane %v361, 6
    %v374 = vsel %vm365, %v373, %v372
    %375 = vrot.lane.b32.xlu0 %v374, 32
    %v376 = vpop.permute.xlu0 %375
    %vm378 = vcmask 261120
    %v379 = vsel %vm378, %v368, %v376
    %v381 = vsel %vm162, %v379, 0
    %383 = vmatprep.subr.mxu0 0.0
    %384 = vmatpush1.msra.mxu0 0.0
    %385 = vmatprep.subr.mxu0 0.0
    %386 = vmatpush1.msra.mxu0 0.0
    %387 = vmatprep.subr.mxu0 0.0
    %388 = vmatpush1.msra.mxu0 0.0
    %389 = vmatprep.subr.mxu0 0.0
    %390 = vmatpush1.msra.mxu0 0.0
    %391 = vmatprep.subr.mxu0 0.0
    %392 = vmatpush1.msra.mxu0 0.0
    %393 = vmatprep.subr.mxu0 0.0
    %394 = vmatpush1.msra.mxu0 0.0
    %395 = vmatprep.subr.mxu0 0.0
    %396 = vmatpush1.msra.mxu0 0.0
    %397 = vmatprep.subr.mxu0 0.0
    %398 = vmatpush1.msra.mxu0 0.0
    %399 = vmatprep.subr.mxu0 %v148
    %400 = vmatpush1.msra.mxu0 %v147
    %401 = vmatprep.subr.mxu0 %v146
    %402 = vmatpush1.msra.mxu0 %v145
    %403 = vmatprep.subr.mxu0 %v144
    %404 = vmatpush1.msra.mxu0 %v143
    %405 = vmatprep.subr.mxu0 %v142
    %406 = vmatpush1.msra.mxu0 %v141
    %407 = vmatprep.subr.mxu0 %v140
    %408 = vmatpush1.msra.mxu0 %v139
    %409 = vmatprep.subr.mxu0 %v138
    %410 = vmatpush1.msra.mxu0 %v137
    %411 = vmatprep.subr.mxu0 %v136
    %412 = vmatpush1.msra.mxu0 %v135
    %413 = vmatprep.subr.mxu0 %v134
    %414 = vmatpush1.msra.mxu0 %v133
    %415 = vmatprep.subr.mxu0 0.0
    %416 = vmatpush2.msra.mxu0 0.0
    %417 = vmatprep.subr.mxu0 0.0
    %418 = vmatpush2.msra.mxu0 0.0
    %419 = vmatprep.subr.mxu0 0.0
    %420 = vmatpush2.msra.mxu0 0.0
    %421 = vmatprep.subr.mxu0 0.0
    %422 = vmatpush2.msra.mxu0 0.0
    %423 = vmatprep.subr.mxu0 0.0
    %424 = vmatpush2.msra.mxu0 0.0
    %425 = vmatprep.subr.mxu0 0.0
    %426 = vmatpush2.msra.mxu0 0.0
    %427 = vmatprep.subr.mxu0 0.0
    %428 = vmatpush2.msra.mxu0 0.0
    %429 = vmatprep.subr.mxu0 0.0
    %430 = vmatpush2.msra.mxu0 0.0
    %431 = vmatprep.subr.mxu0 0.0
    %432 = vmatpush2.msra.mxu0 0.0
    %433 = vmatprep.subr.mxu0 0.0
    %434 = vmatpush2.msra.mxu0 0.0
    %435 = vmatprep.subr.mxu0 0.0
    %436 = vmatpush2.msra.mxu0 0.0
    %437 = vmatprep.subr.mxu0 0.0
    %438 = vmatpush2.msra.mxu0 0.0
    %439 = vmatprep.subr.mxu0 0.0
    %440 = vmatpush2.msra.mxu0 0.0
    %441 = vmatprep.subr.mxu0 0.0
    %442 = vmatpush2.msra.mxu0 0.0
    %443 = vmatprep.subr.mxu0 0.0
    %444 = vmatpush2.msra.mxu0 0.0
    %445 = vmatprep.subr.mxu0 0.0
    %446 = vmatpush2.msra.mxu0 0.0
    %447 = vmatprep.mubr.f32.mxu0 0.0
    %448 = vmatmul.mubr.f32.gmra.mxu0 %v381
    %v449 = vpop.f32.mrf.mxu0
    %v450 = vadd.f32 %v155, %v449
    %v451 = vpop.f32.mrf.mxu0
    %v452 = vadd.f32 %v159, %v451
    %453 = vdwg.mxu0
    %v455 = vrot.slane %v450, 7
    %v458 = vadd.f32 %v123, %v455
    %v459 = vadd.f32 %v129, %v450
    %v460 = vxor.u32 %v458, 2147483648
    %v461 = vxor.u32 %v459, 2147483648
    %v462 = vmul.f32 %v460, 1.442695
    %v463 = vpow.pop %v462
    %v464 = vmul.f32 %v461, 1.442695
    %v465 = vpow.pop %v464
    %v466 = vadd.f32 %v463, 1.0
    %v467 = vadd.f32 %v465, 1.0
    %v468 = vrcp.pop %v466
    %v469 = vmul.f32 1.0, %v468
    %v470 = vrcp.pop %v467
    %v471 = vmul.f32 1.0, %v470
    %472 = vrot.lane.b32.xlu0 %v455, 64
    %v473 = vpop.permute.xlu0 %472
    %474 = vrot.lane.b32.xlu0 %v450, 64
    %v475 = vpop.permute.xlu0 %474
    %v478 = vmul.f32 %v469, %v473
    %v479 = vmul.f32 %v471, %v475
    %482 = vrot.lane.b32.xlu0 %v478, 64
    %v483 = vpop.permute.xlu0 %482
    %484 = vrot.lane.b32.xlu0 %v479, 64
    %v485 = vpop.permute.xlu0 %484
    %v488 = vadd.f32 %v123, %v483
    %v489 = vadd.f32 %v129, %v485
    %v490 = vtanh.pop %v488
    %v491 = vtanh.pop %v489
    %v492 = vsub.f32 1.0, %v469
    %v493 = vsub.f32 1.0, %v471
    %496 = vrot.lane.b32.xlu0 %v490, 96
    %v497 = vpop.permute.xlu0 %496
    %498 = vrot.lane.b32.xlu0 %v491, 96
    %v499 = vpop.permute.xlu0 %498
    %v502 = vmul.f32 %v492, %v497
    %v503 = vmul.f32 %v493, %v499
    %v504 = vrot.slane %v379, 7
    %505 = vrot.lane.b32.xlu0 %v504, 32
    %v506 = vpop.permute.xlu0 %505
    %507 = vrot.lane.b32.xlu0 %v379, 32
    %v508 = vpop.permute.xlu0 %507
    %v511 = vmul.f32 %v469, %v506
    %v512 = vmul.f32 %v471, %v508
    %v513 = vadd.f32 %v502, %v511
    %v514 = vadd.f32 %v503, %v512
    %v515 = vrot.slane %v450, 2
    %v516 = vrot.slane %v450, 3
    %v519 = vadd.f32 %v123, %v515
    %v520 = vadd.f32 %v129, %v516
    %v521 = vxor.u32 %v519, 2147483648
    %v522 = vxor.u32 %v520, 2147483648
    %v523 = vmul.f32 %v521, 1.442695
    %v524 = vpow.pop %v523
    %v525 = vmul.f32 %v522, 1.442695
    %v526 = vpow.pop %v525
    %v527 = vadd.f32 %v524, 1.0
    %v528 = vadd.f32 %v526, 1.0
    %v529 = vrcp.pop %v527
    %v530 = vmul.f32 1.0, %v529
    %v531 = vrcp.pop %v528
    %v532 = vmul.f32 1.0, %v531
    %v534 = vrot.slane %v452, 2
    %v535 = vrot.slane %v452, 3
    %v538 = vadd.f32 %v125, %v534
    %v539 = vadd.f32 %v131, %v535
    %v540 = vxor.u32 %v538, 2147483648
    %v541 = vxor.u32 %v539, 2147483648
    %v542 = vmul.f32 %v540, 1.442695
    %v543 = vpow.pop %v542
    %v544 = vmul.f32 %v541, 1.442695
    %v545 = vpow.pop %v544
    %v546 = vadd.f32 %v543, 1.0
    %v547 = vadd.f32 %v545, 1.0
    %v548 = vrcp.pop %v546
    %v549 = vmul.f32 1.0, %v548
    %v550 = vrcp.pop %v547
    %v551 = vmul.f32 1.0, %v550
    %552 = vrot.lane.b32.xlu0 %v534, 64
    %v553 = vpop.permute.xlu0 %552
    %554 = vrot.lane.b32.xlu0 %v535, 64
    %v555 = vpop.permute.xlu0 %554
    %v558 = vmul.f32 %v530, %v553
    %v559 = vmul.f32 %v532, %v555
    %562 = vrot.lane.b32.xlu0 %v558, 64
    %v563 = vpop.permute.xlu0 %562
    %564 = vrot.lane.b32.xlu0 %v559, 64
    %v565 = vpop.permute.xlu0 %564
    %v568 = vadd.f32 %v125, %v563
    %v569 = vadd.f32 %v131, %v565
    %v570 = vtanh.pop %v568
    %v571 = vtanh.pop %v569
    %v572 = vsub.f32 1.0, %v549
    %v573 = vsub.f32 1.0, %v551
    %576 = vrot.lane.b32.xlu0 %v570, 96
    %v577 = vpop.permute.xlu0 %576
    %578 = vrot.lane.b32.xlu0 %v571, 96
    %v579 = vpop.permute.xlu0 %578
    %v582 = vmul.f32 %v572, %v577
    %v583 = vmul.f32 %v573, %v579
    %v584 = vrot.slane %v379, 2
    %v585 = vrot.slane %v379, 3
    %586 = vrot.lane.b32.xlu0 %v584, 96
    %v587 = vpop.permute.xlu0 %586
    %588 = vrot.lane.b32.xlu0 %v585, 96
    %v589 = vpop.permute.xlu0 %588
    %v592 = vmul.f32 %v549, %v587
    %v593 = vmul.f32 %v551, %v589
    %v594 = vadd.f32 %v582, %v592
    %v595 = vadd.f32 %v583, %v593
    %v598 = vrot.slane %v514, 7
    %vm599 = vcmask 1042434
    %v600 = vsel %vm599, %v598, %v513
    %601 = vrot.lane.b32.xlu0 %v600, 96
    %v602 = vpop.permute.xlu0 %601
    %v606 = vrot.slane %v594, 5
    %v607 = vrot.slane %v595, 4
    %v608 = vsel %vm599, %v607, %v606
    %609 = vrot.lane.b32.xlu0 %v608, 32
    %v610 = vpop.permute.xlu0 %609
    %v612 = vsel %vm378, %v602, %v610
    %v614 = vrot.slane %v612, 1
    %v615 = vsel %vm162, %v614, 0
    %617 = vmatprep.subr.mxu0 0.0
    %618 = vmatpush1.msra.mxu0 0.0
    %619 = vmatprep.subr.mxu0 0.0
    %620 = vmatpush1.msra.mxu0 0.0
    %621 = vmatprep.subr.mxu0 0.0
    %622 = vmatpush1.msra.mxu0 0.0
    %623 = vmatprep.subr.mxu0 0.0
    %624 = vmatpush1.msra.mxu0 0.0
    %625 = vmatprep.subr.mxu0 0.0
    %626 = vmatpush1.msra.mxu0 0.0
    %627 = vmatprep.subr.mxu0 0.0
    %628 = vmatpush1.msra.mxu0 0.0
    %629 = vmatprep.subr.mxu0 0.0
    %630 = vmatpush1.msra.mxu0 0.0
    %631 = vmatprep.subr.mxu0 0.0
    %632 = vmatpush1.msra.mxu0 0.0
    %633 = vmatprep.subr.mxu0 %v148
    %634 = vmatpush1.msra.mxu0 %v147
    %635 = vmatprep.subr.mxu0 %v146
    %636 = vmatpush1.msra.mxu0 %v145
    %637 = vmatprep.subr.mxu0 %v144
    %638 = vmatpush1.msra.mxu0 %v143
    %639 = vmatprep.subr.mxu0 %v142
    %640 = vmatpush1.msra.mxu0 %v141
    %641 = vmatprep.subr.mxu0 %v140
    %642 = vmatpush1.msra.mxu0 %v139
    %643 = vmatprep.subr.mxu0 %v138
    %644 = vmatpush1.msra.mxu0 %v137
    %645 = vmatprep.subr.mxu0 %v136
    %646 = vmatpush1.msra.mxu0 %v135
    %647 = vmatprep.subr.mxu0 %v134
    %648 = vmatpush1.msra.mxu0 %v133
    %649 = vmatprep.subr.mxu0 0.0
    %650 = vmatpush2.msra.mxu0 0.0
    %651 = vmatprep.subr.mxu0 0.0
    %652 = vmatpush2.msra.mxu0 0.0
    %653 = vmatprep.subr.mxu0 0.0
    %654 = vmatpush2.msra.mxu0 0.0
    %655 = vmatprep.subr.mxu0 0.0
    %656 = vmatpush2.msra.mxu0 0.0
    %657 = vmatprep.subr.mxu0 0.0
    %658 = vmatpush2.msra.mxu0 0.0
    %659 = vmatprep.subr.mxu0 0.0
    %660 = vmatpush2.msra.mxu0 0.0
    %661 = vmatprep.subr.mxu0 0.0
    %662 = vmatpush2.msra.mxu0 0.0
    %663 = vmatprep.subr.mxu0 0.0
    %664 = vmatpush2.msra.mxu0 0.0
    %665 = vmatprep.subr.mxu0 0.0
    %666 = vmatpush2.msra.mxu0 0.0
    %667 = vmatprep.subr.mxu0 0.0
    %668 = vmatpush2.msra.mxu0 0.0
    %669 = vmatprep.subr.mxu0 0.0
    %670 = vmatpush2.msra.mxu0 0.0
    %671 = vmatprep.subr.mxu0 0.0
    %672 = vmatpush2.msra.mxu0 0.0
    %673 = vmatprep.subr.mxu0 0.0
    %674 = vmatpush2.msra.mxu0 0.0
    %675 = vmatprep.subr.mxu0 0.0
    %676 = vmatpush2.msra.mxu0 0.0
    %677 = vmatprep.subr.mxu0 0.0
    %678 = vmatpush2.msra.mxu0 0.0
    %679 = vmatprep.subr.mxu0 0.0
    %680 = vmatpush2.msra.mxu0 0.0
    %681 = vmatprep.mubr.f32.mxu0 0.0
    %682 = vmatmul.mubr.f32.gmra.mxu0 %v615
    %v683 = vpop.f32.mrf.mxu0
    %v684 = vadd.f32 %v155, %v683
    %v685 = vpop.f32.mrf.mxu0
    %v686 = vadd.f32 %v159, %v685
    %687 = vdwg.mxu0
    %v689 = vrot.slane %v684, 6
    %v690 = vrot.slane %v684, 7
    %v693 = vadd.f32 %v123, %v689
    %v694 = vadd.f32 %v129, %v690
    %v695 = vxor.u32 %v693, 2147483648
    %v696 = vxor.u32 %v694, 2147483648
    %v697 = vmul.f32 %v695, 1.442695
    %v698 = vpow.pop %v697
    %v699 = vmul.f32 %v696, 1.442695
    %v700 = vpow.pop %v699
    %v701 = vadd.f32 %v698, 1.0
    %v702 = vadd.f32 %v700, 1.0
    %v703 = vrcp.pop %v701
    %v704 = vmul.f32 1.0, %v703
    %v705 = vrcp.pop %v702
    %v706 = vmul.f32 1.0, %v705
    %707 = vrot.lane.b32.xlu0 %v689, 64
    %v708 = vpop.permute.xlu0 %707
    %709 = vrot.lane.b32.xlu0 %v690, 64
    %v710 = vpop.permute.xlu0 %709
    %v713 = vmul.f32 %v704, %v708
    %v714 = vmul.f32 %v706, %v710
    %717 = vrot.lane.b32.xlu0 %v713, 64
    %v718 = vpop.permute.xlu0 %717
    %719 = vrot.lane.b32.xlu0 %v714, 64
    %v720 = vpop.permute.xlu0 %719
    %v723 = vadd.f32 %v123, %v718
    %v724 = vadd.f32 %v129, %v720
    %v725 = vtanh.pop %v723
    %v726 = vtanh.pop %v724
    %v727 = vsub.f32 1.0, %v704
    %v728 = vsub.f32 1.0, %v706
    %731 = vrot.lane.b32.xlu0 %v725, 96
    %v732 = vpop.permute.xlu0 %731
    %733 = vrot.lane.b32.xlu0 %v726, 96
    %v734 = vpop.permute.xlu0 %733
    %v737 = vmul.f32 %v727, %v732
    %v738 = vmul.f32 %v728, %v734
    %v739 = vrot.slane %v612, 7
    %740 = vrot.lane.b32.xlu0 %v739, 32
    %v741 = vpop.permute.xlu0 %740
    %742 = vrot.lane.b32.xlu0 %v612, 32
    %v743 = vpop.permute.xlu0 %742
    %v746 = vmul.f32 %v704, %v741
    %v747 = vmul.f32 %v706, %v743
    %v748 = vadd.f32 %v737, %v746
    %v749 = vadd.f32 %v738, %v747
    %v750 = vrot.slane %v684, 3
    %v751 = vrot.slane %v684, 4
    %v754 = vadd.f32 %v123, %v750
    %v755 = vadd.f32 %v129, %v751
    %v756 = vxor.u32 %v754, 2147483648
    %v757 = vxor.u32 %v755, 2147483648
    %v758 = vmul.f32 %v756, 1.442695
    %v759 = vpow.pop %v758
    %v760 = vmul.f32 %v757, 1.442695
    %v761 = vpow.pop %v760
    %v762 = vadd.f32 %v759, 1.0
    %v763 = vadd.f32 %v761, 1.0
    %v764 = vrcp.pop %v762
    %v765 = vmul.f32 1.0, %v764
    %v766 = vrcp.pop %v763
    %v767 = vmul.f32 1.0, %v766
    %v769 = vrot.slane %v686, 3
    %v770 = vrot.slane %v686, 4
    %v773 = vadd.f32 %v125, %v769
    %v774 = vadd.f32 %v131, %v770
    %v775 = vxor.u32 %v773, 2147483648
    %v776 = vxor.u32 %v774, 2147483648
    %v777 = vmul.f32 %v775, 1.442695
    %v778 = vpow.pop %v777
    %v779 = vmul.f32 %v776, 1.442695
    %v780 = vpow.pop %v779
    %v781 = vadd.f32 %v778, 1.0
    %v782 = vadd.f32 %v780, 1.0
    %v783 = vrcp.pop %v781
    %v784 = vmul.f32 1.0, %v783
    %v785 = vrcp.pop %v782
    %v786 = vmul.f32 1.0, %v785
    %787 = vrot.lane.b32.xlu0 %v769, 64
    %v788 = vpop.permute.xlu0 %787
    %789 = vrot.lane.b32.xlu0 %v770, 64
    %v790 = vpop.permute.xlu0 %789
    %v793 = vmul.f32 %v765, %v788
    %v794 = vmul.f32 %v767, %v790
    %797 = vrot.lane.b32.xlu0 %v793, 64
    %v798 = vpop.permute.xlu0 %797
    %799 = vrot.lane.b32.xlu0 %v794, 64
    %v800 = vpop.permute.xlu0 %799
    %v803 = vadd.f32 %v125, %v798
    %v804 = vadd.f32 %v131, %v800
    %v805 = vtanh.pop %v803
    %v806 = vtanh.pop %v804
    %v807 = vsub.f32 1.0, %v784
    %v808 = vsub.f32 1.0, %v786
    %811 = vrot.lane.b32.xlu0 %v805, 96
    %v812 = vpop.permute.xlu0 %811
    %813 = vrot.lane.b32.xlu0 %v806, 96
    %v814 = vpop.permute.xlu0 %813
    %v817 = vmul.f32 %v807, %v812
    %v818 = vmul.f32 %v808, %v814
    %v819 = vrot.slane %v612, 4
    %v820 = vrot.slane %v612, 5
    %821 = vrot.lane.b32.xlu0 %v819, 96
    %v822 = vpop.permute.xlu0 %821
    %823 = vrot.lane.b32.xlu0 %v820, 96
    %v824 = vpop.permute.xlu0 %823
    %v827 = vmul.f32 %v784, %v822
    %v828 = vmul.f32 %v786, %v824
    %v829 = vadd.f32 %v817, %v827
    %v830 = vadd.f32 %v818, %v828
    %v833 = vrot.slane %v749, 7
    %vm834 = vcmask 1043459
    %v835 = vsel %vm834, %v833, %v748
    %836 = vrot.lane.b32.xlu0 %v835, 96
    %v837 = vpop.permute.xlu0 %836
    %v841 = vrot.slane %v829, 3
    %v842 = vrot.slane %v830, 2
    %v843 = vsel %vm834, %v842, %v841
    %844 = vrot.lane.b32.xlu0 %v843, 32
    %v845 = vpop.permute.xlu0 %844
    %v847 = vsel %vm378, %v837, %v845
    %v849 = vrot.slane %v847, 2
    %v850 = vsel %vm162, %v849, 0
    %852 = vmatprep.subr.mxu0 0.0
    %853 = vmatpush1.msra.mxu0 0.0
    %854 = vmatprep.subr.mxu0 0.0
    %855 = vmatpush1.msra.mxu0 0.0
    %856 = vmatprep.subr.mxu0 0.0
    %857 = vmatpush1.msra.mxu0 0.0
    %858 = vmatprep.subr.mxu0 0.0
    %859 = vmatpush1.msra.mxu0 0.0
    %860 = vmatprep.subr.mxu0 0.0
    %861 = vmatpush1.msra.mxu0 0.0
    %862 = vmatprep.subr.mxu0 0.0
    %863 = vmatpush1.msra.mxu0 0.0
    %864 = vmatprep.subr.mxu0 0.0
    %865 = vmatpush1.msra.mxu0 0.0
    %866 = vmatprep.subr.mxu0 0.0
    %867 = vmatpush1.msra.mxu0 0.0
    %868 = vmatprep.subr.mxu0 %v148
    %869 = vmatpush1.msra.mxu0 %v147
    %870 = vmatprep.subr.mxu0 %v146
    %871 = vmatpush1.msra.mxu0 %v145
    %872 = vmatprep.subr.mxu0 %v144
    %873 = vmatpush1.msra.mxu0 %v143
    %874 = vmatprep.subr.mxu0 %v142
    %875 = vmatpush1.msra.mxu0 %v141
    %876 = vmatprep.subr.mxu0 %v140
    %877 = vmatpush1.msra.mxu0 %v139
    %878 = vmatprep.subr.mxu0 %v138
    %879 = vmatpush1.msra.mxu0 %v137
    %880 = vmatprep.subr.mxu0 %v136
    %881 = vmatpush1.msra.mxu0 %v135
    %882 = vmatprep.subr.mxu0 %v134
    %883 = vmatpush1.msra.mxu0 %v133
    %884 = vmatprep.subr.mxu0 0.0
    %885 = vmatpush2.msra.mxu0 0.0
    %886 = vmatprep.subr.mxu0 0.0
    %887 = vmatpush2.msra.mxu0 0.0
    %888 = vmatprep.subr.mxu0 0.0
    %889 = vmatpush2.msra.mxu0 0.0
    %890 = vmatprep.subr.mxu0 0.0
    %891 = vmatpush2.msra.mxu0 0.0
    %892 = vmatprep.subr.mxu0 0.0
    %893 = vmatpush2.msra.mxu0 0.0
    %894 = vmatprep.subr.mxu0 0.0
    %895 = vmatpush2.msra.mxu0 0.0
    %896 = vmatprep.subr.mxu0 0.0
    %897 = vmatpush2.msra.mxu0 0.0
    %898 = vmatprep.subr.mxu0 0.0
    %899 = vmatpush2.msra.mxu0 0.0
    %900 = vmatprep.subr.mxu0 0.0
    %901 = vmatpush2.msra.mxu0 0.0
    %902 = vmatprep.subr.mxu0 0.0
    %903 = vmatpush2.msra.mxu0 0.0
    %904 = vmatprep.subr.mxu0 0.0
    %905 = vmatpush2.msra.mxu0 0.0
    %906 = vmatprep.subr.mxu0 0.0
    %907 = vmatpush2.msra.mxu0 0.0
    %908 = vmatprep.subr.mxu0 0.0
    %909 = vmatpush2.msra.mxu0 0.0
    %910 = vmatprep.subr.mxu0 0.0
    %911 = vmatpush2.msra.mxu0 0.0
    %912 = vmatprep.subr.mxu0 0.0
    %913 = vmatpush2.msra.mxu0 0.0
    %914 = vmatprep.subr.mxu0 0.0
    %915 = vmatpush2.msra.mxu0 0.0
    %916 = vmatprep.mubr.f32.mxu0 0.0
    %917 = vmatmul.mubr.f32.gmra.mxu0 %v850
    %v918 = vpop.f32.mrf.mxu0
    %v919 = vadd.f32 %v155, %v918
    %v920 = vpop.f32.mrf.mxu0
    %v921 = vadd.f32 %v159, %v920
    %922 = vdwg.mxu0
    %v924 = vrot.slane %v919, 5
    %v925 = vrot.slane %v919, 6
    %v928 = vadd.f32 %v123, %v924
    %v929 = vadd.f32 %v129, %v925
    %v930 = vxor.u32 %v928, 2147483648
    %v931 = vxor.u32 %v929, 2147483648
    %v932 = vmul.f32 %v930, 1.442695
    %v933 = vpow.pop %v932
    %v934 = vmul.f32 %v931, 1.442695
    %v935 = vpow.pop %v934
    %v936 = vadd.f32 %v933, 1.0
    %v937 = vadd.f32 %v935, 1.0
    %v938 = vrcp.pop %v936
    %v939 = vmul.f32 1.0, %v938
    %v940 = vrcp.pop %v937
    %v941 = vmul.f32 1.0, %v940
    %942 = vrot.lane.b32.xlu0 %v924, 64
    %v943 = vpop.permute.xlu0 %942
    %944 = vrot.lane.b32.xlu0 %v925, 64
    %v945 = vpop.permute.xlu0 %944
    %v948 = vmul.f32 %v939, %v943
    %v949 = vmul.f32 %v941, %v945
    %952 = vrot.lane.b32.xlu0 %v948, 64
    %v953 = vpop.permute.xlu0 %952
    %954 = vrot.lane.b32.xlu0 %v949, 64
    %v955 = vpop.permute.xlu0 %954
    %v958 = vadd.f32 %v123, %v953
    %v959 = vadd.f32 %v129, %v955
    %v960 = vtanh.pop %v958
    %v961 = vtanh.pop %v959
    %v962 = vsub.f32 1.0, %v939
    %v963 = vsub.f32 1.0, %v941
    %966 = vrot.lane.b32.xlu0 %v960, 96
    %v967 = vpop.permute.xlu0 %966
    %968 = vrot.lane.b32.xlu0 %v961, 96
    %v969 = vpop.permute.xlu0 %968
    %v972 = vmul.f32 %v962, %v967
    %v973 = vmul.f32 %v963, %v969
    %v974 = vrot.slane %v847, 7
    %975 = vrot.lane.b32.xlu0 %v974, 32
    %v976 = vpop.permute.xlu0 %975
    %977 = vrot.lane.b32.xlu0 %v847, 32
    %v978 = vpop.permute.xlu0 %977
    %v981 = vmul.f32 %v939, %v976
    %v982 = vmul.f32 %v941, %v978
    %v983 = vadd.f32 %v972, %v981
    %v984 = vadd.f32 %v973, %v982
    %v985 = vrot.slane %v919, 4
    %v987 = vadd.f32 %v123, %v985
    %v988 = vadd.f32 %v129, %v924
    %v989 = vxor.u32 %v987, 2147483648
    %v990 = vxor.u32 %v988, 2147483648
    %v991 = vmul.f32 %v989, 1.442695
    %v992 = vpow.pop %v991
    %v993 = vmul.f32 %v990, 1.442695
    %v994 = vpow.pop %v993
    %v995 = vadd.f32 %v992, 1.0
    %v996 = vadd.f32 %v994, 1.0
    %v997 = vrcp.pop %v995
    %v998 = vmul.f32 1.0, %v997
    %v999 = vrcp.pop %v996
    %v1000 = vmul.f32 1.0, %v999
    %v1002 = vrot.slane %v921, 4
    %v1003 = vrot.slane %v921, 5
    %v1006 = vadd.f32 %v125, %v1002
    %v1007 = vadd.f32 %v131, %v1003
    %v1008 = vxor.u32 %v1006, 2147483648
    %v1009 = vxor.u32 %v1007, 2147483648
    %v1010 = vmul.f32 %v1008, 1.442695
    %v1011 = vpow.pop %v1010
    %v1012 = vmul.f32 %v1009, 1.442695
    %v1013 = vpow.pop %v1012
    %v1014 = vadd.f32 %v1011, 1.0
    %v1015 = vadd.f32 %v1013, 1.0
    %v1016 = vrcp.pop %v1014
    %v1017 = vmul.f32 1.0, %v1016
    %v1018 = vrcp.pop %v1015
    %v1019 = vmul.f32 1.0, %v1018
    %1020 = vrot.lane.b32.xlu0 %v1002, 64
    %v1021 = vpop.permute.xlu0 %1020
    %1022 = vrot.lane.b32.xlu0 %v1003, 64
    %v1023 = vpop.permute.xlu0 %1022
    %v1026 = vmul.f32 %v998, %v1021
    %v1027 = vmul.f32 %v1000, %v1023
    %1030 = vrot.lane.b32.xlu0 %v1026, 64
    %v1031 = vpop.permute.xlu0 %1030
    %1032 = vrot.lane.b32.xlu0 %v1027, 64
    %v1033 = vpop.permute.xlu0 %1032
    %v1036 = vadd.f32 %v125, %v1031
    %v1037 = vadd.f32 %v131, %v1033
    %v1038 = vtanh.pop %v1036
    %v1039 = vtanh.pop %v1037
    %v1040 = vsub.f32 1.0, %v1017
    %v1041 = vsub.f32 1.0, %v1019
    %1044 = vrot.lane.b32.xlu0 %v1038, 96
    %v1045 = vpop.permute.xlu0 %1044
    %1046 = vrot.lane.b32.xlu0 %v1039, 96
    %v1047 = vpop.permute.xlu0 %1046
    %v1050 = vmul.f32 %v1040, %v1045
    %v1051 = vmul.f32 %v1041, %v1047
    %v1052 = vrot.slane %v847, 6
    %1053 = vrot.lane.b32.xlu0 %v1052, 96
    %v1054 = vpop.permute.xlu0 %1053
    %1055 = vrot.lane.b32.xlu0 %v974, 96
    %v1056 = vpop.permute.xlu0 %1055
    %v1059 = vmul.f32 %v1017, %v1054
    %v1060 = vmul.f32 %v1019, %v1056
    %v1061 = vadd.f32 %v1050, %v1059
    %v1062 = vadd.f32 %v1051, %v1060
    %v1065 = vrot.slane %v984, 7
    %vm1066 = vcmask 1044484
    %v1067 = vsel %vm1066, %v1065, %v983
    %1068 = vrot.lane.b32.xlu0 %v1067, 96
    %v1069 = vpop.permute.xlu0 %1068
    %v1073 = vrot.slane %v1061, 1
    %v1074 = vsel %vm1066, %v1062, %v1073
    %1075 = vrot.lane.b32.xlu0 %v1074, 32
    %v1076 = vpop.permute.xlu0 %1075
    %v1078 = vsel %vm378, %v1069, %v1076
    %v1080 = vrot.slane %v1078, 3
    %v1081 = vsel %vm162, %v1080, 0
    %1083 = vmatprep.subr.mxu0 0.0
    %1084 = vmatpush1.msra.mxu0 0.0
    %1085 = vmatprep.subr.mxu0 0.0
    %1086 = vmatpush1.msra.mxu0 0.0
    %1087 = vmatprep.subr.mxu0 0.0
    %1088 = vmatpush1.msra.mxu0 0.0
    %1089 = vmatprep.subr.mxu0 0.0
    %1090 = vmatpush1.msra.mxu0 0.0
    %1091 = vmatprep.subr.mxu0 0.0
    %1092 = vmatpush1.msra.mxu0 0.0
    %1093 = vmatprep.subr.mxu0 0.0
    %1094 = vmatpush1.msra.mxu0 0.0
    %1095 = vmatprep.subr.mxu0 0.0
    %1096 = vmatpush1.msra.mxu0 0.0
    %1097 = vmatprep.subr.mxu0 0.0
    %1098 = vmatpush1.msra.mxu0 0.0
    %1099 = vmatprep.subr.mxu0 %v148
    %1100 = vmatpush1.msra.mxu0 %v147
    %1101 = vmatprep.subr.mxu0 %v146
    %1102 = vmatpush1.msra.mxu0 %v145
    %1103 = vmatprep.subr.mxu0 %v144
    %1104 = vmatpush1.msra.mxu0 %v143
    %1105 = vmatprep.subr.mxu0 %v142
    %1106 = vmatpush1.msra.mxu0 %v141
    %1107 = vmatprep.subr.mxu0 %v140
    %1108 = vmatpush1.msra.mxu0 %v139
    %1109 = vmatprep.subr.mxu0 %v138
    %1110 = vmatpush1.msra.mxu0 %v137
    %1111 = vmatprep.subr.mxu0 %v136
    %1112 = vmatpush1.msra.mxu0 %v135
    %1113 = vmatprep.subr.mxu0 %v134
    %1114 = vmatpush1.msra.mxu0 %v133
    %1115 = vmatprep.subr.mxu0 0.0
    %1116 = vmatpush2.msra.mxu0 0.0
    %1117 = vmatprep.subr.mxu0 0.0
    %1118 = vmatpush2.msra.mxu0 0.0
    %1119 = vmatprep.subr.mxu0 0.0
    %1120 = vmatpush2.msra.mxu0 0.0
    %1121 = vmatprep.subr.mxu0 0.0
    %1122 = vmatpush2.msra.mxu0 0.0
    %1123 = vmatprep.subr.mxu0 0.0
    %1124 = vmatpush2.msra.mxu0 0.0
    %1125 = vmatprep.subr.mxu0 0.0
    %1126 = vmatpush2.msra.mxu0 0.0
    %1127 = vmatprep.subr.mxu0 0.0
    %1128 = vmatpush2.msra.mxu0 0.0
    %1129 = vmatprep.subr.mxu0 0.0
    %1130 = vmatpush2.msra.mxu0 0.0
    %1131 = vmatprep.subr.mxu0 0.0
    %1132 = vmatpush2.msra.mxu0 0.0
    %1133 = vmatprep.subr.mxu0 0.0
    %1134 = vmatpush2.msra.mxu0 0.0
    %1135 = vmatprep.subr.mxu0 0.0
    %1136 = vmatpush2.msra.mxu0 0.0
    %1137 = vmatprep.subr.mxu0 0.0
    %1138 = vmatpush2.msra.mxu0 0.0
    %1139 = vmatprep.subr.mxu0 0.0
    %1140 = vmatpush2.msra.mxu0 0.0
    %1141 = vmatprep.subr.mxu0 0.0
    %1142 = vmatpush2.msra.mxu0 0.0
    %1143 = vmatprep.subr.mxu0 0.0
    %1144 = vmatpush2.msra.mxu0 0.0
    %1145 = vmatprep.subr.mxu0 0.0
    %1146 = vmatpush2.msra.mxu0 0.0
    %1147 = vmatprep.mubr.f32.mxu0 0.0
    %1148 = vmatmul.mubr.f32.gmra.mxu0 %v1081
    %v1149 = vpop.f32.mrf.mxu0
    %v1150 = vadd.f32 %v155, %v1149
    %v1151 = vpop.f32.mrf.mxu0
    %v1152 = vadd.f32 %v159, %v1151
    %1153 = vdwg.mxu0
    %v1155 = vrot.slane %v1150, 4
    %v1156 = vrot.slane %v1150, 5
    %v1159 = vadd.f32 %v123, %v1155
    %v1160 = vadd.f32 %v129, %v1156
    %v1161 = vxor.u32 %v1159, 2147483648
    %v1162 = vxor.u32 %v1160, 2147483648
    %v1163 = vmul.f32 %v1161, 1.442695
    %v1164 = vpow.pop %v1163
    %v1165 = vmul.f32 %v1162, 1.442695
    %v1166 = vpow.pop %v1165
    %v1167 = vadd.f32 %v1164, 1.0
    %v1168 = vadd.f32 %v1166, 1.0
    %v1169 = vrcp.pop %v1167
    %v1170 = vmul.f32 1.0, %v1169
    %v1171 = vrcp.pop %v1168
    %v1172 = vmul.f32 1.0, %v1171
    %1173 = vrot.lane.b32.xlu0 %v1155, 64
    %v1174 = vpop.permute.xlu0 %1173
    %1175 = vrot.lane.b32.xlu0 %v1156, 64
    %v1176 = vpop.permute.xlu0 %1175
    %v1179 = vmul.f32 %v1170, %v1174
    %v1180 = vmul.f32 %v1172, %v1176
    %1183 = vrot.lane.b32.xlu0 %v1179, 64
    %v1184 = vpop.permute.xlu0 %1183
    %1185 = vrot.lane.b32.xlu0 %v1180, 64
    %v1186 = vpop.permute.xlu0 %1185
    %v1189 = vadd.f32 %v123, %v1184
    %v1190 = vadd.f32 %v129, %v1186
    %v1191 = vtanh.pop %v1189
    %v1192 = vtanh.pop %v1190
    %v1193 = vsub.f32 1.0, %v1170
    %v1194 = vsub.f32 1.0, %v1172
    %1197 = vrot.lane.b32.xlu0 %v1191, 96
    %v1198 = vpop.permute.xlu0 %1197
    %1199 = vrot.lane.b32.xlu0 %v1192, 96
    %v1200 = vpop.permute.xlu0 %1199
    %v1203 = vmul.f32 %v1193, %v1198
    %v1204 = vmul.f32 %v1194, %v1200
    %v1205 = vrot.slane %v1078, 7
    %1206 = vrot.lane.b32.xlu0 %v1205, 32
    %v1207 = vpop.permute.xlu0 %1206
    %1208 = vrot.lane.b32.xlu0 %v1078, 32
    %v1209 = vpop.permute.xlu0 %1208
    %v1212 = vmul.f32 %v1170, %v1207
    %v1213 = vmul.f32 %v1172, %v1209
    %v1214 = vadd.f32 %v1203, %v1212
    %v1215 = vadd.f32 %v1204, %v1213
    %v1216 = vrot.slane %v1150, 6
    %v1218 = vadd.f32 %v123, %v1156
    %v1219 = vadd.f32 %v129, %v1216
    %v1220 = vxor.u32 %v1218, 2147483648
    %v1221 = vxor.u32 %v1219, 2147483648
    %v1222 = vmul.f32 %v1220, 1.442695
    %v1223 = vpow.pop %v1222
    %v1224 = vmul.f32 %v1221, 1.442695
    %v1225 = vpow.pop %v1224
    %v1226 = vadd.f32 %v1223, 1.0
    %v1227 = vadd.f32 %v1225, 1.0
    %v1228 = vrcp.pop %v1226
    %v1229 = vmul.f32 1.0, %v1228
    %v1230 = vrcp.pop %v1227
    %v1231 = vmul.f32 1.0, %v1230
    %v1233 = vrot.slane %v1152, 5
    %v1234 = vrot.slane %v1152, 6
    %v1237 = vadd.f32 %v125, %v1233
    %v1238 = vadd.f32 %v131, %v1234
    %v1239 = vxor.u32 %v1237, 2147483648
    %v1240 = vxor.u32 %v1238, 2147483648
    %v1241 = vmul.f32 %v1239, 1.442695
    %v1242 = vpow.pop %v1241
    %v1243 = vmul.f32 %v1240, 1.442695
    %v1244 = vpow.pop %v1243
    %v1245 = vadd.f32 %v1242, 1.0
    %v1246 = vadd.f32 %v1244, 1.0
    %v1247 = vrcp.pop %v1245
    %v1248 = vmul.f32 1.0, %v1247
    %v1249 = vrcp.pop %v1246
    %v1250 = vmul.f32 1.0, %v1249
    %1251 = vrot.lane.b32.xlu0 %v1233, 64
    %v1252 = vpop.permute.xlu0 %1251
    %1253 = vrot.lane.b32.xlu0 %v1234, 64
    %v1254 = vpop.permute.xlu0 %1253
    %v1257 = vmul.f32 %v1229, %v1252
    %v1258 = vmul.f32 %v1231, %v1254
    %1261 = vrot.lane.b32.xlu0 %v1257, 64
    %v1262 = vpop.permute.xlu0 %1261
    %1263 = vrot.lane.b32.xlu0 %v1258, 64
    %v1264 = vpop.permute.xlu0 %1263
    %v1267 = vadd.f32 %v125, %v1262
    %v1268 = vadd.f32 %v131, %v1264
    %v1269 = vtanh.pop %v1267
    %v1270 = vtanh.pop %v1268
    %v1271 = vsub.f32 1.0, %v1248
    %v1272 = vsub.f32 1.0, %v1250
    %1275 = vrot.lane.b32.xlu0 %v1269, 96
    %v1276 = vpop.permute.xlu0 %1275
    %1277 = vrot.lane.b32.xlu0 %v1270, 96
    %v1278 = vpop.permute.xlu0 %1277
    %v1281 = vmul.f32 %v1271, %v1276
    %v1282 = vmul.f32 %v1272, %v1278
    %v1283 = vrot.slane %v1078, 1
    %1284 = vrot.lane.b32.xlu0 %v1078, 96
    %v1285 = vpop.permute.xlu0 %1284
    %1286 = vrot.lane.b32.xlu0 %v1283, 96
    %v1287 = vpop.permute.xlu0 %1286
    %v1290 = vmul.f32 %v1248, %v1285
    %v1291 = vmul.f32 %v1250, %v1287
    %v1292 = vadd.f32 %v1281, %v1290
    %v1293 = vadd.f32 %v1282, %v1291
    %v1296 = vrot.slane %v1215, 7
    %vm1297 = vcmask 1045509
    %v1298 = vsel %vm1297, %v1296, %v1214
    %1299 = vrot.lane.b32.xlu0 %v1298, 96
    %v1300 = vpop.permute.xlu0 %1299
    %v1304 = vrot.slane %v1292, 7
    %v1305 = vrot.slane %v1293, 6
    %v1306 = vsel %vm1297, %v1305, %v1304
    %1307 = vrot.lane.b32.xlu0 %v1306, 32
    %v1308 = vpop.permute.xlu0 %1307
    %v1310 = vsel %vm378, %v1300, %v1308
    %v1312 = vrot.slane %v1310, 4
    %v1313 = vsel %vm162, %v1312, 0
    %1315 = vmatprep.subr.mxu0 0.0
    %1316 = vmatpush1.msra.mxu0 0.0
    %1317 = vmatprep.subr.mxu0 0.0
    %1318 = vmatpush1.msra.mxu0 0.0
    %1319 = vmatprep.subr.mxu0 0.0
    %1320 = vmatpush1.msra.mxu0 0.0
    %1321 = vmatprep.subr.mxu0 0.0
    %1322 = vmatpush1.msra.mxu0 0.0
    %1323 = vmatprep.subr.mxu0 0.0
    %1324 = vmatpush1.msra.mxu0 0.0
    %1325 = vmatprep.subr.mxu0 0.0
    %1326 = vmatpush1.msra.mxu0 0.0
    %1327 = vmatprep.subr.mxu0 0.0
    %1328 = vmatpush1.msra.mxu0 0.0
    %1329 = vmatprep.subr.mxu0 0.0
    %1330 = vmatpush1.msra.mxu0 0.0
    %1331 = vmatprep.subr.mxu0 %v148
    %1332 = vmatpush1.msra.mxu0 %v147
    %1333 = vmatprep.subr.mxu0 %v146
    %1334 = vmatpush1.msra.mxu0 %v145
    %1335 = vmatprep.subr.mxu0 %v144
    %1336 = vmatpush1.msra.mxu0 %v143
    %1337 = vmatprep.subr.mxu0 %v142
    %1338 = vmatpush1.msra.mxu0 %v141
    %1339 = vmatprep.subr.mxu0 %v140
    %1340 = vmatpush1.msra.mxu0 %v139
    %1341 = vmatprep.subr.mxu0 %v138
    %1342 = vmatpush1.msra.mxu0 %v137
    %1343 = vmatprep.subr.mxu0 %v136
    %1344 = vmatpush1.msra.mxu0 %v135
    %1345 = vmatprep.subr.mxu0 %v134
    %1346 = vmatpush1.msra.mxu0 %v133
    %1347 = vmatprep.subr.mxu0 0.0
    %1348 = vmatpush2.msra.mxu0 0.0
    %1349 = vmatprep.subr.mxu0 0.0
    %1350 = vmatpush2.msra.mxu0 0.0
    %1351 = vmatprep.subr.mxu0 0.0
    %1352 = vmatpush2.msra.mxu0 0.0
    %1353 = vmatprep.subr.mxu0 0.0
    %1354 = vmatpush2.msra.mxu0 0.0
    %1355 = vmatprep.subr.mxu0 0.0
    %1356 = vmatpush2.msra.mxu0 0.0
    %1357 = vmatprep.subr.mxu0 0.0
    %1358 = vmatpush2.msra.mxu0 0.0
    %1359 = vmatprep.subr.mxu0 0.0
    %1360 = vmatpush2.msra.mxu0 0.0
    %1361 = vmatprep.subr.mxu0 0.0
    %1362 = vmatpush2.msra.mxu0 0.0
    %1363 = vmatprep.subr.mxu0 0.0
    %1364 = vmatpush2.msra.mxu0 0.0
    %1365 = vmatprep.subr.mxu0 0.0
    %1366 = vmatpush2.msra.mxu0 0.0
    %1367 = vmatprep.subr.mxu0 0.0
    %1368 = vmatpush2.msra.mxu0 0.0
    %1369 = vmatprep.subr.mxu0 0.0
    %1370 = vmatpush2.msra.mxu0 0.0
    %1371 = vmatprep.subr.mxu0 0.0
    %1372 = vmatpush2.msra.mxu0 0.0
    %1373 = vmatprep.subr.mxu0 0.0
    %1374 = vmatpush2.msra.mxu0 0.0
    %1375 = vmatprep.subr.mxu0 0.0
    %1376 = vmatpush2.msra.mxu0 0.0
    %1377 = vmatprep.subr.mxu0 0.0
    %1378 = vmatpush2.msra.mxu0 0.0
    %1379 = vmatprep.mubr.f32.mxu0 0.0
    %1380 = vmatmul.mubr.f32.gmra.mxu0 %v1313
    %v1381 = vpop.f32.mrf.mxu0
    %v1382 = vadd.f32 %v155, %v1381
    %v1383 = vpop.f32.mrf.mxu0
    %v1384 = vadd.f32 %v159, %v1383
    %1385 = vdwg.mxu0
    %v1387 = vrot.slane %v1382, 3
    %v1388 = vrot.slane %v1382, 4
    %v1391 = vadd.f32 %v123, %v1387
    %v1392 = vadd.f32 %v129, %v1388
    %v1393 = vxor.u32 %v1391, 2147483648
    %v1394 = vxor.u32 %v1392, 2147483648
    %v1395 = vmul.f32 %v1393, 1.442695
    %v1396 = vpow.pop %v1395
    %v1397 = vmul.f32 %v1394, 1.442695
    %v1398 = vpow.pop %v1397
    %v1399 = vadd.f32 %v1396, 1.0
    %v1400 = vadd.f32 %v1398, 1.0
    %v1401 = vrcp.pop %v1399
    %v1402 = vmul.f32 1.0, %v1401
    %v1403 = vrcp.pop %v1400
    %v1404 = vmul.f32 1.0, %v1403
    %1405 = vrot.lane.b32.xlu0 %v1387, 64
    %v1406 = vpop.permute.xlu0 %1405
    %1407 = vrot.lane.b32.xlu0 %v1388, 64
    %v1408 = vpop.permute.xlu0 %1407
    %v1411 = vmul.f32 %v1402, %v1406
    %v1412 = vmul.f32 %v1404, %v1408
    %1415 = vrot.lane.b32.xlu0 %v1411, 64
    %v1416 = vpop.permute.xlu0 %1415
    %1417 = vrot.lane.b32.xlu0 %v1412, 64
    %v1418 = vpop.permute.xlu0 %1417
    %v1421 = vadd.f32 %v123, %v1416
    %v1422 = vadd.f32 %v129, %v1418
    %v1423 = vtanh.pop %v1421
    %v1424 = vtanh.pop %v1422
    %v1425 = vsub.f32 1.0, %v1402
    %v1426 = vsub.f32 1.0, %v1404
    %1429 = vrot.lane.b32.xlu0 %v1423, 96
    %v1430 = vpop.permute.xlu0 %1429
    %1431 = vrot.lane.b32.xlu0 %v1424, 96
    %v1432 = vpop.permute.xlu0 %1431
    %v1435 = vmul.f32 %v1425, %v1430
    %v1436 = vmul.f32 %v1426, %v1432
    %v1437 = vrot.slane %v1310, 7
    %1438 = vrot.lane.b32.xlu0 %v1437, 32
    %v1439 = vpop.permute.xlu0 %1438
    %1440 = vrot.lane.b32.xlu0 %v1310, 32
    %v1441 = vpop.permute.xlu0 %1440
    %v1444 = vmul.f32 %v1402, %v1439
    %v1445 = vmul.f32 %v1404, %v1441
    %v1446 = vadd.f32 %v1435, %v1444
    %v1447 = vadd.f32 %v1436, %v1445
    %v1448 = vrot.slane %v1382, 6
    %v1449 = vrot.slane %v1382, 7
    %v1452 = vadd.f32 %v123, %v1448
    %v1453 = vadd.f32 %v129, %v1449
    %v1454 = vxor.u32 %v1452, 2147483648
    %v1455 = vxor.u32 %v1453, 2147483648
    %v1456 = vmul.f32 %v1454, 1.442695
    %v1457 = vpow.pop %v1456
    %v1458 = vmul.f32 %v1455, 1.442695
    %v1459 = vpow.pop %v1458
    %v1460 = vadd.f32 %v1457, 1.0
    %v1461 = vadd.f32 %v1459, 1.0
    %v1462 = vrcp.pop %v1460
    %v1463 = vmul.f32 1.0, %v1462
    %v1464 = vrcp.pop %v1461
    %v1465 = vmul.f32 1.0, %v1464
    %v1467 = vrot.slane %v1384, 6
    %v1468 = vrot.slane %v1384, 7
    %v1471 = vadd.f32 %v125, %v1467
    %v1472 = vadd.f32 %v131, %v1468
    %v1473 = vxor.u32 %v1471, 2147483648
    %v1474 = vxor.u32 %v1472, 2147483648
    %v1475 = vmul.f32 %v1473, 1.442695
    %v1476 = vpow.pop %v1475
    %v1477 = vmul.f32 %v1474, 1.442695
    %v1478 = vpow.pop %v1477
    %v1479 = vadd.f32 %v1476, 1.0
    %v1480 = vadd.f32 %v1478, 1.0
    %v1481 = vrcp.pop %v1479
    %v1482 = vmul.f32 1.0, %v1481
    %v1483 = vrcp.pop %v1480
    %v1484 = vmul.f32 1.0, %v1483
    %1485 = vrot.lane.b32.xlu0 %v1467, 64
    %v1486 = vpop.permute.xlu0 %1485
    %1487 = vrot.lane.b32.xlu0 %v1468, 64
    %v1488 = vpop.permute.xlu0 %1487
    %v1491 = vmul.f32 %v1463, %v1486
    %v1492 = vmul.f32 %v1465, %v1488
    %1495 = vrot.lane.b32.xlu0 %v1491, 64
    %v1496 = vpop.permute.xlu0 %1495
    %1497 = vrot.lane.b32.xlu0 %v1492, 64
    %v1498 = vpop.permute.xlu0 %1497
    %v1501 = vadd.f32 %v125, %v1496
    %v1502 = vadd.f32 %v131, %v1498
    %v1503 = vtanh.pop %v1501
    %v1504 = vtanh.pop %v1502
    %v1505 = vsub.f32 1.0, %v1482
    %v1506 = vsub.f32 1.0, %v1484
    %1509 = vrot.lane.b32.xlu0 %v1503, 96
    %v1510 = vpop.permute.xlu0 %1509
    %1511 = vrot.lane.b32.xlu0 %v1504, 96
    %v1512 = vpop.permute.xlu0 %1511
    %v1515 = vmul.f32 %v1505, %v1510
    %v1516 = vmul.f32 %v1506, %v1512
    %v1517 = vrot.slane %v1310, 2
    %v1518 = vrot.slane %v1310, 3
    %1519 = vrot.lane.b32.xlu0 %v1517, 96
    %v1520 = vpop.permute.xlu0 %1519
    %1521 = vrot.lane.b32.xlu0 %v1518, 96
    %v1522 = vpop.permute.xlu0 %1521
    %v1525 = vmul.f32 %v1482, %v1520
    %v1526 = vmul.f32 %v1484, %v1522
    %v1527 = vadd.f32 %v1515, %v1525
    %v1528 = vadd.f32 %v1516, %v1526
    %v1531 = vrot.slane %v1447, 7
    %vm1532 = vcmask 1046534
    %v1533 = vsel %vm1532, %v1531, %v1446
    %1534 = vrot.lane.b32.xlu0 %v1533, 96
    %v1535 = vpop.permute.xlu0 %1534
    %v1539 = vrot.slane %v1527, 5
    %v1540 = vrot.slane %v1528, 4
    %v1541 = vsel %vm1532, %v1540, %v1539
    %1542 = vrot.lane.b32.xlu0 %v1541, 32
    %v1543 = vpop.permute.xlu0 %1542
    %v1545 = vsel %vm378, %v1535, %v1543
    %v1547 = vrot.slane %v1545, 5
    %v1548 = vsel %vm162, %v1547, 0
    %1550 = vmatprep.subr.mxu0 0.0
    %1551 = vmatpush1.msra.mxu0 0.0
    %1552 = vmatprep.subr.mxu0 0.0
    %1553 = vmatpush1.msra.mxu0 0.0
    %1554 = vmatprep.subr.mxu0 0.0
    %1555 = vmatpush1.msra.mxu0 0.0
    %1556 = vmatprep.subr.mxu0 0.0
    %1557 = vmatpush1.msra.mxu0 0.0
    %1558 = vmatprep.subr.mxu0 0.0
    %1559 = vmatpush1.msra.mxu0 0.0
    %1560 = vmatprep.subr.mxu0 0.0
    %1561 = vmatpush1.msra.mxu0 0.0
    %1562 = vmatprep.subr.mxu0 0.0
    %1563 = vmatpush1.msra.mxu0 0.0
    %1564 = vmatprep.subr.mxu0 0.0
    %1565 = vmatpush1.msra.mxu0 0.0
    %1566 = vmatprep.subr.mxu0 %v148
    %1567 = vmatpush1.msra.mxu0 %v147
    %1568 = vmatprep.subr.mxu0 %v146
    %1569 = vmatpush1.msra.mxu0 %v145
    %1570 = vmatprep.subr.mxu0 %v144
    %1571 = vmatpush1.msra.mxu0 %v143
    %1572 = vmatprep.subr.mxu0 %v142
    %1573 = vmatpush1.msra.mxu0 %v141
    %1574 = vmatprep.subr.mxu0 %v140
    %1575 = vmatpush1.msra.mxu0 %v139
    %1576 = vmatprep.subr.mxu0 %v138
    %1577 = vmatpush1.msra.mxu0 %v137
    %1578 = vmatprep.subr.mxu0 %v136
    %1579 = vmatpush1.msra.mxu0 %v135
    %1580 = vmatprep.subr.mxu0 %v134
    %1581 = vmatpush1.msra.mxu0 %v133
    %1582 = vmatprep.subr.mxu0 0.0
    %1583 = vmatpush2.msra.mxu0 0.0
    %1584 = vmatprep.subr.mxu0 0.0
    %1585 = vmatpush2.msra.mxu0 0.0
    %1586 = vmatprep.subr.mxu0 0.0
    %1587 = vmatpush2.msra.mxu0 0.0
    %1588 = vmatprep.subr.mxu0 0.0
    %1589 = vmatpush2.msra.mxu0 0.0
    %1590 = vmatprep.subr.mxu0 0.0
    %1591 = vmatpush2.msra.mxu0 0.0
    %1592 = vmatprep.subr.mxu0 0.0
    %1593 = vmatpush2.msra.mxu0 0.0
    %1594 = vmatprep.subr.mxu0 0.0
    %1595 = vmatpush2.msra.mxu0 0.0
    %1596 = vmatprep.subr.mxu0 0.0
    %1597 = vmatpush2.msra.mxu0 0.0
    %1598 = vmatprep.subr.mxu0 0.0
    %1599 = vmatpush2.msra.mxu0 0.0
    %1600 = vmatprep.subr.mxu0 0.0
    %1601 = vmatpush2.msra.mxu0 0.0
    %1602 = vmatprep.subr.mxu0 0.0
    %1603 = vmatpush2.msra.mxu0 0.0
    %1604 = vmatprep.subr.mxu0 0.0
    %1605 = vmatpush2.msra.mxu0 0.0
    %1606 = vmatprep.subr.mxu0 0.0
    %1607 = vmatpush2.msra.mxu0 0.0
    %1608 = vmatprep.subr.mxu0 0.0
    %1609 = vmatpush2.msra.mxu0 0.0
    %1610 = vmatprep.subr.mxu0 0.0
    %1611 = vmatpush2.msra.mxu0 0.0
    %1612 = vmatprep.subr.mxu0 0.0
    %1613 = vmatpush2.msra.mxu0 0.0
    %1614 = vmatprep.mubr.f32.mxu0 0.0
    %1615 = vmatmul.mubr.f32.gmra.mxu0 %v1548
    %v1616 = vpop.f32.mrf.mxu0
    %v1617 = vadd.f32 %v155, %v1616
    %v1618 = vpop.f32.mrf.mxu0
    %v1619 = vadd.f32 %v159, %v1618
    %1620 = vdwg.mxu0
    %v1622 = vrot.slane %v1617, 2
    %v1623 = vrot.slane %v1617, 3
    %v1626 = vadd.f32 %v123, %v1622
    %v1627 = vadd.f32 %v129, %v1623
    %v1628 = vxor.u32 %v1626, 2147483648
    %v1629 = vxor.u32 %v1627, 2147483648
    %v1630 = vmul.f32 %v1628, 1.442695
    %v1631 = vpow.pop %v1630
    %v1632 = vmul.f32 %v1629, 1.442695
    %v1633 = vpow.pop %v1632
    %v1634 = vadd.f32 %v1631, 1.0
    %v1635 = vadd.f32 %v1633, 1.0
    %v1636 = vrcp.pop %v1634
    %v1637 = vmul.f32 1.0, %v1636
    %v1638 = vrcp.pop %v1635
    %v1639 = vmul.f32 1.0, %v1638
    %1640 = vrot.lane.b32.xlu0 %v1622, 64
    %v1641 = vpop.permute.xlu0 %1640
    %1642 = vrot.lane.b32.xlu0 %v1623, 64
    %v1643 = vpop.permute.xlu0 %1642
    %v1646 = vmul.f32 %v1637, %v1641
    %v1647 = vmul.f32 %v1639, %v1643
    %1650 = vrot.lane.b32.xlu0 %v1646, 64
    %v1651 = vpop.permute.xlu0 %1650
    %1652 = vrot.lane.b32.xlu0 %v1647, 64
    %v1653 = vpop.permute.xlu0 %1652
    %v1656 = vadd.f32 %v123, %v1651
    %v1657 = vadd.f32 %v129, %v1653
    %v1658 = vtanh.pop %v1656
    %v1659 = vtanh.pop %v1657
    %v1660 = vsub.f32 1.0, %v1637
    %v1661 = vsub.f32 1.0, %v1639
    %1664 = vrot.lane.b32.xlu0 %v1658, 96
    %v1665 = vpop.permute.xlu0 %1664
    %1666 = vrot.lane.b32.xlu0 %v1659, 96
    %v1667 = vpop.permute.xlu0 %1666
    %v1670 = vmul.f32 %v1660, %v1665
    %v1671 = vmul.f32 %v1661, %v1667
    %v1672 = vrot.slane %v1545, 7
    %1673 = vrot.lane.b32.xlu0 %v1672, 32
    %v1674 = vpop.permute.xlu0 %1673
    %1675 = vrot.lane.b32.xlu0 %v1545, 32
    %v1676 = vpop.permute.xlu0 %1675
    %v1679 = vmul.f32 %v1637, %v1674
    %v1680 = vmul.f32 %v1639, %v1676
    %v1681 = vadd.f32 %v1670, %v1679
    %v1682 = vadd.f32 %v1671, %v1680
    %v1683 = vrot.slane %v1617, 7
    %v1686 = vadd.f32 %v123, %v1683
    %v1687 = vadd.f32 %v129, %v1617
    %v1688 = vxor.u32 %v1686, 2147483648
    %v1689 = vxor.u32 %v1687, 2147483648
    %v1690 = vmul.f32 %v1688, 1.442695
    %v1691 = vpow.pop %v1690
    %v1692 = vmul.f32 %v1689, 1.442695
    %v1693 = vpow.pop %v1692
    %v1694 = vadd.f32 %v1691, 1.0
    %v1695 = vadd.f32 %v1693, 1.0
    %v1696 = vrcp.pop %v1694
    %v1697 = vmul.f32 1.0, %v1696
    %v1698 = vrcp.pop %v1695
    %v1699 = vmul.f32 1.0, %v1698
    %v1701 = vrot.slane %v1619, 7
    %v1704 = vadd.f32 %v125, %v1701
    %v1705 = vadd.f32 %v131, %v1619
    %v1706 = vxor.u32 %v1704, 2147483648
    %v1707 = vxor.u32 %v1705, 2147483648
    %v1708 = vmul.f32 %v1706, 1.442695
    %v1709 = vpow.pop %v1708
    %v1710 = vmul.f32 %v1707, 1.442695
    %v1711 = vpow.pop %v1710
    %v1712 = vadd.f32 %v1709, 1.0
    %v1713 = vadd.f32 %v1711, 1.0
    %v1714 = vrcp.pop %v1712
    %v1715 = vmul.f32 1.0, %v1714
    %v1716 = vrcp.pop %v1713
    %v1717 = vmul.f32 1.0, %v1716
    %1718 = vrot.lane.b32.xlu0 %v1701, 64
    %v1719 = vpop.permute.xlu0 %1718
    %1720 = vrot.lane.b32.xlu0 %v1619, 64
    %v1721 = vpop.permute.xlu0 %1720
    %v1724 = vmul.f32 %v1697, %v1719
    %v1725 = vmul.f32 %v1699, %v1721
    %1728 = vrot.lane.b32.xlu0 %v1724, 64
    %v1729 = vpop.permute.xlu0 %1728
    %1730 = vrot.lane.b32.xlu0 %v1725, 64
    %v1731 = vpop.permute.xlu0 %1730
    %v1734 = vadd.f32 %v125, %v1729
    %v1735 = vadd.f32 %v131, %v1731
    %v1736 = vtanh.pop %v1734
    %v1737 = vtanh.pop %v1735
    %v1738 = vsub.f32 1.0, %v1715
    %v1739 = vsub.f32 1.0, %v1717
    %1742 = vrot.lane.b32.xlu0 %v1736, 96
    %v1743 = vpop.permute.xlu0 %1742
    %1744 = vrot.lane.b32.xlu0 %v1737, 96
    %v1745 = vpop.permute.xlu0 %1744
    %v1748 = vmul.f32 %v1738, %v1743
    %v1749 = vmul.f32 %v1739, %v1745
    %v1750 = vrot.slane %v1545, 4
    %1751 = vrot.lane.b32.xlu0 %v1750, 96
    %v1752 = vpop.permute.xlu0 %1751
    %1753 = vrot.lane.b32.xlu0 %v1547, 96
    %v1754 = vpop.permute.xlu0 %1753
    %v1757 = vmul.f32 %v1715, %v1752
    %v1758 = vmul.f32 %v1717, %v1754
    %v1759 = vadd.f32 %v1748, %v1757
    %v1760 = vadd.f32 %v1749, %v1758
    %v1763 = vrot.slane %v1682, 7
    %vm1764 = vcmask 1047559
    %v1765 = vsel %vm1764, %v1763, %v1681
    %1766 = vrot.lane.b32.xlu0 %v1765, 96
    %v1767 = vpop.permute.xlu0 %1766
    %v1771 = vrot.slane %v1759, 3
    %v1772 = vrot.slane %v1760, 2
    %v1773 = vsel %vm1764, %v1772, %v1771
    %1774 = vrot.lane.b32.xlu0 %v1773, 32
    %v1775 = vpop.permute.xlu0 %1774
    %v1777 = vsel %vm378, %v1767, %v1775
    %v1779 = vrot.slane %v1777, 6
    %v1780 = vsel %vm162, %v1779, 0
    %1782 = vmatprep.subr.mxu0 0.0
    %1783 = vmatpush1.msra.mxu0 0.0
    %1784 = vmatprep.subr.mxu0 0.0
    %1785 = vmatpush1.msra.mxu0 0.0
    %1786 = vmatprep.subr.mxu0 0.0
    %1787 = vmatpush1.msra.mxu0 0.0
    %1788 = vmatprep.subr.mxu0 0.0
    %1789 = vmatpush1.msra.mxu0 0.0
    %1790 = vmatprep.subr.mxu0 0.0
    %1791 = vmatpush1.msra.mxu0 0.0
    %1792 = vmatprep.subr.mxu0 0.0
    %1793 = vmatpush1.msra.mxu0 0.0
    %1794 = vmatprep.subr.mxu0 0.0
    %1795 = vmatpush1.msra.mxu0 0.0
    %1796 = vmatprep.subr.mxu0 0.0
    %1797 = vmatpush1.msra.mxu0 0.0
    %1798 = vmatprep.subr.mxu0 %v148
    %1799 = vmatpush1.msra.mxu0 %v147
    %1800 = vmatprep.subr.mxu0 %v146
    %1801 = vmatpush1.msra.mxu0 %v145
    %1802 = vmatprep.subr.mxu0 %v144
    %1803 = vmatpush1.msra.mxu0 %v143
    %1804 = vmatprep.subr.mxu0 %v142
    %1805 = vmatpush1.msra.mxu0 %v141
    %1806 = vmatprep.subr.mxu0 %v140
    %1807 = vmatpush1.msra.mxu0 %v139
    %1808 = vmatprep.subr.mxu0 %v138
    %1809 = vmatpush1.msra.mxu0 %v137
    %1810 = vmatprep.subr.mxu0 %v136
    %1811 = vmatpush1.msra.mxu0 %v135
    %1812 = vmatprep.subr.mxu0 %v134
    %1813 = vmatpush1.msra.mxu0 %v133
    %1814 = vmatprep.subr.mxu0 0.0
    %1815 = vmatpush2.msra.mxu0 0.0
    %1816 = vmatprep.subr.mxu0 0.0
    %1817 = vmatpush2.msra.mxu0 0.0
    %1818 = vmatprep.subr.mxu0 0.0
    %1819 = vmatpush2.msra.mxu0 0.0
    %1820 = vmatprep.subr.mxu0 0.0
    %1821 = vmatpush2.msra.mxu0 0.0
    %1822 = vmatprep.subr.mxu0 0.0
    %1823 = vmatpush2.msra.mxu0 0.0
    %1824 = vmatprep.subr.mxu0 0.0
    %1825 = vmatpush2.msra.mxu0 0.0
    %1826 = vmatprep.subr.mxu0 0.0
    %1827 = vmatpush2.msra.mxu0 0.0
    %1828 = vmatprep.subr.mxu0 0.0
    %1829 = vmatpush2.msra.mxu0 0.0
    %1830 = vmatprep.subr.mxu0 0.0
    %1831 = vmatpush2.msra.mxu0 0.0
    %1832 = vmatprep.subr.mxu0 0.0
    %1833 = vmatpush2.msra.mxu0 0.0
    %1834 = vmatprep.subr.mxu0 0.0
    %1835 = vmatpush2.msra.mxu0 0.0
    %1836 = vmatprep.subr.mxu0 0.0
    %1837 = vmatpush2.msra.mxu0 0.0
    %1838 = vmatprep.subr.mxu0 0.0
    %1839 = vmatpush2.msra.mxu0 0.0
    %1840 = vmatprep.subr.mxu0 0.0
    %1841 = vmatpush2.msra.mxu0 0.0
    %1842 = vmatprep.subr.mxu0 0.0
    %1843 = vmatpush2.msra.mxu0 0.0
    %1844 = vmatprep.subr.mxu0 0.0
    %1845 = vmatpush2.msra.mxu0 0.0
    %1846 = vmatprep.mubr.f32.mxu0 0.0
    %1847 = vmatmul.mubr.f32.gmra.mxu0 %v1780
    %v1848 = vpop.f32.mrf.mxu0
    %v1849 = vadd.f32 %v155, %v1848
    %v1850 = vpop.f32.mrf.mxu0
    %v1851 = vadd.f32 %v159, %v1850
    %1852 = vdwg.mxu0
    %v1854 = vrot.slane %v1849, 1
    %v1855 = vrot.slane %v1849, 2
    %v1858 = vadd.f32 %v123, %v1854
    %v1859 = vadd.f32 %v129, %v1855
    %v1860 = vxor.u32 %v1858, 2147483648
    %v1861 = vxor.u32 %v1859, 2147483648
    %v1862 = vmul.f32 %v1860, 1.442695
    %v1863 = vpow.pop %v1862
    %v1864 = vmul.f32 %v1861, 1.442695
    %v1865 = vpow.pop %v1864
    %v1866 = vadd.f32 %v1863, 1.0
    %v1867 = vadd.f32 %v1865, 1.0
    %v1868 = vrcp.pop %v1866
    %v1869 = vmul.f32 1.0, %v1868
    %v1870 = vrcp.pop %v1867
    %v1871 = vmul.f32 1.0, %v1870
    %1872 = vrot.lane.b32.xlu0 %v1854, 64
    %v1873 = vpop.permute.xlu0 %1872
    %1874 = vrot.lane.b32.xlu0 %v1855, 64
    %v1875 = vpop.permute.xlu0 %1874
    %v1878 = vmul.f32 %v1869, %v1873
    %v1879 = vmul.f32 %v1871, %v1875
    %1882 = vrot.lane.b32.xlu0 %v1878, 64
    %v1883 = vpop.permute.xlu0 %1882
    %1884 = vrot.lane.b32.xlu0 %v1879, 64
    %v1885 = vpop.permute.xlu0 %1884
    %v1888 = vadd.f32 %v123, %v1883
    %v1889 = vadd.f32 %v129, %v1885
    %v1890 = vtanh.pop %v1888
    %v1891 = vtanh.pop %v1889
    %v1892 = vsub.f32 1.0, %v1869
    %v1893 = vsub.f32 1.0, %v1871
    %1896 = vrot.lane.b32.xlu0 %v1890, 96
    %v1897 = vpop.permute.xlu0 %1896
    %1898 = vrot.lane.b32.xlu0 %v1891, 96
    %v1899 = vpop.permute.xlu0 %1898
    %v1902 = vmul.f32 %v1892, %v1897
    %v1903 = vmul.f32 %v1893, %v1899
    %v1904 = vrot.slane %v1777, 7
    %1905 = vrot.lane.b32.xlu0 %v1904, 32
    %v1906 = vpop.permute.xlu0 %1905
    %1907 = vrot.lane.b32.xlu0 %v1777, 32
    %v1908 = vpop.permute.xlu0 %1907
    %v1911 = vmul.f32 %v1869, %v1906
    %v1912 = vmul.f32 %v1871, %v1908
    %v1913 = vadd.f32 %v1902, %v1911
    %v1914 = vadd.f32 %v1903, %v1912
    %v1916 = vadd.f32 %v123, %v1849
    %v1917 = vadd.f32 %v129, %v1854
    %v1918 = vxor.u32 %v1916, 2147483648
    %v1919 = vxor.u32 %v1917, 2147483648
    %v1920 = vmul.f32 %v1918, 1.442695
    %v1921 = vpow.pop %v1920
    %v1922 = vmul.f32 %v1919, 1.442695
    %v1923 = vpow.pop %v1922
    %v1924 = vadd.f32 %v1921, 1.0
    %v1925 = vadd.f32 %v1923, 1.0
    %v1926 = vrcp.pop %v1924
    %v1927 = vmul.f32 1.0, %v1926
    %v1928 = vrcp.pop %v1925
    %v1929 = vmul.f32 1.0, %v1928
    %v1931 = vrot.slane %v1851, 1
    %v1934 = vadd.f32 %v125, %v1851
    %v1935 = vadd.f32 %v131, %v1931
    %v1936 = vxor.u32 %v1934, 2147483648
    %v1937 = vxor.u32 %v1935, 2147483648
    %v1938 = vmul.f32 %v1936, 1.442695
    %v1939 = vpow.pop %v1938
    %v1940 = vmul.f32 %v1937, 1.442695
    %v1941 = vpow.pop %v1940
    %v1942 = vadd.f32 %v1939, 1.0
    %v1943 = vadd.f32 %v1941, 1.0
    %v1944 = vrcp.pop %v1942
    %v1945 = vmul.f32 1.0, %v1944
    %v1946 = vrcp.pop %v1943
    %v1947 = vmul.f32 1.0, %v1946
    %1948 = vrot.lane.b32.xlu0 %v1851, 64
    %v1949 = vpop.permute.xlu0 %1948
    %1950 = vrot.lane.b32.xlu0 %v1931, 64
    %v1951 = vpop.permute.xlu0 %1950
    %v1954 = vmul.f32 %v1927, %v1949
    %v1955 = vmul.f32 %v1929, %v1951
    %1958 = vrot.lane.b32.xlu0 %v1954, 64
    %v1959 = vpop.permute.xlu0 %1958
    %1960 = vrot.lane.b32.xlu0 %v1955, 64
    %v1961 = vpop.permute.xlu0 %1960
    %v1964 = vadd.f32 %v125, %v1959
    %v1965 = vadd.f32 %v131, %v1961
    %v1966 = vtanh.pop %v1964
    %v1967 = vtanh.pop %v1965
    %v1968 = vsub.f32 1.0, %v1945
    %v1969 = vsub.f32 1.0, %v1947
    %1972 = vrot.lane.b32.xlu0 %v1966, 96
    %v1973 = vpop.permute.xlu0 %1972
    %1974 = vrot.lane.b32.xlu0 %v1967, 96
    %v1975 = vpop.permute.xlu0 %1974
    %v1978 = vmul.f32 %v1968, %v1973
    %v1979 = vmul.f32 %v1969, %v1975
    %1980 = vrot.lane.b32.xlu0 %v1779, 96
    %v1981 = vpop.permute.xlu0 %1980
    %1982 = vrot.lane.b32.xlu0 %v1904, 96
    %v1983 = vpop.permute.xlu0 %1982
    %v1986 = vmul.f32 %v1945, %v1981
    %v1987 = vmul.f32 %v1947, %v1983
    %v1988 = vadd.f32 %v1978, %v1986
    %v1989 = vadd.f32 %v1979, %v1987
    %vm1990 = vcmask 1040384
    %v1991 = vsel %vm1990, %v289, %v513
    %v1992 = vsel %vm1990, %v290, %v514
    %vm1993 = vcmask 1041408
    %v1994 = vsel %vm1993, %v1991, %v748
    %v1995 = vsel %vm1993, %v1992, %v749
    %vm1996 = vcmask 1042432
    %v1997 = vsel %vm1996, %v1994, %v983
    %v1998 = vsel %vm1996, %v1995, %v984
    %vm1999 = vcmask 1043456
    %v2000 = vsel %vm1999, %v1997, %v1214
    %v2001 = vsel %vm1999, %v1998, %v1215
    %vm2002 = vcmask 1044480
    %v2003 = vsel %vm2002, %v2000, %v1446
    %v2004 = vsel %vm2002, %v2001, %v1447
    %vm2005 = vcmask 1045504
    %v2006 = vsel %vm2005, %v2003, %v1681
    %v2007 = vsel %vm2005, %v2004, %v1682
    %vm2008 = vcmask 1046528
    %v2009 = vsel %vm2008, %v2006, %v1913
    %v2010 = vsel %vm2008, %v2007, %v1914
    %v2011 = vsel %vm1990, %v1988, %v1759
    %v2012 = vsel %vm1990, %v1989, %v1760
    %v2013 = vsel %vm1993, %v2011, %v1527
    %v2014 = vsel %vm1993, %v2012, %v1528
    %v2015 = vsel %vm1996, %v2013, %v1292
    %v2016 = vsel %vm1996, %v2014, %v1293
    %v2017 = vsel %vm1999, %v2015, %v1061
    %v2018 = vsel %vm1999, %v2016, %v1062
    %v2019 = vsel %vm2002, %v2017, %v829
    %v2020 = vsel %vm2002, %v2018, %v830
    %v2021 = vsel %vm2005, %v2019, %v594
    %v2022 = vsel %vm2005, %v2020, %v595
    %v2023 = vsel %vm2008, %v2021, %v360
    %v2024 = vsel %vm2008, %v2022, %v361
    %2027 = vrot.lane.b32.xlu0 %v2009, 96
    %v2028 = vpop.permute.xlu0 %2027
    %2029 = vrot.lane.b32.xlu0 %v2010, 96
    %v2030 = vpop.permute.xlu0 %2029
    %2035 = vrot.lane.b32.xlu0 %v2023, 32
    %v2036 = vpop.permute.xlu0 %2035
    %2037 = vrot.lane.b32.xlu0 %v2024, 32
    %v2038 = vpop.permute.xlu0 %2037
    %v2041 = vsel %vm378, %v2028, %v2036
    %v2042 = vsel %vm378, %v2030, %v2038
    %v2043 = vld [vmem:[#allocation2 + $0xc0] sm:$0xff]
    %v2044 = vld [vmem:[#allocation2 + $0xd0] sm:$0xff]
    %v2045 = vld [vmem:[#allocation2 + $0xe0] sm:$0xff]
    %v2046 = vld [vmem:[#allocation2 + $0xf0] sm:$0xff]
    %v2047 = vld [vmem:[#allocation2 + $0x100] sm:$0xff]
    %v2048 = vld [vmem:[#allocation2 + $0x110] sm:$0xff]
    %v2049 = vld [vmem:[#allocation2 + $0x120] sm:$0xff]
    %v2050 = vld [vmem:[#allocation2 + $0x130] sm:$0xff]
    %s2051 = scalar_lea.vmem [#allocation2], 320
    %v2052 = vld [vmem:[%s2051] ss:$8 sm:$0x3]
    %v2054 = vlaneseq
    %v2055 = vshrl.u32 %v2054, 7
    %v2056 = vsub.s32 0, %v2055
    %v2057 = vrot.slane %v2052, %v2056
    %v2060 = vsel %vm162, %v2041, 0
    %v2063 = vsel %vm162, %v2042, 0
    %2065 = vmatprep.subr.mxu0 0.0
    %2066 = vmatpush1.msra.mxu0 0.0
    %2067 = vmatprep.subr.mxu0 0.0
    %2068 = vmatpush1.msra.mxu0 0.0
    %2069 = vmatprep.subr.mxu0 0.0
    %2070 = vmatpush1.msra.mxu0 0.0
    %2071 = vmatprep.subr.mxu0 0.0
    %2072 = vmatpush1.msra.mxu0 0.0
    %2073 = vmatprep.subr.mxu0 0.0
    %2074 = vmatpush1.msra.mxu0 0.0
    %2075 = vmatprep.subr.mxu0 0.0
    %2076 = vmatpush1.msra.mxu0 0.0
    %2077 = vmatprep.subr.mxu0 0.0
    %2078 = vmatpush1.msra.mxu0 0.0
    %2079 = vmatprep.subr.mxu0 0.0
    %2080 = vmatpush1.msra.mxu0 0.0
    %2081 = vmatprep.subr.mxu0 0.0
    %2082 = vmatpush1.msra.mxu0 %v2050
    %2083 = vmatprep.subr.mxu0 0.0
    %2084 = vmatpush1.msra.mxu0 %v2049
    %2085 = vmatprep.subr.mxu0 0.0
    %2086 = vmatpush1.msra.mxu0 %v2048
    %2087 = vmatprep.subr.mxu0 0.0
    %2088 = vmatpush1.msra.mxu0 %v2047
    %2089 = vmatprep.subr.mxu0 0.0
    %2090 = vmatpush1.msra.mxu0 %v2046
    %2091 = vmatprep.subr.mxu0 0.0
    %2092 = vmatpush1.msra.mxu0 %v2045
    %2093 = vmatprep.subr.mxu0 0.0
    %2094 = vmatpush1.msra.mxu0 %v2044
    %2095 = vmatprep.subr.mxu0 0.0
    %2096 = vmatpush1.msra.mxu0 %v2043
    %2097 = vmatprep.subr.mxu0 0.0
    %2098 = vmatpush2.msra.mxu0 0.0
    %2099 = vmatprep.subr.mxu0 0.0
    %2100 = vmatpush2.msra.mxu0 0.0
    %2101 = vmatprep.subr.mxu0 0.0
    %2102 = vmatpush2.msra.mxu0 0.0
    %2103 = vmatprep.subr.mxu0 0.0
    %2104 = vmatpush2.msra.mxu0 0.0
    %2105 = vmatprep.subr.mxu0 0.0
    %2106 = vmatpush2.msra.mxu0 0.0
    %2107 = vmatprep.subr.mxu0 0.0
    %2108 = vmatpush2.msra.mxu0 0.0
    %2109 = vmatprep.subr.mxu0 0.0
    %2110 = vmatpush2.msra.mxu0 0.0
    %2111 = vmatprep.subr.mxu0 0.0
    %2112 = vmatpush2.msra.mxu0 0.0
    %2113 = vmatprep.subr.mxu0 0.0
    %2114 = vmatpush2.msra.mxu0 0.0
    %2115 = vmatprep.subr.mxu0 0.0
    %2116 = vmatpush2.msra.mxu0 0.0
    %2117 = vmatprep.subr.mxu0 0.0
    %2118 = vmatpush2.msra.mxu0 0.0
    %2119 = vmatprep.subr.mxu0 0.0
    %2120 = vmatpush2.msra.mxu0 0.0
    %2121 = vmatprep.subr.mxu0 0.0
    %2122 = vmatpush2.msra.mxu0 0.0
    %2123 = vmatprep.subr.mxu0 0.0
    %2124 = vmatpush2.msra.mxu0 0.0
    %2125 = vmatprep.subr.mxu0 0.0
    %2126 = vmatpush2.msra.mxu0 0.0
    %2127 = vmatprep.subr.mxu0 0.0
    %2128 = vmatpush2.msra.mxu0 0.0
    %2129 = vmatprep.mubr.f32.mxu0 0.0
    %2130 = vmatmul.mubr.f32.gmra.mxu0 %v2060
    %v2131 = vpop.f32.mrf.mxu0
    %v2132 = vadd.f32 %v2057, %v2131
    %v2133 = vpop.f32.mrf.mxu0
    %2134 = vmatprep.mubr.f32.mxu0 0.0
    %2135 = vmatmul.mubr.f32.gmra.mxu0 %v2063
    %v2136 = vpop.f32.mrf.mxu0
    %v2137 = vadd.f32 %v2057, %v2136
    %v2138 = vpop.f32.mrf.mxu0
    %2139 = vdwg.mxu0
    %2140 = vxpose.xlu0.b32.start [1/16] %v2132, 128
    %2141 = vxpose.xlu0.b32.cont [2/16] 0.0, 128
    %2142 = vxpose.xlu0.b32.cont [3/16] 0.0, 128
    %2143 = vxpose.xlu0.b32.cont [4/16] 0.0, 128
    %2144 = vxpose.xlu0.b32.cont [5/16] 0.0, 128
    %2145 = vxpose.xlu0.b32.cont [6/16] 0.0, 128
    %2146 = vxpose.xlu0.b32.cont [7/16] 0.0, 128
    %2147 = vxpose.xlu0.b32.cont [8/16] 0.0, 128
    %2148 = vxpose.xlu0.b32.cont [9/16] 0.0, 128
    %2149 = vxpose.xlu0.b32.cont [10/16] 0.0, 128
    %2150 = vxpose.xlu0.b32.cont [11/16] 0.0, 128
    %2151 = vxpose.xlu0.b32.cont [12/16] 0.0, 128
    %2152 = vxpose.xlu0.b32.cont [13/16] 0.0, 128
    %2153 = vxpose.xlu0.b32.cont [14/16] 0.0, 128
    %2154 = vxpose.xlu0.b32.cont [15/16] 0.0, 128
    %2155 = vxpose.xlu0.b32.end [16/16] 0.0, 128
    %v2156 = vpop.trf.xlu0
    %v2157 = vpop.trf.xlu0
    %v2158 = vpop.trf.xlu0
    %v2159 = vpop.trf.xlu0
    %v2160 = vpop.trf.xlu0
    %v2161 = vpop.trf.xlu0
    %v2162 = vpop.trf.xlu0
    %v2163 = vpop.trf.xlu0
    %v2164 = vpop.trf.xlu0
    %v2165 = vpop.trf.xlu0
    %v2166 = vpop.trf.xlu0
    %v2167 = vpop.trf.xlu0
    %v2168 = vpop.trf.xlu0
    %v2169 = vpop.trf.xlu0
    %v2170 = vpop.trf.xlu0
    %v2171 = vpop.trf.xlu0
    %2172 = vxpose.xlu0.b32.start [1/16] %v2137, 128
    %2173 = vxpose.xlu0.b32.cont [2/16] 0.0, 128
    %2174 = vxpose.xlu0.b32.cont [3/16] 0.0, 128
    %2175 = vxpose.xlu0.b32.cont [4/16] 0.0, 128
    %2176 = vxpose.xlu0.b32.cont [5/16] 0.0, 128
    %2177 = vxpose.xlu0.b32.cont [6/16] 0.0, 128
    %2178 = vxpose.xlu0.b32.cont [7/16] 0.0, 128
    %2179 = vxpose.xlu0.b32.cont [8/16] 0.0, 128
    %2180 = vxpose.xlu0.b32.cont [9/16] 0.0, 128
    %2181 = vxpose.xlu0.b32.cont [10/16] 0.0, 128
    %2182 = vxpose.xlu0.b32.cont [11/16] 0.0, 128
    %2183 = vxpose.xlu0.b32.cont [12/16] 0.0, 128
    %2184 = vxpose.xlu0.b32.cont [13/16] 0.0, 128
    %2185 = vxpose.xlu0.b32.cont [14/16] 0.0, 128
    %2186 = vxpose.xlu0.b32.cont [15/16] 0.0, 128
    %2187 = vxpose.xlu0.b32.end [16/16] 0.0, 128
    %v2188 = vpop.trf.xlu0
    %v2189 = vpop.trf.xlu0
    %v2190 = vpop.trf.xlu0
    %v2191 = vpop.trf.xlu0
    %v2192 = vpop.trf.xlu0
    %v2193 = vpop.trf.xlu0
    %v2194 = vpop.trf.xlu0
    %v2195 = vpop.trf.xlu0
    %v2196 = vpop.trf.xlu0
    %v2197 = vpop.trf.xlu0
    %v2198 = vpop.trf.xlu0
    %v2199 = vpop.trf.xlu0
    %v2200 = vpop.trf.xlu0
    %v2201 = vpop.trf.xlu0
    %v2202 = vpop.trf.xlu0
    %v2203 = vpop.trf.xlu0
    %v2204 = vld [vmem:[#allocation2 + $0x1a0] sm:$0xff]
    %v2205 = vld [vmem:[#allocation2 + $0x1a8] sm:$0xff]
    %v2206 = vld [vmem:[#allocation2 + $0x1b0] sm:$0xff]
    %v2207 = vld [vmem:[#allocation2 + $0x1b8] sm:$0xff]
    %v2208 = vld [vmem:[#allocation2 + $0x1c0] sm:$0xff]
    %v2209 = vld [vmem:[#allocation2 + $0x1c8] sm:$0xff]
    %v2210 = vld [vmem:[#allocation2 + $0x1d0] sm:$0xff]
    %v2211 = vld [vmem:[#allocation2 + $0x1d8] sm:$0xff]
    %v2212 = vld [vmem:[#allocation2 + $0x1e0] sm:$0xff]
    %v2213 = vld [vmem:[#allocation2 + $0x1e8] sm:$0xff]
    %v2214 = vld [vmem:[#allocation2 + $0x1f0] sm:$0xff]
    %v2215 = vld [vmem:[#allocation2 + $0x1f8] sm:$0xff]
    %v2216 = vld [vmem:[#allocation2 + $0x200] sm:$0xff]
    %v2217 = vld [vmem:[#allocation2 + $0x208] sm:$0xff]
    %v2218 = vld [vmem:[#allocation2 + $0x210] sm:$0xff]
    %v2219 = vld [vmem:[#allocation2 + $0x218] sm:$0xff]
    %s2220 = scalar_lea.vmem [#allocation2], 544
    %v2221 = vld [vmem:[%s2220] ss:$8 sm:$0x3]
    %v2223 = vlaneseq
    %v2224 = vshrl.u32 %v2223, 7
    %v2225 = vsub.s32 0, %v2224
    %v2226 = vrot.slane %v2221, %v2225
    %v2227 = vlaneseq
    %v2228 = vshrl.u32 %v2227, 7
    %v2229 = vsub.s32 1, %v2228
    %v2230 = vrot.slane %v2221, %v2229
    %2233 = vmatprep.subr.mxu0 0.0
    %2234 = vmatpush1.msra.mxu0 0.0
    %2235 = vmatprep.subr.mxu0 0.0
    %2236 = vmatpush1.msra.mxu0 0.0
    %2237 = vmatprep.subr.mxu0 0.0
    %2238 = vmatpush1.msra.mxu0 0.0
    %2239 = vmatprep.subr.mxu0 0.0
    %2240 = vmatpush1.msra.mxu0 0.0
    %2241 = vmatprep.subr.mxu0 0.0
    %2242 = vmatpush1.msra.mxu0 0.0
    %2243 = vmatprep.subr.mxu0 0.0
    %2244 = vmatpush1.msra.mxu0 0.0
    %2245 = vmatprep.subr.mxu0 0.0
    %2246 = vmatpush1.msra.mxu0 0.0
    %2247 = vmatprep.subr.mxu0 0.0
    %2248 = vmatpush1.msra.mxu0 0.0
    %2249 = vmatprep.subr.mxu0 %v2219
    %2250 = vmatpush1.msra.mxu0 %v2218
    %2251 = vmatprep.subr.mxu0 %v2217
    %2252 = vmatpush1.msra.mxu0 %v2216
    %2253 = vmatprep.subr.mxu0 %v2215
    %2254 = vmatpush1.msra.mxu0 %v2214
    %2255 = vmatprep.subr.mxu0 %v2213
    %2256 = vmatpush1.msra.mxu0 %v2212
    %2257 = vmatprep.subr.mxu0 %v2211
    %2258 = vmatpush1.msra.mxu0 %v2210
    %2259 = vmatprep.subr.mxu0 %v2209
    %2260 = vmatpush1.msra.mxu0 %v2208
    %2261 = vmatprep.subr.mxu0 %v2207
    %2262 = vmatpush1.msra.mxu0 %v2206
    %2263 = vmatprep.subr.mxu0 %v2205
    %2264 = vmatpush1.msra.mxu0 %v2204
    %2265 = vmatprep.subr.mxu0 0.0
    %2266 = vmatpush2.msra.mxu0 0.0
    %2267 = vmatprep.subr.mxu0 0.0
    %2268 = vmatpush2.msra.mxu0 0.0
    %2269 = vmatprep.subr.mxu0 0.0
    %2270 = vmatpush2.msra.mxu0 0.0
    %2271 = vmatprep.subr.mxu0 0.0
    %2272 = vmatpush2.msra.mxu0 0.0
    %2273 = vmatprep.subr.mxu0 0.0
    %2274 = vmatpush2.msra.mxu0 0.0
    %2275 = vmatprep.subr.mxu0 0.0
    %2276 = vmatpush2.msra.mxu0 0.0
    %2277 = vmatprep.subr.mxu0 0.0
    %2278 = vmatpush2.msra.mxu0 0.0
    %2279 = vmatprep.subr.mxu0 0.0
    %2280 = vmatpush2.msra.mxu0 0.0
    %2281 = vmatprep.subr.mxu0 0.0
    %2282 = vmatpush2.msra.mxu0 0.0
    %2283 = vmatprep.subr.mxu0 0.0
    %2284 = vmatpush2.msra.mxu0 0.0
    %2285 = vmatprep.subr.mxu0 0.0
    %2286 = vmatpush2.msra.mxu0 0.0
    %2287 = vmatprep.subr.mxu0 0.0
    %2288 = vmatpush2.msra.mxu0 0.0
    %2289 = vmatprep.subr.mxu0 0.0
    %2290 = vmatpush2.msra.mxu0 0.0
    %2291 = vmatprep.subr.mxu0 0.0
    %2292 = vmatpush2.msra.mxu0 0.0
    %2293 = vmatprep.subr.mxu0 0.0
    %2294 = vmatpush2.msra.mxu0 0.0
    %2295 = vmatprep.subr.mxu0 0.0
    %2296 = vmatpush2.msra.mxu0 0.0
    %2297 = vmatprep.mubr.f32.mxu0 0.0
    %2298 = vmatmul.mubr.f32.gmra.mxu0 %v2060
    %v2299 = vpop.f32.mrf.mxu0
    %v2300 = vadd.f32 %v2226, %v2299
    %v2301 = vpop.f32.mrf.mxu0
    %v2302 = vadd.f32 %v2230, %v2301
    %2303 = vmatprep.mubr.f32.mxu0 0.0
    %2304 = vmatmul.mubr.f32.gmra.mxu0 %v2063
    %v2305 = vpop.f32.mrf.mxu0
    %v2306 = vadd.f32 %v2226, %v2305
    %v2307 = vpop.f32.mrf.mxu0
    %v2308 = vadd.f32 %v2230, %v2307
    %2309 = vdwg.mxu0
    %v2312 = vrot.slane %v30, 7
    %v2313 = vrot.slane %v31, 7
    %v2316 = vsel %vm1990, 0.0, %v2312
    %v2317 = vsel %vm1990, 0.0, %v2313
    %v2320 = vcombine.high %v2316, %v2316
    %v2322 = vunpack.c.l.s4 1983009808
    %v2323 = vunpack.c.0.s8 %v2322
    %v2324 = vlaneseq
    %v2325 = vshrl.u32 %v2324, 7
    %v2326 = vsub.s32 %v2323, %v2325
    %v2327 = vrot.slane %v2316, %v2326
    %v2329 = vunpack.c.l.s4 1983009808
    %v2330 = vunpack.c.0.s8 %v2329
    %v2331 = vlaneseq
    %v2332 = vshrl.u32 %v2331, 7
    %v2333 = vsub.s32 %v2330, %v2332
    %v2334 = vrot.slane %v2320, %v2333
    %v2335 = vcombine.high %v2327, %v2327
    %v2336 = vcombine.high %v2317, %v2317
    %v2338 = vunpack.c.l.s4 1983009808
    %v2339 = vunpack.c.0.s8 %v2338
    %v2340 = vlaneseq
    %v2341 = vshrl.u32 %v2340, 7
    %v2342 = vsub.s32 %v2339, %v2341
    %v2343 = vrot.slane %v2317, %v2342
    %v2345 = vunpack.c.l.s4 1983009808
    %v2346 = vunpack.c.0.s8 %v2345
    %v2347 = vlaneseq
    %v2348 = vshrl.u32 %v2347, 7
    %v2349 = vsub.s32 %v2346, %v2348
    %v2350 = vrot.slane %v2336, %v2349
    %v2351 = vcombine.high %v2343, %v2343
    %v2352 = vld [vmem:[#allocation2 + $0x230] sm:$0xff]
    %v2353 = vld [vmem:[#allocation2 + $0x240] sm:$0xf]
    %s2354 = scalar_lea.vmem [#allocation2], 592
    %v2355 = vld [vmem:[%s2354] ss:$8 sm:$0x3]
    %v2357 = vlaneseq
    %v2358 = vshrl.u32 %v2357, 7
    %v2359 = vsub.s32 0, %v2358
    %v2360 = vrot.slane %v2355, %v2359
    %v2362 = vcombine.low %v2327, %v2335
    %v2363 = vcombine.low %v2334, %v2343
    %v2365 = vunpack.c.l.s4 1983009808
    %v2366 = vunpack.c.0.s8 %v2365
    %v2367 = vlaneseq
    %v2368 = vshrl.u32 %v2367, 7
    %v2369 = vsub.s32 %v2366, %v2368
    %v2370 = vrot.slane %v2362, %v2369
    %v2372 = vunpack.c.l.s4 1983009808
    %v2373 = vunpack.c.0.s8 %v2372
    %v2374 = vlaneseq
    %v2375 = vshrl.u32 %v2374, 7
    %v2376 = vsub.s32 %v2373, %v2375
    %v2377 = vrot.slane %v2363, %v2376
    %v2378 = vcombine.low %v2370, %v2377
    %v2379 = vcombine.low %v2351, %v2350
    %v2381 = vunpack.c.l.s4 1983009808
    %v2382 = vunpack.c.0.s8 %v2381
    %v2383 = vlaneseq
    %v2384 = vshrl.u32 %v2383, 7
    %v2385 = vsub.s32 %v2382, %v2384
    %v2386 = vrot.slane %v2379, %v2385
    %vm2387 = vcmask 97280
    %v2388 = vsel %vm2387, %v2378, 0
    %v2390 = vsel %vm2387, %v2386, 0
    %v2393 = vsel %vm1999, %v2353, 0
    %2395 = vmatprep.subr.mxu0 0.0
    %2396 = vmatpush1.msra.mxu0 0.0
    %2397 = vmatprep.subr.mxu0 0.0
    %2398 = vmatpush1.msra.mxu0 0.0
    %2399 = vmatprep.subr.mxu0 0.0
    %2400 = vmatpush1.msra.mxu0 0.0
    %2401 = vmatprep.subr.mxu0 0.0
    %2402 = vmatpush1.msra.mxu0 0.0
    %2403 = vmatprep.subr.mxu0 0.0
    %2404 = vmatpush1.msra.mxu0 0.0
    %2405 = vmatprep.subr.mxu0 0.0
    %2406 = vmatpush1.msra.mxu0 0.0
    %2407 = vmatprep.subr.mxu0 0.0
    %2408 = vmatpush1.msra.mxu0 0.0
    %2409 = vmatprep.subr.mxu0 0.0
    %2410 = vmatpush1.msra.mxu0 0.0
    %2411 = vmatprep.subr.mxu0 0.0
    %2412 = vmatpush1.msra.mxu0 0.0
    %2413 = vmatprep.subr.mxu0 0.0
    %2414 = vmatpush1.msra.mxu0 0.0
    %2415 = vmatprep.subr.mxu0 0.0
    %2416 = vmatpush1.msra.mxu0 0.0
    %2417 = vmatprep.subr.mxu0 0.0
    %2418 = vmatpush1.msra.mxu0 0.0
    %2419 = vmatprep.subr.mxu0 0.0
    %2420 = vmatpush1.msra.mxu0 0.0
    %2421 = vmatprep.subr.mxu0 0.0
    %2422 = vmatpush1.msra.mxu0 0.0
    %2423 = vmatprep.subr.mxu0 0.0
    %2424 = vmatpush1.msra.mxu0 %v2393
    %2425 = vmatprep.subr.mxu0 0.0
    %2426 = vmatpush1.msra.mxu0 %v2352
    %2427 = vmatprep.subr.mxu0 0.0
    %2428 = vmatpush2.msra.mxu0 0.0
    %2429 = vmatprep.subr.mxu0 0.0
    %2430 = vmatpush2.msra.mxu0 0.0
    %2431 = vmatprep.subr.mxu0 0.0
    %2432 = vmatpush2.msra.mxu0 0.0
    %2433 = vmatprep.subr.mxu0 0.0
    %2434 = vmatpush2.msra.mxu0 0.0
    %2435 = vmatprep.subr.mxu0 0.0
    %2436 = vmatpush2.msra.mxu0 0.0
    %2437 = vmatprep.subr.mxu0 0.0
    %2438 = vmatpush2.msra.mxu0 0.0
    %2439 = vmatprep.subr.mxu0 0.0
    %2440 = vmatpush2.msra.mxu0 0.0
    %2441 = vmatprep.subr.mxu0 0.0
    %2442 = vmatpush2.msra.mxu0 0.0
    %2443 = vmatprep.subr.mxu0 0.0
    %2444 = vmatpush2.msra.mxu0 0.0
    %2445 = vmatprep.subr.mxu0 0.0
    %2446 = vmatpush2.msra.mxu0 0.0
    %2447 = vmatprep.subr.mxu0 0.0
    %2448 = vmatpush2.msra.mxu0 0.0
    %2449 = vmatprep.subr.mxu0 0.0
    %2450 = vmatpush2.msra.mxu0 0.0
    %2451 = vmatprep.subr.mxu0 0.0
    %2452 = vmatpush2.msra.mxu0 0.0
    %2453 = vmatprep.subr.mxu0 0.0
    %2454 = vmatpush2.msra.mxu0 0.0
    %2455 = vmatprep.subr.mxu0 0.0
    %2456 = vmatpush2.msra.mxu0 0.0
    %2457 = vmatprep.subr.mxu0 0.0
    %2458 = vmatpush2.msra.mxu0 0.0
    %2459 = vmatprep.mubr.f32.mxu0 0.0
    %2460 = vmatmul.mubr.f32.gmra.mxu0 %v2388
    %v2461 = vpop.f32.mrf.mxu0
    %v2462 = vadd.f32 %v2360, %v2461
    %v2463 = vpop.f32.mrf.mxu0
    %2464 = vmatprep.mubr.f32.mxu0 0.0
    %2465 = vmatmul.mubr.f32.gmra.mxu0 %v2390
    %v2466 = vpop.f32.mrf.mxu0
    %v2467 = vadd.f32 %v2360, %v2466
    %v2468 = vpop.f32.mrf.mxu0
    %2469 = vdwg.mxu0
    %v2472 = vcombine.high %v2462, %v2462
    %v2474 = vunpack.c.l.s4 1983009808
    %v2475 = vunpack.c.0.s8 %v2474
    %v2476 = vlaneseq
    %v2477 = vshrl.u32 %v2476, 7
    %v2478 = vsub.s32 %v2475, %v2477
    %v2479 = vrot.slane %v2462, %v2478
    %v2481 = vunpack.c.l.s4 1983009808
    %v2482 = vunpack.c.0.s8 %v2481
    %v2483 = vlaneseq
    %v2484 = vshrl.u32 %v2483, 7
    %v2485 = vsub.s32 %v2482, %v2484
    %v2486 = vrot.slane %v2472, %v2485
    %v2487 = vcombine.high %v2479, %v2479
    %v2488 = vcombine.high %v2486, %v2486
    %v2490 = vunpack.c.l.s4 1983009808
    %v2491 = vunpack.c.0.s8 %v2490
    %v2492 = vlaneseq
    %v2493 = vshrl.u32 %v2492, 7
    %v2494 = vsub.s32 %v2491, %v2493
    %v2495 = vrot.slane %v2467, %v2494
    %v2496 = vcombine.high %v2495, %v2495
    %v2503 = vld [vmem:[#allocation2 + $0x150] sm:$0xff]
    %v2504 = vld [vmem:[#allocation2 + $0x160] sm:$0xff]
    %v2505 = vld [vmem:[#allocation2 + $0x170] sm:$0xff]
    %v2506 = vld [vmem:[#allocation2 + $0x180] sm:$0xff]
    %v2507 = vld [vmem:[#allocation2 + $0x260] sm:$0xff]
    %v2508 = vld [vmem:[#allocation2 + $0x270] sm:$0xff]
    %v2509 = vld [vmem:[#allocation2 + $0x280] sm:$0xff]
    %v2510 = vld [vmem:[#allocation2 + $0x290] sm:$0xff]
    %v2511 = vld [vmem:[#allocation2 + $0x2a0] sm:$0xff]
    %v2512 = vld [vmem:[#allocation2 + $0x2b0] sm:$0xff]
    %v2513 = vld [vmem:[#allocation2 + $0x2c0] sm:$0xff]
    %v2514 = vld [vmem:[#allocation2 + $0x2d0] sm:$0xff]
    %v2515 = vld [vmem:[#allocation2 + $0x2e0] sm:$0xff]
    %v2516 = vld [vmem:[#allocation2 + $0x2f0] sm:$0xff]
    %v2517 = vld [vmem:[#allocation2 + $0x300] sm:$0xff]
    %v2518 = vld [vmem:[#allocation2 + $0x310] sm:$0xff]
    %v2519 = vld [vmem:[#allocation2 + $0x320] sm:$0xff]
    %v2520 = vld [vmem:[#allocation2 + $0x330] sm:$0xff]
    %v2521 = vld [vmem:[#allocation2 + $0x340] sm:$0xff]
    %v2522 = vld [vmem:[#allocation2 + $0x350] sm:$0xff]
    %v2523 = vld [vmem:[#allocation2 + $0x360] sm:$0xff]
    %v2524 = vld [vmem:[#allocation2 + $0x370] sm:$0xff]
    %v2525 = vld [vmem:[#allocation2 + $0x380] sm:$0xff]
    %v2526 = vld [vmem:[#allocation2 + $0x390] sm:$0xff]
    %v2527 = vld [vmem:[#allocation2 + $0x3a0] sm:$0xff]
    %v2528 = vld [vmem:[#allocation2 + $0x3b0] sm:$0xff]
    %v2529 = vld [vmem:[#allocation2 + $0x3c0] sm:$0xff]
    %v2530 = vld [vmem:[#allocation2 + $0x3d0] sm:$0xff]
    %v2531 = vld [vmem:[#allocation2 + $0x3e0] sm:$0xff]
    %v2532 = vld [vmem:[#allocation2 + $0x3f0] sm:$0xff]
    %v2533 = vld [vmem:[#allocation2 + $0x400] sm:$0xff]
    %v2534 = vld [vmem:[#allocation2 + $0x410] sm:$0xff]
    %v2535 = vld [vmem:[#allocation2 + $0x420] sm:$0xff]
    %v2536 = vld [vmem:[#allocation2 + $0x430] sm:$0xff]
    %v2537 = vld [vmem:[#allocation2 + $0x440] sm:$0xff]
    %v2538 = vld [vmem:[#allocation2 + $0x450] sm:$0xff]
    %v2539 = vld [vmem:[#allocation2 + $0x460] sm:$0xff]
    %v2540 = vld [vmem:[#allocation2 + $0x470] sm:$0xff]
    %v2541 = vld [vmem:[#allocation2 + $0x480] sm:$0xff]
    %v2542 = vld [vmem:[#allocation2 + $0x490] sm:$0xff]
    %s2543 = scalar_lea.vmem [#allocation2], 400
    %v2544 = vld [vmem:[%s2543] ss:$8 sm:$0x3]
    %v2546 = vlaneseq
    %v2547 = vshrl.u32 %v2546, 7
    %v2548 = vsub.s32 0, %v2547
    %v2549 = vrot.slane %v2544, %v2548
    %s2551 = scalar_lea.vmem [#allocation2], 1184
    %v2552 = vld [vmem:[%s2551] ss:$8 sm:$0x3]
    %v2554 = vlaneseq
    %v2555 = vshrl.u32 %v2554, 7
    %v2556 = vsub.s32 0, %v2555
    %v2557 = vrot.slane %v2552, %v2556
    %s2559 = scalar_lea.vmem [#allocation2], 1280
    %v2560 = vld [vmem:[%s2559] ss:$8 sm:$0x3]
    %v2562 = vlaneseq
    %v2563 = vshrl.u32 %v2562, 7
    %v2564 = vsub.s32 0, %v2563
    %v2565 = vrot.slane %v2560, %v2564
    %v2566 = vsel %vm378, %v2565, 0
    %2568 = vmatprep.subr.mxu0 0.0
    %2569 = vmatpush1.msra.mxu0 0.0
    %2570 = vmatprep.subr.mxu0 0.0
    %2571 = vmatpush1.msra.mxu0 0.0
    %2572 = vmatprep.subr.mxu0 0.0
    %2573 = vmatpush1.msra.mxu0 0.0
    %2574 = vmatprep.subr.mxu0 0.0
    %2575 = vmatpush1.msra.mxu0 0.0
    %2576 = vmatprep.subr.mxu0 0.0
    %2577 = vmatpush1.msra.mxu0 0.0
    %2578 = vmatprep.subr.mxu0 0.0
    %2579 = vmatpush1.msra.mxu0 0.0
    %2580 = vmatprep.subr.mxu0 0.0
    %2581 = vmatpush1.msra.mxu0 0.0
    %2582 = vmatprep.subr.mxu0 0.0
    %2583 = vmatpush1.msra.mxu0 0.0
    %2584 = vmatprep.subr.mxu0 0.0
    %2585 = vmatpush1.msra.mxu0 0.0
    %2586 = vmatprep.subr.mxu0 0.0
    %2587 = vmatpush1.msra.mxu0 0.0
    %2588 = vmatprep.subr.mxu0 0.0
    %2589 = vmatpush1.msra.mxu0 0.0
    %2590 = vmatprep.subr.mxu0 0.0
    %2591 = vmatpush1.msra.mxu0 0.0
    %2592 = vmatprep.subr.mxu0 0.0
    %2593 = vmatpush1.msra.mxu0 %v2506
    %2594 = vmatprep.subr.mxu0 0.0
    %2595 = vmatpush1.msra.mxu0 %v2505
    %2596 = vmatprep.subr.mxu0 0.0
    %2597 = vmatpush1.msra.mxu0 %v2504
    %2598 = vmatprep.subr.mxu0 0.0
    %2599 = vmatpush1.msra.mxu0 %v2503
    %2600 = vmatprep.subr.mxu0 0.0
    %2601 = vmatpush2.msra.mxu0 0.0
    %2602 = vmatprep.subr.mxu0 0.0
    %2603 = vmatpush2.msra.mxu0 0.0
    %2604 = vmatprep.subr.mxu0 0.0
    %2605 = vmatpush2.msra.mxu0 0.0
    %2606 = vmatprep.subr.mxu0 0.0
    %2607 = vmatpush2.msra.mxu0 0.0
    %2608 = vmatprep.subr.mxu0 0.0
    %2609 = vmatpush2.msra.mxu0 0.0
    %2610 = vmatprep.subr.mxu0 0.0
    %2611 = vmatpush2.msra.mxu0 0.0
    %2612 = vmatprep.subr.mxu0 0.0
    %2613 = vmatpush2.msra.mxu0 0.0
    %2614 = vmatprep.subr.mxu0 0.0
    %2615 = vmatpush2.msra.mxu0 0.0
    %2616 = vmatprep.subr.mxu0 0.0
    %2617 = vmatpush2.msra.mxu0 0.0
    %2618 = vmatprep.subr.mxu0 0.0
    %2619 = vmatpush2.msra.mxu0 0.0
    %2620 = vmatprep.subr.mxu0 0.0
    %2621 = vmatpush2.msra.mxu0 0.0
    %2622 = vmatprep.subr.mxu0 0.0
    %2623 = vmatpush2.msra.mxu0 0.0
    %2624 = vmatprep.subr.mxu0 0.0
    %2625 = vmatpush2.msra.mxu0 0.0
    %2626 = vmatprep.subr.mxu0 0.0
    %2627 = vmatpush2.msra.mxu0 0.0
    %2628 = vmatprep.subr.mxu0 0.0
    %2629 = vmatpush2.msra.mxu0 0.0
    %2630 = vmatprep.subr.mxu0 0.0
    %2631 = vmatpush2.msra.mxu0 0.0
    %2632 = vmatprep.mubr.f32.mxu0 0.0
    %2633 = vmatmul.mubr.f32.gmra.mxu0 %v2566
    %v2634 = vpop.f32.mrf.mxu0
    %v2635 = vadd.f32 %v2549, %v2634
    %v2636 = vpop.f32.mrf.mxu0
    %2637 = vdwg.mxu0
    %v2640 = vunpack.c.l.s4 1966171168
    %v2641 = vunpack.c.0.s8 %v2640
    %v2642 = vlaneseq
    %v2643 = vshrl.u32 %v2642, 7
    %v2644 = vsub.s32 %v2641, %v2643
    %v2645 = vrot.slane %v2635, %v2644
    %v2646 = vcombine.high %v2645, %v2645
    %v2648 = vunpack.c.l.s4 1966171168
    %v2649 = vunpack.c.0.s8 %v2648
    %v2650 = vlaneseq
    %v2651 = vshrl.u32 %v2650, 7
    %v2652 = vsub.s32 %v2649, %v2651
    %v2653 = vrot.slane %v2645, %v2652
    %v2655 = vunpack.c.l.s4 1966171168
    %v2656 = vunpack.c.0.s8 %v2655
    %v2657 = vlaneseq
    %v2658 = vshrl.u32 %v2657, 7
    %v2659 = vsub.s32 %v2656, %v2658
    %v2660 = vrot.slane %v2646, %v2659
    %2663 = vmatprep.subr.mxu0 0.0
    %2664 = vmatpush1.msra.mxu0 %v2171
    %2665 = vmatprep.subr.mxu0 0.0
    %2666 = vmatpush1.msra.mxu0 %v2170
    %2667 = vmatprep.subr.mxu0 0.0
    %2668 = vmatpush1.msra.mxu0 %v2169
    %2669 = vmatprep.subr.mxu0 0.0
    %2670 = vmatpush1.msra.mxu0 %v2168
    %2671 = vmatprep.subr.mxu0 0.0
    %2672 = vmatpush1.msra.mxu0 %v2167
    %2673 = vmatprep.subr.mxu0 0.0
    %2674 = vmatpush1.msra.mxu0 %v2166
    %2675 = vmatprep.subr.mxu0 0.0
    %2676 = vmatpush1.msra.mxu0 %v2165
    %2677 = vmatprep.subr.mxu0 0.0
    %2678 = vmatpush1.msra.mxu0 %v2164
    %2679 = vmatprep.subr.mxu0 0.0
    %2680 = vmatpush1.msra.mxu0 %v2163
    %2681 = vmatprep.subr.mxu0 0.0
    %2682 = vmatpush1.msra.mxu0 %v2162
    %2683 = vmatprep.subr.mxu0 0.0
    %2684 = vmatpush1.msra.mxu0 %v2161
    %2685 = vmatprep.subr.mxu0 0.0
    %2686 = vmatpush1.msra.mxu0 %v2160
    %2687 = vmatprep.subr.mxu0 0.0
    %2688 = vmatpush1.msra.mxu0 %v2159
    %2689 = vmatprep.subr.mxu0 0.0
    %2690 = vmatpush1.msra.mxu0 %v2158
    %2691 = vmatprep.subr.mxu0 0.0
    %2692 = vmatpush1.msra.mxu0 %v2157
    %2693 = vmatprep.subr.mxu0 0.0
    %2694 = vmatpush1.msra.mxu0 %v2156
    %2695 = vmatprep.subr.mxu0 0.0
    %2696 = vmatpush2.msra.mxu0 0.0
    %2697 = vmatprep.subr.mxu0 0.0
    %2698 = vmatpush2.msra.mxu0 0.0
    %2699 = vmatprep.subr.mxu0 0.0
    %2700 = vmatpush2.msra.mxu0 0.0
    %2701 = vmatprep.subr.mxu0 0.0
    %2702 = vmatpush2.msra.mxu0 0.0
    %2703 = vmatprep.subr.mxu0 0.0
    %2704 = vmatpush2.msra.mxu0 0.0
    %2705 = vmatprep.subr.mxu0 0.0
    %2706 = vmatpush2.msra.mxu0 0.0
    %2707 = vmatprep.subr.mxu0 0.0
    %2708 = vmatpush2.msra.mxu0 0.0
    %2709 = vmatprep.subr.mxu0 0.0
    %2710 = vmatpush2.msra.mxu0 0.0
    %2711 = vmatprep.subr.mxu0 0.0
    %2712 = vmatpush2.msra.mxu0 0.0
    %2713 = vmatprep.subr.mxu0 0.0
    %2714 = vmatpush2.msra.mxu0 0.0
    %2715 = vmatprep.subr.mxu0 0.0
    %2716 = vmatpush2.msra.mxu0 0.0
    %2717 = vmatprep.subr.mxu0 0.0
    %2718 = vmatpush2.msra.mxu0 0.0
    %2719 = vmatprep.subr.mxu0 0.0
    %2720 = vmatpush2.msra.mxu0 0.0
    %2721 = vmatprep.subr.mxu0 0.0
    %2722 = vmatpush2.msra.mxu0 0.0
    %2723 = vmatprep.subr.mxu0 0.0
    %2724 = vmatpush2.msra.mxu0 0.0
    %2725 = vmatprep.subr.mxu0 0.0
    %2726 = vmatpush2.msra.mxu0 0.0
    %2727 = vmatprep.mubr.f32.mxu0 0.0
    %2728 = vmatmul.mubr.f32.gmra.mxu0 %v2653
    %v2729 = vpop.f32.mrf.mxu0
    %v2730 = vadd.f32 0.0, %v2729
    %v2731 = vpop.f32.mrf.mxu0
    %2732 = vdwg.mxu0
    %2733 = vmatprep.subr.mxu0 0.0
    %2734 = vmatpush1.msra.mxu0 %v2203
    %2735 = vmatprep.subr.mxu0 0.0
    %2736 = vmatpush1.msra.mxu0 %v2202
    %2737 = vmatprep.subr.mxu0 0.0
    %2738 = vmatpush1.msra.mxu0 %v2201
    %2739 = vmatprep.subr.mxu0 0.0
    %2740 = vmatpush1.msra.mxu0 %v2200
    %2741 = vmatprep.subr.mxu0 0.0
    %2742 = vmatpush1.msra.mxu0 %v2199
    %2743 = vmatprep.subr.mxu0 0.0
    %2744 = vmatpush1.msra.mxu0 %v2198
    %2745 = vmatprep.subr.mxu0 0.0
    %2746 = vmatpush1.msra.mxu0 %v2197
    %2747 = vmatprep.subr.mxu0 0.0
    %2748 = vmatpush1.msra.mxu0 %v2196
    %2749 = vmatprep.subr.mxu0 0.0
    %2750 = vmatpush1.msra.mxu0 %v2195
    %2751 = vmatprep.subr.mxu0 0.0
    %2752 = vmatpush1.msra.mxu0 %v2194
    %2753 = vmatprep.subr.mxu0 0.0
    %2754 = vmatpush1.msra.mxu0 %v2193
    %2755 = vmatprep.subr.mxu0 0.0
    %2756 = vmatpush1.msra.mxu0 %v2192
    %2757 = vmatprep.subr.mxu0 0.0
    %2758 = vmatpush1.msra.mxu0 %v2191
    %2759 = vmatprep.subr.mxu0 0.0
    %2760 = vmatpush1.msra.mxu0 %v2190
    %2761 = vmatprep.subr.mxu0 0.0
    %2762 = vmatpush1.msra.mxu0 %v2189
    %2763 = vmatprep.subr.mxu0 0.0
    %2764 = vmatpush1.msra.mxu0 %v2188
    %2765 = vmatprep.subr.mxu0 0.0
    %2766 = vmatpush2.msra.mxu0 0.0
    %2767 = vmatprep.subr.mxu0 0.0
    %2768 = vmatpush2.msra.mxu0 0.0
    %2769 = vmatprep.subr.mxu0 0.0
    %2770 = vmatpush2.msra.mxu0 0.0
    %2771 = vmatprep.subr.mxu0 0.0
    %2772 = vmatpush2.msra.mxu0 0.0
    %2773 = vmatprep.subr.mxu0 0.0
    %2774 = vmatpush2.msra.mxu0 0.0
    %2775 = vmatprep.subr.mxu0 0.0
    %2776 = vmatpush2.msra.mxu0 0.0
    %2777 = vmatprep.subr.mxu0 0.0
    %2778 = vmatpush2.msra.mxu0 0.0
    %2779 = vmatprep.subr.mxu0 0.0
    %2780 = vmatpush2.msra.mxu0 0.0
    %2781 = vmatprep.subr.mxu0 0.0
    %2782 = vmatpush2.msra.mxu0 0.0
    %2783 = vmatprep.subr.mxu0 0.0
    %2784 = vmatpush2.msra.mxu0 0.0
    %2785 = vmatprep.subr.mxu0 0.0
    %2786 = vmatpush2.msra.mxu0 0.0
    %2787 = vmatprep.subr.mxu0 0.0
    %2788 = vmatpush2.msra.mxu0 0.0
    %2789 = vmatprep.subr.mxu0 0.0
    %2790 = vmatpush2.msra.mxu0 0.0
    %2791 = vmatprep.subr.mxu0 0.0
    %2792 = vmatpush2.msra.mxu0 0.0
    %2793 = vmatprep.subr.mxu0 0.0
    %2794 = vmatpush2.msra.mxu0 0.0
    %2795 = vmatprep.subr.mxu0 0.0
    %2796 = vmatpush2.msra.mxu0 0.0
    %2797 = vmatprep.mubr.f32.mxu0 0.0
    %2798 = vmatmul.mubr.f32.gmra.mxu0 %v2660
    %v2799 = vpop.f32.mrf.mxu0
    %v2800 = vadd.f32 0.0, %v2799
    %v2801 = vpop.f32.mrf.mxu0
    %2802 = vdwg.mxu0
    %v2803 = vmul.f32 %v2730, 0.1
    %v2804 = vmul.f32 %v2800, 0.1
    %v2807 = vrot.slane %v2804, 7
    %v2808 = vsel %vm365, %v2807, %v2803
    %vm2810 = vcmask 58368
    %v2811 = vsel %vm2810, %v2808, -inf
    %2812 = vmax.xlane.f32.xlu0 %v2811
    %v2813 = vpop.xlane.xlu0 %2812
    %v2815 = vrot.slane %v2813, 1
    %v2818 = vsub.f32 %v2803, %v2813
    %v2819 = vsub.f32 %v2804, %v2815
    %v2820 = vmul.f32 %v2818, 1.442695
    %v2821 = vpow.pop %v2820
    %v2822 = vmul.f32 %v2819, 1.442695
    %v2823 = vpow.pop %v2822
    %v2826 = vrot.slane %v2823, 7
    %v2827 = vsel %vm365, %v2826, %v2821
    %v2829 = vsel %vm2810, %v2827, 0.0
    %2830 = vadd.xlane.f32.xlu0 %v2829
    %v2831 = vpop.xlane.xlu0 %2830
    %v2833 = vrot.slane %v2831, 1
    %v2836 = vrcp.pop %v2831
    %v2837 = vmul.f32 %v2821, %v2836
    %v2838 = vrcp.pop %v2833
    %v2839 = vmul.f32 %v2823, %v2838
    %vm2840 = vcmask 64512
    %v2842 = vsel %vm2840, %v2837, 0
    %2844 = vmatprep.subr.mxu0 0.0
    %2845 = vmatpush1.msra.mxu0 0.0
    %2846 = vmatprep.subr.mxu0 0.0
    %2847 = vmatpush1.msra.mxu0 0.0
    %2848 = vmatprep.subr.mxu0 0.0
    %2849 = vmatpush1.msra.mxu0 0.0
    %2850 = vmatprep.subr.mxu0 0.0
    %2851 = vmatpush1.msra.mxu0 0.0
    %2852 = vmatprep.subr.mxu0 0.0
    %2853 = vmatpush1.msra.mxu0 0.0
    %2854 = vmatprep.subr.mxu0 0.0
    %2855 = vmatpush1.msra.mxu0 0.0
    %2856 = vmatprep.subr.mxu0 0.0
    %2857 = vmatpush1.msra.mxu0 0.0
    %2858 = vmatprep.subr.mxu0 0.0
    %2859 = vmatpush1.msra.mxu0 0.0
    %2860 = vmatprep.subr.mxu0 0.0
    %2861 = vmatpush1.msra.mxu0 0.0
    %2862 = vmatprep.subr.mxu0 0.0
    %2863 = vmatpush1.msra.mxu0 0.0
    %2864 = vmatprep.subr.mxu0 0.0
    %2865 = vmatpush1.msra.mxu0 0.0
    %2866 = vmatprep.subr.mxu0 0.0
    %2867 = vmatpush1.msra.mxu0 0.0
    %2868 = vmatprep.subr.mxu0 0.0
    %2869 = vmatpush1.msra.mxu0 0.0
    %2870 = vmatprep.subr.mxu0 0.0
    %2871 = vmatpush1.msra.mxu0 0.0
    %2872 = vmatprep.subr.mxu0 0.0
    %2873 = vmatpush1.msra.mxu0 0.0
    %2874 = vmatprep.subr.mxu0 %v2302
    %2875 = vmatpush1.msra.mxu0 %v2300
    %2876 = vmatprep.subr.mxu0 0.0
    %2877 = vmatpush2.msra.mxu0 0.0
    %2878 = vmatprep.subr.mxu0 0.0
    %2879 = vmatpush2.msra.mxu0 0.0
    %2880 = vmatprep.subr.mxu0 0.0
    %2881 = vmatpush2.msra.mxu0 0.0
    %2882 = vmatprep.subr.mxu0 0.0
    %2883 = vmatpush2.msra.mxu0 0.0
    %2884 = vmatprep.subr.mxu0 0.0
    %2885 = vmatpush2.msra.mxu0 0.0
    %2886 = vmatprep.subr.mxu0 0.0
    %2887 = vmatpush2.msra.mxu0 0.0
    %2888 = vmatprep.subr.mxu0 0.0
    %2889 = vmatpush2.msra.mxu0 0.0
    %2890 = vmatprep.subr.mxu0 0.0
    %2891 = vmatpush2.msra.mxu0 0.0
    %2892 = vmatprep.subr.mxu0 0.0
    %2893 = vmatpush2.msra.mxu0 0.0
    %2894 = vmatprep.subr.mxu0 0.0
    %2895 = vmatpush2.msra.mxu0 0.0
    %2896 = vmatprep.subr.mxu0 0.0
    %2897 = vmatpush2.msra.mxu0 0.0
    %2898 = vmatprep.subr.mxu0 0.0
    %2899 = vmatpush2.msra.mxu0 0.0
    %2900 = vmatprep.subr.mxu0 0.0
    %2901 = vmatpush2.msra.mxu0 0.0
    %2902 = vmatprep.subr.mxu0 0.0
    %2903 = vmatpush2.msra.mxu0 0.0
    %2904 = vmatprep.subr.mxu0 0.0
    %2905 = vmatpush2.msra.mxu0 0.0
    %2906 = vmatprep.subr.mxu0 0.0
    %2907 = vmatpush2.msra.mxu0 0.0
    %2908 = vmatprep.mubr.f32.mxu0 0.0
    %2909 = vmatmul.mubr.f32.gmra.mxu0 %v2842
    %v2910 = vpop.f32.mrf.mxu0
    %v2911 = vadd.f32 0.0, %v2910
    %v2912 = vpop.f32.mrf.mxu0
    %v2913 = vadd.f32 0.0, %v2912
    %2914 = vdwg.mxu0
    %v2916 = vsel %vm2840, %v2839, 0
    %2918 = vmatprep.subr.mxu0 0.0
    %2919 = vmatpush1.msra.mxu0 0.0
    %2920 = vmatprep.subr.mxu0 0.0
    %2921 = vmatpush1.msra.mxu0 0.0
    %2922 = vmatprep.subr.mxu0 0.0
    %2923 = vmatpush1.msra.mxu0 0.0
    %2924 = vmatprep.subr.mxu0 0.0
    %2925 = vmatpush1.msra.mxu0 0.0
    %2926 = vmatprep.subr.mxu0 0.0
    %2927 = vmatpush1.msra.mxu0 0.0
    %2928 = vmatprep.subr.mxu0 0.0
    %2929 = vmatpush1.msra.mxu0 0.0
    %2930 = vmatprep.subr.mxu0 0.0
    %2931 = vmatpush1.msra.mxu0 0.0
    %2932 = vmatprep.subr.mxu0 0.0
    %2933 = vmatpush1.msra.mxu0 0.0
    %2934 = vmatprep.subr.mxu0 0.0
    %2935 = vmatpush1.msra.mxu0 0.0
    %2936 = vmatprep.subr.mxu0 0.0
    %2937 = vmatpush1.msra.mxu0 0.0
    %2938 = vmatprep.subr.mxu0 0.0
    %2939 = vmatpush1.msra.mxu0 0.0
    %2940 = vmatprep.subr.mxu0 0.0
    %2941 = vmatpush1.msra.mxu0 0.0
    %2942 = vmatprep.subr.mxu0 0.0
    %2943 = vmatpush1.msra.mxu0 0.0
    %2944 = vmatprep.subr.mxu0 0.0
    %2945 = vmatpush1.msra.mxu0 0.0
    %2946 = vmatprep.subr.mxu0 0.0
    %2947 = vmatpush1.msra.mxu0 0.0
    %2948 = vmatprep.subr.mxu0 %v2308
    %2949 = vmatpush1.msra.mxu0 %v2306
    %2950 = vmatprep.subr.mxu0 0.0
    %2951 = vmatpush2.msra.mxu0 0.0
    %2952 = vmatprep.subr.mxu0 0.0
    %2953 = vmatpush2.msra.mxu0 0.0
    %2954 = vmatprep.subr.mxu0 0.0
    %2955 = vmatpush2.msra.mxu0 0.0
    %2956 = vmatprep.subr.mxu0 0.0
    %2957 = vmatpush2.msra.mxu0 0.0
    %2958 = vmatprep.subr.mxu0 0.0
    %2959 = vmatpush2.msra.mxu0 0.0
    %2960 = vmatprep.subr.mxu0 0.0
    %2961 = vmatpush2.msra.mxu0 0.0
    %2962 = vmatprep.subr.mxu0 0.0
    %2963 = vmatpush2.msra.mxu0 0.0
    %2964 = vmatprep.subr.mxu0 0.0
    %2965 = vmatpush2.msra.mxu0 0.0
    %2966 = vmatprep.subr.mxu0 0.0
    %2967 = vmatpush2.msra.mxu0 0.0
    %2968 = vmatprep.subr.mxu0 0.0
    %2969 = vmatpush2.msra.mxu0 0.0
    %2970 = vmatprep.subr.mxu0 0.0
    %2971 = vmatpush2.msra.mxu0 0.0
    %2972 = vmatprep.subr.mxu0 0.0
    %2973 = vmatpush2.msra.mxu0 0.0
    %2974 = vmatprep.subr.mxu0 0.0
    %2975 = vmatpush2.msra.mxu0 0.0
    %2976 = vmatprep.subr.mxu0 0.0
    %2977 = vmatpush2.msra.mxu0 0.0
    %2978 = vmatprep.subr.mxu0 0.0
    %2979 = vmatpush2.msra.mxu0 0.0
    %2980 = vmatprep.subr.mxu0 0.0
    %2981 = vmatpush2.msra.mxu0 0.0
    %2982 = vmatprep.mubr.f32.mxu0 0.0
    %2983 = vmatmul.mubr.f32.gmra.mxu0 %v2916
    %v2984 = vpop.f32.mrf.mxu0
    %v2985 = vadd.f32 0.0, %v2984
    %v2986 = vpop.f32.mrf.mxu0
    %v2987 = vadd.f32 0.0, %v2986
    %2988 = vdwg.mxu0
    %v2993 = vrot.slane %v2985, 7
    %v2994 = vsel %vm365, %v2993, %v2911
    %v2995 = vrot.slane %v2987, 7
    %v2996 = vsel %vm365, %v2995, %v2913
    %2999 = vmatprep.subr.mxu0 0.0
    %3000 = vmatpush1.msra.mxu0 %v2522
    %3001 = vmatprep.subr.mxu0 0.0
    %3002 = vmatpush1.msra.mxu0 %v2521
    %3003 = vmatprep.subr.mxu0 0.0
    %3004 = vmatpush1.msra.mxu0 %v2520
    %3005 = vmatprep.subr.mxu0 0.0
    %3006 = vmatpush1.msra.mxu0 %v2519
    %3007 = vmatprep.subr.mxu0 0.0
    %3008 = vmatpush1.msra.mxu0 %v2518
    %3009 = vmatprep.subr.mxu0 0.0
    %3010 = vmatpush1.msra.mxu0 %v2517
    %3011 = vmatprep.subr.mxu0 0.0
    %3012 = vmatpush1.msra.mxu0 %v2516
    %3013 = vmatprep.subr.mxu0 0.0
    %3014 = vmatpush1.msra.mxu0 %v2515
    %3015 = vmatprep.subr.mxu0 0.0
    %3016 = vmatpush1.msra.mxu0 %v2514
    %3017 = vmatprep.subr.mxu0 0.0
    %3018 = vmatpush1.msra.mxu0 %v2513
    %3019 = vmatprep.subr.mxu0 0.0
    %3020 = vmatpush1.msra.mxu0 %v2512
    %3021 = vmatprep.subr.mxu0 0.0
    %3022 = vmatpush1.msra.mxu0 %v2511
    %3023 = vmatprep.subr.mxu0 0.0
    %3024 = vmatpush1.msra.mxu0 %v2510
    %3025 = vmatprep.subr.mxu0 0.0
    %3026 = vmatpush1.msra.mxu0 %v2509
    %3027 = vmatprep.subr.mxu0 0.0
    %3028 = vmatpush1.msra.mxu0 %v2508
    %3029 = vmatprep.subr.mxu0 0.0
    %3030 = vmatpush1.msra.mxu0 %v2507
    %3031 = vmatprep.subr.mxu0 0.0
    %3032 = vmatpush2.msra.mxu0 %v2538
    %3033 = vmatprep.subr.mxu0 0.0
    %3034 = vmatpush2.msra.mxu0 %v2537
    %3035 = vmatprep.subr.mxu0 0.0
    %3036 = vmatpush2.msra.mxu0 %v2536
    %3037 = vmatprep.subr.mxu0 0.0
    %3038 = vmatpush2.msra.mxu0 %v2535
    %3039 = vmatprep.subr.mxu0 0.0
    %3040 = vmatpush2.msra.mxu0 %v2534
    %3041 = vmatprep.subr.mxu0 0.0
    %3042 = vmatpush2.msra.mxu0 %v2533
    %3043 = vmatprep.subr.mxu0 0.0
    %3044 = vmatpush2.msra.mxu0 %v2532
    %3045 = vmatprep.subr.mxu0 0.0
    %3046 = vmatpush2.msra.mxu0 %v2531
    %3047 = vmatprep.subr.mxu0 0.0
    %3048 = vmatpush2.msra.mxu0 %v2530
    %3049 = vmatprep.subr.mxu0 0.0
    %3050 = vmatpush2.msra.mxu0 %v2529
    %3051 = vmatprep.subr.mxu0 0.0
    %3052 = vmatpush2.msra.mxu0 %v2528
    %3053 = vmatprep.subr.mxu0 0.0
    %3054 = vmatpush2.msra.mxu0 %v2527
    %3055 = vmatprep.subr.mxu0 0.0
    %3056 = vmatpush2.msra.mxu0 %v2526
    %3057 = vmatprep.subr.mxu0 0.0
    %3058 = vmatpush2.msra.mxu0 %v2525
    %3059 = vmatprep.subr.mxu0 0.0
    %3060 = vmatpush2.msra.mxu0 %v2524
    %3061 = vmatprep.subr.mxu0 0.0
    %3062 = vmatpush2.msra.mxu0 %v2523
    %3063 = vmatprep.mubr.f32.mxu0 %v2996
    %3064 = vmatmul.mubr.f32.gmra.mxu0 %v2994
    %v3065 = vpop.f32.mrf.mxu0
    %v3066 = vadd.f32 0.0, %v3065
    %v3067 = vpop.f32.mrf.mxu0
    %3068 = vdwg.mxu0
    %v3071 = vunpack.c.l.s4 1983009808
    %v3072 = vunpack.c.0.s8 %v3071
    %v3073 = vlaneseq
    %v3074 = vshrl.u32 %v3073, 7
    %v3075 = vsub.s32 %v3072, %v3074
    %v3076 = vrot.slane %v3066, %v3075
    %v3077 = vrot.slane %v3076, 1
    %v3080 = vadd.f32 %v2479, %v3076
    %v3081 = vadd.f32 %v2488, %v3077
    %3082 = vmatprep.subr.mxu0 0.0
    %3083 = vmatpush1.msra.mxu0 0.0
    %3084 = vmatprep.subr.mxu0 0.0
    %3085 = vmatpush1.msra.mxu0 0.0
    %3086 = vmatprep.subr.mxu0 0.0
    %3087 = vmatpush1.msra.mxu0 0.0
    %3088 = vmatprep.subr.mxu0 0.0
    %3089 = vmatpush1.msra.mxu0 0.0
    %3090 = vmatprep.subr.mxu0 0.0
    %3091 = vmatpush1.msra.mxu0 0.0
    %3092 = vmatprep.subr.mxu0 0.0
    %3093 = vmatpush1.msra.mxu0 0.0
    %3094 = vmatprep.subr.mxu0 0.0
    %3095 = vmatpush1.msra.mxu0 0.0
    %3096 = vmatprep.subr.mxu0 0.0
    %3097 = vmatpush1.msra.mxu0 0.0
    %3098 = vmatprep.subr.mxu0 0.0
    %3099 = vmatpush1.msra.mxu0 0.0
    %3100 = vmatprep.subr.mxu0 0.0
    %3101 = vmatpush1.msra.mxu0 0.0
    %3102 = vmatprep.subr.mxu0 0.0
    %3103 = vmatpush1.msra.mxu0 0.0
    %3104 = vmatprep.subr.mxu0 0.0
    %3105 = vmatpush1.msra.mxu0 0.0
    %3106 = vmatprep.subr.mxu0 0.0
    %3107 = vmatpush1.msra.mxu0 %v2542
    %3108 = vmatprep.subr.mxu0 0.0
    %3109 = vmatpush1.msra.mxu0 %v2541
    %3110 = vmatprep.subr.mxu0 0.0
    %3111 = vmatpush1.msra.mxu0 %v2540
    %3112 = vmatprep.subr.mxu0 0.0
    %3113 = vmatpush1.msra.mxu0 %v2539
    %3114 = vmatprep.subr.mxu0 0.0
    %3115 = vmatpush2.msra.mxu0 0.0
    %3116 = vmatprep.subr.mxu0 0.0
    %3117 = vmatpush2.msra.mxu0 0.0
    %3118 = vmatprep.subr.mxu0 0.0
    %3119 = vmatpush2.msra.mxu0 0.0
    %3120 = vmatprep.subr.mxu0 0.0
    %3121 = vmatpush2.msra.mxu0 0.0
    %3122 = vmatprep.subr.mxu0 0.0
    %3123 = vmatpush2.msra.mxu0 0.0
    %3124 = vmatprep.subr.mxu0 0.0
    %3125 = vmatpush2.msra.mxu0 0.0
    %3126 = vmatprep.subr.mxu0 0.0
    %3127 = vmatpush2.msra.mxu0 0.0
    %3128 = vmatprep.subr.mxu0 0.0
    %3129 = vmatpush2.msra.mxu0 0.0
    %3130 = vmatprep.subr.mxu0 0.0
    %3131 = vmatpush2.msra.mxu0 0.0
    %3132 = vmatprep.subr.mxu0 0.0
    %3133 = vmatpush2.msra.mxu0 0.0
    %3134 = vmatprep.subr.mxu0 0.0
    %3135 = vmatpush2.msra.mxu0 0.0
    %3136 = vmatprep.subr.mxu0 0.0
    %3137 = vmatpush2.msra.mxu0 0.0
    %3138 = vmatprep.subr.mxu0 0.0
    %3139 = vmatpush2.msra.mxu0 0.0
    %3140 = vmatprep.subr.mxu0 0.0
    %3141 = vmatpush2.msra.mxu0 0.0
    %3142 = vmatprep.subr.mxu0 0.0
    %3143 = vmatpush2.msra.mxu0 0.0
    %3144 = vmatprep.subr.mxu0 0.0
    %3145 = vmatpush2.msra.mxu0 0.0
    %3146 = vmatprep.mubr.f32.mxu0 0.0
    %3147 = vmatmul.mubr.f32.gmra.mxu0 %v2566
    %v3148 = vpop.f32.mrf.mxu0
    %v3149 = vadd.f32 %v2557, %v3148
    %v3150 = vpop.f32.mrf.mxu0
    %3151 = vdwg.mxu0
    %v3154 = vunpack.c.l.s4 1983009808
    %v3155 = vunpack.c.0.s8 %v3154
    %v3156 = vlaneseq
    %v3157 = vshrl.u32 %v3156, 7
    %v3158 = vsub.s32 %v3155, %v3157
    %v3159 = vrot.slane %v3149, %v3158
    %v3160 = vrot.slane %v3159, 1
    %v3163 = vadd.f32 %v3080, %v3159
    %v3164 = vadd.f32 %v3081, %v3160
    %v3165 = vxor.u32 %v3163, 2147483648
    %v3166 = vxor.u32 %v3164, 2147483648
    %v3167 = vmul.f32 %v3165, 1.442695
    %v3168 = vpow.pop %v3167
    %v3169 = vmul.f32 %v3166, 1.442695
    %v3170 = vpow.pop %v3169
    %v3171 = vadd.f32 %v3168, 1.0
    %v3172 = vadd.f32 %v3170, 1.0
    %v3173 = vrcp.pop %v3171
    %v3174 = vmul.f32 1.0, %v3173
    %v3175 = vrcp.pop %v3172
    %v3176 = vmul.f32 1.0, %v3175
    %3177 = vrot.lane.b32.xlu0 %v3159, 64
    %v3178 = vpop.permute.xlu0 %3177
    %3179 = vrot.lane.b32.xlu0 %v3160, 64
    %v3180 = vpop.permute.xlu0 %3179
    %v3183 = vmul.f32 %v3174, %v3178
    %v3184 = vmul.f32 %v3176, %v3180
    %3187 = vrot.lane.b32.xlu0 %v3183, 64
    %v3188 = vpop.permute.xlu0 %3187
    %3189 = vrot.lane.b32.xlu0 %v3184, 64
    %v3190 = vpop.permute.xlu0 %3189
    %v3193 = vadd.f32 %v3080, %v3188
    %v3194 = vadd.f32 %v3081, %v3190
    %v3195 = vtanh.pop %v3193
    %v3196 = vtanh.pop %v3194
    %v3197 = vsub.f32 1.0, %v3174
    %v3198 = vsub.f32 1.0, %v3176
    %3201 = vrot.lane.b32.xlu0 %v3195, 96
    %v3202 = vpop.permute.xlu0 %3201
    %3203 = vrot.lane.b32.xlu0 %v3196, 96
    %v3204 = vpop.permute.xlu0 %3203
    %v3207 = vmul.f32 %v3197, %v3202
    %v3208 = vmul.f32 %v3198, %v3204
    %v3210 = vunpack.c.l.s4 1983009808
    %v3211 = vunpack.c.0.s8 %v3210
    %v3212 = vlaneseq
    %v3213 = vshrl.u32 %v3212, 7
    %v3214 = vsub.s32 %v3211, %v3213
    %v3215 = vrot.slane %v2565, %v3214
    %v3216 = vrot.slane %v3215, 1
    %3217 = vrot.lane.b32.xlu0 %v3215, 32
    %v3218 = vpop.permute.xlu0 %3217
    %3219 = vrot.lane.b32.xlu0 %v3216, 32
    %v3220 = vpop.permute.xlu0 %3219
    %v3223 = vmul.f32 %v3174, %v3218
    %v3224 = vmul.f32 %v3176, %v3220
    %v3225 = vadd.f32 %v3207, %v3223
    %v3226 = vadd.f32 %v3208, %v3224
    %v3229 = vlaneseq
    %v3230 = vshrl.u32 %v3229, 7
    %v3231 = vsub.s32 0, %v3230
    %v3232 = vrot.slane %v3225, %v3231
    %v3233 = vlaneseq
    %v3234 = vshrl.u32 %v3233, 7
    %v3235 = vsub.s32 0, %v3234
    %v3236 = vrot.slane %v3226, %v3235
    %v3237 = vsel %vm365, %v3236, %v3232
    %3238 = vrot.lane.b32.xlu0 %v3237, 96
    %v3239 = vpop.permute.xlu0 %3238
    %v3240 = vsel %vm378, %v3239, 0
    %3242 = vmatprep.subr.mxu0 0.0
    %3243 = vmatpush1.msra.mxu0 0.0
    %3244 = vmatprep.subr.mxu0 0.0
    %3245 = vmatpush1.msra.mxu0 0.0
    %3246 = vmatprep.subr.mxu0 0.0
    %3247 = vmatpush1.msra.mxu0 0.0
    %3248 = vmatprep.subr.mxu0 0.0
    %3249 = vmatpush1.msra.mxu0 0.0
    %3250 = vmatprep.subr.mxu0 0.0
    %3251 = vmatpush1.msra.mxu0 0.0
    %3252 = vmatprep.subr.mxu0 0.0
    %3253 = vmatpush1.msra.mxu0 0.0
    %3254 = vmatprep.subr.mxu0 0.0
    %3255 = vmatpush1.msra.mxu0 0.0
    %3256 = vmatprep.subr.mxu0 0.0
    %3257 = vmatpush1.msra.mxu0 0.0
    %3258 = vmatprep.subr.mxu0 0.0
    %3259 = vmatpush1.msra.mxu0 0.0
    %3260 = vmatprep.subr.mxu0 0.0
    %3261 = vmatpush1.msra.mxu0 0.0
    %3262 = vmatprep.subr.mxu0 0.0
    %3263 = vmatpush1.msra.mxu0 0.0
    %3264 = vmatprep.subr.mxu0 0.0
    %3265 = vmatpush1.msra.mxu0 0.0
    %3266 = vmatprep.subr.mxu0 0.0
    %3267 = vmatpush1.msra.mxu0 %v2506
    %3268 = vmatprep.subr.mxu0 0.0
    %3269 = vmatpush1.msra.mxu0 %v2505
    %3270 = vmatprep.subr.mxu0 0.0
    %3271 = vmatpush1.msra.mxu0 %v2504
    %3272 = vmatprep.subr.mxu0 0.0
    %3273 = vmatpush1.msra.mxu0 %v2503
    %3274 = vmatprep.subr.mxu0 0.0
    %3275 = vmatpush2.msra.mxu0 0.0
    %3276 = vmatprep.subr.mxu0 0.0
    %3277 = vmatpush2.msra.mxu0 0.0
    %3278 = vmatprep.subr.mxu0 0.0
    %3279 = vmatpush2.msra.mxu0 0.0
    %3280 = vmatprep.subr.mxu0 0.0
    %3281 = vmatpush2.msra.mxu0 0.0
    %3282 = vmatprep.subr.mxu0 0.0
    %3283 = vmatpush2.msra.mxu0 0.0
    %3284 = vmatprep.subr.mxu0 0.0
    %3285 = vmatpush2.msra.mxu0 0.0
    %3286 = vmatprep.subr.mxu0 0.0
    %3287 = vmatpush2.msra.mxu0 0.0
    %3288 = vmatprep.subr.mxu0 0.0
    %3289 = vmatpush2.msra.mxu0 0.0
    %3290 = vmatprep.subr.mxu0 0.0
    %3291 = vmatpush2.msra.mxu0 0.0
    %3292 = vmatprep.subr.mxu0 0.0
    %3293 = vmatpush2.msra.mxu0 0.0
    %3294 = vmatprep.subr.mxu0 0.0
    %3295 = vmatpush2.msra.mxu0 0.0
    %3296 = vmatprep.subr.mxu0 0.0
    %3297 = vmatpush2.msra.mxu0 0.0
    %3298 = vmatprep.subr.mxu0 0.0
    %3299 = vmatpush2.msra.mxu0 0.0
    %3300 = vmatprep.subr.mxu0 0.0
    %3301 = vmatpush2.msra.mxu0 0.0
    %3302 = vmatprep.subr.mxu0 0.0
    %3303 = vmatpush2.msra.mxu0 0.0
    %3304 = vmatprep.subr.mxu0 0.0
    %3305 = vmatpush2.msra.mxu0 0.0
    %3306 = vmatprep.mubr.f32.mxu0 0.0
    %3307 = vmatmul.mubr.f32.gmra.mxu0 %v3240
    %v3308 = vpop.f32.mrf.mxu0
    %v3309 = vadd.f32 %v2549, %v3308
    %v3310 = vpop.f32.mrf.mxu0
    %3311 = vdwg.mxu0
    %v3314 = vunpack.c.l.s4 1966171168
    %v3315 = vunpack.c.0.s8 %v3314
    %v3316 = vlaneseq
    %v3317 = vshrl.u32 %v3316, 7
    %v3318 = vsub.s32 %v3315, %v3317
    %v3319 = vrot.slane %v3309, %v3318
    %v3320 = vcombine.high %v3319, %v3319
    %v3322 = vunpack.c.l.s4 1966171168
    %v3323 = vunpack.c.0.s8 %v3322
    %v3324 = vlaneseq
    %v3325 = vshrl.u32 %v3324, 7
    %v3326 = vsub.s32 %v3323, %v3325
    %v3327 = vrot.slane %v3319, %v3326
    %v3329 = vunpack.c.l.s4 1966171168
    %v3330 = vunpack.c.0.s8 %v3329
    %v3331 = vlaneseq
    %v3332 = vshrl.u32 %v3331, 7
    %v3333 = vsub.s32 %v3330, %v3332
    %v3334 = vrot.slane %v3320, %v3333
    %3337 = vmatprep.subr.mxu0 0.0
    %3338 = vmatpush1.msra.mxu0 %v2171
    %3339 = vmatprep.subr.mxu0 0.0
    %3340 = vmatpush1.msra.mxu0 %v2170
    %3341 = vmatprep.subr.mxu0 0.0
    %3342 = vmatpush1.msra.mxu0 %v2169
    %3343 = vmatprep.subr.mxu0 0.0
    %3344 = vmatpush1.msra.mxu0 %v2168
    %3345 = vmatprep.subr.mxu0 0.0
    %3346 = vmatpush1.msra.mxu0 %v2167
    %3347 = vmatprep.subr.mxu0 0.0
    %3348 = vmatpush1.msra.mxu0 %v2166
    %3349 = vmatprep.subr.mxu0 0.0
    %3350 = vmatpush1.msra.mxu0 %v2165
    %3351 = vmatprep.subr.mxu0 0.0
    %3352 = vmatpush1.msra.mxu0 %v2164
    %3353 = vmatprep.subr.mxu0 0.0
    %3354 = vmatpush1.msra.mxu0 %v2163
    %3355 = vmatprep.subr.mxu0 0.0
    %3356 = vmatpush1.msra.mxu0 %v2162
    %3357 = vmatprep.subr.mxu0 0.0
    %3358 = vmatpush1.msra.mxu0 %v2161
    %3359 = vmatprep.subr.mxu0 0.0
    %3360 = vmatpush1.msra.mxu0 %v2160
    %3361 = vmatprep.subr.mxu0 0.0
    %3362 = vmatpush1.msra.mxu0 %v2159
    %3363 = vmatprep.subr.mxu0 0.0
    %3364 = vmatpush1.msra.mxu0 %v2158
    %3365 = vmatprep.subr.mxu0 0.0
    %3366 = vmatpush1.msra.mxu0 %v2157
    %3367 = vmatprep.subr.mxu0 0.0
    %3368 = vmatpush1.msra.mxu0 %v2156
    %3369 = vmatprep.subr.mxu0 0.0
    %3370 = vmatpush2.msra.mxu0 0.0
    %3371 = vmatprep.subr.mxu0 0.0
    %3372 = vmatpush2.msra.mxu0 0.0
    %3373 = vmatprep.subr.mxu0 0.0
    %3374 = vmatpush2.msra.mxu0 0.0
    %3375 = vmatprep.subr.mxu0 0.0
    %3376 = vmatpush2.msra.mxu0 0.0
    %3377 = vmatprep.subr.mxu0 0.0
    %3378 = vmatpush2.msra.mxu0 0.0
    %3379 = vmatprep.subr.mxu0 0.0
    %3380 = vmatpush2.msra.mxu0 0.0
    %3381 = vmatprep.subr.mxu0 0.0
    %3382 = vmatpush2.msra.mxu0 0.0
    %3383 = vmatprep.subr.mxu0 0.0
    %3384 = vmatpush2.msra.mxu0 0.0
    %3385 = vmatprep.subr.mxu0 0.0
    %3386 = vmatpush2.msra.mxu0 0.0
    %3387 = vmatprep.subr.mxu0 0.0
    %3388 = vmatpush2.msra.mxu0 0.0
    %3389 = vmatprep.subr.mxu0 0.0
    %3390 = vmatpush2.msra.mxu0 0.0
    %3391 = vmatprep.subr.mxu0 0.0
    %3392 = vmatpush2.msra.mxu0 0.0
    %3393 = vmatprep.subr.mxu0 0.0
    %3394 = vmatpush2.msra.mxu0 0.0
    %3395 = vmatprep.subr.mxu0 0.0
    %3396 = vmatpush2.msra.mxu0 0.0
    %3397 = vmatprep.subr.mxu0 0.0
    %3398 = vmatpush2.msra.mxu0 0.0
    %3399 = vmatprep.subr.mxu0 0.0
    %3400 = vmatpush2.msra.mxu0 0.0
    %3401 = vmatprep.mubr.f32.mxu0 0.0
    %3402 = vmatmul.mubr.f32.gmra.mxu0 %v3327
    %v3403 = vpop.f32.mrf.mxu0
    %v3404 = vadd.f32 0.0, %v3403
    %v3405 = vpop.f32.mrf.mxu0
    %3406 = vdwg.mxu0
    %3407 = vmatprep.subr.mxu0 0.0
    %3408 = vmatpush1.msra.mxu0 %v2203
    %3409 = vmatprep.subr.mxu0 0.0
    %3410 = vmatpush1.msra.mxu0 %v2202
    %3411 = vmatprep.subr.mxu0 0.0
    %3412 = vmatpush1.msra.mxu0 %v2201
    %3413 = vmatprep.subr.mxu0 0.0
    %3414 = vmatpush1.msra.mxu0 %v2200
    %3415 = vmatprep.subr.mxu0 0.0
    %3416 = vmatpush1.msra.mxu0 %v2199
    %3417 = vmatprep.subr.mxu0 0.0
    %3418 = vmatpush1.msra.mxu0 %v2198
    %3419 = vmatprep.subr.mxu0 0.0
    %3420 = vmatpush1.msra.mxu0 %v2197
    %3421 = vmatprep.subr.mxu0 0.0
    %3422 = vmatpush1.msra.mxu0 %v2196
    %3423 = vmatprep.subr.mxu0 0.0
    %3424 = vmatpush1.msra.mxu0 %v2195
    %3425 = vmatprep.subr.mxu0 0.0
    %3426 = vmatpush1.msra.mxu0 %v2194
    %3427 = vmatprep.subr.mxu0 0.0
    %3428 = vmatpush1.msra.mxu0 %v2193
    %3429 = vmatprep.subr.mxu0 0.0
    %3430 = vmatpush1.msra.mxu0 %v2192
    %3431 = vmatprep.subr.mxu0 0.0
    %3432 = vmatpush1.msra.mxu0 %v2191
    %3433 = vmatprep.subr.mxu0 0.0
    %3434 = vmatpush1.msra.mxu0 %v2190
    %3435 = vmatprep.subr.mxu0 0.0
    %3436 = vmatpush1.msra.mxu0 %v2189
    %3437 = vmatprep.subr.mxu0 0.0
    %3438 = vmatpush1.msra.mxu0 %v2188
    %3439 = vmatprep.subr.mxu0 0.0
    %3440 = vmatpush2.msra.mxu0 0.0
    %3441 = vmatprep.subr.mxu0 0.0
    %3442 = vmatpush2.msra.mxu0 0.0
    %3443 = vmatprep.subr.mxu0 0.0
    %3444 = vmatpush2.msra.mxu0 0.0
    %3445 = vmatprep.subr.mxu0 0.0
    %3446 = vmatpush2.msra.mxu0 0.0
    %3447 = vmatprep.subr.mxu0 0.0
    %3448 = vmatpush2.msra.mxu0 0.0
    %3449 = vmatprep.subr.mxu0 0.0
    %3450 = vmatpush2.msra.mxu0 0.0
    %3451 = vmatprep.subr.mxu0 0.0
    %3452 = vmatpush2.msra.mxu0 0.0
    %3453 = vmatprep.subr.mxu0 0.0
    %3454 = vmatpush2.msra.mxu0 0.0
    %3455 = vmatprep.subr.mxu0 0.0
    %3456 = vmatpush2.msra.mxu0 0.0
    %3457 = vmatprep.subr.mxu0 0.0
    %3458 = vmatpush2.msra.mxu0 0.0
    %3459 = vmatprep.subr.mxu0 0.0
    %3460 = vmatpush2.msra.mxu0 0.0
    %3461 = vmatprep.subr.mxu0 0.0
    %3462 = vmatpush2.msra.mxu0 0.0
    %3463 = vmatprep.subr.mxu0 0.0
    %3464 = vmatpush2.msra.mxu0 0.0
    %3465 = vmatprep.subr.mxu0 0.0
    %3466 = vmatpush2.msra.mxu0 0.0
    %3467 = vmatprep.subr.mxu0 0.0
    %3468 = vmatpush2.msra.mxu0 0.0
    %3469 = vmatprep.subr.mxu0 0.0
    %3470 = vmatpush2.msra.mxu0 0.0
    %3471 = vmatprep.mubr.f32.mxu0 0.0
    %3472 = vmatmul.mubr.f32.gmra.mxu0 %v3334
    %v3473 = vpop.f32.mrf.mxu0
    %v3474 = vadd.f32 0.0, %v3473
    %v3475 = vpop.f32.mrf.mxu0
    %3476 = vdwg.mxu0
    %v3477 = vmul.f32 %v3404, 0.1
    %v3478 = vmul.f32 %v3474, 0.1
    %v3481 = vrot.slane %v3478, 7
    %v3482 = vsel %vm365, %v3481, %v3477
    %v3484 = vsel %vm2810, %v3482, -inf
    %3485 = vmax.xlane.f32.xlu0 %v3484
    %v3486 = vpop.xlane.xlu0 %3485
    %v3488 = vrot.slane %v3486, 1
    %v3491 = vsub.f32 %v3477, %v3486
    %v3492 = vsub.f32 %v3478, %v3488
    %v3493 = vmul.f32 %v3491, 1.442695
    %v3494 = vpow.pop %v3493
    %v3495 = vmul.f32 %v3492, 1.442695
    %v3496 = vpow.pop %v3495
    %v3499 = vrot.slane %v3496, 7
    %v3500 = vsel %vm365, %v3499, %v3494
    %v3502 = vsel %vm2810, %v3500, 0.0
    %3503 = vadd.xlane.f32.xlu0 %v3502
    %v3504 = vpop.xlane.xlu0 %3503
    %v3506 = vrot.slane %v3504, 1
    %v3509 = vrcp.pop %v3504
    %v3510 = vmul.f32 %v3494, %v3509
    %v3511 = vrcp.pop %v3506
    %v3512 = vmul.f32 %v3496, %v3511
    %v3514 = vsel %vm2840, %v3510, 0
    %3516 = vmatprep.subr.mxu0 0.0
    %3517 = vmatpush1.msra.mxu0 0.0
    %3518 = vmatprep.subr.mxu0 0.0
    %3519 = vmatpush1.msra.mxu0 0.0
    %3520 = vmatprep.subr.mxu0 0.0
    %3521 = vmatpush1.msra.mxu0 0.0
    %3522 = vmatprep.subr.mxu0 0.0
    %3523 = vmatpush1.msra.mxu0 0.0
    %3524 = vmatprep.subr.mxu0 0.0
    %3525 = vmatpush1.msra.mxu0 0.0
    %3526 = vmatprep.subr.mxu0 0.0
    %3527 = vmatpush1.msra.mxu0 0.0
    %3528 = vmatprep.subr.mxu0 0.0
    %3529 = vmatpush1.msra.mxu0 0.0
    %3530 = vmatprep.subr.mxu0 0.0
    %3531 = vmatpush1.msra.mxu0 0.0
    %3532 = vmatprep.subr.mxu0 0.0
    %3533 = vmatpush1.msra.mxu0 0.0
    %3534 = vmatprep.subr.mxu0 0.0
    %3535 = vmatpush1.msra.mxu0 0.0
    %3536 = vmatprep.subr.mxu0 0.0
    %3537 = vmatpush1.msra.mxu0 0.0
    %3538 = vmatprep.subr.mxu0 0.0
    %3539 = vmatpush1.msra.mxu0 0.0
    %3540 = vmatprep.subr.mxu0 0.0
    %3541 = vmatpush1.msra.mxu0 0.0
    %3542 = vmatprep.subr.mxu0 0.0
    %3543 = vmatpush1.msra.mxu0 0.0
    %3544 = vmatprep.subr.mxu0 0.0
    %3545 = vmatpush1.msra.mxu0 0.0
    %3546 = vmatprep.subr.mxu0 %v2302
    %3547 = vmatpush1.msra.mxu0 %v2300
    %3548 = vmatprep.subr.mxu0 0.0
    %3549 = vmatpush2.msra.mxu0 0.0
    %3550 = vmatprep.subr.mxu0 0.0
    %3551 = vmatpush2.msra.mxu0 0.0
    %3552 = vmatprep.subr.mxu0 0.0
    %3553 = vmatpush2.msra.mxu0 0.0
    %3554 = vmatprep.subr.mxu0 0.0
    %3555 = vmatpush2.msra.mxu0 0.0
    %3556 = vmatprep.subr.mxu0 0.0
    %3557 = vmatpush2.msra.mxu0 0.0
    %3558 = vmatprep.subr.mxu0 0.0
    %3559 = vmatpush2.msra.mxu0 0.0
    %3560 = vmatprep.subr.mxu0 0.0
    %3561 = vmatpush2.msra.mxu0 0.0
    %3562 = vmatprep.subr.mxu0 0.0
    %3563 = vmatpush2.msra.mxu0 0.0
    %3564 = vmatprep.subr.mxu0 0.0
    %3565 = vmatpush2.msra.mxu0 0.0
    %3566 = vmatprep.subr.mxu0 0.0
    %3567 = vmatpush2.msra.mxu0 0.0
    %3568 = vmatprep.subr.mxu0 0.0
    %3569 = vmatpush2.msra.mxu0 0.0
    %3570 = vmatprep.subr.mxu0 0.0
    %3571 = vmatpush2.msra.mxu0 0.0
    %3572 = vmatprep.subr.mxu0 0.0
    %3573 = vmatpush2.msra.mxu0 0.0
    %3574 = vmatprep.subr.mxu0 0.0
    %3575 = vmatpush2.msra.mxu0 0.0
    %3576 = vmatprep.subr.mxu0 0.0
    %3577 = vmatpush2.msra.mxu0 0.0
    %3578 = vmatprep.subr.mxu0 0.0
    %3579 = vmatpush2.msra.mxu0 0.0
    %3580 = vmatprep.mubr.f32.mxu0 0.0
    %3581 = vmatmul.mubr.f32.gmra.mxu0 %v3514
    %v3582 = vpop.f32.mrf.mxu0
    %v3583 = vadd.f32 0.0, %v3582
    %v3584 = vpop.f32.mrf.mxu0
    %v3585 = vadd.f32 0.0, %v3584
    %3586 = vdwg.mxu0
    %v3588 = vsel %vm2840, %v3512, 0
    %3590 = vmatprep.subr.mxu0 0.0
    %3591 = vmatpush1.msra.mxu0 0.0
    %3592 = vmatprep.subr.mxu0 0.0
    %3593 = vmatpush1.msra.mxu0 0.0
    %3594 = vmatprep.subr.mxu0 0.0
    %3595 = vmatpush1.msra.mxu0 0.0
    %3596 = vmatprep.subr.mxu0 0.0
    %3597 = vmatpush1.msra.mxu0 0.0
    %3598 = vmatprep.subr.mxu0 0.0
    %3599 = vmatpush1.msra.mxu0 0.0
    %3600 = vmatprep.subr.mxu0 0.0
    %3601 = vmatpush1.msra.mxu0 0.0
    %3602 = vmatprep.subr.mxu0 0.0
    %3603 = vmatpush1.msra.mxu0 0.0
    %3604 = vmatprep.subr.mxu0 0.0
    %3605 = vmatpush1.msra.mxu0 0.0
    %3606 = vmatprep.subr.mxu0 0.0
    %3607 = vmatpush1.msra.mxu0 0.0
    %3608 = vmatprep.subr.mxu0 0.0
    %3609 = vmatpush1.msra.mxu0 0.0
    %3610 = vmatprep.subr.mxu0 0.0
    %3611 = vmatpush1.msra.mxu0 0.0
    %3612 = vmatprep.subr.mxu0 0.0
    %3613 = vmatpush1.msra.mxu0 0.0
    %3614 = vmatprep.subr.mxu0 0.0
    %3615 = vmatpush1.msra.mxu0 0.0
    %3616 = vmatprep.subr.mxu0 0.0
    %3617 = vmatpush1.msra.mxu0 0.0
    %3618 = vmatprep.subr.mxu0 0.0
    %3619 = vmatpush1.msra.mxu0 0.0
    %3620 = vmatprep.subr.mxu0 %v2308
    %3621 = vmatpush1.msra.mxu0 %v2306
    %3622 = vmatprep.subr.mxu0 0.0
    %3623 = vmatpush2.msra.mxu0 0.0
    %3624 = vmatprep.subr.mxu0 0.0
    %3625 = vmatpush2.msra.mxu0 0.0
    %3626 = vmatprep.subr.mxu0 0.0
    %3627 = vmatpush2.msra.mxu0 0.0
    %3628 = vmatprep.subr.mxu0 0.0
    %3629 = vmatpush2.msra.mxu0 0.0
    %3630 = vmatprep.subr.mxu0 0.0
    %3631 = vmatpush2.msra.mxu0 0.0
    %3632 = vmatprep.subr.mxu0 0.0
    %3633 = vmatpush2.msra.mxu0 0.0
    %3634 = vmatprep.subr.mxu0 0.0
    %3635 = vmatpush2.msra.mxu0 0.0
    %3636 = vmatprep.subr.mxu0 0.0
    %3637 = vmatpush2.msra.mxu0 0.0
    %3638 = vmatprep.subr.mxu0 0.0
    %3639 = vmatpush2.msra.mxu0 0.0
    %3640 = vmatprep.subr.mxu0 0.0
    %3641 = vmatpush2.msra.mxu0 0.0
    %3642 = vmatprep.subr.mxu0 0.0
    %3643 = vmatpush2.msra.mxu0 0.0
    %3644 = vmatprep.subr.mxu0 0.0
    %3645 = vmatpush2.msra.mxu0 0.0
    %3646 = vmatprep.subr.mxu0 0.0
    %3647 = vmatpush2.msra.mxu0 0.0
    %3648 = vmatprep.subr.mxu0 0.0
    %3649 = vmatpush2.msra.mxu0 0.0
    %3650 = vmatprep.subr.mxu0 0.0
    %3651 = vmatpush2.msra.mxu0 0.0
    %3652 = vmatprep.subr.mxu0 0.0
    %3653 = vmatpush2.msra.mxu0 0.0
    %3654 = vmatprep.mubr.f32.mxu0 0.0
    %3655 = vmatmul.mubr.f32.gmra.mxu0 %v3588
    %v3656 = vpop.f32.mrf.mxu0
    %v3657 = vadd.f32 0.0, %v3656
    %v3658 = vpop.f32.mrf.mxu0
    %v3659 = vadd.f32 0.0, %v3658
    %3660 = vdwg.mxu0
    %v3665 = vrot.slane %v3657, 7
    %v3666 = vsel %vm365, %v3665, %v3583
    %v3667 = vrot.slane %v3659, 7
    %v3668 = vsel %vm365, %v3667, %v3585
    %3671 = vmatprep.subr.mxu0 0.0
    %3672 = vmatpush1.msra.mxu0 %v2522
    %3673 = vmatprep.subr.mxu0 0.0
    %3674 = vmatpush1.msra.mxu0 %v2521
    %3675 = vmatprep.subr.mxu0 0.0
    %3676 = vmatpush1.msra.mxu0 %v2520
    %3677 = vmatprep.subr.mxu0 0.0
    %3678 = vmatpush1.msra.mxu0 %v2519
    %3679 = vmatprep.subr.mxu0 0.0
    %3680 = vmatpush1.msra.mxu0 %v2518
    %3681 = vmatprep.subr.mxu0 0.0
    %3682 = vmatpush1.msra.mxu0 %v2517
    %3683 = vmatprep.subr.mxu0 0.0
    %3684 = vmatpush1.msra.mxu0 %v2516
    %3685 = vmatprep.subr.mxu0 0.0
    %3686 = vmatpush1.msra.mxu0 %v2515
    %3687 = vmatprep.subr.mxu0 0.0
    %3688 = vmatpush1.msra.mxu0 %v2514
    %3689 = vmatprep.subr.mxu0 0.0
    %3690 = vmatpush1.msra.mxu0 %v2513
    %3691 = vmatprep.subr.mxu0 0.0
    %3692 = vmatpush1.msra.mxu0 %v2512
    %3693 = vmatprep.subr.mxu0 0.0
    %3694 = vmatpush1.msra.mxu0 %v2511
    %3695 = vmatprep.subr.mxu0 0.0
    %3696 = vmatpush1.msra.mxu0 %v2510
    %3697 = vmatprep.subr.mxu0 0.0
    %3698 = vmatpush1.msra.mxu0 %v2509
    %3699 = vmatprep.subr.mxu0 0.0
    %3700 = vmatpush1.msra.mxu0 %v2508
    %3701 = vmatprep.subr.mxu0 0.0
    %3702 = vmatpush1.msra.mxu0 %v2507
    %3703 = vmatprep.subr.mxu0 0.0
    %3704 = vmatpush2.msra.mxu0 %v2538
    %3705 = vmatprep.subr.mxu0 0.0
    %3706 = vmatpush2.msra.mxu0 %v2537
    %3707 = vmatprep.subr.mxu0 0.0
    %3708 = vmatpush2.msra.mxu0 %v2536
    %3709 = vmatprep.subr.mxu0 0.0
    %3710 = vmatpush2.msra.mxu0 %v2535
    %3711 = vmatprep.subr.mxu0 0.0
    %3712 = vmatpush2.msra.mxu0 %v2534
    %3713 = vmatprep.subr.mxu0 0.0
    %3714 = vmatpush2.msra.mxu0 %v2533
    %3715 = vmatprep.subr.mxu0 0.0
    %3716 = vmatpush2.msra.mxu0 %v2532
    %3717 = vmatprep.subr.mxu0 0.0
    %3718 = vmatpush2.msra.mxu0 %v2531
    %3719 = vmatprep.subr.mxu0 0.0
    %3720 = vmatpush2.msra.mxu0 %v2530
    %3721 = vmatprep.subr.mxu0 0.0
    %3722 = vmatpush2.msra.mxu0 %v2529
    %3723 = vmatprep.subr.mxu0 0.0
    %3724 = vmatpush2.msra.mxu0 %v2528
    %3725 = vmatprep.subr.mxu0 0.0
    %3726 = vmatpush2.msra.mxu0 %v2527
    %3727 = vmatprep.subr.mxu0 0.0
    %3728 = vmatpush2.msra.mxu0 %v2526
    %3729 = vmatprep.subr.mxu0 0.0
    %3730 = vmatpush2.msra.mxu0 %v2525
    %3731 = vmatprep.subr.mxu0 0.0
    %3732 = vmatpush2.msra.mxu0 %v2524
    %3733 = vmatprep.subr.mxu0 0.0
    %3734 = vmatpush2.msra.mxu0 %v2523
    %3735 = vmatprep.mubr.f32.mxu0 %v3668
    %3736 = vmatmul.mubr.f32.gmra.mxu0 %v3666
    %v3737 = vpop.f32.mrf.mxu0
    %v3738 = vadd.f32 0.0, %v3737
    %v3739 = vpop.f32.mrf.mxu0
    %3740 = vdwg.mxu0
    %v3743 = vunpack.c.l.s4 1983009808
    %v3744 = vunpack.c.0.s8 %v3743
    %v3745 = vlaneseq
    %v3746 = vshrl.u32 %v3745, 7
    %v3747 = vsub.s32 %v3744, %v3746
    %v3748 = vrot.slane %v3738, %v3747
    %v3749 = vrot.slane %v3748, 7
    %v3752 = vadd.f32 %v2479, %v3749
    %v3753 = vadd.f32 %v2488, %v3748
    %3754 = vmatprep.subr.mxu0 0.0
    %3755 = vmatpush1.msra.mxu0 0.0
    %3756 = vmatprep.subr.mxu0 0.0
    %3757 = vmatpush1.msra.mxu0 0.0
    %3758 = vmatprep.subr.mxu0 0.0
    %3759 = vmatpush1.msra.mxu0 0.0
    %3760 = vmatprep.subr.mxu0 0.0
    %3761 = vmatpush1.msra.mxu0 0.0
    %3762 = vmatprep.subr.mxu0 0.0
    %3763 = vmatpush1.msra.mxu0 0.0
    %3764 = vmatprep.subr.mxu0 0.0
    %3765 = vmatpush1.msra.mxu0 0.0
    %3766 = vmatprep.subr.mxu0 0.0
    %3767 = vmatpush1.msra.mxu0 0.0
    %3768 = vmatprep.subr.mxu0 0.0
    %3769 = vmatpush1.msra.mxu0 0.0
    %3770 = vmatprep.subr.mxu0 0.0
    %3771 = vmatpush1.msra.mxu0 0.0
    %3772 = vmatprep.subr.mxu0 0.0
    %3773 = vmatpush1.msra.mxu0 0.0
    %3774 = vmatprep.subr.mxu0 0.0
    %3775 = vmatpush1.msra.mxu0 0.0
    %3776 = vmatprep.subr.mxu0 0.0
    %3777 = vmatpush1.msra.mxu0 0.0
    %3778 = vmatprep.subr.mxu0 0.0
    %3779 = vmatpush1.msra.mxu0 %v2542
    %3780 = vmatprep.subr.mxu0 0.0
    %3781 = vmatpush1.msra.mxu0 %v2541
    %3782 = vmatprep.subr.mxu0 0.0
    %3783 = vmatpush1.msra.mxu0 %v2540
    %3784 = vmatprep.subr.mxu0 0.0
    %3785 = vmatpush1.msra.mxu0 %v2539
    %3786 = vmatprep.subr.mxu0 0.0
    %3787 = vmatpush2.msra.mxu0 0.0
    %3788 = vmatprep.subr.mxu0 0.0
    %3789 = vmatpush2.msra.mxu0 0.0
    %3790 = vmatprep.subr.mxu0 0.0
    %3791 = vmatpush2.msra.mxu0 0.0
    %3792 = vmatprep.subr.mxu0 0.0
    %3793 = vmatpush2.msra.mxu0 0.0
    %3794 = vmatprep.subr.mxu0 0.0
    %3795 = vmatpush2.msra.mxu0 0.0
    %3796 = vmatprep.subr.mxu0 0.0
    %3797 = vmatpush2.msra.mxu0 0.0
    %3798 = vmatprep.subr.mxu0 0.0
    %3799 = vmatpush2.msra.mxu0 0.0
    %3800 = vmatprep.subr.mxu0 0.0
    %3801 = vmatpush2.msra.mxu0 0.0
    %3802 = vmatprep.subr.mxu0 0.0
    %3803 = vmatpush2.msra.mxu0 0.0
    %3804 = vmatprep.subr.mxu0 0.0
    %3805 = vmatpush2.msra.mxu0 0.0
    %3806 = vmatprep.subr.mxu0 0.0
    %3807 = vmatpush2.msra.mxu0 0.0
    %3808 = vmatprep.subr.mxu0 0.0
    %3809 = vmatpush2.msra.mxu0 0.0
    %3810 = vmatprep.subr.mxu0 0.0
    %3811 = vmatpush2.msra.mxu0 0.0
    %3812 = vmatprep.subr.mxu0 0.0
    %3813 = vmatpush2.msra.mxu0 0.0
    %3814 = vmatprep.subr.mxu0 0.0
    %3815 = vmatpush2.msra.mxu0 0.0
    %3816 = vmatprep.subr.mxu0 0.0
    %3817 = vmatpush2.msra.mxu0 0.0
    %3818 = vmatprep.mubr.f32.mxu0 0.0
    %3819 = vmatmul.mubr.f32.gmra.mxu0 %v3240
    %v3820 = vpop.f32.mrf.mxu0
    %v3821 = vadd.f32 %v2557, %v3820
    %v3822 = vpop.f32.mrf.mxu0
    %3823 = vdwg.mxu0
    %v3826 = vunpack.c.l.s4 1983009808
    %v3827 = vunpack.c.0.s8 %v3826
    %v3828 = vlaneseq
    %v3829 = vshrl.u32 %v3828, 7
    %v3830 = vsub.s32 %v3827, %v3829
    %v3831 = vrot.slane %v3821, %v3830
    %v3832 = vrot.slane %v3831, 7
    %v3835 = vadd.f32 %v3752, %v3832
    %v3836 = vadd.f32 %v3753, %v3831
    %v3837 = vxor.u32 %v3835, 2147483648
    %v3838 = vxor.u32 %v3836, 2147483648
    %v3839 = vmul.f32 %v3837, 1.442695
    %v3840 = vpow.pop %v3839
    %v3841 = vmul.f32 %v3838, 1.442695
    %v3842 = vpow.pop %v3841
    %v3843 = vadd.f32 %v3840, 1.0
    %v3844 = vadd.f32 %v3842, 1.0
    %v3845 = vrcp.pop %v3843
    %v3846 = vmul.f32 1.0, %v3845
    %v3847 = vrcp.pop %v3844
    %v3848 = vmul.f32 1.0, %v3847
    %3849 = vrot.lane.b32.xlu0 %v3832, 64
    %v3850 = vpop.permute.xlu0 %3849
    %3851 = vrot.lane.b32.xlu0 %v3831, 64
    %v3852 = vpop.permute.xlu0 %3851
    %v3855 = vmul.f32 %v3846, %v3850
    %v3856 = vmul.f32 %v3848, %v3852
    %3859 = vrot.lane.b32.xlu0 %v3855, 64
    %v3860 = vpop.permute.xlu0 %3859
    %3861 = vrot.lane.b32.xlu0 %v3856, 64
    %v3862 = vpop.permute.xlu0 %3861
    %v3865 = vadd.f32 %v3752, %v3860
    %v3866 = vadd.f32 %v3753, %v3862
    %v3867 = vtanh.pop %v3865
    %v3868 = vtanh.pop %v3866
    %v3869 = vsub.f32 1.0, %v3846
    %v3870 = vsub.f32 1.0, %v3848
    %3873 = vrot.lane.b32.xlu0 %v3867, 96
    %v3874 = vpop.permute.xlu0 %3873
    %3875 = vrot.lane.b32.xlu0 %v3868, 96
    %v3876 = vpop.permute.xlu0 %3875
    %v3879 = vmul.f32 %v3869, %v3874
    %v3880 = vmul.f32 %v3870, %v3876
    %v3881 = vrot.slane %v3225, 7
    %v3882 = vrot.slane %v3226, 7
    %v3885 = vmul.f32 %v3846, %v3881
    %v3886 = vmul.f32 %v3848, %v3882
    %v3887 = vadd.f32 %v3879, %v3885
    %v3888 = vadd.f32 %v3880, %v3886
    %v3891 = vlaneseq
    %v3892 = vshrl.u32 %v3891, 7
    %v3893 = vsub.s32 1, %v3892
    %v3894 = vrot.slane %v3887, %v3893
    %v3895 = vlaneseq
    %v3896 = vshrl.u32 %v3895, 7
    %v3897 = vsub.s32 1, %v3896
    %v3898 = vrot.slane %v3888, %v3897
    %v3899 = vsel %vm365, %v3898, %v3894
    %3900 = vrot.lane.b32.xlu0 %v3899, 96
    %v3901 = vpop.permute.xlu0 %3900
    %v3902 = vsel %vm378, %v3901, 0
    %3904 = vmatprep.subr.mxu0 0.0
    %3905 = vmatpush1.msra.mxu0 0.0
    %3906 = vmatprep.subr.mxu0 0.0
    %3907 = vmatpush1.msra.mxu0 0.0
    %3908 = vmatprep.subr.mxu0 0.0
    %3909 = vmatpush1.msra.mxu0 0.0
    %3910 = vmatprep.subr.mxu0 0.0
    %3911 = vmatpush1.msra.mxu0 0.0
    %3912 = vmatprep.subr.mxu0 0.0
    %3913 = vmatpush1.msra.mxu0 0.0
    %3914 = vmatprep.subr.mxu0 0.0
    %3915 = vmatpush1.msra.mxu0 0.0
    %3916 = vmatprep.subr.mxu0 0.0
    %3917 = vmatpush1.msra.mxu0 0.0
    %3918 = vmatprep.subr.mxu0 0.0
    %3919 = vmatpush1.msra.mxu0 0.0
    %3920 = vmatprep.subr.mxu0 0.0
    %3921 = vmatpush1.msra.mxu0 0.0
    %3922 = vmatprep.subr.mxu0 0.0
    %3923 = vmatpush1.msra.mxu0 0.0
    %3924 = vmatprep.subr.mxu0 0.0
    %3925 = vmatpush1.msra.mxu0 0.0
    %3926 = vmatprep.subr.mxu0 0.0
    %3927 = vmatpush1.msra.mxu0 0.0
    %3928 = vmatprep.subr.mxu0 0.0
    %3929 = vmatpush1.msra.mxu0 %v2506
    %3930 = vmatprep.subr.mxu0 0.0
    %3931 = vmatpush1.msra.mxu0 %v2505
    %3932 = vmatprep.subr.mxu0 0.0
    %3933 = vmatpush1.msra.mxu0 %v2504
    %3934 = vmatprep.subr.mxu0 0.0
    %3935 = vmatpush1.msra.mxu0 %v2503
    %3936 = vmatprep.subr.mxu0 0.0
    %3937 = vmatpush2.msra.mxu0 0.0
    %3938 = vmatprep.subr.mxu0 0.0
    %3939 = vmatpush2.msra.mxu0 0.0
    %3940 = vmatprep.subr.mxu0 0.0
    %3941 = vmatpush2.msra.mxu0 0.0
    %3942 = vmatprep.subr.mxu0 0.0
    %3943 = vmatpush2.msra.mxu0 0.0
    %3944 = vmatprep.subr.mxu0 0.0
    %3945 = vmatpush2.msra.mxu0 0.0
    %3946 = vmatprep.subr.mxu0 0.0
    %3947 = vmatpush2.msra.mxu0 0.0
    %3948 = vmatprep.subr.mxu0 0.0
    %3949 = vmatpush2.msra.mxu0 0.0
    %3950 = vmatprep.subr.mxu0 0.0
    %3951 = vmatpush2.msra.mxu0 0.0
    %3952 = vmatprep.subr.mxu0 0.0
    %3953 = vmatpush2.msra.mxu0 0.0
    %3954 = vmatprep.subr.mxu0 0.0
    %3955 = vmatpush2.msra.mxu0 0.0
    %3956 = vmatprep.subr.mxu0 0.0
    %3957 = vmatpush2.msra.mxu0 0.0
    %3958 = vmatprep.subr.mxu0 0.0
    %3959 = vmatpush2.msra.mxu0 0.0
    %3960 = vmatprep.subr.mxu0 0.0
    %3961 = vmatpush2.msra.mxu0 0.0
    %3962 = vmatprep.subr.mxu0 0.0
    %3963 = vmatpush2.msra.mxu0 0.0
    %3964 = vmatprep.subr.mxu0 0.0
    %3965 = vmatpush2.msra.mxu0 0.0
    %3966 = vmatprep.subr.mxu0 0.0
    %3967 = vmatpush2.msra.mxu0 0.0
    %3968 = vmatprep.mubr.f32.mxu0 0.0
    %3969 = vmatmul.mubr.f32.gmra.mxu0 %v3902
    %v3970 = vpop.f32.mrf.mxu0
    %v3971 = vadd.f32 %v2549, %v3970
    %v3972 = vpop.f32.mrf.mxu0
    %3973 = vdwg.mxu0
    %v3976 = vunpack.c.l.s4 1966171168
    %v3977 = vunpack.c.0.s8 %v3976
    %v3978 = vlaneseq
    %v3979 = vshrl.u32 %v3978, 7
    %v3980 = vsub.s32 %v3977, %v3979
    %v3981 = vrot.slane %v3971, %v3980
    %v3982 = vcombine.high %v3981, %v3981
    %v3984 = vunpack.c.l.s4 1966171168
    %v3985 = vunpack.c.0.s8 %v3984
    %v3986 = vlaneseq
    %v3987 = vshrl.u32 %v3986, 7
    %v3988 = vsub.s32 %v3985, %v3987
    %v3989 = vrot.slane %v3981, %v3988
    %v3991 = vunpack.c.l.s4 1966171168
    %v3992 = vunpack.c.0.s8 %v3991
    %v3993 = vlaneseq
    %v3994 = vshrl.u32 %v3993, 7
    %v3995 = vsub.s32 %v3992, %v3994
    %v3996 = vrot.slane %v3982, %v3995
    %3999 = vmatprep.subr.mxu0 0.0
    %4000 = vmatpush1.msra.mxu0 %v2171
    %4001 = vmatprep.subr.mxu0 0.0
    %4002 = vmatpush1.msra.mxu0 %v2170
    %4003 = vmatprep.subr.mxu0 0.0
    %4004 = vmatpush1.msra.mxu0 %v2169
    %4005 = vmatprep.subr.mxu0 0.0
    %4006 = vmatpush1.msra.mxu0 %v2168
    %4007 = vmatprep.subr.mxu0 0.0
    %4008 = vmatpush1.msra.mxu0 %v2167
    %4009 = vmatprep.subr.mxu0 0.0
    %4010 = vmatpush1.msra.mxu0 %v2166
    %4011 = vmatprep.subr.mxu0 0.0
    %4012 = vmatpush1.msra.mxu0 %v2165
    %4013 = vmatprep.subr.mxu0 0.0
    %4014 = vmatpush1.msra.mxu0 %v2164
    %4015 = vmatprep.subr.mxu0 0.0
    %4016 = vmatpush1.msra.mxu0 %v2163
    %4017 = vmatprep.subr.mxu0 0.0
    %4018 = vmatpush1.msra.mxu0 %v2162
    %4019 = vmatprep.subr.mxu0 0.0
    %4020 = vmatpush1.msra.mxu0 %v2161
    %4021 = vmatprep.subr.mxu0 0.0
    %4022 = vmatpush1.msra.mxu0 %v2160
    %4023 = vmatprep.subr.mxu0 0.0
    %4024 = vmatpush1.msra.mxu0 %v2159
    %4025 = vmatprep.subr.mxu0 0.0
    %4026 = vmatpush1.msra.mxu0 %v2158
    %4027 = vmatprep.subr.mxu0 0.0
    %4028 = vmatpush1.msra.mxu0 %v2157
    %4029 = vmatprep.subr.mxu0 0.0
    %4030 = vmatpush1.msra.mxu0 %v2156
    %4031 = vmatprep.subr.mxu0 0.0
    %4032 = vmatpush2.msra.mxu0 0.0
    %4033 = vmatprep.subr.mxu0 0.0
    %4034 = vmatpush2.msra.mxu0 0.0
    %4035 = vmatprep.subr.mxu0 0.0
    %4036 = vmatpush2.msra.mxu0 0.0
    %4037 = vmatprep.subr.mxu0 0.0
    %4038 = vmatpush2.msra.mxu0 0.0
    %4039 = vmatprep.subr.mxu0 0.0
    %4040 = vmatpush2.msra.mxu0 0.0
    %4041 = vmatprep.subr.mxu0 0.0
    %4042 = vmatpush2.msra.mxu0 0.0
    %4043 = vmatprep.subr.mxu0 0.0
    %4044 = vmatpush2.msra.mxu0 0.0
    %4045 = vmatprep.subr.mxu0 0.0
    %4046 = vmatpush2.msra.mxu0 0.0
    %4047 = vmatprep.subr.mxu0 0.0
    %4048 = vmatpush2.msra.mxu0 0.0
    %4049 = vmatprep.subr.mxu0 0.0
    %4050 = vmatpush2.msra.mxu0 0.0
    %4051 = vmatprep.subr.mxu0 0.0
    %4052 = vmatpush2.msra.mxu0 0.0
    %4053 = vmatprep.subr.mxu0 0.0
    %4054 = vmatpush2.msra.mxu0 0.0
    %4055 = vmatprep.subr.mxu0 0.0
    %4056 = vmatpush2.msra.mxu0 0.0
    %4057 = vmatprep.subr.mxu0 0.0
    %4058 = vmatpush2.msra.mxu0 0.0
    %4059 = vmatprep.subr.mxu0 0.0
    %4060 = vmatpush2.msra.mxu0 0.0
    %4061 = vmatprep.subr.mxu0 0.0
    %4062 = vmatpush2.msra.mxu0 0.0
    %4063 = vmatprep.mubr.f32.mxu0 0.0
    %4064 = vmatmul.mubr.f32.gmra.mxu0 %v3989
    %v4065 = vpop.f32.mrf.mxu0
    %v4066 = vadd.f32 0.0, %v4065
    %v4067 = vpop.f32.mrf.mxu0
    %4068 = vdwg.mxu0
    %4069 = vmatprep.subr.mxu0 0.0
    %4070 = vmatpush1.msra.mxu0 %v2203
    %4071 = vmatprep.subr.mxu0 0.0
    %4072 = vmatpush1.msra.mxu0 %v2202
    %4073 = vmatprep.subr.mxu0 0.0
    %4074 = vmatpush1.msra.mxu0 %v2201
    %4075 = vmatprep.subr.mxu0 0.0
    %4076 = vmatpush1.msra.mxu0 %v2200
    %4077 = vmatprep.subr.mxu0 0.0
    %4078 = vmatpush1.msra.mxu0 %v2199
    %4079 = vmatprep.subr.mxu0 0.0
    %4080 = vmatpush1.msra.mxu0 %v2198
    %4081 = vmatprep.subr.mxu0 0.0
    %4082 = vmatpush1.msra.mxu0 %v2197
    %4083 = vmatprep.subr.mxu0 0.0
    %4084 = vmatpush1.msra.mxu0 %v2196
    %4085 = vmatprep.subr.mxu0 0.0
    %4086 = vmatpush1.msra.mxu0 %v2195
    %4087 = vmatprep.subr.mxu0 0.0
    %4088 = vmatpush1.msra.mxu0 %v2194
    %4089 = vmatprep.subr.mxu0 0.0
    %4090 = vmatpush1.msra.mxu0 %v2193
    %4091 = vmatprep.subr.mxu0 0.0
    %4092 = vmatpush1.msra.mxu0 %v2192
    %4093 = vmatprep.subr.mxu0 0.0
    %4094 = vmatpush1.msra.mxu0 %v2191
    %4095 = vmatprep.subr.mxu0 0.0
    %4096 = vmatpush1.msra.mxu0 %v2190
    %4097 = vmatprep.subr.mxu0 0.0
    %4098 = vmatpush1.msra.mxu0 %v2189
    %4099 = vmatprep.subr.mxu0 0.0
    %4100 = vmatpush1.msra.mxu0 %v2188
    %4101 = vmatprep.subr.mxu0 0.0
    %4102 = vmatpush2.msra.mxu0 0.0
    %4103 = vmatprep.subr.mxu0 0.0
    %4104 = vmatpush2.msra.mxu0 0.0
    %4105 = vmatprep.subr.mxu0 0.0
    %4106 = vmatpush2.msra.mxu0 0.0
    %4107 = vmatprep.subr.mxu0 0.0
    %4108 = vmatpush2.msra.mxu0 0.0
    %4109 = vmatprep.subr.mxu0 0.0
    %4110 = vmatpush2.msra.mxu0 0.0
    %4111 = vmatprep.subr.mxu0 0.0
    %4112 = vmatpush2.msra.mxu0 0.0
    %4113 = vmatprep.subr.mxu0 0.0
    %4114 = vmatpush2.msra.mxu0 0.0
    %4115 = vmatprep.subr.mxu0 0.0
    %4116 = vmatpush2.msra.mxu0 0.0
    %4117 = vmatprep.subr.mxu0 0.0
    %4118 = vmatpush2.msra.mxu0 0.0
    %4119 = vmatprep.subr.mxu0 0.0
    %4120 = vmatpush2.msra.mxu0 0.0
    %4121 = vmatprep.subr.mxu0 0.0
    %4122 = vmatpush2.msra.mxu0 0.0
    %4123 = vmatprep.subr.mxu0 0.0
    %4124 = vmatpush2.msra.mxu0 0.0
    %4125 = vmatprep.subr.mxu0 0.0
    %4126 = vmatpush2.msra.mxu0 0.0
    %4127 = vmatprep.subr.mxu0 0.0
    %4128 = vmatpush2.msra.mxu0 0.0
    %4129 = vmatprep.subr.mxu0 0.0
    %4130 = vmatpush2.msra.mxu0 0.0
    %4131 = vmatprep.subr.mxu0 0.0
    %4132 = vmatpush2.msra.mxu0 0.0
    %4133 = vmatprep.mubr.f32.mxu0 0.0
    %4134 = vmatmul.mubr.f32.gmra.mxu0 %v3996
    %v4135 = vpop.f32.mrf.mxu0
    %v4136 = vadd.f32 0.0, %v4135
    %v4137 = vpop.f32.mrf.mxu0
    %4138 = vdwg.mxu0
    %v4139 = vmul.f32 %v4066, 0.1
    %v4140 = vmul.f32 %v4136, 0.1
    %v4143 = vrot.slane %v4140, 7
    %v4144 = vsel %vm365, %v4143, %v4139
    %v4146 = vsel %vm2810, %v4144, -inf
    %4147 = vmax.xlane.f32.xlu0 %v4146
    %v4148 = vpop.xlane.xlu0 %4147
    %v4150 = vrot.slane %v4148, 1
    %v4153 = vsub.f32 %v4139, %v4148
    %v4154 = vsub.f32 %v4140, %v4150
    %v4155 = vmul.f32 %v4153, 1.442695
    %v4156 = vpow.pop %v4155
    %v4157 = vmul.f32 %v4154, 1.442695
    %v4158 = vpow.pop %v4157
    %v4161 = vrot.slane %v4158, 7
    %v4162 = vsel %vm365, %v4161, %v4156
    %v4164 = vsel %vm2810, %v4162, 0.0
    %4165 = vadd.xlane.f32.xlu0 %v4164
    %v4166 = vpop.xlane.xlu0 %4165
    %v4168 = vrot.slane %v4166, 1
    %v4171 = vrcp.pop %v4166
    %v4172 = vmul.f32 %v4156, %v4171
    %v4173 = vrcp.pop %v4168
    %v4174 = vmul.f32 %v4158, %v4173
    %v4176 = vsel %vm2840, %v4172, 0
    %4178 = vmatprep.subr.mxu0 0.0
    %4179 = vmatpush1.msra.mxu0 0.0
    %4180 = vmatprep.subr.mxu0 0.0
    %4181 = vmatpush1.msra.mxu0 0.0
    %4182 = vmatprep.subr.mxu0 0.0
    %4183 = vmatpush1.msra.mxu0 0.0
    %4184 = vmatprep.subr.mxu0 0.0
    %4185 = vmatpush1.msra.mxu0 0.0
    %4186 = vmatprep.subr.mxu0 0.0
    %4187 = vmatpush1.msra.mxu0 0.0
    %4188 = vmatprep.subr.mxu0 0.0
    %4189 = vmatpush1.msra.mxu0 0.0
    %4190 = vmatprep.subr.mxu0 0.0
    %4191 = vmatpush1.msra.mxu0 0.0
    %4192 = vmatprep.subr.mxu0 0.0
    %4193 = vmatpush1.msra.mxu0 0.0
    %4194 = vmatprep.subr.mxu0 0.0
    %4195 = vmatpush1.msra.mxu0 0.0
    %4196 = vmatprep.subr.mxu0 0.0
    %4197 = vmatpush1.msra.mxu0 0.0
    %4198 = vmatprep.subr.mxu0 0.0
    %4199 = vmatpush1.msra.mxu0 0.0
    %4200 = vmatprep.subr.mxu0 0.0
    %4201 = vmatpush1.msra.mxu0 0.0
    %4202 = vmatprep.subr.mxu0 0.0
    %4203 = vmatpush1.msra.mxu0 0.0
    %4204 = vmatprep.subr.mxu0 0.0
    %4205 = vmatpush1.msra.mxu0 0.0
    %4206 = vmatprep.subr.mxu0 0.0
    %4207 = vmatpush1.msra.mxu0 0.0
    %4208 = vmatprep.subr.mxu0 %v2302
    %4209 = vmatpush1.msra.mxu0 %v2300
    %4210 = vmatprep.subr.mxu0 0.0
    %4211 = vmatpush2.msra.mxu0 0.0
    %4212 = vmatprep.subr.mxu0 0.0
    %4213 = vmatpush2.msra.mxu0 0.0
    %4214 = vmatprep.subr.mxu0 0.0
    %4215 = vmatpush2.msra.mxu0 0.0
    %4216 = vmatprep.subr.mxu0 0.0
    %4217 = vmatpush2.msra.mxu0 0.0
    %4218 = vmatprep.subr.mxu0 0.0
    %4219 = vmatpush2.msra.mxu0 0.0
    %4220 = vmatprep.subr.mxu0 0.0
    %4221 = vmatpush2.msra.mxu0 0.0
    %4222 = vmatprep.subr.mxu0 0.0
    %4223 = vmatpush2.msra.mxu0 0.0
    %4224 = vmatprep.subr.mxu0 0.0
    %4225 = vmatpush2.msra.mxu0 0.0
    %4226 = vmatprep.subr.mxu0 0.0
    %4227 = vmatpush2.msra.mxu0 0.0
    %4228 = vmatprep.subr.mxu0 0.0
    %4229 = vmatpush2.msra.mxu0 0.0
    %4230 = vmatprep.subr.mxu0 0.0
    %4231 = vmatpush2.msra.mxu0 0.0
    %4232 = vmatprep.subr.mxu0 0.0
    %4233 = vmatpush2.msra.mxu0 0.0
    %4234 = vmatprep.subr.mxu0 0.0
    %4235 = vmatpush2.msra.mxu0 0.0
    %4236 = vmatprep.subr.mxu0 0.0
    %4237 = vmatpush2.msra.mxu0 0.0
    %4238 = vmatprep.subr.mxu0 0.0
    %4239 = vmatpush2.msra.mxu0 0.0
    %4240 = vmatprep.subr.mxu0 0.0
    %4241 = vmatpush2.msra.mxu0 0.0
    %4242 = vmatprep.mubr.f32.mxu0 0.0
    %4243 = vmatmul.mubr.f32.gmra.mxu0 %v4176
    %v4244 = vpop.f32.mrf.mxu0
    %v4245 = vadd.f32 0.0, %v4244
    %v4246 = vpop.f32.mrf.mxu0
    %v4247 = vadd.f32 0.0, %v4246
    %4248 = vdwg.mxu0
    %v4250 = vsel %vm2840, %v4174, 0
    %4252 = vmatprep.subr.mxu0 0.0
    %4253 = vmatpush1.msra.mxu0 0.0
    %4254 = vmatprep.subr.mxu0 0.0
    %4255 = vmatpush1.msra.mxu0 0.0
    %4256 = vmatprep.subr.mxu0 0.0
    %4257 = vmatpush1.msra.mxu0 0.0
    %4258 = vmatprep.subr.mxu0 0.0
    %4259 = vmatpush1.msra.mxu0 0.0
    %4260 = vmatprep.subr.mxu0 0.0
    %4261 = vmatpush1.msra.mxu0 0.0
    %4262 = vmatprep.subr.mxu0 0.0
    %4263 = vmatpush1.msra.mxu0 0.0
    %4264 = vmatprep.subr.mxu0 0.0
    %4265 = vmatpush1.msra.mxu0 0.0
    %4266 = vmatprep.subr.mxu0 0.0
    %4267 = vmatpush1.msra.mxu0 0.0
    %4268 = vmatprep.subr.mxu0 0.0
    %4269 = vmatpush1.msra.mxu0 0.0
    %4270 = vmatprep.subr.mxu0 0.0
    %4271 = vmatpush1.msra.mxu0 0.0
    %4272 = vmatprep.subr.mxu0 0.0
    %4273 = vmatpush1.msra.mxu0 0.0
    %4274 = vmatprep.subr.mxu0 0.0
    %4275 = vmatpush1.msra.mxu0 0.0
    %4276 = vmatprep.subr.mxu0 0.0
    %4277 = vmatpush1.msra.mxu0 0.0
    %4278 = vmatprep.subr.mxu0 0.0
    %4279 = vmatpush1.msra.mxu0 0.0
    %4280 = vmatprep.subr.mxu0 0.0
    %4281 = vmatpush1.msra.mxu0 0.0
    %4282 = vmatprep.subr.mxu0 %v2308
    %4283 = vmatpush1.msra.mxu0 %v2306
    %4284 = vmatprep.subr.mxu0 0.0
    %4285 = vmatpush2.msra.mxu0 0.0
    %4286 = vmatprep.subr.mxu0 0.0
    %4287 = vmatpush2.msra.mxu0 0.0
    %4288 = vmatprep.subr.mxu0 0.0
    %4289 = vmatpush2.msra.mxu0 0.0
    %4290 = vmatprep.subr.mxu0 0.0
    %4291 = vmatpush2.msra.mxu0 0.0
    %4292 = vmatprep.subr.mxu0 0.0
    %4293 = vmatpush2.msra.mxu0 0.0
    %4294 = vmatprep.subr.mxu0 0.0
    %4295 = vmatpush2.msra.mxu0 0.0
    %4296 = vmatprep.subr.mxu0 0.0
    %4297 = vmatpush2.msra.mxu0 0.0
    %4298 = vmatprep.subr.mxu0 0.0
    %4299 = vmatpush2.msra.mxu0 0.0
    %4300 = vmatprep.subr.mxu0 0.0
    %4301 = vmatpush2.msra.mxu0 0.0
    %4302 = vmatprep.subr.mxu0 0.0
    %4303 = vmatpush2.msra.mxu0 0.0
    %4304 = vmatprep.subr.mxu0 0.0
    %4305 = vmatpush2.msra.mxu0 0.0
    %4306 = vmatprep.subr.mxu0 0.0
    %4307 = vmatpush2.msra.mxu0 0.0
    %4308 = vmatprep.subr.mxu0 0.0
    %4309 = vmatpush2.msra.mxu0 0.0
    %4310 = vmatprep.subr.mxu0 0.0
    %4311 = vmatpush2.msra.mxu0 0.0
    %4312 = vmatprep.subr.mxu0 0.0
    %4313 = vmatpush2.msra.mxu0 0.0
    %4314 = vmatprep.subr.mxu0 0.0
    %4315 = vmatpush2.msra.mxu0 0.0
    %4316 = vmatprep.mubr.f32.mxu0 0.0
    %4317 = vmatmul.mubr.f32.gmra.mxu0 %v4250
    %v4318 = vpop.f32.mrf.mxu0
    %v4319 = vadd.f32 0.0, %v4318
    %v4320 = vpop.f32.mrf.mxu0
    %v4321 = vadd.f32 0.0, %v4320
    %4322 = vdwg.mxu0
    %v4327 = vrot.slane %v4319, 7
    %v4328 = vsel %vm365, %v4327, %v4245
    %v4329 = vrot.slane %v4321, 7
    %v4330 = vsel %vm365, %v4329, %v4247
    %4333 = vmatprep.subr.mxu0 0.0
    %4334 = vmatpush1.msra.mxu0 %v2522
    %4335 = vmatprep.subr.mxu0 0.0
    %4336 = vmatpush1.msra.mxu0 %v2521
    %4337 = vmatprep.subr.mxu0 0.0
    %4338 = vmatpush1.msra.mxu0 %v2520
    %4339 = vmatprep.subr.mxu0 0.0
    %4340 = vmatpush1.msra.mxu0 %v2519
    %4341 = vmatprep.subr.mxu0 0.0
    %4342 = vmatpush1.msra.mxu0 %v2518
    %4343 = vmatprep.subr.mxu0 0.0
    %4344 = vmatpush1.msra.mxu0 %v2517
    %4345 = vmatprep.subr.mxu0 0.0
    %4346 = vmatpush1.msra.mxu0 %v2516
    %4347 = vmatprep.subr.mxu0 0.0
    %4348 = vmatpush1.msra.mxu0 %v2515
    %4349 = vmatprep.subr.mxu0 0.0
    %4350 = vmatpush1.msra.mxu0 %v2514
    %4351 = vmatprep.subr.mxu0 0.0
    %4352 = vmatpush1.msra.mxu0 %v2513
    %4353 = vmatprep.subr.mxu0 0.0
    %4354 = vmatpush1.msra.mxu0 %v2512
    %4355 = vmatprep.subr.mxu0 0.0
    %4356 = vmatpush1.msra.mxu0 %v2511
    %4357 = vmatprep.subr.mxu0 0.0
    %4358 = vmatpush1.msra.mxu0 %v2510
    %4359 = vmatprep.subr.mxu0 0.0
    %4360 = vmatpush1.msra.mxu0 %v2509
    %4361 = vmatprep.subr.mxu0 0.0
    %4362 = vmatpush1.msra.mxu0 %v2508
    %4363 = vmatprep.subr.mxu0 0.0
    %4364 = vmatpush1.msra.mxu0 %v2507
    %4365 = vmatprep.subr.mxu0 0.0
    %4366 = vmatpush2.msra.mxu0 %v2538
    %4367 = vmatprep.subr.mxu0 0.0
    %4368 = vmatpush2.msra.mxu0 %v2537
    %4369 = vmatprep.subr.mxu0 0.0
    %4370 = vmatpush2.msra.mxu0 %v2536
    %4371 = vmatprep.subr.mxu0 0.0
    %4372 = vmatpush2.msra.mxu0 %v2535
    %4373 = vmatprep.subr.mxu0 0.0
    %4374 = vmatpush2.msra.mxu0 %v2534
    %4375 = vmatprep.subr.mxu0 0.0
    %4376 = vmatpush2.msra.mxu0 %v2533
    %4377 = vmatprep.subr.mxu0 0.0
    %4378 = vmatpush2.msra.mxu0 %v2532
    %4379 = vmatprep.subr.mxu0 0.0
    %4380 = vmatpush2.msra.mxu0 %v2531
    %4381 = vmatprep.subr.mxu0 0.0
    %4382 = vmatpush2.msra.mxu0 %v2530
    %4383 = vmatprep.subr.mxu0 0.0
    %4384 = vmatpush2.msra.mxu0 %v2529
    %4385 = vmatprep.subr.mxu0 0.0
    %4386 = vmatpush2.msra.mxu0 %v2528
    %4387 = vmatprep.subr.mxu0 0.0
    %4388 = vmatpush2.msra.mxu0 %v2527
    %4389 = vmatprep.subr.mxu0 0.0
    %4390 = vmatpush2.msra.mxu0 %v2526
    %4391 = vmatprep.subr.mxu0 0.0
    %4392 = vmatpush2.msra.mxu0 %v2525
    %4393 = vmatprep.subr.mxu0 0.0
    %4394 = vmatpush2.msra.mxu0 %v2524
    %4395 = vmatprep.subr.mxu0 0.0
    %4396 = vmatpush2.msra.mxu0 %v2523
    %4397 = vmatprep.mubr.f32.mxu0 %v4330
    %4398 = vmatmul.mubr.f32.gmra.mxu0 %v4328
    %v4399 = vpop.f32.mrf.mxu0
    %v4400 = vadd.f32 0.0, %v4399
    %v4401 = vpop.f32.mrf.mxu0
    %4402 = vdwg.mxu0
    %v4405 = vunpack.c.l.s4 1983009808
    %v4406 = vunpack.c.0.s8 %v4405
    %v4407 = vlaneseq
    %v4408 = vshrl.u32 %v4407, 7
    %v4409 = vsub.s32 %v4406, %v4408
    %v4410 = vrot.slane %v4400, %v4409
    %v4411 = vrot.slane %v4410, 1
    %v4414 = vadd.f32 %v2487, %v4410
    %v4415 = vadd.f32 %v2495, %v4411
    %4416 = vmatprep.subr.mxu0 0.0
    %4417 = vmatpush1.msra.mxu0 0.0
    %4418 = vmatprep.subr.mxu0 0.0
    %4419 = vmatpush1.msra.mxu0 0.0
    %4420 = vmatprep.subr.mxu0 0.0
    %4421 = vmatpush1.msra.mxu0 0.0
    %4422 = vmatprep.subr.mxu0 0.0
    %4423 = vmatpush1.msra.mxu0 0.0
    %4424 = vmatprep.subr.mxu0 0.0
    %4425 = vmatpush1.msra.mxu0 0.0
    %4426 = vmatprep.subr.mxu0 0.0
    %4427 = vmatpush1.msra.mxu0 0.0
    %4428 = vmatprep.subr.mxu0 0.0
    %4429 = vmatpush1.msra.mxu0 0.0
    %4430 = vmatprep.subr.mxu0 0.0
    %4431 = vmatpush1.msra.mxu0 0.0
    %4432 = vmatprep.subr.mxu0 0.0
    %4433 = vmatpush1.msra.mxu0 0.0
    %4434 = vmatprep.subr.mxu0 0.0
    %4435 = vmatpush1.msra.mxu0 0.0
    %4436 = vmatprep.subr.mxu0 0.0
    %4437 = vmatpush1.msra.mxu0 0.0
    %4438 = vmatprep.subr.mxu0 0.0
    %4439 = vmatpush1.msra.mxu0 0.0
    %4440 = vmatprep.subr.mxu0 0.0
    %4441 = vmatpush1.msra.mxu0 %v2542
    %4442 = vmatprep.subr.mxu0 0.0
    %4443 = vmatpush1.msra.mxu0 %v2541
    %4444 = vmatprep.subr.mxu0 0.0
    %4445 = vmatpush1.msra.mxu0 %v2540
    %4446 = vmatprep.subr.mxu0 0.0
    %4447 = vmatpush1.msra.mxu0 %v2539
    %4448 = vmatprep.subr.mxu0 0.0
    %4449 = vmatpush2.msra.mxu0 0.0
    %4450 = vmatprep.subr.mxu0 0.0
    %4451 = vmatpush2.msra.mxu0 0.0
    %4452 = vmatprep.subr.mxu0 0.0
    %4453 = vmatpush2.msra.mxu0 0.0
    %4454 = vmatprep.subr.mxu0 0.0
    %4455 = vmatpush2.msra.mxu0 0.0
    %4456 = vmatprep.subr.mxu0 0.0
    %4457 = vmatpush2.msra.mxu0 0.0
    %4458 = vmatprep.subr.mxu0 0.0
    %4459 = vmatpush2.msra.mxu0 0.0
    %4460 = vmatprep.subr.mxu0 0.0
    %4461 = vmatpush2.msra.mxu0 0.0
    %4462 = vmatprep.subr.mxu0 0.0
    %4463 = vmatpush2.msra.mxu0 0.0
    %4464 = vmatprep.subr.mxu0 0.0
    %4465 = vmatpush2.msra.mxu0 0.0
    %4466 = vmatprep.subr.mxu0 0.0
    %4467 = vmatpush2.msra.mxu0 0.0
    %4468 = vmatprep.subr.mxu0 0.0
    %4469 = vmatpush2.msra.mxu0 0.0
    %4470 = vmatprep.subr.mxu0 0.0
    %4471 = vmatpush2.msra.mxu0 0.0
    %4472 = vmatprep.subr.mxu0 0.0
    %4473 = vmatpush2.msra.mxu0 0.0
    %4474 = vmatprep.subr.mxu0 0.0
    %4475 = vmatpush2.msra.mxu0 0.0
    %4476 = vmatprep.subr.mxu0 0.0
    %4477 = vmatpush2.msra.mxu0 0.0
    %4478 = vmatprep.subr.mxu0 0.0
    %4479 = vmatpush2.msra.mxu0 0.0
    %4480 = vmatprep.mubr.f32.mxu0 0.0
    %4481 = vmatmul.mubr.f32.gmra.mxu0 %v3902
    %v4482 = vpop.f32.mrf.mxu0
    %v4483 = vadd.f32 %v2557, %v4482
    %v4484 = vpop.f32.mrf.mxu0
    %4485 = vdwg.mxu0
    %v4488 = vunpack.c.l.s4 1983009808
    %v4489 = vunpack.c.0.s8 %v4488
    %v4490 = vlaneseq
    %v4491 = vshrl.u32 %v4490, 7
    %v4492 = vsub.s32 %v4489, %v4491
    %v4493 = vrot.slane %v4483, %v4492
    %v4494 = vrot.slane %v4493, 1
    %v4497 = vadd.f32 %v4414, %v4493
    %v4498 = vadd.f32 %v4415, %v4494
    %v4499 = vxor.u32 %v4497, 2147483648
    %v4500 = vxor.u32 %v4498, 2147483648
    %v4501 = vmul.f32 %v4499, 1.442695
    %v4502 = vpow.pop %v4501
    %v4503 = vmul.f32 %v4500, 1.442695
    %v4504 = vpow.pop %v4503
    %v4505 = vadd.f32 %v4502, 1.0
    %v4506 = vadd.f32 %v4504, 1.0
    %v4507 = vrcp.pop %v4505
    %v4508 = vmul.f32 1.0, %v4507
    %v4509 = vrcp.pop %v4506
    %v4510 = vmul.f32 1.0, %v4509
    %4511 = vrot.lane.b32.xlu0 %v4493, 64
    %v4512 = vpop.permute.xlu0 %4511
    %4513 = vrot.lane.b32.xlu0 %v4494, 64
    %v4514 = vpop.permute.xlu0 %4513
    %v4517 = vmul.f32 %v4508, %v4512
    %v4518 = vmul.f32 %v4510, %v4514
    %4521 = vrot.lane.b32.xlu0 %v4517, 64
    %v4522 = vpop.permute.xlu0 %4521
    %4523 = vrot.lane.b32.xlu0 %v4518, 64
    %v4524 = vpop.permute.xlu0 %4523
    %v4527 = vadd.f32 %v4414, %v4522
    %v4528 = vadd.f32 %v4415, %v4524
    %v4529 = vtanh.pop %v4527
    %v4530 = vtanh.pop %v4528
    %v4531 = vsub.f32 1.0, %v4508
    %v4532 = vsub.f32 1.0, %v4510
    %4535 = vrot.lane.b32.xlu0 %v4529, 96
    %v4536 = vpop.permute.xlu0 %4535
    %4537 = vrot.lane.b32.xlu0 %v4530, 96
    %v4538 = vpop.permute.xlu0 %4537
    %v4541 = vmul.f32 %v4531, %v4536
    %v4542 = vmul.f32 %v4532, %v4538
    %v4543 = vrot.slane %v3887, 7
    %v4544 = vrot.slane %v4543, 2
    %v4545 = vrot.slane %v3888, 7
    %v4546 = vrot.slane %v4545, 2
    %v4549 = vmul.f32 %v4508, %v4544
    %v4550 = vmul.f32 %v4510, %v4546
    %v4551 = vadd.f32 %v4541, %v4549
    %v4552 = vadd.f32 %v4542, %v4550
    %v4555 = vlaneseq
    %v4556 = vshrl.u32 %v4555, 7
    %v4557 = vsub.s32 0, %v4556
    %v4558 = vrot.slane %v4551, %v4557
    %v4559 = vlaneseq
    %v4560 = vshrl.u32 %v4559, 7
    %v4561 = vsub.s32 0, %v4560
    %v4562 = vrot.slane %v4552, %v4561
    %v4563 = vsel %vm365, %v4562, %v4558
    %4564 = vrot.lane.b32.xlu0 %v4563, 96
    %v4565 = vpop.permute.xlu0 %4564
    %v4566 = vsel %vm378, %v4565, 0
    %4568 = vmatprep.subr.mxu0 0.0
    %4569 = vmatpush1.msra.mxu0 0.0
    %4570 = vmatprep.subr.mxu0 0.0
    %4571 = vmatpush1.msra.mxu0 0.0
    %4572 = vmatprep.subr.mxu0 0.0
    %4573 = vmatpush1.msra.mxu0 0.0
    %4574 = vmatprep.subr.mxu0 0.0
    %4575 = vmatpush1.msra.mxu0 0.0
    %4576 = vmatprep.subr.mxu0 0.0
    %4577 = vmatpush1.msra.mxu0 0.0
    %4578 = vmatprep.subr.mxu0 0.0
    %4579 = vmatpush1.msra.mxu0 0.0
    %4580 = vmatprep.subr.mxu0 0.0
    %4581 = vmatpush1.msra.mxu0 0.0
    %4582 = vmatprep.subr.mxu0 0.0
    %4583 = vmatpush1.msra.mxu0 0.0
    %4584 = vmatprep.subr.mxu0 0.0
    %4585 = vmatpush1.msra.mxu0 0.0
    %4586 = vmatprep.subr.mxu0 0.0
    %4587 = vmatpush1.msra.mxu0 0.0
    %4588 = vmatprep.subr.mxu0 0.0
    %4589 = vmatpush1.msra.mxu0 0.0
    %4590 = vmatprep.subr.mxu0 0.0
    %4591 = vmatpush1.msra.mxu0 0.0
    %4592 = vmatprep.subr.mxu0 0.0
    %4593 = vmatpush1.msra.mxu0 %v2506
    %4594 = vmatprep.subr.mxu0 0.0
    %4595 = vmatpush1.msra.mxu0 %v2505
    %4596 = vmatprep.subr.mxu0 0.0
    %4597 = vmatpush1.msra.mxu0 %v2504
    %4598 = vmatprep.subr.mxu0 0.0
    %4599 = vmatpush1.msra.mxu0 %v2503
    %4600 = vmatprep.subr.mxu0 0.0
    %4601 = vmatpush2.msra.mxu0 0.0
    %4602 = vmatprep.subr.mxu0 0.0
    %4603 = vmatpush2.msra.mxu0 0.0
    %4604 = vmatprep.subr.mxu0 0.0
    %4605 = vmatpush2.msra.mxu0 0.0
    %4606 = vmatprep.subr.mxu0 0.0
    %4607 = vmatpush2.msra.mxu0 0.0
    %4608 = vmatprep.subr.mxu0 0.0
    %4609 = vmatpush2.msra.mxu0 0.0
    %4610 = vmatprep.subr.mxu0 0.0
    %4611 = vmatpush2.msra.mxu0 0.0
    %4612 = vmatprep.subr.mxu0 0.0
    %4613 = vmatpush2.msra.mxu0 0.0
    %4614 = vmatprep.subr.mxu0 0.0
    %4615 = vmatpush2.msra.mxu0 0.0
    %4616 = vmatprep.subr.mxu0 0.0
    %4617 = vmatpush2.msra.mxu0 0.0
    %4618 = vmatprep.subr.mxu0 0.0
    %4619 = vmatpush2.msra.mxu0 0.0
    %4620 = vmatprep.subr.mxu0 0.0
    %4621 = vmatpush2.msra.mxu0 0.0
    %4622 = vmatprep.subr.mxu0 0.0
    %4623 = vmatpush2.msra.mxu0 0.0
    %4624 = vmatprep.subr.mxu0 0.0
    %4625 = vmatpush2.msra.mxu0 0.0
    %4626 = vmatprep.subr.mxu0 0.0
    %4627 = vmatpush2.msra.mxu0 0.0
    %4628 = vmatprep.subr.mxu0 0.0
    %4629 = vmatpush2.msra.mxu0 0.0
    %4630 = vmatprep.subr.mxu0 0.0
    %4631 = vmatpush2.msra.mxu0 0.0
    %4632 = vmatprep.mubr.f32.mxu0 0.0
    %4633 = vmatmul.mubr.f32.gmra.mxu0 %v4566
    %v4634 = vpop.f32.mrf.mxu0
    %v4635 = vadd.f32 %v2549, %v4634
    %v4636 = vpop.f32.mrf.mxu0
    %4637 = vdwg.mxu0
    %v4640 = vunpack.c.l.s4 1966171168
    %v4641 = vunpack.c.0.s8 %v4640
    %v4642 = vlaneseq
    %v4643 = vshrl.u32 %v4642, 7
    %v4644 = vsub.s32 %v4641, %v4643
    %v4645 = vrot.slane %v4635, %v4644
    %v4646 = vcombine.high %v4645, %v4645
    %v4648 = vunpack.c.l.s4 1966171168
    %v4649 = vunpack.c.0.s8 %v4648
    %v4650 = vlaneseq
    %v4651 = vshrl.u32 %v4650, 7
    %v4652 = vsub.s32 %v4649, %v4651
    %v4653 = vrot.slane %v4645, %v4652
    %v4655 = vunpack.c.l.s4 1966171168
    %v4656 = vunpack.c.0.s8 %v4655
    %v4657 = vlaneseq
    %v4658 = vshrl.u32 %v4657, 7
    %v4659 = vsub.s32 %v4656, %v4658
    %v4660 = vrot.slane %v4646, %v4659
    %4663 = vmatprep.subr.mxu0 0.0
    %4664 = vmatpush1.msra.mxu0 %v2171
    %4665 = vmatprep.subr.mxu0 0.0
    %4666 = vmatpush1.msra.mxu0 %v2170
    %4667 = vmatprep.subr.mxu0 0.0
    %4668 = vmatpush1.msra.mxu0 %v2169
    %4669 = vmatprep.subr.mxu0 0.0
    %4670 = vmatpush1.msra.mxu0 %v2168
    %4671 = vmatprep.subr.mxu0 0.0
    %4672 = vmatpush1.msra.mxu0 %v2167
    %4673 = vmatprep.subr.mxu0 0.0
    %4674 = vmatpush1.msra.mxu0 %v2166
    %4675 = vmatprep.subr.mxu0 0.0
    %4676 = vmatpush1.msra.mxu0 %v2165
    %4677 = vmatprep.subr.mxu0 0.0
    %4678 = vmatpush1.msra.mxu0 %v2164
    %4679 = vmatprep.subr.mxu0 0.0
    %4680 = vmatpush1.msra.mxu0 %v2163
    %4681 = vmatprep.subr.mxu0 0.0
    %4682 = vmatpush1.msra.mxu0 %v2162
    %4683 = vmatprep.subr.mxu0 0.0
    %4684 = vmatpush1.msra.mxu0 %v2161
    %4685 = vmatprep.subr.mxu0 0.0
    %4686 = vmatpush1.msra.mxu0 %v2160
    %4687 = vmatprep.subr.mxu0 0.0
    %4688 = vmatpush1.msra.mxu0 %v2159
    %4689 = vmatprep.subr.mxu0 0.0
    %4690 = vmatpush1.msra.mxu0 %v2158
    %4691 = vmatprep.subr.mxu0 0.0
    %4692 = vmatpush1.msra.mxu0 %v2157
    %4693 = vmatprep.subr.mxu0 0.0
    %4694 = vmatpush1.msra.mxu0 %v2156
    %4695 = vmatprep.subr.mxu0 0.0
    %4696 = vmatpush2.msra.mxu0 0.0
    %4697 = vmatprep.subr.mxu0 0.0
    %4698 = vmatpush2.msra.mxu0 0.0
    %4699 = vmatprep.subr.mxu0 0.0
    %4700 = vmatpush2.msra.mxu0 0.0
    %4701 = vmatprep.subr.mxu0 0.0
    %4702 = vmatpush2.msra.mxu0 0.0
    %4703 = vmatprep.subr.mxu0 0.0
    %4704 = vmatpush2.msra.mxu0 0.0
    %4705 = vmatprep.subr.mxu0 0.0
    %4706 = vmatpush2.msra.mxu0 0.0
    %4707 = vmatprep.subr.mxu0 0.0
    %4708 = vmatpush2.msra.mxu0 0.0
    %4709 = vmatprep.subr.mxu0 0.0
    %4710 = vmatpush2.msra.mxu0 0.0
    %4711 = vmatprep.subr.mxu0 0.0
    %4712 = vmatpush2.msra.mxu0 0.0
    %4713 = vmatprep.subr.mxu0 0.0
    %4714 = vmatpush2.msra.mxu0 0.0
    %4715 = vmatprep.subr.mxu0 0.0
    %4716 = vmatpush2.msra.mxu0 0.0
    %4717 = vmatprep.subr.mxu0 0.0
    %4718 = vmatpush2.msra.mxu0 0.0
    %4719 = vmatprep.subr.mxu0 0.0
    %4720 = vmatpush2.msra.mxu0 0.0
    %4721 = vmatprep.subr.mxu0 0.0
    %4722 = vmatpush2.msra.mxu0 0.0
    %4723 = vmatprep.subr.mxu0 0.0
    %4724 = vmatpush2.msra.mxu0 0.0
    %4725 = vmatprep.subr.mxu0 0.0
    %4726 = vmatpush2.msra.mxu0 0.0
    %4727 = vmatprep.mubr.f32.mxu0 0.0
    %4728 = vmatmul.mubr.f32.gmra.mxu0 %v4653
    %v4729 = vpop.f32.mrf.mxu0
    %v4730 = vadd.f32 0.0, %v4729
    %v4731 = vpop.f32.mrf.mxu0
    %4732 = vdwg.mxu0
    %4733 = vmatprep.subr.mxu0 0.0
    %4734 = vmatpush1.msra.mxu0 %v2203
    %4735 = vmatprep.subr.mxu0 0.0
    %4736 = vmatpush1.msra.mxu0 %v2202
    %4737 = vmatprep.subr.mxu0 0.0
    %4738 = vmatpush1.msra.mxu0 %v2201
    %4739 = vmatprep.subr.mxu0 0.0
    %4740 = vmatpush1.msra.mxu0 %v2200
    %4741 = vmatprep.subr.mxu0 0.0
    %4742 = vmatpush1.msra.mxu0 %v2199
    %4743 = vmatprep.subr.mxu0 0.0
    %4744 = vmatpush1.msra.mxu0 %v2198
    %4745 = vmatprep.subr.mxu0 0.0
    %4746 = vmatpush1.msra.mxu0 %v2197
    %4747 = vmatprep.subr.mxu0 0.0
    %4748 = vmatpush1.msra.mxu0 %v2196
    %4749 = vmatprep.subr.mxu0 0.0
    %4750 = vmatpush1.msra.mxu0 %v2195
    %4751 = vmatprep.subr.mxu0 0.0
    %4752 = vmatpush1.msra.mxu0 %v2194
    %4753 = vmatprep.subr.mxu0 0.0
    %4754 = vmatpush1.msra.mxu0 %v2193
    %4755 = vmatprep.subr.mxu0 0.0
    %4756 = vmatpush1.msra.mxu0 %v2192
    %4757 = vmatprep.subr.mxu0 0.0
    %4758 = vmatpush1.msra.mxu0 %v2191
    %4759 = vmatprep.subr.mxu0 0.0
    %4760 = vmatpush1.msra.mxu0 %v2190
    %4761 = vmatprep.subr.mxu0 0.0
    %4762 = vmatpush1.msra.mxu0 %v2189
    %4763 = vmatprep.subr.mxu0 0.0
    %4764 = vmatpush1.msra.mxu0 %v2188
    %4765 = vmatprep.subr.mxu0 0.0
    %4766 = vmatpush2.msra.mxu0 0.0
    %4767 = vmatprep.subr.mxu0 0.0
    %4768 = vmatpush2.msra.mxu0 0.0
    %4769 = vmatprep.subr.mxu0 0.0
    %4770 = vmatpush2.msra.mxu0 0.0
    %4771 = vmatprep.subr.mxu0 0.0
    %4772 = vmatpush2.msra.mxu0 0.0
    %4773 = vmatprep.subr.mxu0 0.0
    %4774 = vmatpush2.msra.mxu0 0.0
    %4775 = vmatprep.subr.mxu0 0.0
    %4776 = vmatpush2.msra.mxu0 0.0
    %4777 = vmatprep.subr.mxu0 0.0
    %4778 = vmatpush2.msra.mxu0 0.0
    %4779 = vmatprep.subr.mxu0 0.0
    %4780 = vmatpush2.msra.mxu0 0.0
    %4781 = vmatprep.subr.mxu0 0.0
    %4782 = vmatpush2.msra.mxu0 0.0
    %4783 = vmatprep.subr.mxu0 0.0
    %4784 = vmatpush2.msra.mxu0 0.0
    %4785 = vmatprep.subr.mxu0 0.0
    %4786 = vmatpush2.msra.mxu0 0.0
    %4787 = vmatprep.subr.mxu0 0.0
    %4788 = vmatpush2.msra.mxu0 0.0
    %4789 = vmatprep.subr.mxu0 0.0
    %4790 = vmatpush2.msra.mxu0 0.0
    %4791 = vmatprep.subr.mxu0 0.0
    %4792 = vmatpush2.msra.mxu0 0.0
    %4793 = vmatprep.subr.mxu0 0.0
    %4794 = vmatpush2.msra.mxu0 0.0
    %4795 = vmatprep.subr.mxu0 0.0
    %4796 = vmatpush2.msra.mxu0 0.0
    %4797 = vmatprep.mubr.f32.mxu0 0.0
    %4798 = vmatmul.mubr.f32.gmra.mxu0 %v4660
    %v4799 = vpop.f32.mrf.mxu0
    %v4800 = vadd.f32 0.0, %v4799
    %v4801 = vpop.f32.mrf.mxu0
    %4802 = vdwg.mxu0
    %v4803 = vmul.f32 %v4730, 0.1
    %v4804 = vmul.f32 %v4800, 0.1
    %v4807 = vrot.slane %v4804, 7
    %v4808 = vsel %vm365, %v4807, %v4803
    %v4810 = vsel %vm2810, %v4808, -inf
    %4811 = vmax.xlane.f32.xlu0 %v4810
    %v4812 = vpop.xlane.xlu0 %4811
    %v4814 = vrot.slane %v4812, 1
    %v4817 = vsub.f32 %v4803, %v4812
    %v4818 = vsub.f32 %v4804, %v4814
    %v4819 = vmul.f32 %v4817, 1.442695
    %v4820 = vpow.pop %v4819
    %v4821 = vmul.f32 %v4818, 1.442695
    %v4822 = vpow.pop %v4821
    %v4825 = vrot.slane %v4822, 7
    %v4826 = vsel %vm365, %v4825, %v4820
    %v4828 = vsel %vm2810, %v4826, 0.0
    %4829 = vadd.xlane.f32.xlu0 %v4828
    %v4830 = vpop.xlane.xlu0 %4829
    %v4832 = vrot.slane %v4830, 1
    %v4835 = vrcp.pop %v4830
    %v4836 = vmul.f32 %v4820, %v4835
    %v4837 = vrcp.pop %v4832
    %v4838 = vmul.f32 %v4822, %v4837
    %v4840 = vsel %vm2840, %v4836, 0
    %4842 = vmatprep.subr.mxu0 0.0
    %4843 = vmatpush1.msra.mxu0 0.0
    %4844 = vmatprep.subr.mxu0 0.0
    %4845 = vmatpush1.msra.mxu0 0.0
    %4846 = vmatprep.subr.mxu0 0.0
    %4847 = vmatpush1.msra.mxu0 0.0
    %4848 = vmatprep.subr.mxu0 0.0
    %4849 = vmatpush1.msra.mxu0 0.0
    %4850 = vmatprep.subr.mxu0 0.0
    %4851 = vmatpush1.msra.mxu0 0.0
    %4852 = vmatprep.subr.mxu0 0.0
    %4853 = vmatpush1.msra.mxu0 0.0
    %4854 = vmatprep.subr.mxu0 0.0
    %4855 = vmatpush1.msra.mxu0 0.0
    %4856 = vmatprep.subr.mxu0 0.0
    %4857 = vmatpush1.msra.mxu0 0.0
    %4858 = vmatprep.subr.mxu0 0.0
    %4859 = vmatpush1.msra.mxu0 0.0
    %4860 = vmatprep.subr.mxu0 0.0
    %4861 = vmatpush1.msra.mxu0 0.0
    %4862 = vmatprep.subr.mxu0 0.0
    %4863 = vmatpush1.msra.mxu0 0.0
    %4864 = vmatprep.subr.mxu0 0.0
    %4865 = vmatpush1.msra.mxu0 0.0
    %4866 = vmatprep.subr.mxu0 0.0
    %4867 = vmatpush1.msra.mxu0 0.0
    %4868 = vmatprep.subr.mxu0 0.0
    %4869 = vmatpush1.msra.mxu0 0.0
    %4870 = vmatprep.subr.mxu0 0.0
    %4871 = vmatpush1.msra.mxu0 0.0
    %4872 = vmatprep.subr.mxu0 %v2302
    %4873 = vmatpush1.msra.mxu0 %v2300
    %4874 = vmatprep.subr.mxu0 0.0
    %4875 = vmatpush2.msra.mxu0 0.0
    %4876 = vmatprep.subr.mxu0 0.0
    %4877 = vmatpush2.msra.mxu0 0.0
    %4878 = vmatprep.subr.mxu0 0.0
    %4879 = vmatpush2.msra.mxu0 0.0
    %4880 = vmatprep.subr.mxu0 0.0
    %4881 = vmatpush2.msra.mxu0 0.0
    %4882 = vmatprep.subr.mxu0 0.0
    %4883 = vmatpush2.msra.mxu0 0.0
    %4884 = vmatprep.subr.mxu0 0.0
    %4885 = vmatpush2.msra.mxu0 0.0
    %4886 = vmatprep.subr.mxu0 0.0
    %4887 = vmatpush2.msra.mxu0 0.0
    %4888 = vmatprep.subr.mxu0 0.0
    %4889 = vmatpush2.msra.mxu0 0.0
    %4890 = vmatprep.subr.mxu0 0.0
    %4891 = vmatpush2.msra.mxu0 0.0
    %4892 = vmatprep.subr.mxu0 0.0
    %4893 = vmatpush2.msra.mxu0 0.0
    %4894 = vmatprep.subr.mxu0 0.0
    %4895 = vmatpush2.msra.mxu0 0.0
    %4896 = vmatprep.subr.mxu0 0.0
    %4897 = vmatpush2.msra.mxu0 0.0
    %4898 = vmatprep.subr.mxu0 0.0
    %4899 = vmatpush2.msra.mxu0 0.0
    %4900 = vmatprep.subr.mxu0 0.0
    %4901 = vmatpush2.msra.mxu0 0.0
    %4902 = vmatprep.subr.mxu0 0.0
    %4903 = vmatpush2.msra.mxu0 0.0
    %4904 = vmatprep.subr.mxu0 0.0
    %4905 = vmatpush2.msra.mxu0 0.0
    %4906 = vmatprep.mubr.f32.mxu0 0.0
    %4907 = vmatmul.mubr.f32.gmra.mxu0 %v4840
    %v4908 = vpop.f32.mrf.mxu0
    %v4909 = vadd.f32 0.0, %v4908
    %v4910 = vpop.f32.mrf.mxu0
    %v4911 = vadd.f32 0.0, %v4910
    %4912 = vdwg.mxu0
    %v4914 = vsel %vm2840, %v4838, 0
    %4916 = vmatprep.subr.mxu0 0.0
    %4917 = vmatpush1.msra.mxu0 0.0
    %4918 = vmatprep.subr.mxu0 0.0
    %4919 = vmatpush1.msra.mxu0 0.0
    %4920 = vmatprep.subr.mxu0 0.0
    %4921 = vmatpush1.msra.mxu0 0.0
    %4922 = vmatprep.subr.mxu0 0.0
    %4923 = vmatpush1.msra.mxu0 0.0
    %4924 = vmatprep.subr.mxu0 0.0
    %4925 = vmatpush1.msra.mxu0 0.0
    %4926 = vmatprep.subr.mxu0 0.0
    %4927 = vmatpush1.msra.mxu0 0.0
    %4928 = vmatprep.subr.mxu0 0.0
    %4929 = vmatpush1.msra.mxu0 0.0
    %4930 = vmatprep.subr.mxu0 0.0
    %4931 = vmatpush1.msra.mxu0 0.0
    %4932 = vmatprep.subr.mxu0 0.0
    %4933 = vmatpush1.msra.mxu0 0.0
    %4934 = vmatprep.subr.mxu0 0.0
    %4935 = vmatpush1.msra.mxu0 0.0
    %4936 = vmatprep.subr.mxu0 0.0
    %4937 = vmatpush1.msra.mxu0 0.0
    %4938 = vmatprep.subr.mxu0 0.0
    %4939 = vmatpush1.msra.mxu0 0.0
    %4940 = vmatprep.subr.mxu0 0.0
    %4941 = vmatpush1.msra.mxu0 0.0
    %4942 = vmatprep.subr.mxu0 0.0
    %4943 = vmatpush1.msra.mxu0 0.0
    %4944 = vmatprep.subr.mxu0 0.0
    %4945 = vmatpush1.msra.mxu0 0.0
    %4946 = vmatprep.subr.mxu0 %v2308
    %4947 = vmatpush1.msra.mxu0 %v2306
    %4948 = vmatprep.subr.mxu0 0.0
    %4949 = vmatpush2.msra.mxu0 0.0
    %4950 = vmatprep.subr.mxu0 0.0
    %4951 = vmatpush2.msra.mxu0 0.0
    %4952 = vmatprep.subr.mxu0 0.0
    %4953 = vmatpush2.msra.mxu0 0.0
    %4954 = vmatprep.subr.mxu0 0.0
    %4955 = vmatpush2.msra.mxu0 0.0
    %4956 = vmatprep.subr.mxu0 0.0
    %4957 = vmatpush2.msra.mxu0 0.0
    %4958 = vmatprep.subr.mxu0 0.0
    %4959 = vmatpush2.msra.mxu0 0.0
    %4960 = vmatprep.subr.mxu0 0.0
    %4961 = vmatpush2.msra.mxu0 0.0
    %4962 = vmatprep.subr.mxu0 0.0
    %4963 = vmatpush2.msra.mxu0 0.0
    %4964 = vmatprep.subr.mxu0 0.0
    %4965 = vmatpush2.msra.mxu0 0.0
    %4966 = vmatprep.subr.mxu0 0.0
    %4967 = vmatpush2.msra.mxu0 0.0
    %4968 = vmatprep.subr.mxu0 0.0
    %4969 = vmatpush2.msra.mxu0 0.0
    %4970 = vmatprep.subr.mxu0 0.0
    %4971 = vmatpush2.msra.mxu0 0.0
    %4972 = vmatprep.subr.mxu0 0.0
    %4973 = vmatpush2.msra.mxu0 0.0
    %4974 = vmatprep.subr.mxu0 0.0
    %4975 = vmatpush2.msra.mxu0 0.0
    %4976 = vmatprep.subr.mxu0 0.0
    %4977 = vmatpush2.msra.mxu0 0.0
    %4978 = vmatprep.subr.mxu0 0.0
    %4979 = vmatpush2.msra.mxu0 0.0
    %4980 = vmatprep.mubr.f32.mxu0 0.0
    %4981 = vmatmul.mubr.f32.gmra.mxu0 %v4914
    %v4982 = vpop.f32.mrf.mxu0
    %v4983 = vadd.f32 0.0, %v4982
    %v4984 = vpop.f32.mrf.mxu0
    %v4985 = vadd.f32 0.0, %v4984
    %4986 = vdwg.mxu0
    %v4991 = vrot.slane %v4983, 7
    %v4992 = vsel %vm365, %v4991, %v4909
    %v4993 = vrot.slane %v4985, 7
    %v4994 = vsel %vm365, %v4993, %v4911
    %4997 = vmatprep.subr.mxu0 0.0
    %4998 = vmatpush1.msra.mxu0 %v2522
    %4999 = vmatprep.subr.mxu0 0.0
    %5000 = vmatpush1.msra.mxu0 %v2521
    %5001 = vmatprep.subr.mxu0 0.0
    %5002 = vmatpush1.msra.mxu0 %v2520
    %5003 = vmatprep.subr.mxu0 0.0
    %5004 = vmatpush1.msra.mxu0 %v2519
    %5005 = vmatprep.subr.mxu0 0.0
    %5006 = vmatpush1.msra.mxu0 %v2518
    %5007 = vmatprep.subr.mxu0 0.0
    %5008 = vmatpush1.msra.mxu0 %v2517
    %5009 = vmatprep.subr.mxu0 0.0
    %5010 = vmatpush1.msra.mxu0 %v2516
    %5011 = vmatprep.subr.mxu0 0.0
    %5012 = vmatpush1.msra.mxu0 %v2515
    %5013 = vmatprep.subr.mxu0 0.0
    %5014 = vmatpush1.msra.mxu0 %v2514
    %5015 = vmatprep.subr.mxu0 0.0
    %5016 = vmatpush1.msra.mxu0 %v2513
    %5017 = vmatprep.subr.mxu0 0.0
    %5018 = vmatpush1.msra.mxu0 %v2512
    %5019 = vmatprep.subr.mxu0 0.0
    %5020 = vmatpush1.msra.mxu0 %v2511
    %5021 = vmatprep.subr.mxu0 0.0
    %5022 = vmatpush1.msra.mxu0 %v2510
    %5023 = vmatprep.subr.mxu0 0.0
    %5024 = vmatpush1.msra.mxu0 %v2509
    %5025 = vmatprep.subr.mxu0 0.0
    %5026 = vmatpush1.msra.mxu0 %v2508
    %5027 = vmatprep.subr.mxu0 0.0
    %5028 = vmatpush1.msra.mxu0 %v2507
    %5029 = vmatprep.subr.mxu0 0.0
    %5030 = vmatpush2.msra.mxu0 %v2538
    %5031 = vmatprep.subr.mxu0 0.0
    %5032 = vmatpush2.msra.mxu0 %v2537
    %5033 = vmatprep.subr.mxu0 0.0
    %5034 = vmatpush2.msra.mxu0 %v2536
    %5035 = vmatprep.subr.mxu0 0.0
    %5036 = vmatpush2.msra.mxu0 %v2535
    %5037 = vmatprep.subr.mxu0 0.0
    %5038 = vmatpush2.msra.mxu0 %v2534
    %5039 = vmatprep.subr.mxu0 0.0
    %5040 = vmatpush2.msra.mxu0 %v2533
    %5041 = vmatprep.subr.mxu0 0.0
    %5042 = vmatpush2.msra.mxu0 %v2532
    %5043 = vmatprep.subr.mxu0 0.0
    %5044 = vmatpush2.msra.mxu0 %v2531
    %5045 = vmatprep.subr.mxu0 0.0
    %5046 = vmatpush2.msra.mxu0 %v2530
    %5047 = vmatprep.subr.mxu0 0.0
    %5048 = vmatpush2.msra.mxu0 %v2529
    %5049 = vmatprep.subr.mxu0 0.0
    %5050 = vmatpush2.msra.mxu0 %v2528
    %5051 = vmatprep.subr.mxu0 0.0
    %5052 = vmatpush2.msra.mxu0 %v2527
    %5053 = vmatprep.subr.mxu0 0.0
    %5054 = vmatpush2.msra.mxu0 %v2526
    %5055 = vmatprep.subr.mxu0 0.0
    %5056 = vmatpush2.msra.mxu0 %v2525
    %5057 = vmatprep.subr.mxu0 0.0
    %5058 = vmatpush2.msra.mxu0 %v2524
    %5059 = vmatprep.subr.mxu0 0.0
    %5060 = vmatpush2.msra.mxu0 %v2523
    %5061 = vmatprep.mubr.f32.mxu0 %v4994
    %5062 = vmatmul.mubr.f32.gmra.mxu0 %v4992
    %v5063 = vpop.f32.mrf.mxu0
    %v5064 = vadd.f32 0.0, %v5063
    %v5065 = vpop.f32.mrf.mxu0
    %5066 = vdwg.mxu0
    %v5069 = vunpack.c.l.s4 1983009808
    %v5070 = vunpack.c.0.s8 %v5069
    %v5071 = vlaneseq
    %v5072 = vshrl.u32 %v5071, 7
    %v5073 = vsub.s32 %v5070, %v5072
    %v5074 = vrot.slane %v5064, %v5073
    %v5075 = vrot.slane %v5074, 7
    %v5078 = vadd.f32 %v2487, %v5075
    %v5079 = vadd.f32 %v2495, %v5074
    %5080 = vmatprep.subr.mxu0 0.0
    %5081 = vmatpush1.msra.mxu0 0.0
    %5082 = vmatprep.subr.mxu0 0.0
    %5083 = vmatpush1.msra.mxu0 0.0
    %5084 = vmatprep.subr.mxu0 0.0
    %5085 = vmatpush1.msra.mxu0 0.0
    %5086 = vmatprep.subr.mxu0 0.0
    %5087 = vmatpush1.msra.mxu0 0.0
    %5088 = vmatprep.subr.mxu0 0.0
    %5089 = vmatpush1.msra.mxu0 0.0
    %5090 = vmatprep.subr.mxu0 0.0
    %5091 = vmatpush1.msra.mxu0 0.0
    %5092 = vmatprep.subr.mxu0 0.0
    %5093 = vmatpush1.msra.mxu0 0.0
    %5094 = vmatprep.subr.mxu0 0.0
    %5095 = vmatpush1.msra.mxu0 0.0
    %5096 = vmatprep.subr.mxu0 0.0
    %5097 = vmatpush1.msra.mxu0 0.0
    %5098 = vmatprep.subr.mxu0 0.0
    %5099 = vmatpush1.msra.mxu0 0.0
    %5100 = vmatprep.subr.mxu0 0.0
    %5101 = vmatpush1.msra.mxu0 0.0
    %5102 = vmatprep.subr.mxu0 0.0
    %5103 = vmatpush1.msra.mxu0 0.0
    %5104 = vmatprep.subr.mxu0 0.0
    %5105 = vmatpush1.msra.mxu0 %v2542
    %5106 = vmatprep.subr.mxu0 0.0
    %5107 = vmatpush1.msra.mxu0 %v2541
    %5108 = vmatprep.subr.mxu0 0.0
    %5109 = vmatpush1.msra.mxu0 %v2540
    %5110 = vmatprep.subr.mxu0 0.0
    %5111 = vmatpush1.msra.mxu0 %v2539
    %5112 = vmatprep.subr.mxu0 0.0
    %5113 = vmatpush2.msra.mxu0 0.0
    %5114 = vmatprep.subr.mxu0 0.0
    %5115 = vmatpush2.msra.mxu0 0.0
    %5116 = vmatprep.subr.mxu0 0.0
    %5117 = vmatpush2.msra.mxu0 0.0
    %5118 = vmatprep.subr.mxu0 0.0
    %5119 = vmatpush2.msra.mxu0 0.0
    %5120 = vmatprep.subr.mxu0 0.0
    %5121 = vmatpush2.msra.mxu0 0.0
    %5122 = vmatprep.subr.mxu0 0.0
    %5123 = vmatpush2.msra.mxu0 0.0
    %5124 = vmatprep.subr.mxu0 0.0
    %5125 = vmatpush2.msra.mxu0 0.0
    %5126 = vmatprep.subr.mxu0 0.0
    %5127 = vmatpush2.msra.mxu0 0.0
    %5128 = vmatprep.subr.mxu0 0.0
    %5129 = vmatpush2.msra.mxu0 0.0
    %5130 = vmatprep.subr.mxu0 0.0
    %5131 = vmatpush2.msra.mxu0 0.0
    %5132 = vmatprep.subr.mxu0 0.0
    %5133 = vmatpush2.msra.mxu0 0.0
    %5134 = vmatprep.subr.mxu0 0.0
    %5135 = vmatpush2.msra.mxu0 0.0
    %5136 = vmatprep.subr.mxu0 0.0
    %5137 = vmatpush2.msra.mxu0 0.0
    %5138 = vmatprep.subr.mxu0 0.0
    %5139 = vmatpush2.msra.mxu0 0.0
    %5140 = vmatprep.subr.mxu0 0.0
    %5141 = vmatpush2.msra.mxu0 0.0
    %5142 = vmatprep.subr.mxu0 0.0
    %5143 = vmatpush2.msra.mxu0 0.0
    %5144 = vmatprep.mubr.f32.mxu0 0.0
    %5145 = vmatmul.mubr.f32.gmra.mxu0 %v4566
    %v5146 = vpop.f32.mrf.mxu0
    %v5147 = vadd.f32 %v2557, %v5146
    %v5148 = vpop.f32.mrf.mxu0
    %5149 = vdwg.mxu0
    %v5152 = vunpack.c.l.s4 1983009808
    %v5153 = vunpack.c.0.s8 %v5152
    %v5154 = vlaneseq
    %v5155 = vshrl.u32 %v5154, 7
    %v5156 = vsub.s32 %v5153, %v5155
    %v5157 = vrot.slane %v5147, %v5156
    %v5158 = vrot.slane %v5157, 7
    %v5161 = vadd.f32 %v5078, %v5158
    %v5162 = vadd.f32 %v5079, %v5157
    %v5163 = vxor.u32 %v5161, 2147483648
    %v5164 = vxor.u32 %v5162, 2147483648
    %v5165 = vmul.f32 %v5163, 1.442695
    %v5166 = vpow.pop %v5165
    %v5167 = vmul.f32 %v5164, 1.442695
    %v5168 = vpow.pop %v5167
    %v5169 = vadd.f32 %v5166, 1.0
    %v5170 = vadd.f32 %v5168, 1.0
    %v5171 = vrcp.pop %v5169
    %v5172 = vmul.f32 1.0, %v5171
    %v5173 = vrcp.pop %v5170
    %v5174 = vmul.f32 1.0, %v5173
    %5175 = vrot.lane.b32.xlu0 %v5158, 64
    %v5176 = vpop.permute.xlu0 %5175
    %5177 = vrot.lane.b32.xlu0 %v5157, 64
    %v5178 = vpop.permute.xlu0 %5177
    %v5181 = vmul.f32 %v5172, %v5176
    %v5182 = vmul.f32 %v5174, %v5178
    %5185 = vrot.lane.b32.xlu0 %v5181, 64
    %v5186 = vpop.permute.xlu0 %5185
    %5187 = vrot.lane.b32.xlu0 %v5182, 64
    %v5188 = vpop.permute.xlu0 %5187
    %v5191 = vadd.f32 %v5078, %v5186
    %v5192 = vadd.f32 %v5079, %v5188
    %v5193 = vtanh.pop %v5191
    %v5194 = vtanh.pop %v5192
    %v5195 = vsub.f32 1.0, %v5172
    %v5196 = vsub.f32 1.0, %v5174
    %5199 = vrot.lane.b32.xlu0 %v5193, 96
    %v5200 = vpop.permute.xlu0 %5199
    %5201 = vrot.lane.b32.xlu0 %v5194, 96
    %v5202 = vpop.permute.xlu0 %5201
    %v5205 = vmul.f32 %v5195, %v5200
    %v5206 = vmul.f32 %v5196, %v5202
    %v5207 = vrot.slane %v4551, 7
    %v5208 = vrot.slane %v4552, 7
    %v5211 = vmul.f32 %v5172, %v5207
    %v5212 = vmul.f32 %v5174, %v5208
    %v5213 = vadd.f32 %v5205, %v5211
    %v5214 = vadd.f32 %v5206, %v5212
    %v5217 = vlaneseq
    %v5218 = vshrl.u32 %v5217, 7
    %v5219 = vsub.s32 1, %v5218
    %v5220 = vrot.slane %v5213, %v5219
    %v5221 = vlaneseq
    %v5222 = vshrl.u32 %v5221, 7
    %v5223 = vsub.s32 1, %v5222
    %v5224 = vrot.slane %v5214, %v5223
    %v5225 = vsel %vm365, %v5224, %v5220
    %5226 = vrot.lane.b32.xlu0 %v5225, 96
    %v5227 = vpop.permute.xlu0 %5226
    %v5228 = vsel %vm378, %v5227, 0
    %5230 = vmatprep.subr.mxu0 0.0
    %5231 = vmatpush1.msra.mxu0 0.0
    %5232 = vmatprep.subr.mxu0 0.0
    %5233 = vmatpush1.msra.mxu0 0.0
    %5234 = vmatprep.subr.mxu0 0.0
    %5235 = vmatpush1.msra.mxu0 0.0
    %5236 = vmatprep.subr.mxu0 0.0
    %5237 = vmatpush1.msra.mxu0 0.0
    %5238 = vmatprep.subr.mxu0 0.0
    %5239 = vmatpush1.msra.mxu0 0.0
    %5240 = vmatprep.subr.mxu0 0.0
    %5241 = vmatpush1.msra.mxu0 0.0
    %5242 = vmatprep.subr.mxu0 0.0
    %5243 = vmatpush1.msra.mxu0 0.0
    %5244 = vmatprep.subr.mxu0 0.0
    %5245 = vmatpush1.msra.mxu0 0.0
    %5246 = vmatprep.subr.mxu0 0.0
    %5247 = vmatpush1.msra.mxu0 0.0
    %5248 = vmatprep.subr.mxu0 0.0
    %5249 = vmatpush1.msra.mxu0 0.0
    %5250 = vmatprep.subr.mxu0 0.0
    %5251 = vmatpush1.msra.mxu0 0.0
    %5252 = vmatprep.subr.mxu0 0.0
    %5253 = vmatpush1.msra.mxu0 0.0
    %5254 = vmatprep.subr.mxu0 0.0
    %5255 = vmatpush1.msra.mxu0 %v2506
    %5256 = vmatprep.subr.mxu0 0.0
    %5257 = vmatpush1.msra.mxu0 %v2505
    %5258 = vmatprep.subr.mxu0 0.0
    %5259 = vmatpush1.msra.mxu0 %v2504
    %5260 = vmatprep.subr.mxu0 0.0
    %5261 = vmatpush1.msra.mxu0 %v2503
    %5262 = vmatprep.subr.mxu0 0.0
    %5263 = vmatpush2.msra.mxu0 0.0
    %5264 = vmatprep.subr.mxu0 0.0
    %5265 = vmatpush2.msra.mxu0 0.0
    %5266 = vmatprep.subr.mxu0 0.0
    %5267 = vmatpush2.msra.mxu0 0.0
    %5268 = vmatprep.subr.mxu0 0.0
    %5269 = vmatpush2.msra.mxu0 0.0
    %5270 = vmatprep.subr.mxu0 0.0
    %5271 = vmatpush2.msra.mxu0 0.0
    %5272 = vmatprep.subr.mxu0 0.0
    %5273 = vmatpush2.msra.mxu0 0.0
    %5274 = vmatprep.subr.mxu0 0.0
    %5275 = vmatpush2.msra.mxu0 0.0
    %5276 = vmatprep.subr.mxu0 0.0
    %5277 = vmatpush2.msra.mxu0 0.0
    %5278 = vmatprep.subr.mxu0 0.0
    %5279 = vmatpush2.msra.mxu0 0.0
    %5280 = vmatprep.subr.mxu0 0.0
    %5281 = vmatpush2.msra.mxu0 0.0
    %5282 = vmatprep.subr.mxu0 0.0
    %5283 = vmatpush2.msra.mxu0 0.0
    %5284 = vmatprep.subr.mxu0 0.0
    %5285 = vmatpush2.msra.mxu0 0.0
    %5286 = vmatprep.subr.mxu0 0.0
    %5287 = vmatpush2.msra.mxu0 0.0
    %5288 = vmatprep.subr.mxu0 0.0
    %5289 = vmatpush2.msra.mxu0 0.0
    %5290 = vmatprep.subr.mxu0 0.0
    %5291 = vmatpush2.msra.mxu0 0.0
    %5292 = vmatprep.subr.mxu0 0.0
    %5293 = vmatpush2.msra.mxu0 0.0
    %5294 = vmatprep.mubr.f32.mxu0 0.0
    %5295 = vmatmul.mubr.f32.gmra.mxu0 %v5228
    %v5296 = vpop.f32.mrf.mxu0
    %v5297 = vadd.f32 %v2549, %v5296
    %v5298 = vpop.f32.mrf.mxu0
    %5299 = vdwg.mxu0
    %v5302 = vunpack.c.l.s4 1966171168
    %v5303 = vunpack.c.0.s8 %v5302
    %v5304 = vlaneseq
    %v5305 = vshrl.u32 %v5304, 7
    %v5306 = vsub.s32 %v5303, %v5305
    %v5307 = vrot.slane %v5297, %v5306
    %v5308 = vcombine.high %v5307, %v5307
    %v5310 = vunpack.c.l.s4 1966171168
    %v5311 = vunpack.c.0.s8 %v5310
    %v5312 = vlaneseq
    %v5313 = vshrl.u32 %v5312, 7
    %v5314 = vsub.s32 %v5311, %v5313
    %v5315 = vrot.slane %v5307, %v5314
    %v5317 = vunpack.c.l.s4 1966171168
    %v5318 = vunpack.c.0.s8 %v5317
    %v5319 = vlaneseq
    %v5320 = vshrl.u32 %v5319, 7
    %v5321 = vsub.s32 %v5318, %v5320
    %v5322 = vrot.slane %v5308, %v5321
    %5325 = vmatprep.subr.mxu0 0.0
    %5326 = vmatpush1.msra.mxu0 %v2171
    %5327 = vmatprep.subr.mxu0 0.0
    %5328 = vmatpush1.msra.mxu0 %v2170
    %5329 = vmatprep.subr.mxu0 0.0
    %5330 = vmatpush1.msra.mxu0 %v2169
    %5331 = vmatprep.subr.mxu0 0.0
    %5332 = vmatpush1.msra.mxu0 %v2168
    %5333 = vmatprep.subr.mxu0 0.0
    %5334 = vmatpush1.msra.mxu0 %v2167
    %5335 = vmatprep.subr.mxu0 0.0
    %5336 = vmatpush1.msra.mxu0 %v2166
    %5337 = vmatprep.subr.mxu0 0.0
    %5338 = vmatpush1.msra.mxu0 %v2165
    %5339 = vmatprep.subr.mxu0 0.0
    %5340 = vmatpush1.msra.mxu0 %v2164
    %5341 = vmatprep.subr.mxu0 0.0
    %5342 = vmatpush1.msra.mxu0 %v2163
    %5343 = vmatprep.subr.mxu0 0.0
    %5344 = vmatpush1.msra.mxu0 %v2162
    %5345 = vmatprep.subr.mxu0 0.0
    %5346 = vmatpush1.msra.mxu0 %v2161
    %5347 = vmatprep.subr.mxu0 0.0
    %5348 = vmatpush1.msra.mxu0 %v2160
    %5349 = vmatprep.subr.mxu0 0.0
    %5350 = vmatpush1.msra.mxu0 %v2159
    %5351 = vmatprep.subr.mxu0 0.0
    %5352 = vmatpush1.msra.mxu0 %v2158
    %5353 = vmatprep.subr.mxu0 0.0
    %5354 = vmatpush1.msra.mxu0 %v2157
    %5355 = vmatprep.subr.mxu0 0.0
    %5356 = vmatpush1.msra.mxu0 %v2156
    %5357 = vmatprep.subr.mxu0 0.0
    %5358 = vmatpush2.msra.mxu0 0.0
    %5359 = vmatprep.subr.mxu0 0.0
    %5360 = vmatpush2.msra.mxu0 0.0
    %5361 = vmatprep.subr.mxu0 0.0
    %5362 = vmatpush2.msra.mxu0 0.0
    %5363 = vmatprep.subr.mxu0 0.0
    %5364 = vmatpush2.msra.mxu0 0.0
    %5365 = vmatprep.subr.mxu0 0.0
    %5366 = vmatpush2.msra.mxu0 0.0
    %5367 = vmatprep.subr.mxu0 0.0
    %5368 = vmatpush2.msra.mxu0 0.0
    %5369 = vmatprep.subr.mxu0 0.0
    %5370 = vmatpush2.msra.mxu0 0.0
    %5371 = vmatprep.subr.mxu0 0.0
    %5372 = vmatpush2.msra.mxu0 0.0
    %5373 = vmatprep.subr.mxu0 0.0
    %5374 = vmatpush2.msra.mxu0 0.0
    %5375 = vmatprep.subr.mxu0 0.0
    %5376 = vmatpush2.msra.mxu0 0.0
    %5377 = vmatprep.subr.mxu0 0.0
    %5378 = vmatpush2.msra.mxu0 0.0
    %5379 = vmatprep.subr.mxu0 0.0
    %5380 = vmatpush2.msra.mxu0 0.0
    %5381 = vmatprep.subr.mxu0 0.0
    %5382 = vmatpush2.msra.mxu0 0.0
    %5383 = vmatprep.subr.mxu0 0.0
    %5384 = vmatpush2.msra.mxu0 0.0
    %5385 = vmatprep.subr.mxu0 0.0
    %5386 = vmatpush2.msra.mxu0 0.0
    %5387 = vmatprep.subr.mxu0 0.0
    %5388 = vmatpush2.msra.mxu0 0.0
    %5389 = vmatprep.mubr.f32.mxu0 0.0
    %5390 = vmatmul.mubr.f32.gmra.mxu0 %v5315
    %v5391 = vpop.f32.mrf.mxu0
    %v5392 = vadd.f32 0.0, %v5391
    %v5393 = vpop.f32.mrf.mxu0
    %5394 = vdwg.mxu0
    %5395 = vmatprep.subr.mxu0 0.0
    %5396 = vmatpush1.msra.mxu0 %v2203
    %5397 = vmatprep.subr.mxu0 0.0
    %5398 = vmatpush1.msra.mxu0 %v2202
    %5399 = vmatprep.subr.mxu0 0.0
    %5400 = vmatpush1.msra.mxu0 %v2201
    %5401 = vmatprep.subr.mxu0 0.0
    %5402 = vmatpush1.msra.mxu0 %v2200
    %5403 = vmatprep.subr.mxu0 0.0
    %5404 = vmatpush1.msra.mxu0 %v2199
    %5405 = vmatprep.subr.mxu0 0.0
    %5406 = vmatpush1.msra.mxu0 %v2198
    %5407 = vmatprep.subr.mxu0 0.0
    %5408 = vmatpush1.msra.mxu0 %v2197
    %5409 = vmatprep.subr.mxu0 0.0
    %5410 = vmatpush1.msra.mxu0 %v2196
    %5411 = vmatprep.subr.mxu0 0.0
    %5412 = vmatpush1.msra.mxu0 %v2195
    %5413 = vmatprep.subr.mxu0 0.0
    %5414 = vmatpush1.msra.mxu0 %v2194
    %5415 = vmatprep.subr.mxu0 0.0
    %5416 = vmatpush1.msra.mxu0 %v2193
    %5417 = vmatprep.subr.mxu0 0.0
    %5418 = vmatpush1.msra.mxu0 %v2192
    %5419 = vmatprep.subr.mxu0 0.0
    %5420 = vmatpush1.msra.mxu0 %v2191
    %5421 = vmatprep.subr.mxu0 0.0
    %5422 = vmatpush1.msra.mxu0 %v2190
    %5423 = vmatprep.subr.mxu0 0.0
    %5424 = vmatpush1.msra.mxu0 %v2189
    %5425 = vmatprep.subr.mxu0 0.0
    %5426 = vmatpush1.msra.mxu0 %v2188
    %5427 = vmatprep.subr.mxu0 0.0
    %5428 = vmatpush2.msra.mxu0 0.0
    %5429 = vmatprep.subr.mxu0 0.0
    %5430 = vmatpush2.msra.mxu0 0.0
    %5431 = vmatprep.subr.mxu0 0.0
    %5432 = vmatpush2.msra.mxu0 0.0
    %5433 = vmatprep.subr.mxu0 0.0
    %5434 = vmatpush2.msra.mxu0 0.0
    %5435 = vmatprep.subr.mxu0 0.0
    %5436 = vmatpush2.msra.mxu0 0.0
    %5437 = vmatprep.subr.mxu0 0.0
    %5438 = vmatpush2.msra.mxu0 0.0
    %5439 = vmatprep.subr.mxu0 0.0
    %5440 = vmatpush2.msra.mxu0 0.0
    %5441 = vmatprep.subr.mxu0 0.0
    %5442 = vmatpush2.msra.mxu0 0.0
    %5443 = vmatprep.subr.mxu0 0.0
    %5444 = vmatpush2.msra.mxu0 0.0
    %5445 = vmatprep.subr.mxu0 0.0
    %5446 = vmatpush2.msra.mxu0 0.0
    %5447 = vmatprep.subr.mxu0 0.0
    %5448 = vmatpush2.msra.mxu0 0.0
    %5449 = vmatprep.subr.mxu0 0.0
    %5450 = vmatpush2.msra.mxu0 0.0
    %5451 = vmatprep.subr.mxu0 0.0
    %5452 = vmatpush2.msra.mxu0 0.0
    %5453 = vmatprep.subr.mxu0 0.0
    %5454 = vmatpush2.msra.mxu0 0.0
    %5455 = vmatprep.subr.mxu0 0.0
    %5456 = vmatpush2.msra.mxu0 0.0
    %5457 = vmatprep.subr.mxu0 0.0
    %5458 = vmatpush2.msra.mxu0 0.0
    %5459 = vmatprep.mubr.f32.mxu0 0.0
    %5460 = vmatmul.mubr.f32.gmra.mxu0 %v5322
    %v5461 = vpop.f32.mrf.mxu0
    %v5462 = vadd.f32 0.0, %v5461
    %v5463 = vpop.f32.mrf.mxu0
    %5464 = vdwg.mxu0
    %v5465 = vmul.f32 %v5392, 0.1
    %v5466 = vmul.f32 %v5462, 0.1
    %v5469 = vrot.slane %v5466, 7
    %v5470 = vsel %vm365, %v5469, %v5465
    %v5472 = vsel %vm2810, %v5470, -inf
    %5473 = vmax.xlane.f32.xlu0 %v5472
    %v5474 = vpop.xlane.xlu0 %5473
    %v5476 = vrot.slane %v5474, 1
    %v5479 = vsub.f32 %v5465, %v5474
    %v5480 = vsub.f32 %v5466, %v5476
    %v5481 = vmul.f32 %v5479, 1.442695
    %v5482 = vpow.pop %v5481
    %v5483 = vmul.f32 %v5480, 1.442695
    %v5484 = vpow.pop %v5483
    %v5487 = vrot.slane %v5484, 7
    %v5488 = vsel %vm365, %v5487, %v5482
    %v5490 = vsel %vm2810, %v5488, 0.0
    %5491 = vadd.xlane.f32.xlu0 %v5490
    %v5492 = vpop.xlane.xlu0 %5491
    %v5494 = vrot.slane %v5492, 1
    %v5497 = vrcp.pop %v5492
    %v5498 = vmul.f32 %v5482, %v5497
    %v5499 = vrcp.pop %v5494
    %v5500 = vmul.f32 %v5484, %v5499
    %v5502 = vsel %vm2840, %v5498, 0
    %5504 = vmatprep.subr.mxu0 0.0
    %5505 = vmatpush1.msra.mxu0 0.0
    %5506 = vmatprep.subr.mxu0 0.0
    %5507 = vmatpush1.msra.mxu0 0.0
    %5508 = vmatprep.subr.mxu0 0.0
    %5509 = vmatpush1.msra.mxu0 0.0
    %5510 = vmatprep.subr.mxu0 0.0
    %5511 = vmatpush1.msra.mxu0 0.0
    %5512 = vmatprep.subr.mxu0 0.0
    %5513 = vmatpush1.msra.mxu0 0.0
    %5514 = vmatprep.subr.mxu0 0.0
    %5515 = vmatpush1.msra.mxu0 0.0
    %5516 = vmatprep.subr.mxu0 0.0
    %5517 = vmatpush1.msra.mxu0 0.0
    %5518 = vmatprep.subr.mxu0 0.0
    %5519 = vmatpush1.msra.mxu0 0.0
    %5520 = vmatprep.subr.mxu0 0.0
    %5521 = vmatpush1.msra.mxu0 0.0
    %5522 = vmatprep.subr.mxu0 0.0
    %5523 = vmatpush1.msra.mxu0 0.0
    %5524 = vmatprep.subr.mxu0 0.0
    %5525 = vmatpush1.msra.mxu0 0.0
    %5526 = vmatprep.subr.mxu0 0.0
    %5527 = vmatpush1.msra.mxu0 0.0
    %5528 = vmatprep.subr.mxu0 0.0
    %5529 = vmatpush1.msra.mxu0 0.0
    %5530 = vmatprep.subr.mxu0 0.0
    %5531 = vmatpush1.msra.mxu0 0.0
    %5532 = vmatprep.subr.mxu0 0.0
    %5533 = vmatpush1.msra.mxu0 0.0
    %5534 = vmatprep.subr.mxu0 %v2302
    %5535 = vmatpush1.msra.mxu0 %v2300
    %5536 = vmatprep.subr.mxu0 0.0
    %5537 = vmatpush2.msra.mxu0 0.0
    %5538 = vmatprep.subr.mxu0 0.0
    %5539 = vmatpush2.msra.mxu0 0.0
    %5540 = vmatprep.subr.mxu0 0.0
    %5541 = vmatpush2.msra.mxu0 0.0
    %5542 = vmatprep.subr.mxu0 0.0
    %5543 = vmatpush2.msra.mxu0 0.0
    %5544 = vmatprep.subr.mxu0 0.0
    %5545 = vmatpush2.msra.mxu0 0.0
    %5546 = vmatprep.subr.mxu0 0.0
    %5547 = vmatpush2.msra.mxu0 0.0
    %5548 = vmatprep.subr.mxu0 0.0
    %5549 = vmatpush2.msra.mxu0 0.0
    %5550 = vmatprep.subr.mxu0 0.0
    %5551 = vmatpush2.msra.mxu0 0.0
    %5552 = vmatprep.subr.mxu0 0.0
    %5553 = vmatpush2.msra.mxu0 0.0
    %5554 = vmatprep.subr.mxu0 0.0
    %5555 = vmatpush2.msra.mxu0 0.0
    %5556 = vmatprep.subr.mxu0 0.0
    %5557 = vmatpush2.msra.mxu0 0.0
    %5558 = vmatprep.subr.mxu0 0.0
    %5559 = vmatpush2.msra.mxu0 0.0
    %5560 = vmatprep.subr.mxu0 0.0
    %5561 = vmatpush2.msra.mxu0 0.0
    %5562 = vmatprep.subr.mxu0 0.0
    %5563 = vmatpush2.msra.mxu0 0.0
    %5564 = vmatprep.subr.mxu0 0.0
    %5565 = vmatpush2.msra.mxu0 0.0
    %5566 = vmatprep.subr.mxu0 0.0
    %5567 = vmatpush2.msra.mxu0 0.0
    %5568 = vmatprep.mubr.f32.mxu0 0.0
    %5569 = vmatmul.mubr.f32.gmra.mxu0 %v5502
    %v5570 = vpop.f32.mrf.mxu0
    %v5571 = vadd.f32 0.0, %v5570
    %v5572 = vpop.f32.mrf.mxu0
    %v5573 = vadd.f32 0.0, %v5572
    %5574 = vdwg.mxu0
    %v5576 = vsel %vm2840, %v5500, 0
    %5578 = vmatprep.subr.mxu0 0.0
    %5579 = vmatpush1.msra.mxu0 0.0
    %5580 = vmatprep.subr.mxu0 0.0
    %5581 = vmatpush1.msra.mxu0 0.0
    %5582 = vmatprep.subr.mxu0 0.0
    %5583 = vmatpush1.msra.mxu0 0.0
    %5584 = vmatprep.subr.mxu0 0.0
    %5585 = vmatpush1.msra.mxu0 0.0
    %5586 = vmatprep.subr.mxu0 0.0
    %5587 = vmatpush1.msra.mxu0 0.0
    %5588 = vmatprep.subr.mxu0 0.0
    %5589 = vmatpush1.msra.mxu0 0.0
    %5590 = vmatprep.subr.mxu0 0.0
    %5591 = vmatpush1.msra.mxu0 0.0
    %5592 = vmatprep.subr.mxu0 0.0
    %5593 = vmatpush1.msra.mxu0 0.0
    %5594 = vmatprep.subr.mxu0 0.0
    %5595 = vmatpush1.msra.mxu0 0.0
    %5596 = vmatprep.subr.mxu0 0.0
    %5597 = vmatpush1.msra.mxu0 0.0
    %5598 = vmatprep.subr.mxu0 0.0
    %5599 = vmatpush1.msra.mxu0 0.0
    %5600 = vmatprep.subr.mxu0 0.0
    %5601 = vmatpush1.msra.mxu0 0.0
    %5602 = vmatprep.subr.mxu0 0.0
    %5603 = vmatpush1.msra.mxu0 0.0
    %5604 = vmatprep.subr.mxu0 0.0
    %5605 = vmatpush1.msra.mxu0 0.0
    %5606 = vmatprep.subr.mxu0 0.0
    %5607 = vmatpush1.msra.mxu0 0.0
    %5608 = vmatprep.subr.mxu0 %v2308
    %5609 = vmatpush1.msra.mxu0 %v2306
    %5610 = vmatprep.subr.mxu0 0.0
    %5611 = vmatpush2.msra.mxu0 0.0
    %5612 = vmatprep.subr.mxu0 0.0
    %5613 = vmatpush2.msra.mxu0 0.0
    %5614 = vmatprep.subr.mxu0 0.0
    %5615 = vmatpush2.msra.mxu0 0.0
    %5616 = vmatprep.subr.mxu0 0.0
    %5617 = vmatpush2.msra.mxu0 0.0
    %5618 = vmatprep.subr.mxu0 0.0
    %5619 = vmatpush2.msra.mxu0 0.0
    %5620 = vmatprep.subr.mxu0 0.0
    %5621 = vmatpush2.msra.mxu0 0.0
    %5622 = vmatprep.subr.mxu0 0.0
    %5623 = vmatpush2.msra.mxu0 0.0
    %5624 = vmatprep.subr.mxu0 0.0
    %5625 = vmatpush2.msra.mxu0 0.0
    %5626 = vmatprep.subr.mxu0 0.0
    %5627 = vmatpush2.msra.mxu0 0.0
    %5628 = vmatprep.subr.mxu0 0.0
    %5629 = vmatpush2.msra.mxu0 0.0
    %5630 = vmatprep.subr.mxu0 0.0
    %5631 = vmatpush2.msra.mxu0 0.0
    %5632 = vmatprep.subr.mxu0 0.0
    %5633 = vmatpush2.msra.mxu0 0.0
    %5634 = vmatprep.subr.mxu0 0.0
    %5635 = vmatpush2.msra.mxu0 0.0
    %5636 = vmatprep.subr.mxu0 0.0
    %5637 = vmatpush2.msra.mxu0 0.0
    %5638 = vmatprep.subr.mxu0 0.0
    %5639 = vmatpush2.msra.mxu0 0.0
    %5640 = vmatprep.subr.mxu0 0.0
    %5641 = vmatpush2.msra.mxu0 0.0
    %5642 = vmatprep.mubr.f32.mxu0 0.0
    %5643 = vmatmul.mubr.f32.gmra.mxu0 %v5576
    %v5644 = vpop.f32.mrf.mxu0
    %v5645 = vadd.f32 0.0, %v5644
    %v5646 = vpop.f32.mrf.mxu0
    %v5647 = vadd.f32 0.0, %v5646
    %5648 = vdwg.mxu0
    %v5653 = vrot.slane %v5645, 7
    %v5654 = vsel %vm365, %v5653, %v5571
    %v5655 = vrot.slane %v5647, 7
    %v5656 = vsel %vm365, %v5655, %v5573
    %5659 = vmatprep.subr.mxu0 0.0
    %5660 = vmatpush1.msra.mxu0 %v2522
    %5661 = vmatprep.subr.mxu0 0.0
    %5662 = vmatpush1.msra.mxu0 %v2521
    %5663 = vmatprep.subr.mxu0 0.0
    %5664 = vmatpush1.msra.mxu0 %v2520
    %5665 = vmatprep.subr.mxu0 0.0
    %5666 = vmatpush1.msra.mxu0 %v2519
    %5667 = vmatprep.subr.mxu0 0.0
    %5668 = vmatpush1.msra.mxu0 %v2518
    %5669 = vmatprep.subr.mxu0 0.0
    %5670 = vmatpush1.msra.mxu0 %v2517
    %5671 = vmatprep.subr.mxu0 0.0
    %5672 = vmatpush1.msra.mxu0 %v2516
    %5673 = vmatprep.subr.mxu0 0.0
    %5674 = vmatpush1.msra.mxu0 %v2515
    %5675 = vmatprep.subr.mxu0 0.0
    %5676 = vmatpush1.msra.mxu0 %v2514
    %5677 = vmatprep.subr.mxu0 0.0
    %5678 = vmatpush1.msra.mxu0 %v2513
    %5679 = vmatprep.subr.mxu0 0.0
    %5680 = vmatpush1.msra.mxu0 %v2512
    %5681 = vmatprep.subr.mxu0 0.0
    %5682 = vmatpush1.msra.mxu0 %v2511
    %5683 = vmatprep.subr.mxu0 0.0
    %5684 = vmatpush1.msra.mxu0 %v2510
    %5685 = vmatprep.subr.mxu0 0.0
    %5686 = vmatpush1.msra.mxu0 %v2509
    %5687 = vmatprep.subr.mxu0 0.0
    %5688 = vmatpush1.msra.mxu0 %v2508
    %5689 = vmatprep.subr.mxu0 0.0
    %5690 = vmatpush1.msra.mxu0 %v2507
    %5691 = vmatprep.subr.mxu0 0.0
    %5692 = vmatpush2.msra.mxu0 %v2538
    %5693 = vmatprep.subr.mxu0 0.0
    %5694 = vmatpush2.msra.mxu0 %v2537
    %5695 = vmatprep.subr.mxu0 0.0
    %5696 = vmatpush2.msra.mxu0 %v2536
    %5697 = vmatprep.subr.mxu0 0.0
    %5698 = vmatpush2.msra.mxu0 %v2535
    %5699 = vmatprep.subr.mxu0 0.0
    %5700 = vmatpush2.msra.mxu0 %v2534
    %5701 = vmatprep.subr.mxu0 0.0
    %5702 = vmatpush2.msra.mxu0 %v2533
    %5703 = vmatprep.subr.mxu0 0.0
    %5704 = vmatpush2.msra.mxu0 %v2532
    %5705 = vmatprep.subr.mxu0 0.0
    %5706 = vmatpush2.msra.mxu0 %v2531
    %5707 = vmatprep.subr.mxu0 0.0
    %5708 = vmatpush2.msra.mxu0 %v2530
    %5709 = vmatprep.subr.mxu0 0.0
    %5710 = vmatpush2.msra.mxu0 %v2529
    %5711 = vmatprep.subr.mxu0 0.0
    %5712 = vmatpush2.msra.mxu0 %v2528
    %5713 = vmatprep.subr.mxu0 0.0
    %5714 = vmatpush2.msra.mxu0 %v2527
    %5715 = vmatprep.subr.mxu0 0.0
    %5716 = vmatpush2.msra.mxu0 %v2526
    %5717 = vmatprep.subr.mxu0 0.0
    %5718 = vmatpush2.msra.mxu0 %v2525
    %5719 = vmatprep.subr.mxu0 0.0
    %5720 = vmatpush2.msra.mxu0 %v2524
    %5721 = vmatprep.subr.mxu0 0.0
    %5722 = vmatpush2.msra.mxu0 %v2523
    %5723 = vmatprep.mubr.f32.mxu0 %v5656
    %5724 = vmatmul.mubr.f32.gmra.mxu0 %v5654
    %v5725 = vpop.f32.mrf.mxu0
    %v5726 = vadd.f32 0.0, %v5725
    %v5727 = vpop.f32.mrf.mxu0
    %5728 = vdwg.mxu0
    %v5731 = vunpack.c.l.s4 1983009808
    %v5732 = vunpack.c.0.s8 %v5731
    %v5733 = vlaneseq
    %v5734 = vshrl.u32 %v5733, 7
    %v5735 = vsub.s32 %v5732, %v5734
    %v5736 = vrot.slane %v5726, %v5735
    %v5737 = vrot.slane %v5736, 1
    %v5740 = vadd.f32 %v2486, %v5736
    %v5741 = vadd.f32 %v2496, %v5737
    %5742 = vmatprep.subr.mxu0 0.0
    %5743 = vmatpush1.msra.mxu0 0.0
    %5744 = vmatprep.subr.mxu0 0.0
    %5745 = vmatpush1.msra.mxu0 0.0
    %5746 = vmatprep.subr.mxu0 0.0
    %5747 = vmatpush1.msra.mxu0 0.0
    %5748 = vmatprep.subr.mxu0 0.0
    %5749 = vmatpush1.msra.mxu0 0.0
    %5750 = vmatprep.subr.mxu0 0.0
    %5751 = vmatpush1.msra.mxu0 0.0
    %5752 = vmatprep.subr.mxu0 0.0
    %5753 = vmatpush1.msra.mxu0 0.0
    %5754 = vmatprep.subr.mxu0 0.0
    %5755 = vmatpush1.msra.mxu0 0.0
    %5756 = vmatprep.subr.mxu0 0.0
    %5757 = vmatpush1.msra.mxu0 0.0
    %5758 = vmatprep.subr.mxu0 0.0
    %5759 = vmatpush1.msra.mxu0 0.0
    %5760 = vmatprep.subr.mxu0 0.0
    %5761 = vmatpush1.msra.mxu0 0.0
    %5762 = vmatprep.subr.mxu0 0.0
    %5763 = vmatpush1.msra.mxu0 0.0
    %5764 = vmatprep.subr.mxu0 0.0
    %5765 = vmatpush1.msra.mxu0 0.0
    %5766 = vmatprep.subr.mxu0 0.0
    %5767 = vmatpush1.msra.mxu0 %v2542
    %5768 = vmatprep.subr.mxu0 0.0
    %5769 = vmatpush1.msra.mxu0 %v2541
    %5770 = vmatprep.subr.mxu0 0.0
    %5771 = vmatpush1.msra.mxu0 %v2540
    %5772 = vmatprep.subr.mxu0 0.0
    %5773 = vmatpush1.msra.mxu0 %v2539
    %5774 = vmatprep.subr.mxu0 0.0
    %5775 = vmatpush2.msra.mxu0 0.0
    %5776 = vmatprep.subr.mxu0 0.0
    %5777 = vmatpush2.msra.mxu0 0.0
    %5778 = vmatprep.subr.mxu0 0.0
    %5779 = vmatpush2.msra.mxu0 0.0
    %5780 = vmatprep.subr.mxu0 0.0
    %5781 = vmatpush2.msra.mxu0 0.0
    %5782 = vmatprep.subr.mxu0 0.0
    %5783 = vmatpush2.msra.mxu0 0.0
    %5784 = vmatprep.subr.mxu0 0.0
    %5785 = vmatpush2.msra.mxu0 0.0
    %5786 = vmatprep.subr.mxu0 0.0
    %5787 = vmatpush2.msra.mxu0 0.0
    %5788 = vmatprep.subr.mxu0 0.0
    %5789 = vmatpush2.msra.mxu0 0.0
    %5790 = vmatprep.subr.mxu0 0.0
    %5791 = vmatpush2.msra.mxu0 0.0
    %5792 = vmatprep.subr.mxu0 0.0
    %5793 = vmatpush2.msra.mxu0 0.0
    %5794 = vmatprep.subr.mxu0 0.0
    %5795 = vmatpush2.msra.mxu0 0.0
    %5796 = vmatprep.subr.mxu0 0.0
    %5797 = vmatpush2.msra.mxu0 0.0
    %5798 = vmatprep.subr.mxu0 0.0
    %5799 = vmatpush2.msra.mxu0 0.0
    %5800 = vmatprep.subr.mxu0 0.0
    %5801 = vmatpush2.msra.mxu0 0.0
    %5802 = vmatprep.subr.mxu0 0.0
    %5803 = vmatpush2.msra.mxu0 0.0
    %5804 = vmatprep.subr.mxu0 0.0
    %5805 = vmatpush2.msra.mxu0 0.0
    %5806 = vmatprep.mubr.f32.mxu0 0.0
    %5807 = vmatmul.mubr.f32.gmra.mxu0 %v5228
    %v5808 = vpop.f32.mrf.mxu0
    %v5809 = vadd.f32 %v2557, %v5808
    %v5810 = vpop.f32.mrf.mxu0
    %5811 = vdwg.mxu0
    %v5814 = vunpack.c.l.s4 1983009808
    %v5815 = vunpack.c.0.s8 %v5814
    %v5816 = vlaneseq
    %v5817 = vshrl.u32 %v5816, 7
    %v5818 = vsub.s32 %v5815, %v5817
    %v5819 = vrot.slane %v5809, %v5818
    %v5820 = vrot.slane %v5819, 1
    %v5823 = vadd.f32 %v5740, %v5819
    %v5824 = vadd.f32 %v5741, %v5820
    %v5825 = vxor.u32 %v5823, 2147483648
    %v5826 = vxor.u32 %v5824, 2147483648
    %v5827 = vmul.f32 %v5825, 1.442695
    %v5828 = vpow.pop %v5827
    %v5829 = vmul.f32 %v5826, 1.442695
    %v5830 = vpow.pop %v5829
    %v5831 = vadd.f32 %v5828, 1.0
    %v5832 = vadd.f32 %v5830, 1.0
    %v5833 = vrcp.pop %v5831
    %v5834 = vmul.f32 1.0, %v5833
    %v5835 = vrcp.pop %v5832
    %v5836 = vmul.f32 1.0, %v5835
    %5837 = vrot.lane.b32.xlu0 %v5819, 64
    %v5838 = vpop.permute.xlu0 %5837
    %5839 = vrot.lane.b32.xlu0 %v5820, 64
    %v5840 = vpop.permute.xlu0 %5839
    %v5843 = vmul.f32 %v5834, %v5838
    %v5844 = vmul.f32 %v5836, %v5840
    %5847 = vrot.lane.b32.xlu0 %v5843, 64
    %v5848 = vpop.permute.xlu0 %5847
    %5849 = vrot.lane.b32.xlu0 %v5844, 64
    %v5850 = vpop.permute.xlu0 %5849
    %v5853 = vadd.f32 %v5740, %v5848
    %v5854 = vadd.f32 %v5741, %v5850
    %v5855 = vtanh.pop %v5853
    %v5856 = vtanh.pop %v5854
    %v5857 = vsub.f32 1.0, %v5834
    %v5858 = vsub.f32 1.0, %v5836
    %5861 = vrot.lane.b32.xlu0 %v5855, 96
    %v5862 = vpop.permute.xlu0 %5861
    %5863 = vrot.lane.b32.xlu0 %v5856, 96
    %v5864 = vpop.permute.xlu0 %5863
    %v5867 = vmul.f32 %v5857, %v5862
    %v5868 = vmul.f32 %v5858, %v5864
    %v5869 = vrot.slane %v5213, 7
    %v5870 = vrot.slane %v5869, 2
    %v5871 = vrot.slane %v5214, 7
    %v5872 = vrot.slane %v5871, 2
    %v5875 = vmul.f32 %v5834, %v5870
    %v5876 = vmul.f32 %v5836, %v5872
    %v5877 = vadd.f32 %v5867, %v5875
    %v5878 = vadd.f32 %v5868, %v5876
    %v5881 = vlaneseq
    %v5882 = vshrl.u32 %v5881, 7
    %v5883 = vsub.s32 0, %v5882
    %v5884 = vrot.slane %v5877, %v5883
    %v5885 = vlaneseq
    %v5886 = vshrl.u32 %v5885, 7
    %v5887 = vsub.s32 0, %v5886
    %v5888 = vrot.slane %v5878, %v5887
    %v5889 = vsel %vm365, %v5888, %v5884
    %5890 = vrot.lane.b32.xlu0 %v5889, 96
    %v5891 = vpop.permute.xlu0 %5890
    %v5892 = vsel %vm378, %v5891, 0
    %5894 = vmatprep.subr.mxu0 0.0
    %5895 = vmatpush1.msra.mxu0 0.0
    %5896 = vmatprep.subr.mxu0 0.0
    %5897 = vmatpush1.msra.mxu0 0.0
    %5898 = vmatprep.subr.mxu0 0.0
    %5899 = vmatpush1.msra.mxu0 0.0
    %5900 = vmatprep.subr.mxu0 0.0
    %5901 = vmatpush1.msra.mxu0 0.0
    %5902 = vmatprep.subr.mxu0 0.0
    %5903 = vmatpush1.msra.mxu0 0.0
    %5904 = vmatprep.subr.mxu0 0.0
    %5905 = vmatpush1.msra.mxu0 0.0
    %5906 = vmatprep.subr.mxu0 0.0
    %5907 = vmatpush1.msra.mxu0 0.0
    %5908 = vmatprep.subr.mxu0 0.0
    %5909 = vmatpush1.msra.mxu0 0.0
    %5910 = vmatprep.subr.mxu0 0.0
    %5911 = vmatpush1.msra.mxu0 0.0
    %5912 = vmatprep.subr.mxu0 0.0
    %5913 = vmatpush1.msra.mxu0 0.0
    %5914 = vmatprep.subr.mxu0 0.0
    %5915 = vmatpush1.msra.mxu0 0.0
    %5916 = vmatprep.subr.mxu0 0.0
    %5917 = vmatpush1.msra.mxu0 0.0
    %5918 = vmatprep.subr.mxu0 0.0
    %5919 = vmatpush1.msra.mxu0 %v2506
    %5920 = vmatprep.subr.mxu0 0.0
    %5921 = vmatpush1.msra.mxu0 %v2505
    %5922 = vmatprep.subr.mxu0 0.0
    %5923 = vmatpush1.msra.mxu0 %v2504
    %5924 = vmatprep.subr.mxu0 0.0
    %5925 = vmatpush1.msra.mxu0 %v2503
    %5926 = vmatprep.subr.mxu0 0.0
    %5927 = vmatpush2.msra.mxu0 0.0
    %5928 = vmatprep.subr.mxu0 0.0
    %5929 = vmatpush2.msra.mxu0 0.0
    %5930 = vmatprep.subr.mxu0 0.0
    %5931 = vmatpush2.msra.mxu0 0.0
    %5932 = vmatprep.subr.mxu0 0.0
    %5933 = vmatpush2.msra.mxu0 0.0
    %5934 = vmatprep.subr.mxu0 0.0
    %5935 = vmatpush2.msra.mxu0 0.0
    %5936 = vmatprep.subr.mxu0 0.0
    %5937 = vmatpush2.msra.mxu0 0.0
    %5938 = vmatprep.subr.mxu0 0.0
    %5939 = vmatpush2.msra.mxu0 0.0
    %5940 = vmatprep.subr.mxu0 0.0
    %5941 = vmatpush2.msra.mxu0 0.0
    %5942 = vmatprep.subr.mxu0 0.0
    %5943 = vmatpush2.msra.mxu0 0.0
    %5944 = vmatprep.subr.mxu0 0.0
    %5945 = vmatpush2.msra.mxu0 0.0
    %5946 = vmatprep.subr.mxu0 0.0
    %5947 = vmatpush2.msra.mxu0 0.0
    %5948 = vmatprep.subr.mxu0 0.0
    %5949 = vmatpush2.msra.mxu0 0.0
    %5950 = vmatprep.subr.mxu0 0.0
    %5951 = vmatpush2.msra.mxu0 0.0
    %5952 = vmatprep.subr.mxu0 0.0
    %5953 = vmatpush2.msra.mxu0 0.0
    %5954 = vmatprep.subr.mxu0 0.0
    %5955 = vmatpush2.msra.mxu0 0.0
    %5956 = vmatprep.subr.mxu0 0.0
    %5957 = vmatpush2.msra.mxu0 0.0
    %5958 = vmatprep.mubr.f32.mxu0 0.0
    %5959 = vmatmul.mubr.f32.gmra.mxu0 %v5892
    %v5960 = vpop.f32.mrf.mxu0
    %v5961 = vadd.f32 %v2549, %v5960
    %v5962 = vpop.f32.mrf.mxu0
    %5963 = vdwg.mxu0
    %v5966 = vunpack.c.l.s4 1966171168
    %v5967 = vunpack.c.0.s8 %v5966
    %v5968 = vlaneseq
    %v5969 = vshrl.u32 %v5968, 7
    %v5970 = vsub.s32 %v5967, %v5969
    %v5971 = vrot.slane %v5961, %v5970
    %v5972 = vcombine.high %v5971, %v5971
    %v5974 = vunpack.c.l.s4 1966171168
    %v5975 = vunpack.c.0.s8 %v5974
    %v5976 = vlaneseq
    %v5977 = vshrl.u32 %v5976, 7
    %v5978 = vsub.s32 %v5975, %v5977
    %v5979 = vrot.slane %v5971, %v5978
    %v5981 = vunpack.c.l.s4 1966171168
    %v5982 = vunpack.c.0.s8 %v5981
    %v5983 = vlaneseq
    %v5984 = vshrl.u32 %v5983, 7
    %v5985 = vsub.s32 %v5982, %v5984
    %v5986 = vrot.slane %v5972, %v5985
    %5989 = vmatprep.subr.mxu0 0.0
    %5990 = vmatpush1.msra.mxu0 %v2171
    %5991 = vmatprep.subr.mxu0 0.0
    %5992 = vmatpush1.msra.mxu0 %v2170
    %5993 = vmatprep.subr.mxu0 0.0
    %5994 = vmatpush1.msra.mxu0 %v2169
    %5995 = vmatprep.subr.mxu0 0.0
    %5996 = vmatpush1.msra.mxu0 %v2168
    %5997 = vmatprep.subr.mxu0 0.0
    %5998 = vmatpush1.msra.mxu0 %v2167
    %5999 = vmatprep.subr.mxu0 0.0
    %6000 = vmatpush1.msra.mxu0 %v2166
    %6001 = vmatprep.subr.mxu0 0.0
    %6002 = vmatpush1.msra.mxu0 %v2165
    %6003 = vmatprep.subr.mxu0 0.0
    %6004 = vmatpush1.msra.mxu0 %v2164
    %6005 = vmatprep.subr.mxu0 0.0
    %6006 = vmatpush1.msra.mxu0 %v2163
    %6007 = vmatprep.subr.mxu0 0.0
    %6008 = vmatpush1.msra.mxu0 %v2162
    %6009 = vmatprep.subr.mxu0 0.0
    %6010 = vmatpush1.msra.mxu0 %v2161
    %6011 = vmatprep.subr.mxu0 0.0
    %6012 = vmatpush1.msra.mxu0 %v2160
    %6013 = vmatprep.subr.mxu0 0.0
    %6014 = vmatpush1.msra.mxu0 %v2159
    %6015 = vmatprep.subr.mxu0 0.0
    %6016 = vmatpush1.msra.mxu0 %v2158
    %6017 = vmatprep.subr.mxu0 0.0
    %6018 = vmatpush1.msra.mxu0 %v2157
    %6019 = vmatprep.subr.mxu0 0.0
    %6020 = vmatpush1.msra.mxu0 %v2156
    %6021 = vmatprep.subr.mxu0 0.0
    %6022 = vmatpush2.msra.mxu0 0.0
    %6023 = vmatprep.subr.mxu0 0.0
    %6024 = vmatpush2.msra.mxu0 0.0
    %6025 = vmatprep.subr.mxu0 0.0
    %6026 = vmatpush2.msra.mxu0 0.0
    %6027 = vmatprep.subr.mxu0 0.0
    %6028 = vmatpush2.msra.mxu0 0.0
    %6029 = vmatprep.subr.mxu0 0.0
    %6030 = vmatpush2.msra.mxu0 0.0
    %6031 = vmatprep.subr.mxu0 0.0
    %6032 = vmatpush2.msra.mxu0 0.0
    %6033 = vmatprep.subr.mxu0 0.0
    %6034 = vmatpush2.msra.mxu0 0.0
    %6035 = vmatprep.subr.mxu0 0.0
    %6036 = vmatpush2.msra.mxu0 0.0
    %6037 = vmatprep.subr.mxu0 0.0
    %6038 = vmatpush2.msra.mxu0 0.0
    %6039 = vmatprep.subr.mxu0 0.0
    %6040 = vmatpush2.msra.mxu0 0.0
    %6041 = vmatprep.subr.mxu0 0.0
    %6042 = vmatpush2.msra.mxu0 0.0
    %6043 = vmatprep.subr.mxu0 0.0
    %6044 = vmatpush2.msra.mxu0 0.0
    %6045 = vmatprep.subr.mxu0 0.0
    %6046 = vmatpush2.msra.mxu0 0.0
    %6047 = vmatprep.subr.mxu0 0.0
    %6048 = vmatpush2.msra.mxu0 0.0
    %6049 = vmatprep.subr.mxu0 0.0
    %6050 = vmatpush2.msra.mxu0 0.0
    %6051 = vmatprep.subr.mxu0 0.0
    %6052 = vmatpush2.msra.mxu0 0.0
    %6053 = vmatprep.mubr.f32.mxu0 0.0
    %6054 = vmatmul.mubr.f32.gmra.mxu0 %v5979
    %v6055 = vpop.f32.mrf.mxu0
    %v6056 = vadd.f32 0.0, %v6055
    %v6057 = vpop.f32.mrf.mxu0
    %6058 = vdwg.mxu0
    %6059 = vmatprep.subr.mxu0 0.0
    %6060 = vmatpush1.msra.mxu0 %v2203
    %6061 = vmatprep.subr.mxu0 0.0
    %6062 = vmatpush1.msra.mxu0 %v2202
    %6063 = vmatprep.subr.mxu0 0.0
    %6064 = vmatpush1.msra.mxu0 %v2201
    %6065 = vmatprep.subr.mxu0 0.0
    %6066 = vmatpush1.msra.mxu0 %v2200
    %6067 = vmatprep.subr.mxu0 0.0
    %6068 = vmatpush1.msra.mxu0 %v2199
    %6069 = vmatprep.subr.mxu0 0.0
    %6070 = vmatpush1.msra.mxu0 %v2198
    %6071 = vmatprep.subr.mxu0 0.0
    %6072 = vmatpush1.msra.mxu0 %v2197
    %6073 = vmatprep.subr.mxu0 0.0
    %6074 = vmatpush1.msra.mxu0 %v2196
    %6075 = vmatprep.subr.mxu0 0.0
    %6076 = vmatpush1.msra.mxu0 %v2195
    %6077 = vmatprep.subr.mxu0 0.0
    %6078 = vmatpush1.msra.mxu0 %v2194
    %6079 = vmatprep.subr.mxu0 0.0
    %6080 = vmatpush1.msra.mxu0 %v2193
    %6081 = vmatprep.subr.mxu0 0.0
    %6082 = vmatpush1.msra.mxu0 %v2192
    %6083 = vmatprep.subr.mxu0 0.0
    %6084 = vmatpush1.msra.mxu0 %v2191
    %6085 = vmatprep.subr.mxu0 0.0
    %6086 = vmatpush1.msra.mxu0 %v2190
    %6087 = vmatprep.subr.mxu0 0.0
    %6088 = vmatpush1.msra.mxu0 %v2189
    %6089 = vmatprep.subr.mxu0 0.0
    %6090 = vmatpush1.msra.mxu0 %v2188
    %6091 = vmatprep.subr.mxu0 0.0
    %6092 = vmatpush2.msra.mxu0 0.0
    %6093 = vmatprep.subr.mxu0 0.0
    %6094 = vmatpush2.msra.mxu0 0.0
    %6095 = vmatprep.subr.mxu0 0.0
    %6096 = vmatpush2.msra.mxu0 0.0
    %6097 = vmatprep.subr.mxu0 0.0
    %6098 = vmatpush2.msra.mxu0 0.0
    %6099 = vmatprep.subr.mxu0 0.0
    %6100 = vmatpush2.msra.mxu0 0.0
    %6101 = vmatprep.subr.mxu0 0.0
    %6102 = vmatpush2.msra.mxu0 0.0
    %6103 = vmatprep.subr.mxu0 0.0
    %6104 = vmatpush2.msra.mxu0 0.0
    %6105 = vmatprep.subr.mxu0 0.0
    %6106 = vmatpush2.msra.mxu0 0.0
    %6107 = vmatprep.subr.mxu0 0.0
    %6108 = vmatpush2.msra.mxu0 0.0
    %6109 = vmatprep.subr.mxu0 0.0
    %6110 = vmatpush2.msra.mxu0 0.0
    %6111 = vmatprep.subr.mxu0 0.0
    %6112 = vmatpush2.msra.mxu0 0.0
    %6113 = vmatprep.subr.mxu0 0.0
    %6114 = vmatpush2.msra.mxu0 0.0
    %6115 = vmatprep.subr.mxu0 0.0
    %6116 = vmatpush2.msra.mxu0 0.0
    %6117 = vmatprep.subr.mxu0 0.0
    %6118 = vmatpush2.msra.mxu0 0.0
    %6119 = vmatprep.subr.mxu0 0.0
    %6120 = vmatpush2.msra.mxu0 0.0
    %6121 = vmatprep.subr.mxu0 0.0
    %6122 = vmatpush2.msra.mxu0 0.0
    %6123 = vmatprep.mubr.f32.mxu0 0.0
    %6124 = vmatmul.mubr.f32.gmra.mxu0 %v5986
    %v6125 = vpop.f32.mrf.mxu0
    %v6126 = vadd.f32 0.0, %v6125
    %v6127 = vpop.f32.mrf.mxu0
    %6128 = vdwg.mxu0
    %v6129 = vmul.f32 %v6056, 0.1
    %v6130 = vmul.f32 %v6126, 0.1
    %v6133 = vrot.slane %v6130, 7
    %v6134 = vsel %vm365, %v6133, %v6129
    %v6136 = vsel %vm2810, %v6134, -inf
    %6137 = vmax.xlane.f32.xlu0 %v6136
    %v6138 = vpop.xlane.xlu0 %6137
    %v6140 = vrot.slane %v6138, 1
    %v6143 = vsub.f32 %v6129, %v6138
    %v6144 = vsub.f32 %v6130, %v6140
    %v6145 = vmul.f32 %v6143, 1.442695
    %v6146 = vpow.pop %v6145
    %v6147 = vmul.f32 %v6144, 1.442695
    %v6148 = vpow.pop %v6147
    %v6151 = vrot.slane %v6148, 7
    %v6152 = vsel %vm365, %v6151, %v6146
    %v6154 = vsel %vm2810, %v6152, 0.0
    %6155 = vadd.xlane.f32.xlu0 %v6154
    %v6156 = vpop.xlane.xlu0 %6155
    %v6158 = vrot.slane %v6156, 1
    %v6161 = vrcp.pop %v6156
    %v6162 = vmul.f32 %v6146, %v6161
    %v6163 = vrcp.pop %v6158
    %v6164 = vmul.f32 %v6148, %v6163
    %v6166 = vsel %vm2840, %v6162, 0
    %6168 = vmatprep.subr.mxu0 0.0
    %6169 = vmatpush1.msra.mxu0 0.0
    %6170 = vmatprep.subr.mxu0 0.0
    %6171 = vmatpush1.msra.mxu0 0.0
    %6172 = vmatprep.subr.mxu0 0.0
    %6173 = vmatpush1.msra.mxu0 0.0
    %6174 = vmatprep.subr.mxu0 0.0
    %6175 = vmatpush1.msra.mxu0 0.0
    %6176 = vmatprep.subr.mxu0 0.0
    %6177 = vmatpush1.msra.mxu0 0.0
    %6178 = vmatprep.subr.mxu0 0.0
    %6179 = vmatpush1.msra.mxu0 0.0
    %6180 = vmatprep.subr.mxu0 0.0
    %6181 = vmatpush1.msra.mxu0 0.0
    %6182 = vmatprep.subr.mxu0 0.0
    %6183 = vmatpush1.msra.mxu0 0.0
    %6184 = vmatprep.subr.mxu0 0.0
    %6185 = vmatpush1.msra.mxu0 0.0
    %6186 = vmatprep.subr.mxu0 0.0
    %6187 = vmatpush1.msra.mxu0 0.0
    %6188 = vmatprep.subr.mxu0 0.0
    %6189 = vmatpush1.msra.mxu0 0.0
    %6190 = vmatprep.subr.mxu0 0.0
    %6191 = vmatpush1.msra.mxu0 0.0
    %6192 = vmatprep.subr.mxu0 0.0
    %6193 = vmatpush1.msra.mxu0 0.0
    %6194 = vmatprep.subr.mxu0 0.0
    %6195 = vmatpush1.msra.mxu0 0.0
    %6196 = vmatprep.subr.mxu0 0.0
    %6197 = vmatpush1.msra.mxu0 0.0
    %6198 = vmatprep.subr.mxu0 %v2302
    %6199 = vmatpush1.msra.mxu0 %v2300
    %6200 = vmatprep.subr.mxu0 0.0
    %6201 = vmatpush2.msra.mxu0 0.0
    %6202 = vmatprep.subr.mxu0 0.0
    %6203 = vmatpush2.msra.mxu0 0.0
    %6204 = vmatprep.subr.mxu0 0.0
    %6205 = vmatpush2.msra.mxu0 0.0
    %6206 = vmatprep.subr.mxu0 0.0
    %6207 = vmatpush2.msra.mxu0 0.0
    %6208 = vmatprep.subr.mxu0 0.0
    %6209 = vmatpush2.msra.mxu0 0.0
    %6210 = vmatprep.subr.mxu0 0.0
    %6211 = vmatpush2.msra.mxu0 0.0
    %6212 = vmatprep.subr.mxu0 0.0
    %6213 = vmatpush2.msra.mxu0 0.0
    %6214 = vmatprep.subr.mxu0 0.0
    %6215 = vmatpush2.msra.mxu0 0.0
    %6216 = vmatprep.subr.mxu0 0.0
    %6217 = vmatpush2.msra.mxu0 0.0
    %6218 = vmatprep.subr.mxu0 0.0
    %6219 = vmatpush2.msra.mxu0 0.0
    %6220 = vmatprep.subr.mxu0 0.0
    %6221 = vmatpush2.msra.mxu0 0.0
    %6222 = vmatprep.subr.mxu0 0.0
    %6223 = vmatpush2.msra.mxu0 0.0
    %6224 = vmatprep.subr.mxu0 0.0
    %6225 = vmatpush2.msra.mxu0 0.0
    %6226 = vmatprep.subr.mxu0 0.0
    %6227 = vmatpush2.msra.mxu0 0.0
    %6228 = vmatprep.subr.mxu0 0.0
    %6229 = vmatpush2.msra.mxu0 0.0
    %6230 = vmatprep.subr.mxu0 0.0
    %6231 = vmatpush2.msra.mxu0 0.0
    %6232 = vmatprep.mubr.f32.mxu0 0.0
    %6233 = vmatmul.mubr.f32.gmra.mxu0 %v6166
    %v6234 = vpop.f32.mrf.mxu0
    %v6235 = vadd.f32 0.0, %v6234
    %v6236 = vpop.f32.mrf.mxu0
    %v6237 = vadd.f32 0.0, %v6236
    %6238 = vdwg.mxu0
    %v6240 = vsel %vm2840, %v6164, 0
    %6242 = vmatprep.subr.mxu0 0.0
    %6243 = vmatpush1.msra.mxu0 0.0
    %6244 = vmatprep.subr.mxu0 0.0
    %6245 = vmatpush1.msra.mxu0 0.0
    %6246 = vmatprep.subr.mxu0 0.0
    %6247 = vmatpush1.msra.mxu0 0.0
    %6248 = vmatprep.subr.mxu0 0.0
    %6249 = vmatpush1.msra.mxu0 0.0
    %6250 = vmatprep.subr.mxu0 0.0
    %6251 = vmatpush1.msra.mxu0 0.0
    %6252 = vmatprep.subr.mxu0 0.0
    %6253 = vmatpush1.msra.mxu0 0.0
    %6254 = vmatprep.subr.mxu0 0.0
    %6255 = vmatpush1.msra.mxu0 0.0
    %6256 = vmatprep.subr.mxu0 0.0
    %6257 = vmatpush1.msra.mxu0 0.0
    %6258 = vmatprep.subr.mxu0 0.0
    %6259 = vmatpush1.msra.mxu0 0.0
    %6260 = vmatprep.subr.mxu0 0.0
    %6261 = vmatpush1.msra.mxu0 0.0
    %6262 = vmatprep.subr.mxu0 0.0
    %6263 = vmatpush1.msra.mxu0 0.0
    %6264 = vmatprep.subr.mxu0 0.0
    %6265 = vmatpush1.msra.mxu0 0.0
    %6266 = vmatprep.subr.mxu0 0.0
    %6267 = vmatpush1.msra.mxu0 0.0
    %6268 = vmatprep.subr.mxu0 0.0
    %6269 = vmatpush1.msra.mxu0 0.0
    %6270 = vmatprep.subr.mxu0 0.0
    %6271 = vmatpush1.msra.mxu0 0.0
    %6272 = vmatprep.subr.mxu0 %v2308
    %6273 = vmatpush1.msra.mxu0 %v2306
    %6274 = vmatprep.subr.mxu0 0.0
    %6275 = vmatpush2.msra.mxu0 0.0
    %6276 = vmatprep.subr.mxu0 0.0
    %6277 = vmatpush2.msra.mxu0 0.0
    %6278 = vmatprep.subr.mxu0 0.0
    %6279 = vmatpush2.msra.mxu0 0.0
    %6280 = vmatprep.subr.mxu0 0.0
    %6281 = vmatpush2.msra.mxu0 0.0
    %6282 = vmatprep.subr.mxu0 0.0
    %6283 = vmatpush2.msra.mxu0 0.0
    %6284 = vmatprep.subr.mxu0 0.0
    %6285 = vmatpush2.msra.mxu0 0.0
    %6286 = vmatprep.subr.mxu0 0.0
    %6287 = vmatpush2.msra.mxu0 0.0
    %6288 = vmatprep.subr.mxu0 0.0
    %6289 = vmatpush2.msra.mxu0 0.0
    %6290 = vmatprep.subr.mxu0 0.0
    %6291 = vmatpush2.msra.mxu0 0.0
    %6292 = vmatprep.subr.mxu0 0.0
    %6293 = vmatpush2.msra.mxu0 0.0
    %6294 = vmatprep.subr.mxu0 0.0
    %6295 = vmatpush2.msra.mxu0 0.0
    %6296 = vmatprep.subr.mxu0 0.0
    %6297 = vmatpush2.msra.mxu0 0.0
    %6298 = vmatprep.subr.mxu0 0.0
    %6299 = vmatpush2.msra.mxu0 0.0
    %6300 = vmatprep.subr.mxu0 0.0
    %6301 = vmatpush2.msra.mxu0 0.0
    %6302 = vmatprep.subr.mxu0 0.0
    %6303 = vmatpush2.msra.mxu0 0.0
    %6304 = vmatprep.subr.mxu0 0.0
    %6305 = vmatpush2.msra.mxu0 0.0
    %6306 = vmatprep.mubr.f32.mxu0 0.0
    %6307 = vmatmul.mubr.f32.gmra.mxu0 %v6240
    %v6308 = vpop.f32.mrf.mxu0
    %v6309 = vadd.f32 0.0, %v6308
    %v6310 = vpop.f32.mrf.mxu0
    %v6311 = vadd.f32 0.0, %v6310
    %6312 = vdwg.mxu0
    %v6317 = vrot.slane %v6309, 7
    %v6318 = vsel %vm365, %v6317, %v6235
    %v6319 = vrot.slane %v6311, 7
    %v6320 = vsel %vm365, %v6319, %v6237
    %6323 = vmatprep.subr.mxu0 0.0
    %6324 = vmatpush1.msra.mxu0 %v2522
    %6325 = vmatprep.subr.mxu0 0.0
    %6326 = vmatpush1.msra.mxu0 %v2521
    %6327 = vmatprep.subr.mxu0 0.0
    %6328 = vmatpush1.msra.mxu0 %v2520
    %6329 = vmatprep.subr.mxu0 0.0
    %6330 = vmatpush1.msra.mxu0 %v2519
    %6331 = vmatprep.subr.mxu0 0.0
    %6332 = vmatpush1.msra.mxu0 %v2518
    %6333 = vmatprep.subr.mxu0 0.0
    %6334 = vmatpush1.msra.mxu0 %v2517
    %6335 = vmatprep.subr.mxu0 0.0
    %6336 = vmatpush1.msra.mxu0 %v2516
    %6337 = vmatprep.subr.mxu0 0.0
    %6338 = vmatpush1.msra.mxu0 %v2515
    %6339 = vmatprep.subr.mxu0 0.0
    %6340 = vmatpush1.msra.mxu0 %v2514
    %6341 = vmatprep.subr.mxu0 0.0
    %6342 = vmatpush1.msra.mxu0 %v2513
    %6343 = vmatprep.subr.mxu0 0.0
    %6344 = vmatpush1.msra.mxu0 %v2512
    %6345 = vmatprep.subr.mxu0 0.0
    %6346 = vmatpush1.msra.mxu0 %v2511
    %6347 = vmatprep.subr.mxu0 0.0
    %6348 = vmatpush1.msra.mxu0 %v2510
    %6349 = vmatprep.subr.mxu0 0.0
    %6350 = vmatpush1.msra.mxu0 %v2509
    %6351 = vmatprep.subr.mxu0 0.0
    %6352 = vmatpush1.msra.mxu0 %v2508
    %6353 = vmatprep.subr.mxu0 0.0
    %6354 = vmatpush1.msra.mxu0 %v2507
    %6355 = vmatprep.subr.mxu0 0.0
    %6356 = vmatpush2.msra.mxu0 %v2538
    %6357 = vmatprep.subr.mxu0 0.0
    %6358 = vmatpush2.msra.mxu0 %v2537
    %6359 = vmatprep.subr.mxu0 0.0
    %6360 = vmatpush2.msra.mxu0 %v2536
    %6361 = vmatprep.subr.mxu0 0.0
    %6362 = vmatpush2.msra.mxu0 %v2535
    %6363 = vmatprep.subr.mxu0 0.0
    %6364 = vmatpush2.msra.mxu0 %v2534
    %6365 = vmatprep.subr.mxu0 0.0
    %6366 = vmatpush2.msra.mxu0 %v2533
    %6367 = vmatprep.subr.mxu0 0.0
    %6368 = vmatpush2.msra.mxu0 %v2532
    %6369 = vmatprep.subr.mxu0 0.0
    %6370 = vmatpush2.msra.mxu0 %v2531
    %6371 = vmatprep.subr.mxu0 0.0
    %6372 = vmatpush2.msra.mxu0 %v2530
    %6373 = vmatprep.subr.mxu0 0.0
    %6374 = vmatpush2.msra.mxu0 %v2529
    %6375 = vmatprep.subr.mxu0 0.0
    %6376 = vmatpush2.msra.mxu0 %v2528
    %6377 = vmatprep.subr.mxu0 0.0
    %6378 = vmatpush2.msra.mxu0 %v2527
    %6379 = vmatprep.subr.mxu0 0.0
    %6380 = vmatpush2.msra.mxu0 %v2526
    %6381 = vmatprep.subr.mxu0 0.0
    %6382 = vmatpush2.msra.mxu0 %v2525
    %6383 = vmatprep.subr.mxu0 0.0
    %6384 = vmatpush2.msra.mxu0 %v2524
    %6385 = vmatprep.subr.mxu0 0.0
    %6386 = vmatpush2.msra.mxu0 %v2523
    %6387 = vmatprep.mubr.f32.mxu0 %v6320
    %6388 = vmatmul.mubr.f32.gmra.mxu0 %v6318
    %v6389 = vpop.f32.mrf.mxu0
    %v6390 = vadd.f32 0.0, %v6389
    %v6391 = vpop.f32.mrf.mxu0
    %6392 = vdwg.mxu0
    %v6395 = vunpack.c.l.s4 1983009808
    %v6396 = vunpack.c.0.s8 %v6395
    %v6397 = vlaneseq
    %v6398 = vshrl.u32 %v6397, 7
    %v6399 = vsub.s32 %v6396, %v6398
    %v6400 = vrot.slane %v6390, %v6399
    %v6401 = vrot.slane %v6400, 7
    %v6404 = vadd.f32 %v2486, %v6401
    %v6405 = vadd.f32 %v2496, %v6400
    %6406 = vmatprep.subr.mxu0 0.0
    %6407 = vmatpush1.msra.mxu0 0.0
    %6408 = vmatprep.subr.mxu0 0.0
    %6409 = vmatpush1.msra.mxu0 0.0
    %6410 = vmatprep.subr.mxu0 0.0
    %6411 = vmatpush1.msra.mxu0 0.0
    %6412 = vmatprep.subr.mxu0 0.0
    %6413 = vmatpush1.msra.mxu0 0.0
    %6414 = vmatprep.subr.mxu0 0.0
    %6415 = vmatpush1.msra.mxu0 0.0
    %6416 = vmatprep.subr.mxu0 0.0
    %6417 = vmatpush1.msra.mxu0 0.0
    %6418 = vmatprep.subr.mxu0 0.0
    %6419 = vmatpush1.msra.mxu0 0.0
    %6420 = vmatprep.subr.mxu0 0.0
    %6421 = vmatpush1.msra.mxu0 0.0
    %6422 = vmatprep.subr.mxu0 0.0
    %6423 = vmatpush1.msra.mxu0 0.0
    %6424 = vmatprep.subr.mxu0 0.0
    %6425 = vmatpush1.msra.mxu0 0.0
    %6426 = vmatprep.subr.mxu0 0.0
    %6427 = vmatpush1.msra.mxu0 0.0
    %6428 = vmatprep.subr.mxu0 0.0
    %6429 = vmatpush1.msra.mxu0 0.0
    %6430 = vmatprep.subr.mxu0 0.0
    %6431 = vmatpush1.msra.mxu0 %v2542
    %6432 = vmatprep.subr.mxu0 0.0
    %6433 = vmatpush1.msra.mxu0 %v2541
    %6434 = vmatprep.subr.mxu0 0.0
    %6435 = vmatpush1.msra.mxu0 %v2540
    %6436 = vmatprep.subr.mxu0 0.0
    %6437 = vmatpush1.msra.mxu0 %v2539
    %6438 = vmatprep.subr.mxu0 0.0
    %6439 = vmatpush2.msra.mxu0 0.0
    %6440 = vmatprep.subr.mxu0 0.0
    %6441 = vmatpush2.msra.mxu0 0.0
    %6442 = vmatprep.subr.mxu0 0.0
    %6443 = vmatpush2.msra.mxu0 0.0
    %6444 = vmatprep.subr.mxu0 0.0
    %6445 = vmatpush2.msra.mxu0 0.0
    %6446 = vmatprep.subr.mxu0 0.0
    %6447 = vmatpush2.msra.mxu0 0.0
    %6448 = vmatprep.subr.mxu0 0.0
    %6449 = vmatpush2.msra.mxu0 0.0
    %6450 = vmatprep.subr.mxu0 0.0
    %6451 = vmatpush2.msra.mxu0 0.0
    %6452 = vmatprep.subr.mxu0 0.0
    %6453 = vmatpush2.msra.mxu0 0.0
    %6454 = vmatprep.subr.mxu0 0.0
    %6455 = vmatpush2.msra.mxu0 0.0
    %6456 = vmatprep.subr.mxu0 0.0
    %6457 = vmatpush2.msra.mxu0 0.0
    %6458 = vmatprep.subr.mxu0 0.0
    %6459 = vmatpush2.msra.mxu0 0.0
    %6460 = vmatprep.subr.mxu0 0.0
    %6461 = vmatpush2.msra.mxu0 0.0
    %6462 = vmatprep.subr.mxu0 0.0
    %6463 = vmatpush2.msra.mxu0 0.0
    %6464 = vmatprep.subr.mxu0 0.0
    %6465 = vmatpush2.msra.mxu0 0.0
    %6466 = vmatprep.subr.mxu0 0.0
    %6467 = vmatpush2.msra.mxu0 0.0
    %6468 = vmatprep.subr.mxu0 0.0
    %6469 = vmatpush2.msra.mxu0 0.0
    %6470 = vmatprep.mubr.f32.mxu0 0.0
    %6471 = vmatmul.mubr.f32.gmra.mxu0 %v5892
    %v6472 = vpop.f32.mrf.mxu0
    %v6473 = vadd.f32 %v2557, %v6472
    %v6474 = vpop.f32.mrf.mxu0
    %6475 = vdwg.mxu0
    %v6478 = vunpack.c.l.s4 1983009808
    %v6479 = vunpack.c.0.s8 %v6478
    %v6480 = vlaneseq
    %v6481 = vshrl.u32 %v6480, 7
    %v6482 = vsub.s32 %v6479, %v6481
    %v6483 = vrot.slane %v6473, %v6482
    %v6484 = vrot.slane %v6483, 7
    %v6487 = vadd.f32 %v6404, %v6484
    %v6488 = vadd.f32 %v6405, %v6483
    %v6489 = vxor.u32 %v6487, 2147483648
    %v6490 = vxor.u32 %v6488, 2147483648
    %v6491 = vmul.f32 %v6489, 1.442695
    %v6492 = vpow.pop %v6491
    %v6493 = vmul.f32 %v6490, 1.442695
    %v6494 = vpow.pop %v6493
    %v6495 = vadd.f32 %v6492, 1.0
    %v6496 = vadd.f32 %v6494, 1.0
    %v6497 = vrcp.pop %v6495
    %v6498 = vmul.f32 1.0, %v6497
    %v6499 = vrcp.pop %v6496
    %v6500 = vmul.f32 1.0, %v6499
    %6501 = vrot.lane.b32.xlu0 %v6484, 64
    %v6502 = vpop.permute.xlu0 %6501
    %6503 = vrot.lane.b32.xlu0 %v6483, 64
    %v6504 = vpop.permute.xlu0 %6503
    %v6507 = vmul.f32 %v6498, %v6502
    %v6508 = vmul.f32 %v6500, %v6504
    %6511 = vrot.lane.b32.xlu0 %v6507, 64
    %v6512 = vpop.permute.xlu0 %6511
    %6513 = vrot.lane.b32.xlu0 %v6508, 64
    %v6514 = vpop.permute.xlu0 %6513
    %v6517 = vadd.f32 %v6404, %v6512
    %v6518 = vadd.f32 %v6405, %v6514
    %v6519 = vtanh.pop %v6517
    %v6520 = vtanh.pop %v6518
    %v6521 = vsub.f32 1.0, %v6498
    %v6522 = vsub.f32 1.0, %v6500
    %6525 = vrot.lane.b32.xlu0 %v6519, 96
    %v6526 = vpop.permute.xlu0 %6525
    %6527 = vrot.lane.b32.xlu0 %v6520, 96
    %v6528 = vpop.permute.xlu0 %6527
    %v6531 = vmul.f32 %v6521, %v6526
    %v6532 = vmul.f32 %v6522, %v6528
    %v6533 = vrot.slane %v5877, 7
    %v6534 = vrot.slane %v5878, 7
    %v6537 = vmul.f32 %v6498, %v6533
    %v6538 = vmul.f32 %v6500, %v6534
    %v6539 = vadd.f32 %v6531, %v6537
    %v6540 = vadd.f32 %v6532, %v6538
    %v6549 = vlaneseq
    %v6550 = vshrl.u32 %v6549, 7
    %v6551 = vsub.s32 1, %v6550
    %v6552 = vrot.slane %v6539, %v6551
    %v6553 = vlaneseq
    %v6554 = vshrl.u32 %v6553, 7
    %v6555 = vsub.s32 1, %v6554
    %v6556 = vrot.slane %v6540, %v6555
    %v6559 = vsel %vm1990, %v3225, %v3887
    %v6560 = vsel %vm1990, %v3226, %v3888
    %v6561 = vsel %vm1993, %v6559, %v4558
    %v6562 = vsel %vm1993, %v6560, %v4562
    %v6563 = vsel %vm1996, %v6561, %v5220
    %v6564 = vsel %vm1996, %v6562, %v5224
    %v6565 = vsel %vm1999, %v6563, %v5884
    %v6566 = vsel %vm1999, %v6564, %v5888
    %v6567 = vsel %vm2002, %v6565, %v6552
    %v6568 = vsel %vm2002, %v6566, %v6556
    %v6571 = vcombine.high %v6567, %v6567
    %v6573 = vunpack.c.l.s4 1983009808
    %v6574 = vunpack.c.0.s8 %v6573
    %v6575 = vlaneseq
    %v6576 = vshrl.u32 %v6575, 7
    %v6577 = vsub.s32 %v6574, %v6576
    %v6578 = vrot.slane %v6567, %v6577
    %v6580 = vunpack.c.l.s4 1983009808
    %v6581 = vunpack.c.0.s8 %v6580
    %v6582 = vlaneseq
    %v6583 = vshrl.u32 %v6582, 7
    %v6584 = vsub.s32 %v6581, %v6583
    %v6585 = vrot.slane %v6571, %v6584
    %v6586 = vcombine.high %v6578, %v6578
    %v6587 = vcombine.high %v6568, %v6568
    %v6589 = vunpack.c.l.s4 1983009808
    %v6590 = vunpack.c.0.s8 %v6589
    %v6591 = vlaneseq
    %v6592 = vshrl.u32 %v6591, 7
    %v6593 = vsub.s32 %v6590, %v6592
    %v6594 = vrot.slane %v6568, %v6593
    %v6596 = vunpack.c.l.s4 1983009808
    %v6597 = vunpack.c.0.s8 %v6596
    %v6598 = vlaneseq
    %v6599 = vshrl.u32 %v6598, 7
    %v6600 = vsub.s32 %v6597, %v6599
    %v6601 = vrot.slane %v6587, %v6600
    %v6602 = vcombine.high %v6594, %v6594
    %v6603 = vld [vmem:[#allocation2 + $0x4b0] sm:$0xff]
    %v6604 = vld [vmem:[#allocation2 + $0x4c0] sm:$0xff]
    %v6605 = vld [vmem:[#allocation2 + $0x4d0] sm:$0xff]
    %v6606 = vld [vmem:[#allocation2 + $0x4e0] sm:$0xff]
    %s6607 = scalar_lea.vmem [#allocation2], 1264
    %v6608 = vld [vmem:[%s6607] ss:$8 sm:$0x3]
    %v6610 = vlaneseq
    %v6611 = vshrl.u32 %v6610, 7
    %v6612 = vsub.s32 0, %v6611
    %v6613 = vrot.slane %v6608, %v6612
    %v6615 = vcombine.low %v6578, %v6586
    %v6616 = vcombine.low %v6585, %v6594
    %v6618 = vunpack.c.l.s4 1983009808
    %v6619 = vunpack.c.0.s8 %v6618
    %v6620 = vlaneseq
    %v6621 = vshrl.u32 %v6620, 7
    %v6622 = vsub.s32 %v6619, %v6621
    %v6623 = vrot.slane %v6615, %v6622
    %v6625 = vunpack.c.l.s4 1983009808
    %v6626 = vunpack.c.0.s8 %v6625
    %v6627 = vlaneseq
    %v6628 = vshrl.u32 %v6627, 7
    %v6629 = vsub.s32 %v6626, %v6628
    %v6630 = vrot.slane %v6616, %v6629
    %v6631 = vcombine.low %v6623, %v6630
    %v6632 = vcombine.low %v6602, %v6601
    %v6634 = vunpack.c.l.s4 1983009808
    %v6635 = vunpack.c.0.s8 %v6634
    %v6636 = vlaneseq
    %v6637 = vshrl.u32 %v6636, 7
    %v6638 = vsub.s32 %v6635, %v6637
    %v6639 = vrot.slane %v6632, %v6638
    %6640 = vrot.lane.b32.xlu0 %v6631, 96
    %v6641 = vpop.permute.xlu0 %6640
    %6642 = vrot.lane.b32.xlu0 %v6639, 96
    %v6643 = vpop.permute.xlu0 %6642
    %v6644 = vsel %vm378, %v6641, 0
    %v6646 = vsel %vm378, %v6643, 0
    %6648 = vmatprep.subr.mxu0 0.0
    %6649 = vmatpush1.msra.mxu0 0.0
    %6650 = vmatprep.subr.mxu0 0.0
    %6651 = vmatpush1.msra.mxu0 0.0
    %6652 = vmatprep.subr.mxu0 0.0
    %6653 = vmatpush1.msra.mxu0 0.0
    %6654 = vmatprep.subr.mxu0 0.0
    %6655 = vmatpush1.msra.mxu0 0.0
    %6656 = vmatprep.subr.mxu0 0.0
    %6657 = vmatpush1.msra.mxu0 0.0
    %6658 = vmatprep.subr.mxu0 0.0
    %6659 = vmatpush1.msra.mxu0 0.0
    %6660 = vmatprep.subr.mxu0 0.0
    %6661 = vmatpush1.msra.mxu0 0.0
    %6662 = vmatprep.subr.mxu0 0.0
    %6663 = vmatpush1.msra.mxu0 0.0
    %6664 = vmatprep.subr.mxu0 0.0
    %6665 = vmatpush1.msra.mxu0 0.0
    %6666 = vmatprep.subr.mxu0 0.0
    %6667 = vmatpush1.msra.mxu0 0.0
    %6668 = vmatprep.subr.mxu0 0.0
    %6669 = vmatpush1.msra.mxu0 0.0
    %6670 = vmatprep.subr.mxu0 0.0
    %6671 = vmatpush1.msra.mxu0 0.0
    %6672 = vmatprep.subr.mxu0 0.0
    %6673 = vmatpush1.msra.mxu0 %v6606
    %6674 = vmatprep.subr.mxu0 0.0
    %6675 = vmatpush1.msra.mxu0 %v6605
    %6676 = vmatprep.subr.mxu0 0.0
    %6677 = vmatpush1.msra.mxu0 %v6604
    %6678 = vmatprep.subr.mxu0 0.0
    %6679 = vmatpush1.msra.mxu0 %v6603
    %6680 = vmatprep.subr.mxu0 0.0
    %6681 = vmatpush2.msra.mxu0 0.0
    %6682 = vmatprep.subr.mxu0 0.0
    %6683 = vmatpush2.msra.mxu0 0.0
    %6684 = vmatprep.subr.mxu0 0.0
    %6685 = vmatpush2.msra.mxu0 0.0
    %6686 = vmatprep.subr.mxu0 0.0
    %6687 = vmatpush2.msra.mxu0 0.0
    %6688 = vmatprep.subr.mxu0 0.0
    %6689 = vmatpush2.msra.mxu0 0.0
    %6690 = vmatprep.subr.mxu0 0.0
    %6691 = vmatpush2.msra.mxu0 0.0
    %6692 = vmatprep.subr.mxu0 0.0
    %6693 = vmatpush2.msra.mxu0 0.0
    %6694 = vmatprep.subr.mxu0 0.0
    %6695 = vmatpush2.msra.mxu0 0.0
    %6696 = vmatprep.subr.mxu0 0.0
    %6697 = vmatpush2.msra.mxu0 0.0
    %6698 = vmatprep.subr.mxu0 0.0
    %6699 = vmatpush2.msra.mxu0 0.0
    %6700 = vmatprep.subr.mxu0 0.0
    %6701 = vmatpush2.msra.mxu0 0.0
    %6702 = vmatprep.subr.mxu0 0.0
    %6703 = vmatpush2.msra.mxu0 0.0
    %6704 = vmatprep.subr.mxu0 0.0
    %6705 = vmatpush2.msra.mxu0 0.0
    %6706 = vmatprep.subr.mxu0 0.0
    %6707 = vmatpush2.msra.mxu0 0.0
    %6708 = vmatprep.subr.mxu0 0.0
    %6709 = vmatpush2.msra.mxu0 0.0
    %6710 = vmatprep.subr.mxu0 0.0
    %6711 = vmatpush2.msra.mxu0 0.0
    %6712 = vmatprep.mubr.f32.mxu0 0.0
    %6713 = vmatmul.mubr.f32.gmra.mxu0 %v6644
    %v6714 = vpop.f32.mrf.mxu0
    %v6715 = vadd.f32 %v6613, %v6714
    %v6716 = vpop.f32.mrf.mxu0
    %6717 = vmatprep.mubr.f32.mxu0 0.0
    %6718 = vmatmul.mubr.f32.gmra.mxu0 %v6646
    %v6719 = vpop.f32.mrf.mxu0
    %v6720 = vadd.f32 %v6613, %v6719
    %v6721 = vpop.f32.mrf.mxu0
    %6722 = vdwg.mxu0
    %v6725 = vcombine.high %v6715, %v6715
    %v6727 = vunpack.c.l.s4 1983009808
    %v6728 = vunpack.c.0.s8 %v6727
    %v6729 = vlaneseq
    %v6730 = vshrl.u32 %v6729, 7
    %v6731 = vsub.s32 %v6728, %v6730
    %v6732 = vrot.slane %v6715, %v6731
    %v6734 = vunpack.c.l.s4 1983009808
    %v6735 = vunpack.c.0.s8 %v6734
    %v6736 = vlaneseq
    %v6737 = vshrl.u32 %v6736, 7
    %v6738 = vsub.s32 %v6735, %v6737
    %v6739 = vrot.slane %v6725, %v6738
    %v6740 = vcombine.high %v6732, %v6732
    %v6741 = vcombine.high %v6739, %v6739
    %v6743 = vunpack.c.l.s4 1983009808
    %v6744 = vunpack.c.0.s8 %v6743
    %v6745 = vlaneseq
    %v6746 = vshrl.u32 %v6745, 7
    %v6747 = vsub.s32 %v6744, %v6746
    %v6748 = vrot.slane %v6720, %v6747
    %v6749 = vcombine.high %v6748, %v6748
    %v6756 = vcombine.low %v6732, %v6740
    %v6758 = vunpack.c.l.s4 1983009808
    %v6759 = vunpack.c.0.s8 %v6758
    %v6760 = vlaneseq
    %v6761 = vshrl.u32 %v6760, 7
    %v6762 = vsub.s32 %v6759, %v6761
    %v6763 = vrot.slane %v6756, %v6762
    %v6765 = vunpack.c.l.s4 1983009808
    %v6766 = vunpack.c.0.s8 %v6765
    %v6767 = vlaneseq
    %v6768 = vshrl.u32 %v6767, 7
    %v6769 = vsub.s32 %v6766, %v6768
    %v6770 = vrot.slane %v6739, %v6769
    %v6771 = vcombine.low %v6763, %v6770
    %v6772 = vcombine.low %v6741, %v6748
    %v6774 = vunpack.c.l.s4 1983009808
    %v6775 = vunpack.c.0.s8 %v6774
    %v6776 = vlaneseq
    %v6777 = vshrl.u32 %v6776, 7
    %v6778 = vsub.s32 %v6775, %v6777
    %v6779 = vrot.slane %v6772, %v6778
    %v6781 = vunpack.c.l.s4 1983009808
    %v6782 = vunpack.c.0.s8 %v6781
    %v6783 = vlaneseq
    %v6784 = vshrl.u32 %v6783, 7
    %v6785 = vsub.s32 %v6782, %v6784
    %v6786 = vrot.slane %v6749, %v6785
    %v6787 = vcombine.low %v6779, %v6786
    %vm6790 = vcmask 95232
    %v6791 = vsel %vm6790, %v6771, -inf
    %6792 = vmax.xlane.f32.xlu0 %v6791
    %v6793 = vpop.xlane.xlu0 %6792
    %v6794 = vsel %vm6790, %v6787, -inf
    %6795 = vmax.xlane.f32.xlu0 %v6794
    %v6796 = vpop.xlane.xlu0 %6795
    %v6800 = vunpack.c.l.s4 269488144
    %v6801 = vunpack.c.0.s8 %v6800
    %v6802 = vlaneseq
    %v6803 = vshrl.u32 %v6802, 7
    %v6804 = vsub.s32 %v6801, %v6803
    %v6805 = vrot.slane %v6793, %v6804
    %v6807 = vunpack.c.l.s4 842150450
    %v6808 = vunpack.c.0.s8 %v6807
    %v6809 = vlaneseq
    %v6810 = vshrl.u32 %v6809, 7
    %v6811 = vsub.s32 %v6808, %v6810
    %v6812 = vrot.slane %v6793, %v6811
    %v6814 = vunpack.c.l.s4 1414812756
    %v6815 = vunpack.c.0.s8 %v6814
    %v6816 = vlaneseq
    %v6817 = vshrl.u32 %v6816, 7
    %v6818 = vsub.s32 %v6815, %v6817
    %v6819 = vrot.slane %v6793, %v6818
    %v6821 = vunpack.c.l.s4 269488144
    %v6822 = vunpack.c.0.s8 %v6821
    %v6823 = vlaneseq
    %v6824 = vshrl.u32 %v6823, 7
    %v6825 = vsub.s32 %v6822, %v6824
    %v6826 = vrot.slane %v6796, %v6825
    %v6828 = vunpack.c.l.s4 842150450
    %v6829 = vunpack.c.0.s8 %v6828
    %v6830 = vlaneseq
    %v6831 = vshrl.u32 %v6830, 7
    %v6832 = vsub.s32 %v6829, %v6831
    %v6833 = vrot.slane %v6796, %v6832
    %v6835 = vunpack.c.l.s4 1414812756
    %v6836 = vunpack.c.0.s8 %v6835
    %v6837 = vlaneseq
    %v6838 = vshrl.u32 %v6837, 7
    %v6839 = vsub.s32 %v6836, %v6838
    %v6840 = vrot.slane %v6796, %v6839
    %v6847 = vsub.f32 %v6732, %v6805
    %v6848 = vsub.f32 %v6740, %v6812
    %v6849 = vsub.f32 %v6739, %v6819
    %v6850 = vsub.f32 %v6741, %v6826
    %v6851 = vsub.f32 %v6748, %v6833
    %v6852 = vsub.f32 %v6749, %v6840
    %v6853 = vmul.f32 %v6847, 1.442695
    %v6854 = vpow.pop %v6853
    %v6855 = vmul.f32 %v6848, 1.442695
    %v6856 = vpow.pop %v6855
    %v6857 = vmul.f32 %v6849, 1.442695
    %v6858 = vpow.pop %v6857
    %v6859 = vmul.f32 %v6850, 1.442695
    %v6860 = vpow.pop %v6859
    %v6861 = vmul.f32 %v6851, 1.442695
    %v6862 = vpow.pop %v6861
    %v6863 = vmul.f32 %v6852, 1.442695
    %v6864 = vpow.pop %v6863
    %v6871 = vcombine.low %v6854, %v6856
    %v6873 = vunpack.c.l.s4 1983009808
    %v6874 = vunpack.c.0.s8 %v6873
    %v6875 = vlaneseq
    %v6876 = vshrl.u32 %v6875, 7
    %v6877 = vsub.s32 %v6874, %v6876
    %v6878 = vrot.slane %v6871, %v6877
    %v6880 = vunpack.c.l.s4 1983009808
    %v6881 = vunpack.c.0.s8 %v6880
    %v6882 = vlaneseq
    %v6883 = vshrl.u32 %v6882, 7
    %v6884 = vsub.s32 %v6881, %v6883
    %v6885 = vrot.slane %v6858, %v6884
    %v6886 = vcombine.low %v6878, %v6885
    %v6887 = vcombine.low %v6860, %v6862
    %v6889 = vunpack.c.l.s4 1983009808
    %v6890 = vunpack.c.0.s8 %v6889
    %v6891 = vlaneseq
    %v6892 = vshrl.u32 %v6891, 7
    %v6893 = vsub.s32 %v6890, %v6892
    %v6894 = vrot.slane %v6887, %v6893
    %v6896 = vunpack.c.l.s4 1983009808
    %v6897 = vunpack.c.0.s8 %v6896
    %v6898 = vlaneseq
    %v6899 = vshrl.u32 %v6898, 7
    %v6900 = vsub.s32 %v6897, %v6899
    %v6901 = vrot.slane %v6864, %v6900
    %v6902 = vcombine.low %v6894, %v6901
    %v6905 = vsel %vm6790, %v6886, 0.0
    %6906 = vadd.xlane.f32.xlu0 %v6905
    %v6907 = vpop.xlane.xlu0 %6906
    %v6908 = vsel %vm6790, %v6902, 0.0
    %6909 = vadd.xlane.f32.xlu0 %v6908
    %v6910 = vpop.xlane.xlu0 %6909
    %v6911 = vlog2.pop %v6907
    %v6912 = vmul.f32 %v6911, 0.6931472
    %v6913 = vlog2.pop %v6910
    %v6914 = vmul.f32 %v6913, 0.6931472
    %v6915 = vadd.f32 %v6912, %v6793
    %v6916 = vadd.f32 %v6914, %v6796
    %v6920 = vunpack.c.l.s4 269488144
    %v6921 = vunpack.c.0.s8 %v6920
    %v6922 = vlaneseq
    %v6923 = vshrl.u32 %v6922, 7
    %v6924 = vsub.s32 %v6921, %v6923
    %v6925 = vrot.slane %v6915, %v6924
    %v6927 = vunpack.c.l.s4 842150450
    %v6928 = vunpack.c.0.s8 %v6927
    %v6929 = vlaneseq
    %v6930 = vshrl.u32 %v6929, 7
    %v6931 = vsub.s32 %v6928, %v6930
    %v6932 = vrot.slane %v6915, %v6931
    %v6934 = vunpack.c.l.s4 1414812756
    %v6935 = vunpack.c.0.s8 %v6934
    %v6936 = vlaneseq
    %v6937 = vshrl.u32 %v6936, 7
    %v6938 = vsub.s32 %v6935, %v6937
    %v6939 = vrot.slane %v6915, %v6938
    %v6941 = vunpack.c.l.s4 269488144
    %v6942 = vunpack.c.0.s8 %v6941
    %v6943 = vlaneseq
    %v6944 = vshrl.u32 %v6943, 7
    %v6945 = vsub.s32 %v6942, %v6944
    %v6946 = vrot.slane %v6916, %v6945
    %v6948 = vunpack.c.l.s4 842150450
    %v6949 = vunpack.c.0.s8 %v6948
    %v6950 = vlaneseq
    %v6951 = vshrl.u32 %v6950, 7
    %v6952 = vsub.s32 %v6949, %v6951
    %v6953 = vrot.slane %v6916, %v6952
    %v6955 = vunpack.c.l.s4 1414812756
    %v6956 = vunpack.c.0.s8 %v6955
    %v6957 = vlaneseq
    %v6958 = vshrl.u32 %v6957, 7
    %v6959 = vsub.s32 %v6956, %v6958
    %v6960 = vrot.slane %v6916, %v6959
    %v6967 = vsub.f32 %v6732, %v6925
    %v6968 = vsub.f32 %v6740, %v6932
    %v6969 = vsub.f32 %v6739, %v6939
    %v6970 = vsub.f32 %v6741, %v6946
    %v6971 = vsub.f32 %v6748, %v6953
    %v6972 = vsub.f32 %v6749, %v6960
    %v6973 = vcombine.high %v30, %v30
    %v6975 = vunpack.c.l.s4 1983009808
    %v6976 = vunpack.c.0.s8 %v6975
    %v6977 = vlaneseq
    %v6978 = vshrl.u32 %v6977, 7
    %v6979 = vsub.s32 %v6976, %v6978
    %v6980 = vrot.slane %v30, %v6979
    %v6982 = vunpack.c.l.s4 1983009808
    %v6983 = vunpack.c.0.s8 %v6982
    %v6984 = vlaneseq
    %v6985 = vshrl.u32 %v6984, 7
    %v6986 = vsub.s32 %v6983, %v6985
    %v6987 = vrot.slane %v6973, %v6986
    %v6988 = vcombine.high %v6980, %v6980
    %v6989 = vcombine.high %v31, %v31
    %v6991 = vunpack.c.l.s4 1983009808
    %v6992 = vunpack.c.0.s8 %v6991
    %v6993 = vlaneseq
    %v6994 = vshrl.u32 %v6993, 7
    %v6995 = vsub.s32 %v6992, %v6994
    %v6996 = vrot.slane %v31, %v6995
    %v6998 = vunpack.c.l.s4 1983009808
    %v6999 = vunpack.c.0.s8 %v6998
    %v7000 = vlaneseq
    %v7001 = vshrl.u32 %v7000, 7
    %v7002 = vsub.s32 %v6999, %v7001
    %v7003 = vrot.slane %v6989, %v7002
    %v7004 = vcombine.high %v6996, %v6996
    %v7011 = vmul.f32 %v6967, %v6980
    %v7012 = vmul.f32 %v6968, %v6988
    %v7013 = vmul.f32 %v6969, %v6987
    %v7014 = vmul.f32 %v6970, %v6996
    %v7015 = vmul.f32 %v6971, %v7004
    %v7016 = vmul.f32 %v6972, %v7003
    %v7023 = vcombine.low %v7011, %v7012
    %v7025 = vunpack.c.l.s4 1983009808
    %v7026 = vunpack.c.0.s8 %v7025
    %v7027 = vlaneseq
    %v7028 = vshrl.u32 %v7027, 7
    %v7029 = vsub.s32 %v7026, %v7028
    %v7030 = vrot.slane %v7023, %v7029
    %v7032 = vunpack.c.l.s4 1983009808
    %v7033 = vunpack.c.0.s8 %v7032
    %v7034 = vlaneseq
    %v7035 = vshrl.u32 %v7034, 7
    %v7036 = vsub.s32 %v7033, %v7035
    %v7037 = vrot.slane %v7013, %v7036
    %v7038 = vcombine.low %v7030, %v7037
    %v7039 = vcombine.low %v7014, %v7015
    %v7041 = vunpack.c.l.s4 1983009808
    %v7042 = vunpack.c.0.s8 %v7041
    %v7043 = vlaneseq
    %v7044 = vshrl.u32 %v7043, 7
    %v7045 = vsub.s32 %v7042, %v7044
    %v7046 = vrot.slane %v7039, %v7045
    %v7048 = vunpack.c.l.s4 1983009808
    %v7049 = vunpack.c.0.s8 %v7048
    %v7050 = vlaneseq
    %v7051 = vshrl.u32 %v7050, 7
    %v7052 = vsub.s32 %v7049, %v7051
    %v7053 = vrot.slane %v7016, %v7052
    %v7054 = vcombine.low %v7046, %v7053
    %v7057 = vsel %vm6790, %v7038, 0.0
    %7058 = vadd.xlane.f32.xlu0 %v7057
    %v7059 = vpop.xlane.xlu0 %7058
    %v7060 = vsel %vm6790, %v7054, 0.0
    %7061 = vadd.xlane.f32.xlu0 %v7060
    %v7062 = vpop.xlane.xlu0 %7061
    %v7065 = vlaneseq
    %v7066 = vand.u32 %v7065, 127
    %v7067 = vlaneseq
    %v7068 = vshrl.u32 %v7067, 7
    %v7069 = vsub.s32 %v7066, %v7068
    %v7070 = vrot.slane %v7059, %v7069
    %v7071 = vlaneseq
    %v7072 = vshrl.u32 %v7071, 7
    %v7073 = vsub.s32 %v7066, %v7072
    %v7074 = vrot.slane %v7062, %v7073
    %v7075 = vsel %vm365, %v7074, %v7070
    %vm7077 = vcmask 41984
    %v7078 = vsel %vm7077, %v7075, 0.0
    %7079 = vadd.xlane.f32.xlu0 %v7078
    %v7080 = vpop.xlane.xlu0 %7079
    %vm7081 = vcmask 1024
    %7082 = vst.msk [vmem:[%s3] sm:$0x3] %vm7081, %v7080
    // Predicated region
    $region18: #{tpu_custom_call.1} parent=1 // pred_check
      _
    $region19: #{tpu_custom_call.1} parent=1 // pred_check_branch
      %7084 = sbr.rel (0) target = $region21
    $region20: #{tpu_custom_call.1} parent=1 // pred_region
      _
    $region21: #{tpu_custom_call.1} parent=1 // pred_fallthru
      _
    // Predicated region
    $region22: #{tpu_custom_call.1} parent=1 // pred_check
      _
    $region23: #{tpu_custom_call.1} parent=1 // pred_check_branch
      %7086 = sbr.rel (0) target = $region25
    $region24: #{tpu_custom_call.1} parent=1 // pred_region
      _
    $region25: #{tpu_custom_call.1} parent=1 // pred_fallthru
      _
    %7087 = vsyncpa [#allocation3], 1

</llo_original>
